<compile_context>
chip_gen: v5e
topology: v5e:2x2
jax: 0.10.0
libtpu: 0.0.40
codegen_flags: <defaults>
</compile_context>

<pallas_src>
import collections
import functools
import math

import numpy as np

import jax
import jax.numpy as jnp
from jax import lax
from jax.experimental import pallas as pl
from jax.experimental.pallas import tpu as pltpu


def _round_up(x, m):
    return ((x + m - 1) // m) * m


ModuleCfg = collections.namedtuple(
    "ModuleCfg", ["head", "vis_to_qk", "ir_to_qk", "to_global_v", "sr_convs", "alpha"])


# ---------------------------------------------------------------------------
# Pallas kernel 1: conv (stride 1) via in-kernel shift-and-matmul im2col.
#   input  : flattened zero-padded NHWC slab  (1, (Hp+1)*Wp, Cin)   bf16
#   weights: per-tap (k*k, Cin, Cout)  bf16 (BN scale folded in)
#   bias   : (1, Cout) f32
#   output : (1, ho*Wp, Cout) bf16 -- rows i*Wp+j, the j >= wo columns are junk
#            (wrap-around) and are sliced off outside the kernel.
# ---------------------------------------------------------------------------
def _conv_kernel(x_ref, w_ref, b_ref, o_ref, *, k, wp, m, relu):
    cout = o_ref.shape[-1]
    acc = jnp.zeros((m, cout), jnp.float32)
    for di in range(k):
        for dj in range(k):
            shift = di * wp + dj
            sl = x_ref[0, shift:shift + m, :]                     # (m, Cin) bf16
            acc = acc + jnp.dot(sl, w_ref[di * k + dj],
                                preferred_element_type=jnp.float32)
    acc = acc + b_ref[...]                                        # folded conv-bias / BN shift
    if relu:
        acc = jnp.maximum(acc, 0.0)
    o_ref[0] = acc.astype(o_ref.dtype)


def conv_apply(x, wd, c):
    """x: (B, H, W, Cin) channels-last.  wd: {'w': (k*k,Cin,Cout) bf16, 'shift': (1,Cout) f32}.
    c: static (k, stride, pad, relu)."""
    k, s, pad, relu = c
    B, H, W, _ = x.shape
    cin, cout = wd["w"].shape[1], wd["w"].shape[2]
    hp, wp = H + 2 * pad, W + 2 * pad
    ho, wo = hp - k + 1, wp - k + 1                               # stride-1 output extent
    m = ho * wp                                                   # rows computed per image

    # +1 bottom row keeps every in-kernel flat slice in bounds for the max tap shift.
    xp = jnp.pad(x.astype(jnp.bfloat16),
                 ((0, 0), (pad, pad + 1), (pad, pad), (0, 0)))
    xf = xp.reshape(B, (hp + 1) * wp, cin)

    out = pl.pallas_call(
        functools.partial(_conv_kernel, k=k, wp=wp, m=m, relu=relu),
        out_shape=jax.ShapeDtypeStruct((B, m, cout), jnp.bfloat16),
        grid=(B,),
        in_specs=[
            pl.BlockSpec((1, (hp + 1) * wp, cin), lambda b: (b, 0, 0)),
            pl.BlockSpec((k * k, cin, cout), lambda b: (0, 0, 0)),
            pl.BlockSpec((1, cout), lambda b: (0, 0)),
        ],
        out_specs=pl.BlockSpec((1, m, cout), lambda b: (b, 0, 0)),
        compiler_params=pltpu.CompilerParams(dimension_semantics=("parallel",)),
    )(xf, wd["w"], wd["shift"])

    out = out.reshape(B, ho, wp, cout)[:, :, :wo, :]
    if s > 1:
        # stride-s conv == stride-1 conv subsampled at the stride positions.
        out = out[:, ::s, ::s, :]
    # TODO(synk): for very large feature maps, add halo row-tiling inside the kernel instead of
    # one full image per grid step (current blocks are fine for the VMEM budgets of this module).
    return out


def seq_conv(wlist, clist, x):
    for wd, c in zip(wlist, clist):
        x = conv_apply(x, wd, c)
    return x


# ---------------------------------------------------------------------------
# Pallas kernel 2: fused cross-attention.  One (sample*head, query-tile) grid step:
#   LayerNorm(q, stacked-k, gv)  ->  logits = q @ K_stacked^T * scale (one (tq, 2N) matmul)
#   -> softmax (pl.reciprocal) -> one (tq, 2N) @ (2N, D) PV matmul, for vis and ir queries.
# ---------------------------------------------------------------------------
def _attn_kernel(vq_ref, rq_ref, gk_ref, vgv_ref, rgv_ref, vo_ref, ro_ref,
                 *, scale, d_true, eps=1e-5):
    dp = vq_ref.shape[-1]
    need_mask = dp != d_true
    if need_mask:
        lmask = (lax.broadcasted_iota(jnp.int32, (1, dp), 1) < d_true).astype(jnp.float32)

    def ln(x):  # nn.LayerNorm, unit affine (the reference builds fresh LayerNorms per call)
        x = x.astype(jnp.float32)
        mu = jnp.sum(x, axis=-1, keepdims=True) * (1.0 / d_true)
        xc = x - mu
        if need_mask:
            xc = xc * lmask
        var = jnp.sum(xc * xc, axis=-1, keepdims=True) * (1.0 / d_true)
        return (xc * lax.rsqrt(var + eps)).astype(jnp.bfloat16)

    gk = ln(gk_ref[0])                                            # (2N, Dp) bf16
    dn = (((1,), (1,)), ((), ()))                                 # contract over Dp (q @ k^T)

    def one(q_ref, v_ref, o_ref):
        q = ln(q_ref[0])                                          # (tq, Dp)
        v = ln(v_ref[0])                                          # (2N, Dp)
        logits = lax.dot_general(q, gk, dn,
                                 preferred_element_type=jnp.float32) * scale
        m = jnp.max(logits, axis=-1, keepdims=True)
        p = jnp.exp(logits - m)
        denom = jnp.sum(p, axis=-1, keepdims=True)
        p = (p * pl.reciprocal(denom, approx=True)).astype(jnp.bfloat16)
        o_ref[0] = jnp.dot(p, v, preferred_element_type=jnp.float32).astype(o_ref.dtype)

    one(vq_ref, vgv_ref, vo_ref)
    one(rq_ref, rgv_ref, ro_ref)


def pallas_cross_attention(vq, rq, gk, vgv, rgv_re, scale, d_true):
    """vq/rq: (BH, N, D) queries.  gk: (BH, 2N, D) stacked [vis_k; ir_k].
    vgv: (BH, 2N, D) vis values.  rgv_re: (BH, 2N, D) ir values, reordered so that
    column-block j of the [vis_k | ir_k] logits pairs with row-block j (matches the
    reference's softmax(cat([rr, rv])) @ ir_gv)."""
    BH, N, D = vq.shape
    nk = gk.shape[1]
    dp = _round_up(D, 128)
    if dp != D:  # lane-dense feature dim; LayerNorm masks the padded lanes in-kernel
        padw = ((0, 0), (0, 0), (0, dp - D))
        vq, rq, gk, vgv, rgv_re = (jnp.pad(t, padw) for t in (vq, rq, gk, vgv, rgv_re))
    if N <= 256:
        tq, nqp = N, N
    else:  # query-tile so big token counts stay inside VMEM (keys/values stay resident per head)
        tq = 128
        nqp = _round_up(N, tq)
        qpad = ((0, 0), (0, nqp - N), (0, 0))
        vq = jnp.pad(vq, qpad)
        rq = jnp.pad(rq, qpad)

    q_spec = pl.BlockSpec((1, tq, dp), lambda i, j: (i, j, 0))
    kv_spec = pl.BlockSpec((1, nk, dp), lambda i, j: (i, 0, 0))
    vo, ro = pl.pallas_call(
        functools.partial(_attn_kernel, scale=scale, d_true=d_true),
        out_shape=(jax.ShapeDtypeStruct((BH, nqp, dp), jnp.float32),
                   jax.ShapeDtypeStruct((BH, nqp, dp), jnp.float32)),
        grid=(BH, nqp // tq),
        in_specs=[q_spec, q_spec, kv_spec, kv_spec, kv_spec],
        out_specs=(q_spec, q_spec),
        compiler_params=pltpu.CompilerParams(
            dimension_semantics=("parallel", "arbitrary")),
    )(vq, rq, gk, vgv, rgv_re)
    return vo[:, :N, :D], ro[:, :N, :D]


# ---------------------------------------------------------------------------
# Padding / einops-style rearranges (pure reshapes + transposes -> XLA glue).
# ---------------------------------------------------------------------------
def t4d_pad(x, patch_h, patch_w):
    """x: (B, H, W, C) channels-last, reflect-pad bottom/right to patch multiples."""
    H, W = x.shape[1], x.shape[2]
    nh = math.ceil(H / patch_h)
    nw = math.ceil(W / patch_w)
    # TODO(synk): reflect padding requires pad < dim (same constraint as the PyTorch reference).
    return jnp.pad(x, ((0, 0), (0, nh * patch_h - H), (0, nw * patch_w - W), (0, 0)),
                   mode="reflect")


def _qk_to_token(x, h, ph, pw, nph, npw):
    # 'b (nph ph) (npw pw) (h d) -> b h (nph npw) (d ph pw)'
    B, C = x.shape[0], x.shape[-1]
    d = C // h
    x = x.reshape(B, nph, ph, npw, pw, h, d)
    x = x.transpose(0, 5, 1, 3, 6, 2, 4)
    return x.reshape(B, h, nph * npw, d * ph * pw)


def _v_to_token(x, h, n, ph, pw, nph, npw):
    # 'b (nph ph) (npw pw) (h n d) -> b h (n nph npw) (d ph pw)'
    B, C = x.shape[0], x.shape[-1]
    d = C // (h * n)
    x = x.reshape(B, nph, ph, npw, pw, h, n, d)
    x = x.transpose(0, 5, 6, 1, 3, 7, 2, 4)
    return x.reshape(B, h, n * nph * npw, d * ph * pw)


def _to_tensor(x, h, ph, pw, nph, npw):
    # 'b h (nph npw) (d ph pw) -> b (h d) (nph ph) (npw pw)'   (NCHW out)
    B, D = x.shape[0], x.shape[-1]
    d = D // (ph * pw)
    x = x.reshape(B, h, nph, npw, d, ph, pw)
    x = x.transpose(0, 1, 4, 2, 5, 3, 6)
    return x.reshape(B, h * d, nph * ph, npw * pw)


# ---------------------------------------------------------------------------
# HWScaleRatio forward (Pallas convs + tiny XLA MLP heads).
# ---------------------------------------------------------------------------
def hw_scale_ratio_forward(sr_w, cfg, vis_nhwc, ir_nhwc):
    x = jnp.concatenate([vis_nhwc, ir_nhwc], axis=-1)
    for wd, c in zip(sr_w["convs"], cfg.sr_convs):
        x = conv_apply(x, wd, c)
    pooled = jnp.mean(x.astype(jnp.float32), axis=(1, 2))        # AdaptiveAvgPool2d + Flatten

    def mlp(mw):
        h = pooled @ mw["w1"] + mw["b1"]
        h = jax.nn.gelu(h, approximate=False)                    # nn.GELU default (exact erf)
        h = h @ mw["w2"] + mw["b2"]
        return jnp.tanh(h)

    scale = cfg.alpha * mlp(sr_w["scale_mlp"]) + 1.0
    ratio = cfg.alpha * mlp(sr_w["ratio_mlp"]) + 1.0
    return scale, ratio


_hw_scale_ratio_jit = jax.jit(hw_scale_ratio_forward, static_argnums=(1,))


# ---------------------------------------------------------------------------
# DeformCrossAttention.attention / forward.
# ---------------------------------------------------------------------------
def _attention(weights, cfg, vis_feat, ir_feat, patch_h, patch_w):
    """vis_feat/ir_feat: (B, H, W, C) channels-last; returns NCHW (B, 2*dim, Hp, Wp)."""
    head = cfg.head
    vis_pad = t4d_pad(vis_feat, patch_h, patch_w)
    ir_pad = t4d_pad(ir_feat, patch_h, patch_w)
    n_pw = vis_pad.shape[2] // patch_w
    n_ph = vis_pad.shape[1] // patch_h

    vis_qk = seq_conv(weights["vis_to_qk"], cfg.vis_to_qk, vis_pad)
    ir_qk = seq_conv(weights["ir_to_qk"], cfg.ir_to_qk, ir_pad)
    c_qk = vis_qk.shape[-1] // 2
    vq_raw, vk_raw = vis_qk[..., :c_qk], vis_qk[..., c_qk:]
    rq_raw, rk_raw = ir_qk[..., :c_qk], ir_qk[..., c_qk:]
    head_dim = (c_qk // head) * patch_h * patch_w
    scale = head_dim ** (-0.5)

    gv = seq_conv(weights["to_global_v"], cfg.to_global_v,
                  jnp.concatenate([vis_pad, ir_pad], axis=-1))
    c_gv = gv.shape[-1] // 2
    vgv_raw, rgv_raw = gv[..., :c_gv], gv[..., c_gv:]

    vq = _qk_to_token(vq_raw, head, patch_h, patch_w, n_ph, n_pw)
    vk = _qk_to_token(vk_raw, head, patch_h, patch_w, n_ph, n_pw)
    rq = _qk_to_token(rq_raw, head, patch_h, patch_w, n_ph, n_pw)
    rk = _qk_to_token(rk_raw, head, patch_h, patch_w, n_ph, n_pw)
    vgv = _v_to_token(vgv_raw, head, 2, patch_h, patch_w, n_ph, n_pw)
    rgv = _v_to_token(rgv_raw, head, 2, patch_h, patch_w, n_ph, n_pw)

    N = n_ph * n_pw
    gk = jnp.concatenate([vk, rk], axis=2)                        # stacked keys (B, h, 2N, D)
    rgv_re = jnp.concatenate([rgv[:, :, N:], rgv[:, :, :N]], axis=2)

    Bg = vq.shape[0]

    def mh(t):  # fold batch into the head (grid) axis
        return t.reshape(Bg * head, t.shape[2], t.shape[3])

    vo, ro = pallas_cross_attention(mh(vq), mh(rq), mh(gk), mh(vgv), mh(rgv_re),
                                    scale, head_dim)
    vo = vo.reshape(Bg, head, N, head_dim)
    ro = ro.reshape(Bg, head, N, head_dim)
    vis_out = _to_tensor(vo, head, patch_h, patch_w, n_ph, n_pw)
    ir_out = _to_tensor(ro, head, patch_h, patch_w, n_ph, n_pw)
    return jnp.concatenate([vis_out, ir_out], axis=1)


_attention_jit = jax.jit(_attention, static_argnums=(1, 4, 5))


def deform_cross_attention_forward(weights, cfg, vis_feat, ir_feat,
                                   patch=16, min_patch=8):
    """vis_feat/ir_feat: NCHW (B, C, H, W) like the PyTorch module."""
    B, _, H, W = vis_feat.shape
    vis_nhwc = jnp.transpose(vis_feat, (0, 2, 3, 1))
    ir_nhwc = jnp.transpose(ir_feat, (0, 2, 3, 1))

    hw_scale, hw_ratio = _hw_scale_ratio_jit(weights["sr"], cfg, vis_nhwc, ir_nhwc)
    # One host readback for the whole batch (mirrors hw_scale[i].item(); groups == 1).
    s_host, r_host = jax.device_get((hw_scale, hw_ratio))

    # Group samples that resolve to the same (patch_h, patch_w): one launch per group,
    # compile cache keyed on the static patch sizes.
    groups_map = {}
    for i in range(B):
        pw = max(int(round(float(s_host[i, 0]) * patch)), min_patch)
        ph = max(int(round(float(r_host[i, 0]) * pw)), min_patch)
        groups_map.setdefault((ph, pw), []).append(i)

    outs = [None] * B
    for (ph, pw), idxs in groups_map.items():
        sel = np.asarray(idxs)
        uf = _attention_jit(weights, cfg, vis_nhwc[sel], ir_nhwc[sel], ph, pw)
        uf = uf[:, :, :H, :W]                                     # t4d_crop
        for li, gi in enumerate(idxs):
            outs[gi] = uf[li]
    return jnp.stack(outs, axis=0)


# ---------------------------------------------------------------------------
# Deterministic parameter init (synthetic; eval-mode BatchNorm folded into weights).
# ---------------------------------------------------------------------------
def init_params(key, in_dim, dim, groups=1, head=4, expand=4, alpha=0.9):
    keys = iter(jax.random.split(key, 64))

    def conv(cin, cout, k, s, p, bn=True, relu=True):
        w = jax.random.normal(next(keys), (cout, cin, k, k), jnp.float32) * (
            0.3 / math.sqrt(cin * k * k))
        if bn:
            # eval BatchNorm with gamma=1, beta=0, running_mean=0, running_var=1
            scl = jnp.full((cout,), 1.0 / math.sqrt(1.0 + 1e-5), jnp.float32)
            sft = jnp.zeros((cout,), jnp.float32)
        else:
            scl = jnp.ones((cout,), jnp.float32)
            sft = jax.random.normal(next(keys), (cout,), jnp.float32) * 0.01  # conv bias
        # fold BN scale into the weights, lay out per-tap (k*k, Cin, Cout), cast to bf16 once.
        w_taps = (w * scl[:, None, None, None]).transpose(2, 3, 1, 0).reshape(k * k, cin, cout)
        wd = dict(w=w_taps.astype(jnp.bfloat16), shift=sft.reshape(1, cout))
        return wd, (k, s, p, bool(relu))

    def linear(cin, cout):
        w = jax.random.normal(next(keys), (cout, cin), jnp.float32) * (0.3 / math.sqrt(cin))
        b = jax.random.normal(next(keys), (cout,), jnp.float32) * 0.01
        return w.T, b                                             # pre-transposed (in, out)

    def build(specs):
        ws, cs = [], []
        for (ci, co, k, s, p, bn, r) in specs:
            wd, cc = conv(ci, co, k, s, p, bn=bn, relu=r)
            ws.append(wd)
            cs.append(cc)
        return ws, tuple(cs)

    ge = groups * expand
    vis_w, vis_c = build([(in_dim, dim, 5, 1, 2, True, True),
                          (dim, dim * 2, 5, 1, 2, True, True),
                          (dim * 2, dim * 2, 5, 1, 2, False, True),
                          (dim * 2, dim * 2, 5, 1, 2, False, False)])
    ir_w, ir_c = build([(in_dim, dim * 2, 5, 1, 2, True, True),
                        (dim * 2, dim * 2, 5, 1, 2, True, True),
                        (dim * 2, dim * 2, 5, 1, 2, False, True),
                        (dim * 2, dim * 2, 5, 1, 2, False, False)])
    gv_w, gv_c = build([(in_dim * 2, dim * 4, 5, 1, 2, True, True),
                        (dim * 4, dim * 4, 5, 1, 2, True, True),
                        (dim * 4, dim * 4, 5, 1, 2, False, True),
                        (dim * 4, dim * 4, 5, 1, 2, False, False)])
    sr_w, sr_c = build([(in_dim * 2, ge, 3, 2, 1, True, True),
                        (ge, ge, 3, 1, 1, True, True)])

    def mlp():
        w1, b1 = linear(ge, ge)
        w2, b2 = linear(ge, groups)
        return dict(w1=w1, b1=b1, w2=w2, b2=b2)

    weights = dict(
        vis_to_qk=vis_w, ir_to_qk=ir_w, to_global_v=gv_w,
        sr=dict(convs=sr_w, scale_mlp=mlp(), ratio_mlp=mlp()),
    )
    cfg = ModuleCfg(head=head, vis_to_qk=vis_c, ir_to_qk=ir_c, to_global_v=gv_c,
                    sr_convs=sr_c, alpha=float(alpha))
    return weights, cfg


if __name__ == "__main__":
    key = jax.random.PRNGKey(0)
    k_vis, k_ir, k_par = jax.random.split(key, 3)

    B, in_dim, H, W = 2, 4, 32, 32
    dim, head, groups = 8, 4, 1

    vis = jax.random.normal(k_vis, (B, in_dim, H, W), jnp.float32)
    ir = jax.random.normal(k_ir, (B, in_dim, H, W), jnp.float32)

    weights, cfg = init_params(k_par, in_dim, dim, groups=groups, head=head)

    out = deform_cross_attention_forward(weights, cfg, vis, ir)
    out = jax.block_until_ready(out)
    assert out.shape == (B, 2 * dim, H, W), out.shape
    assert bool(jnp.all(jnp.isfinite(out)))
    print("KERNEL_OK")
</pallas_src>

<mosaic_0001>
module attributes {stable_mosaic.version = 11 : i64} {
  func.func @_conv_kernel(%arg0: i32, %arg1: memref<1x1190x8xbf16, #tpu.memory_space<vmem>>, %arg2: memref<9x8x4xbf16, #tpu.memory_space<vmem>>, %arg3: memref<1x4xf32, #tpu.memory_space<vmem>>, %arg4: memref<1x1088x4xbf16, #tpu.memory_space<vmem>>) attributes {dimension_semantics = [#tpu.dimension_semantics<parallel>], iteration_bounds = array<i64: 2>, scalar_prefetch = 0 : i64, scratch_operands = 0 : i64, tpu.core_type = #tpu.core_type<tc>, window_params = [{transform_indices = @transform_0, window_bounds = array<i64: 1, 1190, 8>}, {pipeline_mode = #tpu.pipeline_mode<synchronous>, transform_indices = @transform_1, window_bounds = array<i64: 9, 8, 4>}, {pipeline_mode = #tpu.pipeline_mode<synchronous>, transform_indices = @transform_2, window_bounds = array<i64: 1, 4>}, {transform_indices = @transform_3, window_bounds = array<i64: 1, 1088, 4>}]} {
    %cst = arith.constant 0.000000e+00 : f32
    %0 = vector.broadcast %cst : f32 to vector<1088x4xf32>
    %c0 = arith.constant 0 : index
    %c0_0 = arith.constant 0 : index
    %c0_1 = arith.constant 0 : index
    %1 = vector.load %arg1[%c0, %c0_0, %c0_1] : memref<1x1190x8xbf16, #tpu.memory_space<vmem>>, vector<1x1088x8xbf16>
    %2 = vector.shape_cast %1 : vector<1x1088x8xbf16> to vector<1088x8xbf16>
    %c0_2 = arith.constant 0 : index
    %c0_3 = arith.constant 0 : index
    %c0_4 = arith.constant 0 : index
    %3 = vector.load %arg2[%c0_2, %c0_3, %c0_4] : memref<9x8x4xbf16, #tpu.memory_space<vmem>>, vector<1x8x4xbf16>
    %4 = vector.shape_cast %3 : vector<1x8x4xbf16> to vector<8x4xbf16>
    %cst_5 = arith.constant dense<0.000000e+00> : vector<1088x4xf32>
    %5 = tpu.matmul %2, %4, %cst_5 {dimension_numbers = #tpu.dot_dimension_numbers<[1], [0], [0], [1], [0, 0, 1, 1], [], []>} : vector<1088x8xbf16>, vector<8x4xbf16>, vector<1088x4xf32> -> vector<1088x4xf32>
    %6 = arith.addf %0, %5 : vector<1088x4xf32>
    %c0_6 = arith.constant 0 : index
    %c1 = arith.constant 1 : index
    %c0_7 = arith.constant 0 : index
    %7 = vector.load %arg1[%c0_6, %c1, %c0_7] : memref<1x1190x8xbf16, #tpu.memory_space<vmem>>, vector<1x1088x8xbf16>
    %8 = vector.shape_cast %7 : vector<1x1088x8xbf16> to vector<1088x8xbf16>
    %c1_8 = arith.constant 1 : index
    %c0_9 = arith.constant 0 : index
    %c0_10 = arith.constant 0 : index
    %9 = vector.load %arg2[%c1_8, %c0_9, %c0_10] : memref<9x8x4xbf16, #tpu.memory_space<vmem>>, vector<1x8x4xbf16>
    %10 = vector.shape_cast %9 : vector<1x8x4xbf16> to vector<8x4xbf16>
    %cst_11 = arith.constant dense<0.000000e+00> : vector<1088x4xf32>
    %11 = tpu.matmul %8, %10, %cst_11 {dimension_numbers = #tpu.dot_dimension_numbers<[1], [0], [0], [1], [0, 0, 1, 1], [], []>} : vector<1088x8xbf16>, vector<8x4xbf16>, vector<1088x4xf32> -> vector<1088x4xf32>
    %12 = arith.addf %6, %11 : vector<1088x4xf32>
    %c0_12 = arith.constant 0 : index
    %c2 = arith.constant 2 : index
    %c0_13 = arith.constant 0 : index
    %13 = vector.load %arg1[%c0_12, %c2, %c0_13] : memref<1x1190x8xbf16, #tpu.memory_space<vmem>>, vector<1x1088x8xbf16>
    %14 = vector.shape_cast %13 : vector<1x1088x8xbf16> to vector<1088x8xbf16>
    %c2_14 = arith.constant 2 : index
    %c0_15 = arith.constant 0 : index
    %c0_16 = arith.constant 0 : index
    %15 = vector.load %arg2[%c2_14, %c0_15, %c0_16] : memref<9x8x4xbf16, #tpu.memory_space<vmem>>, vector<1x8x4xbf16>
    %16 = vector.shape_cast %15 : vector<1x8x4xbf16> to vector<8x4xbf16>
    %cst_17 = arith.constant dense<0.000000e+00> : vector<1088x4xf32>
    %17 = tpu.matmul %14, %16, %cst_17 {dimension_numbers = #tpu.dot_dimension_numbers<[1], [0], [0], [1], [0, 0, 1, 1], [], []>} : vector<1088x8xbf16>, vector<8x4xbf16>, vector<1088x4xf32> -> vector<1088x4xf32>
    %18 = arith.addf %12, %17 : vector<1088x4xf32>
    %c0_18 = arith.constant 0 : index
    %c34 = arith.constant 34 : index
    %c0_19 = arith.constant 0 : index
    %19 = vector.load %arg1[%c0_18, %c34, %c0_19] : memref<1x1190x8xbf16, #tpu.memory_space<vmem>>, vector<1x1088x8xbf16>
    %20 = vector.shape_cast %19 : vector<1x1088x8xbf16> to vector<1088x8xbf16>
    %c3 = arith.constant 3 : index
    %c0_20 = arith.constant 0 : index
    %c0_21 = arith.constant 0 : index
    %21 = vector.load %arg2[%c3, %c0_20, %c0_21] : memref<9x8x4xbf16, #tpu.memory_space<vmem>>, vector<1x8x4xbf16>
    %22 = vector.shape_cast %21 : vector<1x8x4xbf16> to vector<8x4xbf16>
    %cst_22 = arith.constant dense<0.000000e+00> : vector<1088x4xf32>
    %23 = tpu.matmul %20, %22, %cst_22 {dimension_numbers = #tpu.dot_dimension_numbers<[1], [0], [0], [1], [0, 0, 1, 1], [], []>} : vector<1088x8xbf16>, vector<8x4xbf16>, vector<1088x4xf32> -> vector<1088x4xf32>
    %24 = arith.addf %18, %23 : vector<1088x4xf32>
    %c0_23 = arith.constant 0 : index
    %c35 = arith.constant 35 : index
    %c0_24 = arith.constant 0 : index
    %25 = vector.load %arg1[%c0_23, %c35, %c0_24] : memref<1x1190x8xbf16, #tpu.memory_space<vmem>>, vector<1x1088x8xbf16>
    %26 = vector.shape_cast %25 : vector<1x1088x8xbf16> to vector<1088x8xbf16>
    %c4 = arith.constant 4 : index
    %c0_25 = arith.constant 0 : index
    %c0_26 = arith.constant 0 : index
    %27 = vector.load %arg2[%c4, %c0_25, %c0_26] : memref<9x8x4xbf16, #tpu.memory_space<vmem>>, vector<1x8x4xbf16>
    %28 = vector.shape_cast %27 : vector<1x8x4xbf16> to vector<8x4xbf16>
    %cst_27 = arith.constant dense<0.000000e+00> : vector<1088x4xf32>
    %29 = tpu.matmul %26, %28, %cst_27 {dimension_numbers = #tpu.dot_dimension_numbers<[1], [0], [0], [1], [0, 0, 1, 1], [], []>} : vector<1088x8xbf16>, vector<8x4xbf16>, vector<1088x4xf32> -> vector<1088x4xf32>
    %30 = arith.addf %24, %29 : vector<1088x4xf32>
    %c0_28 = arith.constant 0 : index
    %c36 = arith.constant 36 : index
    %c0_29 = arith.constant 0 : index
    %31 = vector.load %arg1[%c0_28, %c36, %c0_29] : memref<1x1190x8xbf16, #tpu.memory_space<vmem>>, vector<1x1088x8xbf16>
    %32 = vector.shape_cast %31 : vector<1x1088x8xbf16> to vector<1088x8xbf16>
    %c5 = arith.constant 5 : index
    %c0_30 = arith.constant 0 : index
    %c0_31 = arith.constant 0 : index
    %33 = vector.load %arg2[%c5, %c0_30, %c0_31] : memref<9x8x4xbf16, #tpu.memory_space<vmem>>, vector<1x8x4xbf16>
    %34 = vector.shape_cast %33 : vector<1x8x4xbf16> to vector<8x4xbf16>
    %cst_32 = arith.constant dense<0.000000e+00> : vector<1088x4xf32>
    %35 = tpu.matmul %32, %34, %cst_32 {dimension_numbers = #tpu.dot_dimension_numbers<[1], [0], [0], [1], [0, 0, 1, 1], [], []>} : vector<1088x8xbf16>, vector<8x4xbf16>, vector<1088x4xf32> -> vector<1088x4xf32>
    %36 = arith.addf %30, %35 : vector<1088x4xf32>
    %c0_33 = arith.constant 0 : index
    %c68 = arith.constant 68 : index
    %c0_34 = arith.constant 0 : index
    %37 = vector.load %arg1[%c0_33, %c68, %c0_34] : memref<1x1190x8xbf16, #tpu.memory_space<vmem>>, vector<1x1088x8xbf16>
    %38 = vector.shape_cast %37 : vector<1x1088x8xbf16> to vector<1088x8xbf16>
    %c6 = arith.constant 6 : index
    %c0_35 = arith.constant 0 : index
    %c0_36 = arith.constant 0 : index
    %39 = vector.load %arg2[%c6, %c0_35, %c0_36] : memref<9x8x4xbf16, #tpu.memory_space<vmem>>, vector<1x8x4xbf16>
    %40 = vector.shape_cast %39 : vector<1x8x4xbf16> to vector<8x4xbf16>
    %cst_37 = arith.constant dense<0.000000e+00> : vector<1088x4xf32>
    %41 = tpu.matmul %38, %40, %cst_37 {dimension_numbers = #tpu.dot_dimension_numbers<[1], [0], [0], [1], [0, 0, 1, 1], [], []>} : vector<1088x8xbf16>, vector<8x4xbf16>, vector<1088x4xf32> -> vector<1088x4xf32>
    %42 = arith.addf %36, %41 : vector<1088x4xf32>
    %c0_38 = arith.constant 0 : index
    %c69 = arith.constant 69 : index
    %c0_39 = arith.constant 0 : index
    %43 = vector.load %arg1[%c0_38, %c69, %c0_39] : memref<1x1190x8xbf16, #tpu.memory_space<vmem>>, vector<1x1088x8xbf16>
    %44 = vector.shape_cast %43 : vector<1x1088x8xbf16> to vector<1088x8xbf16>
    %c7 = arith.constant 7 : index
    %c0_40 = arith.constant 0 : index
    %c0_41 = arith.constant 0 : index
    %45 = vector.load %arg2[%c7, %c0_40, %c0_41] : memref<9x8x4xbf16, #tpu.memory_space<vmem>>, vector<1x8x4xbf16>
    %46 = vector.shape_cast %45 : vector<1x8x4xbf16> to vector<8x4xbf16>
    %cst_42 = arith.constant dense<0.000000e+00> : vector<1088x4xf32>
    %47 = tpu.matmul %44, %46, %cst_42 {dimension_numbers = #tpu.dot_dimension_numbers<[1], [0], [0], [1], [0, 0, 1, 1], [], []>} : vector<1088x8xbf16>, vector<8x4xbf16>, vector<1088x4xf32> -> vector<1088x4xf32>
    %48 = arith.addf %42, %47 : vector<1088x4xf32>
    %c0_43 = arith.constant 0 : index
    %c70 = arith.constant 70 : index
    %c0_44 = arith.constant 0 : index
    %49 = vector.load %arg1[%c0_43, %c70, %c0_44] : memref<1x1190x8xbf16, #tpu.memory_space<vmem>>, vector<1x1088x8xbf16>
    %50 = vector.shape_cast %49 : vector<1x1088x8xbf16> to vector<1088x8xbf16>
    %c8 = arith.constant 8 : index
    %c0_45 = arith.constant 0 : index
    %c0_46 = arith.constant 0 : index
    %51 = vector.load %arg2[%c8, %c0_45, %c0_46] : memref<9x8x4xbf16, #tpu.memory_space<vmem>>, vector<1x8x4xbf16>
    %52 = vector.shape_cast %51 : vector<1x8x4xbf16> to vector<8x4xbf16>
    %cst_47 = arith.constant dense<0.000000e+00> : vector<1088x4xf32>
    %53 = tpu.matmul %50, %52, %cst_47 {dimension_numbers = #tpu.dot_dimension_numbers<[1], [0], [0], [1], [0, 0, 1, 1], [], []>} : vector<1088x8xbf16>, vector<8x4xbf16>, vector<1088x4xf32> -> vector<1088x4xf32>
    %54 = arith.addf %48, %53 : vector<1088x4xf32>
    %c0_48 = arith.constant 0 : index
    %c0_49 = arith.constant 0 : index
    %55 = vector.load %arg3[%c0_48, %c0_49] : memref<1x4xf32, #tpu.memory_space<vmem>>, vector<1x4xf32>
    %56 = vector.broadcast %55 : vector<1x4xf32> to vector<1088x4xf32>
    %57 = arith.addf %54, %56 : vector<1088x4xf32>
    %cst_50 = arith.constant 0.000000e+00 : f32
    %58 = vector.broadcast %cst_50 : f32 to vector<1088x4xf32>
    %59 = arith.maximumf %57, %58 : vector<1088x4xf32>
    %60 = arith.truncf %59 : vector<1088x4xf32> to vector<1088x4xbf16>
    %c0_51 = arith.constant 0 : index
    %c0_52 = arith.constant 0 : index
    %c0_53 = arith.constant 0 : index
    %61 = vector.load %arg4[%c0_51, %c0_52, %c0_53] : memref<1x1088x4xbf16, #tpu.memory_space<vmem>>, vector<1x1088x4xbf16>
    %62 = vector.shape_cast %61 : vector<1x1088x4xbf16> to vector<1088x4xbf16>
    %63 = vector.shape_cast %60 : vector<1088x4xbf16> to vector<1x1088x4xbf16>
    tpu.vector_store %arg4[%c0_51, %c0_52, %c0_53], %63 {strides = array<i32>} : memref<1x1088x4xbf16, #tpu.memory_space<vmem>>, vector<1x1088x4xbf16>,
    return
  }
  func.func @transform_0(%arg0: i32) -> (i32, i32, i32) {
    %c0_i32 = arith.constant 0 : i32
    %c0_i32_0 = arith.constant 0 : i32
    %c0_i32_1 = arith.constant 0 : i32
    return %arg0, %c0_i32, %c0_i32_0 : i32, i32, i32
  }
  func.func @transform_1(%arg0: i32) -> (i32, i32, i32) {
    %c0_i32 = arith.constant 0 : i32
    %c0_i32_0 = arith.constant 0 : i32
    %c0_i32_1 = arith.constant 0 : i32
    %c0_i32_2 = arith.constant 0 : i32
    return %c0_i32, %c0_i32_0, %c0_i32_1 : i32, i32, i32
  }
  func.func @transform_2(%arg0: i32) -> (i32, i32) {
    %c0_i32 = arith.constant 0 : i32
    %c0_i32_0 = arith.constant 0 : i32
    %c0_i32_1 = arith.constant 0 : i32
    return %c0_i32, %c0_i32_0 : i32, i32
  }
  func.func @transform_3(%arg0: i32) -> (i32, i32, i32) {
    %c0_i32 = arith.constant 0 : i32
    %c0_i32_0 = arith.constant 0 : i32
    %c0_i32_1 = arith.constant 0 : i32
    return %arg0, %c0_i32, %c0_i32_0 : i32, i32, i32
  }
}

module attributes {stable_mosaic.version = 11 : i64} {
  func.func @_conv_kernel(%arg0: i32, %arg1: memref<1x342x4xbf16, #tpu.memory_space<vmem>>, %arg2: memref<9x4x4xbf16, #tpu.memory_space<vmem>>, %arg3: memref<1x4xf32, #tpu.memory_space<vmem>>, %arg4: memref<1x288x4xbf16, #tpu.memory_space<vmem>>) attributes {dimension_semantics = [#tpu.dimension_semantics<parallel>], iteration_bounds = array<i64: 2>, scalar_prefetch = 0 : i64, scratch_operands = 0 : i64, tpu.core_type = #tpu.core_type<tc>, window_params = [{transform_indices = @transform_0, window_bounds = array<i64: 1, 342, 4>}, {pipeline_mode = #tpu.pipeline_mode<synchronous>, transform_indices = @transform_1, window_bounds = array<i64: 9, 4, 4>}, {pipeline_mode = #tpu.pipeline_mode<synchronous>, transform_indices = @transform_2, window_bounds = array<i64: 1, 4>}, {transform_indices = @transform_3, window_bounds = array<i64: 1, 288, 4>}]} {
    %cst = arith.constant 0.000000e+00 : f32
    %0 = vector.broadcast %cst : f32 to vector<288x4xf32>
    %c0 = arith.constant 0 : index
    %c0_0 = arith.constant 0 : index
    %c0_1 = arith.constant 0 : index
    %1 = vector.load %arg1[%c0, %c0_0, %c0_1] : memref<1x342x4xbf16, #tpu.memory_space<vmem>>, vector<1x288x4xbf16>
    %2 = vector.shape_cast %1 : vector<1x288x4xbf16> to vector<288x4xbf16>
    %c0_2 = arith.constant 0 : index
    %c0_3 = arith.constant 0 : index
    %c0_4 = arith.constant 0 : index
    %3 = vector.load %arg2[%c0_2, %c0_3, %c0_4] : memref<9x4x4xbf16, #tpu.memory_space<vmem>>, vector<1x4x4xbf16>
    %4 = vector.shape_cast %3 : vector<1x4x4xbf16> to vector<4x4xbf16>
    %cst_5 = arith.constant dense<0.000000e+00> : vector<288x4xf32>
    %5 = tpu.matmul %2, %4, %cst_5 {dimension_numbers = #tpu.dot_dimension_numbers<[1], [0], [0], [1], [0, 0, 1, 1], [], []>} : vector<288x4xbf16>, vector<4x4xbf16>, vector<288x4xf32> -> vector<288x4xf32>
    %6 = arith.addf %0, %5 : vector<288x4xf32>
    %c0_6 = arith.constant 0 : index
    %c1 = arith.constant 1 : index
    %c0_7 = arith.constant 0 : index
    %7 = vector.load %arg1[%c0_6, %c1, %c0_7] : memref<1x342x4xbf16, #tpu.memory_space<vmem>>, vector<1x288x4xbf16>
    %8 = vector.shape_cast %7 : vector<1x288x4xbf16> to vector<288x4xbf16>
    %c1_8 = arith.constant 1 : index
    %c0_9 = arith.constant 0 : index
    %c0_10 = arith.constant 0 : index
    %9 = vector.load %arg2[%c1_8, %c0_9, %c0_10] : memref<9x4x4xbf16, #tpu.memory_space<vmem>>, vector<1x4x4xbf16>
    %10 = vector.shape_cast %9 : vector<1x4x4xbf16> to vector<4x4xbf16>
    %cst_11 = arith.constant dense<0.000000e+00> : vector<288x4xf32>
    %11 = tpu.matmul %8, %10, %cst_11 {dimension_numbers = #tpu.dot_dimension_numbers<[1], [0], [0], [1], [0, 0, 1, 1], [], []>} : vector<288x4xbf16>, vector<4x4xbf16>, vector<288x4xf32> -> vector<288x4xf32>
    %12 = arith.addf %6, %11 : vector<288x4xf32>
    %c0_12 = arith.constant 0 : index
    %c2 = arith.constant 2 : index
    %c0_13 = arith.constant 0 : index
    %13 = vector.load %arg1[%c0_12, %c2, %c0_13] : memref<1x342x4xbf16, #tpu.memory_space<vmem>>, vector<1x288x4xbf16>
    %14 = vector.shape_cast %13 : vector<1x288x4xbf16> to vector<288x4xbf16>
    %c2_14 = arith.constant 2 : index
    %c0_15 = arith.constant 0 : index
    %c0_16 = arith.constant 0 : index
    %15 = vector.load %arg2[%c2_14, %c0_15, %c0_16] : memref<9x4x4xbf16, #tpu.memory_space<vmem>>, vector<1x4x4xbf16>
    %16 = vector.shape_cast %15 : vector<1x4x4xbf16> to vector<4x4xbf16>
    %cst_17 = arith.constant dense<0.000000e+00> : vector<288x4xf32>
    %17 = tpu.matmul %14, %16, %cst_17 {dimension_numbers = #tpu.dot_dimension_numbers<[1], [0], [0], [1], [0, 0, 1, 1], [], []>} : vector<288x4xbf16>, vector<4x4xbf16>, vector<288x4xf32> -> vector<288x4xf32>
    %18 = arith.addf %12, %17 : vector<288x4xf32>
    %c0_18 = arith.constant 0 : index
    %c18 = arith.constant 18 : index
    %c0_19 = arith.constant 0 : index
    %19 = vector.load %arg1[%c0_18, %c18, %c0_19] : memref<1x342x4xbf16, #tpu.memory_space<vmem>>, vector<1x288x4xbf16>
    %20 = vector.shape_cast %19 : vector<1x288x4xbf16> to vector<288x4xbf16>
    %c3 = arith.constant 3 : index
    %c0_20 = arith.constant 0 : index
    %c0_21 = arith.constant 0 : index
    %21 = vector.load %arg2[%c3, %c0_20, %c0_21] : memref<9x4x4xbf16, #tpu.memory_space<vmem>>, vector<1x4x4xbf16>
    %22 = vector.shape_cast %21 : vector<1x4x4xbf16> to vector<4x4xbf16>
    %cst_22 = arith.constant dense<0.000000e+00> : vector<288x4xf32>
    %23 = tpu.matmul %20, %22, %cst_22 {dimension_numbers = #tpu.dot_dimension_numbers<[1], [0], [0], [1], [0, 0, 1, 1], [], []>} : vector<288x4xbf16>, vector<4x4xbf16>, vector<288x4xf32> -> vector<288x4xf32>
    %24 = arith.addf %18, %23 : vector<288x4xf32>
    %c0_23 = arith.constant 0 : index
    %c19 = arith.constant 19 : index
    %c0_24 = arith.constant 0 : index
    %25 = vector.load %arg1[%c0_23, %c19, %c0_24] : memref<1x342x4xbf16, #tpu.memory_space<vmem>>, vector<1x288x4xbf16>
    %26 = vector.shape_cast %25 : vector<1x288x4xbf16> to vector<288x4xbf16>
    %c4 = arith.constant 4 : index
    %c0_25 = arith.constant 0 : index
    %c0_26 = arith.constant 0 : index
    %27 = vector.load %arg2[%c4, %c0_25, %c0_26] : memref<9x4x4xbf16, #tpu.memory_space<vmem>>, vector<1x4x4xbf16>
    %28 = vector.shape_cast %27 : vector<1x4x4xbf16> to vector<4x4xbf16>
    %cst_27 = arith.constant dense<0.000000e+00> : vector<288x4xf32>
    %29 = tpu.matmul %26, %28, %cst_27 {dimension_numbers = #tpu.dot_dimension_numbers<[1], [0], [0], [1], [0, 0, 1, 1], [], []>} : vector<288x4xbf16>, vector<4x4xbf16>, vector<288x4xf32> -> vector<288x4xf32>
    %30 = arith.addf %24, %29 : vector<288x4xf32>
    %c0_28 = arith.constant 0 : index
    %c20 = arith.constant 20 : index
    %c0_29 = arith.constant 0 : index
    %31 = vector.load %arg1[%c0_28, %c20, %c0_29] : memref<1x342x4xbf16, #tpu.memory_space<vmem>>, vector<1x288x4xbf16>
    %32 = vector.shape_cast %31 : vector<1x288x4xbf16> to vector<288x4xbf16>
    %c5 = arith.constant 5 : index
    %c0_30 = arith.constant 0 : index
    %c0_31 = arith.constant 0 : index
    %33 = vector.load %arg2[%c5, %c0_30, %c0_31] : memref<9x4x4xbf16, #tpu.memory_space<vmem>>, vector<1x4x4xbf16>
    %34 = vector.shape_cast %33 : vector<1x4x4xbf16> to vector<4x4xbf16>
    %cst_32 = arith.constant dense<0.000000e+00> : vector<288x4xf32>
    %35 = tpu.matmul %32, %34, %cst_32 {dimension_numbers = #tpu.dot_dimension_numbers<[1], [0], [0], [1], [0, 0, 1, 1], [], []>} : vector<288x4xbf16>, vector<4x4xbf16>, vector<288x4xf32> -> vector<288x4xf32>
    %36 = arith.addf %30, %35 : vector<288x4xf32>
    %c0_33 = arith.constant 0 : index
    %c36 = arith.constant 36 : index
    %c0_34 = arith.constant 0 : index
    %37 = vector.load %arg1[%c0_33, %c36, %c0_34] : memref<1x342x4xbf16, #tpu.memory_space<vmem>>, vector<1x288x4xbf16>
    %38 = vector.shape_cast %37 : vector<1x288x4xbf16> to vector<288x4xbf16>
    %c6 = arith.constant 6 : index
    %c0_35 = arith.constant 0 : index
    %c0_36 = arith.constant 0 : index
    %39 = vector.load %arg2[%c6, %c0_35, %c0_36] : memref<9x4x4xbf16, #tpu.memory_space<vmem>>, vector<1x4x4xbf16>
    %40 = vector.shape_cast %39 : vector<1x4x4xbf16> to vector<4x4xbf16>
    %cst_37 = arith.constant dense<0.000000e+00> : vector<288x4xf32>
    %41 = tpu.matmul %38, %40, %cst_37 {dimension_numbers = #tpu.dot_dimension_numbers<[1], [0], [0], [1], [0, 0, 1, 1], [], []>} : vector<288x4xbf16>, vector<4x4xbf16>, vector<288x4xf32> -> vector<288x4xf32>
    %42 = arith.addf %36, %41 : vector<288x4xf32>
    %c0_38 = arith.constant 0 : index
    %c37 = arith.constant 37 : index
    %c0_39 = arith.constant 0 : index
    %43 = vector.load %arg1[%c0_38, %c37, %c0_39] : memref<1x342x4xbf16, #tpu.memory_space<vmem>>, vector<1x288x4xbf16>
    %44 = vector.shape_cast %43 : vector<1x288x4xbf16> to vector<288x4xbf16>
    %c7 = arith.constant 7 : index
    %c0_40 = arith.constant 0 : index
    %c0_41 = arith.constant 0 : index
    %45 = vector.load %arg2[%c7, %c0_40, %c0_41] : memref<9x4x4xbf16, #tpu.memory_space<vmem>>, vector<1x4x4xbf16>
    %46 = vector.shape_cast %45 : vector<1x4x4xbf16> to vector<4x4xbf16>
    %cst_42 = arith.constant dense<0.000000e+00> : vector<288x4xf32>
    %47 = tpu.matmul %44, %46, %cst_42 {dimension_numbers = #tpu.dot_dimension_numbers<[1], [0], [0], [1], [0, 0, 1, 1], [], []>} : vector<288x4xbf16>, vector<4x4xbf16>, vector<288x4xf32> -> vector<288x4xf32>
    %48 = arith.addf %42, %47 : vector<288x4xf32>
    %c0_43 = arith.constant 0 : index
    %c38 = arith.constant 38 : index
    %c0_44 = arith.constant 0 : index
    %49 = vector.load %arg1[%c0_43, %c38, %c0_44] : memref<1x342x4xbf16, #tpu.memory_space<vmem>>, vector<1x288x4xbf16>
    %50 = vector.shape_cast %49 : vector<1x288x4xbf16> to vector<288x4xbf16>
    %c8 = arith.constant 8 : index
    %c0_45 = arith.constant 0 : index
    %c0_46 = arith.constant 0 : index
    %51 = vector.load %arg2[%c8, %c0_45, %c0_46] : memref<9x4x4xbf16, #tpu.memory_space<vmem>>, vector<1x4x4xbf16>
    %52 = vector.shape_cast %51 : vector<1x4x4xbf16> to vector<4x4xbf16>
    %cst_47 = arith.constant dense<0.000000e+00> : vector<288x4xf32>
    %53 = tpu.matmul %50, %52, %cst_47 {dimension_numbers = #tpu.dot_dimension_numbers<[1], [0], [0], [1], [0, 0, 1, 1], [], []>} : vector<288x4xbf16>, vector<4x4xbf16>, vector<288x4xf32> -> vector<288x4xf32>
    %54 = arith.addf %48, %53 : vector<288x4xf32>
    %c0_48 = arith.constant 0 : index
    %c0_49 = arith.constant 0 : index
    %55 = vector.load %arg3[%c0_48, %c0_49] : memref<1x4xf32, #tpu.memory_space<vmem>>, vector<1x4xf32>
    %56 = vector.broadcast %55 : vector<1x4xf32> to vector<288x4xf32>
    %57 = arith.addf %54, %56 : vector<288x4xf32>
    %cst_50 = arith.constant 0.000000e+00 : f32
    %58 = vector.broadcast %cst_50 : f32 to vector<288x4xf32>
    %59 = arith.maximumf %57, %58 : vector<288x4xf32>
    %60 = arith.truncf %59 : vector<288x4xf32> to vector<288x4xbf16>
    %c0_51 = arith.constant 0 : index
    %c0_52 = arith.constant 0 : index
    %c0_53 = arith.constant 0 : index
    %61 = vector.load %arg4[%c0_51, %c0_52, %c0_53] : memref<1x288x4xbf16, #tpu.memory_space<vmem>>, vector<1x288x4xbf16>
    %62 = vector.shape_cast %61 : vector<1x288x4xbf16> to vector<288x4xbf16>
    %63 = vector.shape_cast %60 : vector<288x4xbf16> to vector<1x288x4xbf16>
    tpu.vector_store %arg4[%c0_51, %c0_52, %c0_53], %63 {strides = array<i32>} : memref<1x288x4xbf16, #tpu.memory_space<vmem>>, vector<1x288x4xbf16>,
    return
  }
  func.func @transform_0(%arg0: i32) -> (i32, i32, i32) {
    %c0_i32 = arith.constant 0 : i32
    %c0_i32_0 = arith.constant 0 : i32
    %c0_i32_1 = arith.constant 0 : i32
    return %arg0, %c0_i32, %c0_i32_0 : i32, i32, i32
  }
  func.func @transform_1(%arg0: i32) -> (i32, i32, i32) {
    %c0_i32 = arith.constant 0 : i32
    %c0_i32_0 = arith.constant 0 : i32
    %c0_i32_1 = arith.constant 0 : i32
    %c0_i32_2 = arith.constant 0 : i32
    return %c0_i32, %c0_i32_0, %c0_i32_1 : i32, i32, i32
  }
  func.func @transform_2(%arg0: i32) -> (i32, i32) {
    %c0_i32 = arith.constant 0 : i32
    %c0_i32_0 = arith.constant 0 : i32
    %c0_i32_1 = arith.constant 0 : i32
    return %c0_i32, %c0_i32_0 : i32, i32
  }
  func.func @transform_3(%arg0: i32) -> (i32, i32, i32) {
    %c0_i32 = arith.constant 0 : i32
    %c0_i32_0 = arith.constant 0 : i32
    %c0_i32_1 = arith.constant 0 : i32
    return %arg0, %c0_i32, %c0_i32_0 : i32, i32, i32
  }
}

</mosaic_0001>

<llo_original>
// kernel: hw_scale_ratio_forward.3
$region0: #{hw_scale_ratio_forward.3}
  #allocation0 [shape = 'u32[]', space=smem, size = 0x4, offset = 0x4, fixed_abs, tag = 'smem constant byte address 0x4 - core index']
  #allocation1 [shape = 'u32[72,128]{1,0:T(1,128)}', space=vmem, size = 0x9000, scoped, tag = 'internal scratch']
  %s0 = inlined_call_operand.vmem [shape: bf16[2,342,4], index: 0, kind: input, shape index: {}]
  %s1 = inlined_call_operand.vmem [shape: bf16[9,4,4], index: 1, kind: input, shape index: {}]
  %s2 = inlined_call_operand.vmem [shape: f32[1,4], index: 2, kind: input, shape index: {}]
  %s3 = inlined_call_operand.vmem [shape: bf16[2,288,4], index: 3, kind: output, shape index: {}]
  %s4 = sld [smem:[#allocation0]]
  $region45: #{hw_scale_ratio_forward.3} parent=0
    _
  %s6 = ssub.s32 1, %s4
  %s7 = scalar_select 0, %s6, %s4
  loop: start=0, step=1, limit=4
  $region2: #{hw_scale_ratio_forward.3} parent=0 // loop_pre_header
    _
  $region3: #{hw_scale_ratio_forward.3} parent=0 // loop_header
    %s9 = sphi 0, %s13
    %p10 = scmp.ge.s32.totalorder %s9, 4
    %s19 = sphi 0, %s21
    %s22 = sphi 0, %s19
    %s23 = sphi 0, %s22
    %s39 = sphi 0, %s23
    %s43 = sphi 0, %s43
    %s45 = sphi 0, %s43
    %s46 = sphi 0, %s45
    %s60 = sphi 0, %s46
    %s64 = sphi 0, %s64
    %s66 = sphi 0, %s64
    %s67 = sphi 0, %s66
    %s81 = sphi 0, %s67
    %s87 = sphi 0, %s89
    %s90 = sphi 0, %s87
    %s91 = sphi 0, %s90
    %s107 = sphi 0, %s91
  $region4: #{hw_scale_ratio_forward.3} parent=0 // loop_header_branch
    %12 = sbr.rel (%p10) target = $region8
  $region5: #{hw_scale_ratio_forward.3} parent=0 // loop_body
    %s14 = ssub.s32 %s9, 1
    %s15 = ssub.s32 %s9, 2
    %s16 = sadd.s32 %s9, 1
    %s17 = ssub.s32 %s9, %s16
    %p18 = scmp.eq.s32.totalorder %s17, 0
    %s20 = sadd.s32 %s19, 1
    %s21 = scalar_select %p18, %s19, %s20
    %p24 = pneg %p18
    %p25 = scmp.eq.s32.totalorder %s9, 1
    %p26 = por %p24, %p25
    %p27 = scmp.ne.s32.totalorder %s19, %s22
    %p28 = scmp.eq.s32.totalorder %s9, 0
    %p29 = por %p27, %p28
    %p30 = scmp.ne.s32.totalorder %s19, %s22
    %p31 = scmp.eq.s32.totalorder %s14, 1
    %p32 = por %p30, %p31
    %p33 = scmp.ne.s32.totalorder %s22, %s23
    %p34 = scmp.eq.s32.totalorder %s14, 0
    %p35 = por %p33, %p34
    %p36 = scmp.ne.s32.totalorder %s22, %s23
    %p37 = scmp.eq.s32.totalorder %s15, 1
    %p38 = por %p36, %p37
    %p40 = scmp.ne.s32.totalorder %s23, %s39
    %p41 = scmp.eq.s32.totalorder %s15, 0
    %p42 = por %p40, %p41
    %s44 = sadd.s32 %s43, 1
    %p47 = scmp.eq.s32.totalorder %s9, 1
    %p48 = scmp.ne.s32.totalorder %s43, %s45
    %p49 = scmp.eq.s32.totalorder %s9, 0
    %p50 = por %p48, %p49
    %p51 = scmp.ne.s32.totalorder %s43, %s45
    %p52 = scmp.eq.s32.totalorder %s14, 1
    %p53 = por %p51, %p52
    %p54 = scmp.ne.s32.totalorder %s45, %s46
    %p55 = scmp.eq.s32.totalorder %s14, 0
    %p56 = por %p54, %p55
    %p57 = scmp.ne.s32.totalorder %s45, %s46
    %p58 = scmp.eq.s32.totalorder %s15, 1
    %p59 = por %p57, %p58
    %p61 = scmp.ne.s32.totalorder %s46, %s60
    %p62 = scmp.eq.s32.totalorder %s15, 0
    %p63 = por %p61, %p62
    %s65 = sadd.s32 %s64, 1
    %p68 = scmp.eq.s32.totalorder %s9, 1
    %p69 = scmp.ne.s32.totalorder %s64, %s66
    %p70 = scmp.eq.s32.totalorder %s9, 0
    %p71 = por %p69, %p70
    %p72 = scmp.ne.s32.totalorder %s64, %s66
    %p73 = scmp.eq.s32.totalorder %s14, 1
    %p74 = por %p72, %p73
    %p75 = scmp.ne.s32.totalorder %s66, %s67
    %p76 = scmp.eq.s32.totalorder %s14, 0
    %p77 = por %p75, %p76
    %p78 = scmp.ne.s32.totalorder %s66, %s67
    %p79 = scmp.eq.s32.totalorder %s15, 1
    %p80 = por %p78, %p79
    %p82 = scmp.ne.s32.totalorder %s67, %s81
    %p83 = scmp.eq.s32.totalorder %s15, 0
    %p84 = por %p82, %p83
    %s85 = ssub.s32 %s9, %s16
    %p86 = scmp.eq.s32.totalorder %s85, 0
    %s88 = sadd.s32 %s87, 1
    %s89 = scalar_select %p86, %s87, %s88
    %p92 = pneg %p86
    %p93 = scmp.eq.s32.totalorder %s9, 1
    %p94 = por %p92, %p93
    %p95 = scmp.ne.s32.totalorder %s87, %s90
    %p96 = scmp.eq.s32.totalorder %s9, 0
    %p97 = por %p95, %p96
    %p98 = scmp.ne.s32.totalorder %s87, %s90
    %p99 = scmp.eq.s32.totalorder %s14, 1
    %p100 = por %p98, %p99
    %p101 = scmp.ne.s32.totalorder %s90, %s91
    %p102 = scmp.eq.s32.totalorder %s14, 0
    %p103 = por %p101, %p102
    %p104 = scmp.ne.s32.totalorder %s90, %s91
    %p105 = scmp.eq.s32.totalorder %s15, 1
    %p106 = por %p104, %p105
    %p108 = scmp.ne.s32.totalorder %s91, %s107
    %p109 = scmp.eq.s32.totalorder %s15, 0
    %p110 = por %p108, %p109
    %p111 = scmp.le.s32.totalorder 1, %s9
    %p112 = scmp.lt.s32.totalorder %s9, 3
    %p113 = pnand %p111, %p112
    %p114 = pneg %p113
    // Predicated region
    $region9: #{hw_scale_ratio_forward.3} parent=5 // pred_check
      _
    $region10: #{hw_scale_ratio_forward.3} parent=5 // pred_check_branch
      %116 = sbr.rel (%p113) target = $region12
    $region11: #{hw_scale_ratio_forward.3} parent=5 // pred_region
      %s117 = ssub.s32 %s9, 1
      // Predicated region
      $region13: #{hw_scale_ratio_forward.3} parent=11 // pred_check
        %p118 = pneg %p56
      $region14: #{hw_scale_ratio_forward.3} parent=11 // pred_check_branch
        %120 = sbr.rel (%p118) target = $region16
      $region15: #{hw_scale_ratio_forward.3} parent=11 // pred_region
        _
      $region16: #{hw_scale_ratio_forward.3} parent=11 // pred_fallthru
        _
      // Predicated region
      $region17: #{hw_scale_ratio_forward.3} parent=11 // pred_check
        %p121 = pneg %p77
      $region18: #{hw_scale_ratio_forward.3} parent=11 // pred_check_branch
        %123 = sbr.rel (%p121) target = $region20
      $region19: #{hw_scale_ratio_forward.3} parent=11 // pred_region
        _
      $region20: #{hw_scale_ratio_forward.3} parent=11 // pred_fallthru
        _
    $region12: #{hw_scale_ratio_forward.3} parent=5 // pred_fallthru
      _
    %p124 = scmp.lt.s32.totalorder %s9, 2
    // Predicated region
    $region21: #{hw_scale_ratio_forward.3} parent=5 // pred_check
      %p125 = pneg %p124
    $region22: #{hw_scale_ratio_forward.3} parent=5 // pred_check_branch
      %127 = sbr.rel (%p125) target = $region24
    $region23: #{hw_scale_ratio_forward.3} parent=5 // pred_region
      // Predicated region
      $region25: #{hw_scale_ratio_forward.3} parent=23 // pred_check
        %p128 = pneg %p29
      $region26: #{hw_scale_ratio_forward.3} parent=23 // pred_check_branch
        %130 = sbr.rel (%p128) target = $region28
      $region27: #{hw_scale_ratio_forward.3} parent=23 // pred_region
        %p131 = scmp.lt.s32.totalorder %s9, 1
        %s132 = scalar_select %p131, %s9, 1
        %s133 = smul.addr %s132, 43
        %s134 = smul.addr %s133, 4
        %s135 = scalar_lea.vmem %s0, %s134
      $region28: #{hw_scale_ratio_forward.3} parent=23 // pred_fallthru
        _
    $region24: #{hw_scale_ratio_forward.3} parent=5 // pred_fallthru
      _
    %p136 = scmp.le.s32.totalorder 1, %s9
    %p137 = scmp.lt.s32.totalorder %s9, 3
    %p138 = pnand %p136, %p137
    %p139 = pneg %p138
    // Predicated region
    $region29: #{hw_scale_ratio_forward.3} parent=5 // pred_check
      _
    $region30: #{hw_scale_ratio_forward.3} parent=5 // pred_check_branch
      %141 = sbr.rel (%p138) target = $region32
    $region31: #{hw_scale_ratio_forward.3} parent=5 // pred_region
      %s142 = ssub.s32 %s9, 1
      %p143 = scmp.lt.s32.totalorder %s14, 1
      %s144 = scalar_select %p143, %s14, 1
      %s145 = smul.addr %s144, 43
      %s146 = smul.addr %s145, 4
      %s147 = scalar_lea.vmem %s0, %s146
      %p148 = pneg %p35
      %p149 = pneg %p32
      %p150 = pneg %p56
      %p151 = pneg %p53
      %p152 = pneg %p77
      %p153 = pneg %p74
      %p154 = pneg %p103
      %p155 = pneg %p100
      %p156 = scmp.lt.s32.totalorder %s14, 1
      %s157 = scalar_select %p156, %s14, 1
      %s158 = smul.addr %s157, 36
      %s159 = smul.addr %s158, 4
      %s160 = scalar_lea.vmem %s3, %s159
      %p161 = scmp.lt.s32.totalorder %s14, 1
      %s162 = scalar_select %p161, %s14, 1
      %s163 = smul.addr %s162, 43
      %s164 = smul.addr %s163, 4
      %s165 = scalar_lea.vmem %s0, %s164
      %p166 = scmp.lt.s32.totalorder %s14, 1
      %s167 = scalar_select %p166, %s14, 1
      %s168 = smul.addr %s167, 36
      %s169 = smul.addr %s168, 4
      %s170 = scalar_lea.vmem %s3, %s169
      %v172 = vld [vmem:[%s165] sm:$0xf]
      %v173 = vld [vmem:[%s165 + $0x4] sm:$0xf]
      %v174 = vld [vmem:[%s165 + $0x8] sm:$0xf]
      %v175 = vld [vmem:[%s165 + $0xc] sm:$0xf]
      %v176 = vld [vmem:[%s165 + $0x10] sm:$0xf]
      %v177 = vld [vmem:[%s165 + $0x14] sm:$0xf]
      %v178 = vld [vmem:[%s165 + $0x18] sm:$0xf]
      %v179 = vld [vmem:[%s165 + $0x1c] sm:$0xf]
      %v180 = vld [vmem:[%s165 + $0x20] sm:$0xf]
      %v181 = vld [vmem:[%s165 + $0x24] sm:$0xf]
      %v182 = vld [vmem:[%s165 + $0x28] sm:$0xf]
      %v183 = vld [vmem:[%s165 + $0x2c] sm:$0xf]
      %v184 = vld [vmem:[%s165 + $0x30] sm:$0xf]
      %v185 = vld [vmem:[%s165 + $0x34] sm:$0xf]
      %v186 = vld [vmem:[%s165 + $0x38] sm:$0xf]
      %v187 = vld [vmem:[%s165 + $0x3c] sm:$0xf]
      %v188 = vld [vmem:[%s165 + $0x40] sm:$0xf]
      %v189 = vld [vmem:[%s165 + $0x44] sm:$0xf]
      %v190 = vld [vmem:[%s165 + $0x48] sm:$0xf]
      %v191 = vld [vmem:[%s165 + $0x4c] sm:$0xf]
      %v192 = vld [vmem:[%s165 + $0x50] sm:$0xf]
      %v193 = vld [vmem:[%s165 + $0x54] sm:$0xf]
      %v194 = vld [vmem:[%s165 + $0x58] sm:$0xf]
      %v195 = vld [vmem:[%s165 + $0x5c] sm:$0xf]
      %v196 = vld [vmem:[%s165 + $0x60] sm:$0xf]
      %v197 = vld [vmem:[%s165 + $0x64] sm:$0xf]
      %v198 = vld [vmem:[%s165 + $0x68] sm:$0xf]
      %v199 = vld [vmem:[%s165 + $0x6c] sm:$0xf]
      %v200 = vld [vmem:[%s165 + $0x70] sm:$0xf]
      %v201 = vld [vmem:[%s165 + $0x74] sm:$0xf]
      %v202 = vld [vmem:[%s165 + $0x78] sm:$0xf]
      %v203 = vld [vmem:[%s165 + $0x7c] sm:$0xf]
      %v204 = vld [vmem:[%s165 + $0x80] sm:$0xf]
      %v205 = vld [vmem:[%s165 + $0x84] sm:$0xf]
      %v206 = vld [vmem:[%s165 + $0x88] sm:$0xf]
      %v207 = vld [vmem:[%s165 + $0x8c] sm:$0xf]
      %v208 = vld [vmem:[%s1] sm:$0x3]
      %v209 = vld [vmem:[%s165 + $0x90] sm:$0x1]
      %s210 = scalar_lea.vmem %s1, 2
      %v211 = vld [vmem:[%s210] sm:$0x3]
      %v249 = vunpack.c.l.b16 %v172
      %v250 = vunpack.c.l.b16 %v173
      %v251 = vunpack.c.l.b16 %v174
      %v252 = vunpack.c.l.b16 %v175
      %v253 = vunpack.c.l.b16 %v176
      %v254 = vunpack.c.l.b16 %v177
      %v255 = vunpack.c.l.b16 %v178
      %v256 = vunpack.c.l.b16 %v179
      %v257 = vunpack.c.l.b16 %v180
      %v258 = vunpack.c.l.b16 %v181
      %v259 = vunpack.c.l.b16 %v182
      %v260 = vunpack.c.l.b16 %v183
      %v261 = vunpack.c.l.b16 %v184
      %v262 = vunpack.c.l.b16 %v185
      %v263 = vunpack.c.l.b16 %v186
      %v264 = vunpack.c.l.b16 %v187
      %v265 = vunpack.c.l.b16 %v188
      %v266 = vunpack.c.l.b16 %v189
      %v267 = vunpack.c.l.b16 %v190
      %v268 = vunpack.c.l.b16 %v191
      %v269 = vunpack.c.l.b16 %v192
      %v270 = vunpack.c.l.b16 %v193
      %v271 = vunpack.c.l.b16 %v194
      %v272 = vunpack.c.l.b16 %v195
      %v273 = vunpack.c.l.b16 %v196
      %v274 = vunpack.c.l.b16 %v197
      %v275 = vunpack.c.l.b16 %v198
      %v276 = vunpack.c.l.b16 %v199
      %v277 = vunpack.c.l.b16 %v200
      %v278 = vunpack.c.l.b16 %v201
      %v279 = vunpack.c.l.b16 %v202
      %v280 = vunpack.c.l.b16 %v203
      %v281 = vunpack.c.l.b16 %v204
      %v282 = vunpack.c.l.b16 %v205
      %v283 = vunpack.c.l.b16 %v206
      %v284 = vunpack.c.l.b16 %v207
      %v285 = vunpack.c.l.b16 %v209
      %v286 = vpack.c.b16 %v250, %v249
      %v287 = vpack.c.b16 %v252, %v251
      %v288 = vpack.c.b16 %v254, %v253
      %v289 = vpack.c.b16 %v256, %v255
      %v290 = vpack.c.b16 %v258, %v257
      %v291 = vpack.c.b16 %v260, %v259
      %v292 = vpack.c.b16 %v262, %v261
      %v293 = vpack.c.b16 %v264, %v263
      %v294 = vpack.c.b16 %v266, %v265
      %v295 = vpack.c.b16 %v268, %v267
      %v296 = vpack.c.b16 %v270, %v269
      %v297 = vpack.c.b16 %v272, %v271
      %v298 = vpack.c.b16 %v274, %v273
      %v299 = vpack.c.b16 %v276, %v275
      %v300 = vpack.c.b16 %v278, %v277
      %v301 = vpack.c.b16 %v280, %v279
      %v302 = vpack.c.b16 %v282, %v281
      %v303 = vpack.c.b16 %v284, %v283
      %v304 = vpack.c.b16 %v285, %v285
      %vm305 = vsmask.f32 7424
      %v307 = vshrl.u32 %v286, 16
      %v309 = vshll.u32 %v286, 16
      %v311 = vrot.slane %v309, 1
      %v312 = vor.u32 %v307, %v311
      %v314 = vshll.u32 %v287, 16
      %v316 = vrot.slane %v314, 1
      %v317 = vsel %vm305, %v312, %v316
      %v318 = vshrl.u32 %v287, 16
      %v320 = vor.u32 %v318, %v316
      %v322 = vshll.u32 %v288, 16
      %v324 = vrot.slane %v322, 1
      %v325 = vsel %vm305, %v320, %v324
      %v326 = vshrl.u32 %v288, 16
      %v328 = vor.u32 %v326, %v324
      %v330 = vshll.u32 %v289, 16
      %v332 = vrot.slane %v330, 1
      %v333 = vsel %vm305, %v328, %v332
      %v334 = vshrl.u32 %v289, 16
      %v336 = vor.u32 %v334, %v332
      %v338 = vshll.u32 %v290, 16
      %v340 = vrot.slane %v338, 1
      %v341 = vsel %vm305, %v336, %v340
      %v342 = vshrl.u32 %v290, 16
      %v344 = vor.u32 %v342, %v340
      %v346 = vshll.u32 %v291, 16
      %v348 = vrot.slane %v346, 1
      %v349 = vsel %vm305, %v344, %v348
      %v350 = vshrl.u32 %v291, 16
      %v352 = vor.u32 %v350, %v348
      %v354 = vshll.u32 %v292, 16
      %v356 = vrot.slane %v354, 1
      %v357 = vsel %vm305, %v352, %v356
      %v358 = vshrl.u32 %v292, 16
      %v360 = vor.u32 %v358, %v356
      %v362 = vshll.u32 %v293, 16
      %v364 = vrot.slane %v362, 1
      %v365 = vsel %vm305, %v360, %v364
      %v366 = vshrl.u32 %v293, 16
      %v368 = vor.u32 %v366, %v364
      %v370 = vshll.u32 %v294, 16
      %v372 = vrot.slane %v370, 1
      %v373 = vsel %vm305, %v368, %v372
      %v374 = vshrl.u32 %v294, 16
      %v376 = vor.u32 %v374, %v372
      %v378 = vshll.u32 %v295, 16
      %v380 = vrot.slane %v378, 1
      %v381 = vsel %vm305, %v376, %v380
      %v382 = vshrl.u32 %v295, 16
      %v384 = vor.u32 %v382, %v380
      %v386 = vshll.u32 %v296, 16
      %v388 = vrot.slane %v386, 1
      %v389 = vsel %vm305, %v384, %v388
      %v390 = vshrl.u32 %v296, 16
      %v392 = vor.u32 %v390, %v388
      %v394 = vshll.u32 %v297, 16
      %v396 = vrot.slane %v394, 1
      %v397 = vsel %vm305, %v392, %v396
      %v398 = vshrl.u32 %v297, 16
      %v400 = vor.u32 %v398, %v396
      %v402 = vshll.u32 %v298, 16
      %v404 = vrot.slane %v402, 1
      %v405 = vsel %vm305, %v400, %v404
      %v406 = vshrl.u32 %v298, 16
      %v408 = vor.u32 %v406, %v404
      %v410 = vshll.u32 %v299, 16
      %v412 = vrot.slane %v410, 1
      %v413 = vsel %vm305, %v408, %v412
      %v414 = vshrl.u32 %v299, 16
      %v416 = vor.u32 %v414, %v412
      %v418 = vshll.u32 %v300, 16
      %v420 = vrot.slane %v418, 1
      %v421 = vsel %vm305, %v416, %v420
      %v422 = vshrl.u32 %v300, 16
      %v424 = vor.u32 %v422, %v420
      %v426 = vshll.u32 %v301, 16
      %v428 = vrot.slane %v426, 1
      %v429 = vsel %vm305, %v424, %v428
      %v430 = vshrl.u32 %v301, 16
      %v432 = vor.u32 %v430, %v428
      %v434 = vshll.u32 %v302, 16
      %v436 = vrot.slane %v434, 1
      %v437 = vsel %vm305, %v432, %v436
      %v438 = vshrl.u32 %v302, 16
      %v440 = vor.u32 %v438, %v436
      %v442 = vshll.u32 %v303, 16
      %v444 = vrot.slane %v442, 1
      %v445 = vsel %vm305, %v440, %v444
      %v446 = vshrl.u32 %v303, 16
      %v448 = vor.u32 %v446, %v444
      %v450 = vshll.u32 %v304, 16
      %v452 = vrot.slane %v450, 1
      %v453 = vsel %vm305, %v448, %v452
      %vm454 = vcmask 31744
      %v456 = vsel %vm454, %v317, 0
      %v459 = vsel %vm454, %v325, 0
      %v462 = vsel %vm454, %v333, 0
      %v465 = vsel %vm454, %v341, 0
      %v468 = vsel %vm454, %v349, 0
      %v471 = vsel %vm454, %v357, 0
      %v474 = vsel %vm454, %v365, 0
      %v477 = vsel %vm454, %v373, 0
      %v480 = vsel %vm454, %v381, 0
      %v483 = vsel %vm454, %v389, 0
      %v486 = vsel %vm454, %v397, 0
      %v489 = vsel %vm454, %v405, 0
      %v492 = vsel %vm454, %v413, 0
      %v495 = vsel %vm454, %v421, 0
      %v498 = vsel %vm454, %v429, 0
      %v501 = vsel %vm454, %v437, 0
      %v504 = vsel %vm454, %v445, 0
      %v507 = vsel %vm454, %v453, 0
      %vm509 = vcmask 1041408
      %v511 = vsel %vm509, %v211, 0
      %513 = vmatpush.bf16.msra.mxu0 0
      %514 = vmatpush.bf16.msra.mxu0 0
      %515 = vmatpush.bf16.msra.mxu0 0
      %516 = vmatpush.bf16.msra.mxu0 0
      %517 = vmatpush.bf16.msra.mxu0 0
      %518 = vmatpush.bf16.msra.mxu0 0
      %519 = vmatpush.bf16.msra.mxu0 0
      %520 = vmatpush.bf16.msra.mxu0 %v511
      %521 = vmatmul.bf16.gmra.mxu0 %v456
      %v522 = vpop.f32.mrf.mxu0
      %v523 = vadd.f32 0.0, %v522
      %v524 = vpop.f32.mrf.mxu0
      %v525 = vadd.f32 0.0, %v524
      %526 = vmatmul.bf16.gmra.mxu0 %v459
      %v527 = vpop.f32.mrf.mxu0
      %v528 = vadd.f32 0.0, %v527
      %v529 = vpop.f32.mrf.mxu0
      %v530 = vadd.f32 0.0, %v529
      %531 = vmatmul.bf16.gmra.mxu0 %v462
      %v532 = vpop.f32.mrf.mxu0
      %v533 = vadd.f32 0.0, %v532
      %v534 = vpop.f32.mrf.mxu0
      %v535 = vadd.f32 0.0, %v534
      %536 = vmatmul.bf16.gmra.mxu0 %v465
      %v537 = vpop.f32.mrf.mxu0
      %v538 = vadd.f32 0.0, %v537
      %v539 = vpop.f32.mrf.mxu0
      %v540 = vadd.f32 0.0, %v539
      %541 = vmatmul.bf16.gmra.mxu0 %v468
      %v542 = vpop.f32.mrf.mxu0
      %v543 = vadd.f32 0.0, %v542
      %v544 = vpop.f32.mrf.mxu0
      %v545 = vadd.f32 0.0, %v544
      %546 = vmatmul.bf16.gmra.mxu0 %v471
      %v547 = vpop.f32.mrf.mxu0
      %v548 = vadd.f32 0.0, %v547
      %v549 = vpop.f32.mrf.mxu0
      %v550 = vadd.f32 0.0, %v549
      %551 = vmatmul.bf16.gmra.mxu0 %v474
      %v552 = vpop.f32.mrf.mxu0
      %v553 = vadd.f32 0.0, %v552
      %v554 = vpop.f32.mrf.mxu0
      %v555 = vadd.f32 0.0, %v554
      %556 = vmatmul.bf16.gmra.mxu0 %v477
      %v557 = vpop.f32.mrf.mxu0
      %v558 = vadd.f32 0.0, %v557
      %v559 = vpop.f32.mrf.mxu0
      %v560 = vadd.f32 0.0, %v559
      %561 = vmatmul.bf16.gmra.mxu0 %v480
      %v562 = vpop.f32.mrf.mxu0
      %v563 = vadd.f32 0.0, %v562
      %v564 = vpop.f32.mrf.mxu0
      %v565 = vadd.f32 0.0, %v564
      %566 = vmatmul.bf16.gmra.mxu0 %v483
      %v567 = vpop.f32.mrf.mxu0
      %v568 = vadd.f32 0.0, %v567
      %v569 = vpop.f32.mrf.mxu0
      %v570 = vadd.f32 0.0, %v569
      %571 = vmatmul.bf16.gmra.mxu0 %v486
      %v572 = vpop.f32.mrf.mxu0
      %v573 = vadd.f32 0.0, %v572
      %v574 = vpop.f32.mrf.mxu0
      %v575 = vadd.f32 0.0, %v574
      %576 = vmatmul.bf16.gmra.mxu0 %v489
      %v577 = vpop.f32.mrf.mxu0
      %v578 = vadd.f32 0.0, %v577
      %v579 = vpop.f32.mrf.mxu0
      %v580 = vadd.f32 0.0, %v579
      %581 = vmatmul.bf16.gmra.mxu0 %v492
      %v582 = vpop.f32.mrf.mxu0
      %v583 = vadd.f32 0.0, %v582
      %v584 = vpop.f32.mrf.mxu0
      %v585 = vadd.f32 0.0, %v584
      %586 = vmatmul.bf16.gmra.mxu0 %v495
      %v587 = vpop.f32.mrf.mxu0
      %v588 = vadd.f32 0.0, %v587
      %v589 = vpop.f32.mrf.mxu0
      %v590 = vadd.f32 0.0, %v589
      %591 = vmatmul.bf16.gmra.mxu0 %v498
      %v592 = vpop.f32.mrf.mxu0
      %v593 = vadd.f32 0.0, %v592
      %v594 = vpop.f32.mrf.mxu0
      %v595 = vadd.f32 0.0, %v594
      %596 = vmatmul.bf16.gmra.mxu0 %v501
      %v597 = vpop.f32.mrf.mxu0
      %v598 = vadd.f32 0.0, %v597
      %v599 = vpop.f32.mrf.mxu0
      %v600 = vadd.f32 0.0, %v599
      %601 = vmatmul.bf16.gmra.mxu0 %v504
      %v602 = vpop.f32.mrf.mxu0
      %v603 = vadd.f32 0.0, %v602
      %v604 = vpop.f32.mrf.mxu0
      %v605 = vadd.f32 0.0, %v604
      %606 = vmatmul.bf16.gmra.mxu0 %v507
      %v607 = vpop.f32.mrf.mxu0
      %v608 = vadd.f32 0.0, %v607
      %v609 = vpop.f32.mrf.mxu0
      %v610 = vadd.f32 0.0, %v609
      %611 = vdwg.mxu0
      %v612 = vsel %vm454, %v286, 0
      %v614 = vsel %vm454, %v287, 0
      %v616 = vsel %vm454, %v288, 0
      %v618 = vsel %vm454, %v289, 0
      %v620 = vsel %vm454, %v290, 0
      %v622 = vsel %vm454, %v291, 0
      %v624 = vsel %vm454, %v292, 0
      %v626 = vsel %vm454, %v293, 0
      %v628 = vsel %vm454, %v294, 0
      %v630 = vsel %vm454, %v295, 0
      %v632 = vsel %vm454, %v296, 0
      %v634 = vsel %vm454, %v297, 0
      %v636 = vsel %vm454, %v298, 0
      %v638 = vsel %vm454, %v299, 0
      %v640 = vsel %vm454, %v300, 0
      %v642 = vsel %vm454, %v301, 0
      %v644 = vsel %vm454, %v302, 0
      %v646 = vsel %vm454, %v303, 0
      %v649 = vsel %vm509, %v208, 0
      %651 = vmatpush.bf16.msra.mxu0 0
      %652 = vmatpush.bf16.msra.mxu0 0
      %653 = vmatpush.bf16.msra.mxu0 0
      %654 = vmatpush.bf16.msra.mxu0 0
      %655 = vmatpush.bf16.msra.mxu0 0
      %656 = vmatpush.bf16.msra.mxu0 0
      %657 = vmatpush.bf16.msra.mxu0 0
      %658 = vmatpush.bf16.msra.mxu0 %v649
      %659 = vmatmul.bf16.gmra.mxu0 %v612
      %v660 = vpop.f32.mrf.mxu0
      %v661 = vadd.f32 %v523, %v660
      %v662 = vpop.f32.mrf.mxu0
      %v663 = vadd.f32 %v525, %v662
      %664 = vmatmul.bf16.gmra.mxu0 %v614
      %v665 = vpop.f32.mrf.mxu0
      %v666 = vadd.f32 %v528, %v665
      %v667 = vpop.f32.mrf.mxu0
      %v668 = vadd.f32 %v530, %v667
      %669 = vmatmul.bf16.gmra.mxu0 %v616
      %v670 = vpop.f32.mrf.mxu0
      %v671 = vadd.f32 %v533, %v670
      %v672 = vpop.f32.mrf.mxu0
      %v673 = vadd.f32 %v535, %v672
      %674 = vmatmul.bf16.gmra.mxu0 %v618
      %v675 = vpop.f32.mrf.mxu0
      %v676 = vadd.f32 %v538, %v675
      %v677 = vpop.f32.mrf.mxu0
      %v678 = vadd.f32 %v540, %v677
      %679 = vmatmul.bf16.gmra.mxu0 %v620
      %v680 = vpop.f32.mrf.mxu0
      %v681 = vadd.f32 %v543, %v680
      %v682 = vpop.f32.mrf.mxu0
      %v683 = vadd.f32 %v545, %v682
      %684 = vmatmul.bf16.gmra.mxu0 %v622
      %v685 = vpop.f32.mrf.mxu0
      %v686 = vadd.f32 %v548, %v685
      %v687 = vpop.f32.mrf.mxu0
      %v688 = vadd.f32 %v550, %v687
      %689 = vmatmul.bf16.gmra.mxu0 %v624
      %v690 = vpop.f32.mrf.mxu0
      %v691 = vadd.f32 %v553, %v690
      %v692 = vpop.f32.mrf.mxu0
      %v693 = vadd.f32 %v555, %v692
      %694 = vmatmul.bf16.gmra.mxu0 %v626
      %v695 = vpop.f32.mrf.mxu0
      %v696 = vadd.f32 %v558, %v695
      %v697 = vpop.f32.mrf.mxu0
      %v698 = vadd.f32 %v560, %v697
      %699 = vmatmul.bf16.gmra.mxu0 %v628
      %v700 = vpop.f32.mrf.mxu0
      %v701 = vadd.f32 %v563, %v700
      %v702 = vpop.f32.mrf.mxu0
      %v703 = vadd.f32 %v565, %v702
      %704 = vmatmul.bf16.gmra.mxu0 %v630
      %v705 = vpop.f32.mrf.mxu0
      %v706 = vadd.f32 %v568, %v705
      %v707 = vpop.f32.mrf.mxu0
      %v708 = vadd.f32 %v570, %v707
      %709 = vmatmul.bf16.gmra.mxu0 %v632
      %v710 = vpop.f32.mrf.mxu0
      %v711 = vadd.f32 %v573, %v710
      %v712 = vpop.f32.mrf.mxu0
      %v713 = vadd.f32 %v575, %v712
      %714 = vmatmul.bf16.gmra.mxu0 %v634
      %v715 = vpop.f32.mrf.mxu0
      %v716 = vadd.f32 %v578, %v715
      %v717 = vpop.f32.mrf.mxu0
      %v718 = vadd.f32 %v580, %v717
      %719 = vmatmul.bf16.gmra.mxu0 %v636
      %v720 = vpop.f32.mrf.mxu0
      %v721 = vadd.f32 %v583, %v720
      %v722 = vpop.f32.mrf.mxu0
      %v723 = vadd.f32 %v585, %v722
      %724 = vmatmul.bf16.gmra.mxu0 %v638
      %v725 = vpop.f32.mrf.mxu0
      %v726 = vadd.f32 %v588, %v725
      %v727 = vpop.f32.mrf.mxu0
      %v728 = vadd.f32 %v590, %v727
      %729 = vmatmul.bf16.gmra.mxu0 %v640
      %v730 = vpop.f32.mrf.mxu0
      %v731 = vadd.f32 %v593, %v730
      %v732 = vpop.f32.mrf.mxu0
      %v733 = vadd.f32 %v595, %v732
      %734 = vmatmul.bf16.gmra.mxu0 %v642
      %v735 = vpop.f32.mrf.mxu0
      %v736 = vadd.f32 %v598, %v735
      %v737 = vpop.f32.mrf.mxu0
      %v738 = vadd.f32 %v600, %v737
      %739 = vmatmul.bf16.gmra.mxu0 %v644
      %v740 = vpop.f32.mrf.mxu0
      %v741 = vadd.f32 %v603, %v740
      %v742 = vpop.f32.mrf.mxu0
      %v743 = vadd.f32 %v605, %v742
      %744 = vmatmul.bf16.gmra.mxu0 %v646
      %v745 = vpop.f32.mrf.mxu0
      %v746 = vadd.f32 %v608, %v745
      %v747 = vpop.f32.mrf.mxu0
      %v748 = vadd.f32 %v610, %v747
      %749 = vdwg.mxu0
      %v750 = vld [vmem:[%s165] sm:$0xe]
      %s751 = scalar_lea.vmem %s1, 4
      %v752 = vld [vmem:[%s751] sm:$0x3]
      %v754 = vunpack.c.l.b16 %v750
      %v755 = vpack.c.b16 %v250, %v754
      %vm756 = vcmask 1046528
      %v757 = vrot.slane %v755, 1
      %v758 = vrot.slane %v287, 1
      %v759 = vsel %vm756, %v757, %v758
      %v760 = vrot.slane %v288, 1
      %v761 = vsel %vm756, %v758, %v760
      %v762 = vrot.slane %v289, 1
      %v763 = vsel %vm756, %v760, %v762
      %v764 = vrot.slane %v290, 1
      %v765 = vsel %vm756, %v762, %v764
      %v766 = vrot.slane %v291, 1
      %v767 = vsel %vm756, %v764, %v766
      %v768 = vrot.slane %v292, 1
      %v769 = vsel %vm756, %v766, %v768
      %v770 = vrot.slane %v293, 1
      %v771 = vsel %vm756, %v768, %v770
      %v772 = vrot.slane %v294, 1
      %v773 = vsel %vm756, %v770, %v772
      %v774 = vrot.slane %v295, 1
      %v775 = vsel %vm756, %v772, %v774
      %v776 = vrot.slane %v296, 1
      %v777 = vsel %vm756, %v774, %v776
      %v778 = vrot.slane %v297, 1
      %v779 = vsel %vm756, %v776, %v778
      %v780 = vrot.slane %v298, 1
      %v781 = vsel %vm756, %v778, %v780
      %v782 = vrot.slane %v299, 1
      %v783 = vsel %vm756, %v780, %v782
      %v784 = vrot.slane %v300, 1
      %v785 = vsel %vm756, %v782, %v784
      %v786 = vrot.slane %v301, 1
      %v787 = vsel %vm756, %v784, %v786
      %v788 = vrot.slane %v302, 1
      %v789 = vsel %vm756, %v786, %v788
      %v790 = vrot.slane %v303, 1
      %v791 = vsel %vm756, %v788, %v790
      %v792 = vrot.slane %v304, 1
      %v793 = vsel %vm756, %v790, %v792
      %v795 = vsel %vm454, %v759, 0
      %v798 = vsel %vm454, %v761, 0
      %v801 = vsel %vm454, %v763, 0
      %v804 = vsel %vm454, %v765, 0
      %v807 = vsel %vm454, %v767, 0
      %v810 = vsel %vm454, %v769, 0
      %v813 = vsel %vm454, %v771, 0
      %v816 = vsel %vm454, %v773, 0
      %v819 = vsel %vm454, %v775, 0
      %v822 = vsel %vm454, %v777, 0
      %v825 = vsel %vm454, %v779, 0
      %v828 = vsel %vm454, %v781, 0
      %v831 = vsel %vm454, %v783, 0
      %v834 = vsel %vm454, %v785, 0
      %v837 = vsel %vm454, %v787, 0
      %v840 = vsel %vm454, %v789, 0
      %v843 = vsel %vm454, %v791, 0
      %v846 = vsel %vm454, %v793, 0
      %v849 = vsel %vm509, %v752, 0
      %851 = vmatpush.bf16.msra.mxu0 0
      %852 = vmatpush.bf16.msra.mxu0 0
      %853 = vmatpush.bf16.msra.mxu0 0
      %854 = vmatpush.bf16.msra.mxu0 0
      %855 = vmatpush.bf16.msra.mxu0 0
      %856 = vmatpush.bf16.msra.mxu0 0
      %857 = vmatpush.bf16.msra.mxu0 0
      %858 = vmatpush.bf16.msra.mxu0 %v849
      %859 = vmatmul.bf16.gmra.mxu0 %v795
      %v860 = vpop.f32.mrf.mxu0
      %v861 = vadd.f32 0.0, %v860
      %v862 = vpop.f32.mrf.mxu0
      %v863 = vadd.f32 0.0, %v862
      %864 = vmatmul.bf16.gmra.mxu0 %v798
      %v865 = vpop.f32.mrf.mxu0
      %v866 = vadd.f32 0.0, %v865
      %v867 = vpop.f32.mrf.mxu0
      %v868 = vadd.f32 0.0, %v867
      %869 = vmatmul.bf16.gmra.mxu0 %v801
      %v870 = vpop.f32.mrf.mxu0
      %v871 = vadd.f32 0.0, %v870
      %v872 = vpop.f32.mrf.mxu0
      %v873 = vadd.f32 0.0, %v872
      %874 = vmatmul.bf16.gmra.mxu0 %v804
      %v875 = vpop.f32.mrf.mxu0
      %v876 = vadd.f32 0.0, %v875
      %v877 = vpop.f32.mrf.mxu0
      %v878 = vadd.f32 0.0, %v877
      %879 = vmatmul.bf16.gmra.mxu0 %v807
      %v880 = vpop.f32.mrf.mxu0
      %v881 = vadd.f32 0.0, %v880
      %v882 = vpop.f32.mrf.mxu0
      %v883 = vadd.f32 0.0, %v882
      %884 = vmatmul.bf16.gmra.mxu0 %v810
      %v885 = vpop.f32.mrf.mxu0
      %v886 = vadd.f32 0.0, %v885
      %v887 = vpop.f32.mrf.mxu0
      %v888 = vadd.f32 0.0, %v887
      %889 = vmatmul.bf16.gmra.mxu0 %v813
      %v890 = vpop.f32.mrf.mxu0
      %v891 = vadd.f32 0.0, %v890
      %v892 = vpop.f32.mrf.mxu0
      %v893 = vadd.f32 0.0, %v892
      %894 = vmatmul.bf16.gmra.mxu0 %v816
      %v895 = vpop.f32.mrf.mxu0
      %v896 = vadd.f32 0.0, %v895
      %v897 = vpop.f32.mrf.mxu0
      %v898 = vadd.f32 0.0, %v897
      %899 = vmatmul.bf16.gmra.mxu0 %v819
      %v900 = vpop.f32.mrf.mxu0
      %v901 = vadd.f32 0.0, %v900
      %v902 = vpop.f32.mrf.mxu0
      %v903 = vadd.f32 0.0, %v902
      %904 = vmatmul.bf16.gmra.mxu0 %v822
      %v905 = vpop.f32.mrf.mxu0
      %v906 = vadd.f32 0.0, %v905
      %v907 = vpop.f32.mrf.mxu0
      %v908 = vadd.f32 0.0, %v907
      %909 = vmatmul.bf16.gmra.mxu0 %v825
      %v910 = vpop.f32.mrf.mxu0
      %v911 = vadd.f32 0.0, %v910
      %v912 = vpop.f32.mrf.mxu0
      %v913 = vadd.f32 0.0, %v912
      %914 = vmatmul.bf16.gmra.mxu0 %v828
      %v915 = vpop.f32.mrf.mxu0
      %v916 = vadd.f32 0.0, %v915
      %v917 = vpop.f32.mrf.mxu0
      %v918 = vadd.f32 0.0, %v917
      %919 = vmatmul.bf16.gmra.mxu0 %v831
      %v920 = vpop.f32.mrf.mxu0
      %v921 = vadd.f32 0.0, %v920
      %v922 = vpop.f32.mrf.mxu0
      %v923 = vadd.f32 0.0, %v922
      %924 = vmatmul.bf16.gmra.mxu0 %v834
      %v925 = vpop.f32.mrf.mxu0
      %v926 = vadd.f32 0.0, %v925
      %v927 = vpop.f32.mrf.mxu0
      %v928 = vadd.f32 0.0, %v927
      %929 = vmatmul.bf16.gmra.mxu0 %v837
      %v930 = vpop.f32.mrf.mxu0
      %v931 = vadd.f32 0.0, %v930
      %v932 = vpop.f32.mrf.mxu0
      %v933 = vadd.f32 0.0, %v932
      %934 = vmatmul.bf16.gmra.mxu0 %v840
      %v935 = vpop.f32.mrf.mxu0
      %v936 = vadd.f32 0.0, %v935
      %v937 = vpop.f32.mrf.mxu0
      %v938 = vadd.f32 0.0, %v937
      %939 = vmatmul.bf16.gmra.mxu0 %v843
      %v940 = vpop.f32.mrf.mxu0
      %v941 = vadd.f32 0.0, %v940
      %v942 = vpop.f32.mrf.mxu0
      %v943 = vadd.f32 0.0, %v942
      %944 = vmatmul.bf16.gmra.mxu0 %v846
      %v945 = vpop.f32.mrf.mxu0
      %v946 = vadd.f32 0.0, %v945
      %v947 = vpop.f32.mrf.mxu0
      %v948 = vadd.f32 0.0, %v947
      %949 = vdwg.mxu0
      %v950 = vadd.f32 %v661, %v861
      %v951 = vadd.f32 %v663, %v863
      %v952 = vadd.f32 %v666, %v866
      %v953 = vadd.f32 %v668, %v868
      %v954 = vadd.f32 %v671, %v871
      %v955 = vadd.f32 %v673, %v873
      %v956 = vadd.f32 %v676, %v876
      %v957 = vadd.f32 %v678, %v878
      %v958 = vadd.f32 %v681, %v881
      %v959 = vadd.f32 %v683, %v883
      %v960 = vadd.f32 %v686, %v886
      %v961 = vadd.f32 %v688, %v888
      %v962 = vadd.f32 %v691, %v891
      %v963 = vadd.f32 %v693, %v893
      %v964 = vadd.f32 %v696, %v896
      %v965 = vadd.f32 %v698, %v898
      %v966 = vadd.f32 %v701, %v901
      %v967 = vadd.f32 %v703, %v903
      %v968 = vadd.f32 %v706, %v906
      %v969 = vadd.f32 %v708, %v908
      %v970 = vadd.f32 %v711, %v911
      %v971 = vadd.f32 %v713, %v913
      %v972 = vadd.f32 %v716, %v916
      %v973 = vadd.f32 %v718, %v918
      %v974 = vadd.f32 %v721, %v921
      %v975 = vadd.f32 %v723, %v923
      %v976 = vadd.f32 %v726, %v926
      %v977 = vadd.f32 %v728, %v928
      %v978 = vadd.f32 %v731, %v931
      %v979 = vadd.f32 %v733, %v933
      %v980 = vadd.f32 %v736, %v936
      %v981 = vadd.f32 %v738, %v938
      %v982 = vadd.f32 %v741, %v941
      %v983 = vadd.f32 %v743, %v943
      %v984 = vadd.f32 %v746, %v946
      %v985 = vadd.f32 %v748, %v948
      %v986 = vld [vmem:[%s165 + $0x8] sm:$0xe]
      %v987 = vld [vmem:[%s165 + $0xc] sm:$0xf]
      %v988 = vld [vmem:[%s165 + $0x10] sm:$0xf]
      %v989 = vld [vmem:[%s165 + $0x14] sm:$0xf]
      %v990 = vld [vmem:[%s165 + $0x18] sm:$0xf]
      %v991 = vld [vmem:[%s165 + $0x1c] sm:$0xf]
      %v992 = vld [vmem:[%s165 + $0x20] sm:$0xf]
      %v993 = vld [vmem:[%s165 + $0x24] sm:$0xf]
      %v994 = vld [vmem:[%s165 + $0x28] sm:$0xf]
      %v995 = vld [vmem:[%s165 + $0x2c] sm:$0xf]
      %v996 = vld [vmem:[%s165 + $0x30] sm:$0xf]
      %v997 = vld [vmem:[%s165 + $0x34] sm:$0xf]
      %v998 = vld [vmem:[%s165 + $0x38] sm:$0xf]
      %v999 = vld [vmem:[%s165 + $0x3c] sm:$0xf]
      %v1000 = vld [vmem:[%s165 + $0x40] sm:$0xf]
      %v1001 = vld [vmem:[%s165 + $0x44] sm:$0xf]
      %v1002 = vld [vmem:[%s165 + $0x48] sm:$0xf]
      %v1003 = vld [vmem:[%s165 + $0x4c] sm:$0xf]
      %v1004 = vld [vmem:[%s165 + $0x50] sm:$0xf]
      %v1005 = vld [vmem:[%s165 + $0x54] sm:$0xf]
      %v1006 = vld [vmem:[%s165 + $0x58] sm:$0xf]
      %v1007 = vld [vmem:[%s165 + $0x5c] sm:$0xf]
      %v1008 = vld [vmem:[%s165 + $0x60] sm:$0xf]
      %v1009 = vld [vmem:[%s165 + $0x64] sm:$0xf]
      %v1010 = vld [vmem:[%s165 + $0x68] sm:$0xf]
      %v1011 = vld [vmem:[%s165 + $0x6c] sm:$0xf]
      %v1012 = vld [vmem:[%s165 + $0x70] sm:$0xf]
      %v1013 = vld [vmem:[%s165 + $0x74] sm:$0xf]
      %v1014 = vld [vmem:[%s165 + $0x78] sm:$0xf]
      %v1015 = vld [vmem:[%s165 + $0x7c] sm:$0xf]
      %v1016 = vld [vmem:[%s165 + $0x80] sm:$0xf]
      %v1017 = vld [vmem:[%s165 + $0x84] sm:$0xf]
      %v1018 = vld [vmem:[%s165 + $0x88] sm:$0xf]
      %v1019 = vld [vmem:[%s165 + $0x8c] sm:$0xf]
      %v1020 = vld [vmem:[%s165 + $0x90] sm:$0xf]
      %v1021 = vld [vmem:[%s165 + $0x94] sm:$0xf]
      %v1022 = vld [vmem:[%s165 + $0x98] sm:$0x1]
      %s1023 = scalar_lea.vmem %s1, 6
      %v1024 = vld [vmem:[%s1023] sm:$0x3]
      %v1062 = vunpack.c.l.b16 %v986
      %v1063 = vunpack.c.l.b16 %v987
      %v1064 = vunpack.c.l.b16 %v988
      %v1065 = vunpack.c.l.b16 %v989
      %v1066 = vunpack.c.l.b16 %v990
      %v1067 = vunpack.c.l.b16 %v991
      %v1068 = vunpack.c.l.b16 %v992
      %v1069 = vunpack.c.l.b16 %v993
      %v1070 = vunpack.c.l.b16 %v994
      %v1071 = vunpack.c.l.b16 %v995
      %v1072 = vunpack.c.l.b16 %v996
      %v1073 = vunpack.c.l.b16 %v997
      %v1074 = vunpack.c.l.b16 %v998
      %v1075 = vunpack.c.l.b16 %v999
      %v1076 = vunpack.c.l.b16 %v1000
      %v1077 = vunpack.c.l.b16 %v1001
      %v1078 = vunpack.c.l.b16 %v1002
      %v1079 = vunpack.c.l.b16 %v1003
      %v1080 = vunpack.c.l.b16 %v1004
      %v1081 = vunpack.c.l.b16 %v1005
      %v1082 = vunpack.c.l.b16 %v1006
      %v1083 = vunpack.c.l.b16 %v1007
      %v1084 = vunpack.c.l.b16 %v1008
      %v1085 = vunpack.c.l.b16 %v1009
      %v1086 = vunpack.c.l.b16 %v1010
      %v1087 = vunpack.c.l.b16 %v1011
      %v1088 = vunpack.c.l.b16 %v1012
      %v1089 = vunpack.c.l.b16 %v1013
      %v1090 = vunpack.c.l.b16 %v1014
      %v1091 = vunpack.c.l.b16 %v1015
      %v1092 = vunpack.c.l.b16 %v1016
      %v1093 = vunpack.c.l.b16 %v1017
      %v1094 = vunpack.c.l.b16 %v1018
      %v1095 = vunpack.c.l.b16 %v1019
      %v1096 = vunpack.c.l.b16 %v1020
      %v1097 = vunpack.c.l.b16 %v1021
      %v1098 = vunpack.c.l.b16 %v1022
      %v1099 = vpack.c.b16 %v1063, %v1062
      %v1100 = vpack.c.b16 %v1065, %v1064
      %v1101 = vpack.c.b16 %v1067, %v1066
      %v1102 = vpack.c.b16 %v1069, %v1068
      %v1103 = vpack.c.b16 %v1071, %v1070
      %v1104 = vpack.c.b16 %v1073, %v1072
      %v1105 = vpack.c.b16 %v1075, %v1074
      %v1106 = vpack.c.b16 %v1077, %v1076
      %v1107 = vpack.c.b16 %v1079, %v1078
      %v1108 = vpack.c.b16 %v1081, %v1080
      %v1109 = vpack.c.b16 %v1083, %v1082
      %v1110 = vpack.c.b16 %v1085, %v1084
      %v1111 = vpack.c.b16 %v1087, %v1086
      %v1112 = vpack.c.b16 %v1089, %v1088
      %v1113 = vpack.c.b16 %v1091, %v1090
      %v1114 = vpack.c.b16 %v1093, %v1092
      %v1115 = vpack.c.b16 %v1095, %v1094
      %v1116 = vpack.c.b16 %v1097, %v1096
      %v1117 = vpack.c.b16 %v1098, %v1098
      %v1118 = vrot.slane %v1099, 1
      %v1119 = vrot.slane %v1100, 1
      %v1120 = vsel %vm756, %v1118, %v1119
      %v1121 = vrot.slane %v1101, 1
      %v1122 = vsel %vm756, %v1119, %v1121
      %v1123 = vrot.slane %v1102, 1
      %v1124 = vsel %vm756, %v1121, %v1123
      %v1125 = vrot.slane %v1103, 1
      %v1126 = vsel %vm756, %v1123, %v1125
      %v1127 = vrot.slane %v1104, 1
      %v1128 = vsel %vm756, %v1125, %v1127
      %v1129 = vrot.slane %v1105, 1
      %v1130 = vsel %vm756, %v1127, %v1129
      %v1131 = vrot.slane %v1106, 1
      %v1132 = vsel %vm756, %v1129, %v1131
      %v1133 = vrot.slane %v1107, 1
      %v1134 = vsel %vm756, %v1131, %v1133
      %v1135 = vrot.slane %v1108, 1
      %v1136 = vsel %vm756, %v1133, %v1135
      %v1137 = vrot.slane %v1109, 1
      %v1138 = vsel %vm756, %v1135, %v1137
      %v1139 = vrot.slane %v1110, 1
      %v1140 = vsel %vm756, %v1137, %v1139
      %v1141 = vrot.slane %v1111, 1
      %v1142 = vsel %vm756, %v1139, %v1141
      %v1143 = vrot.slane %v1112, 1
      %v1144 = vsel %vm756, %v1141, %v1143
      %v1145 = vrot.slane %v1113, 1
      %v1146 = vsel %vm756, %v1143, %v1145
      %v1147 = vrot.slane %v1114, 1
      %v1148 = vsel %vm756, %v1145, %v1147
      %v1149 = vrot.slane %v1115, 1
      %v1150 = vsel %vm756, %v1147, %v1149
      %v1151 = vrot.slane %v1116, 1
      %v1152 = vsel %vm756, %v1149, %v1151
      %v1153 = vrot.slane %v1117, 1
      %v1154 = vsel %vm756, %v1151, %v1153
      %v1156 = vsel %vm454, %v1120, 0
      %v1159 = vsel %vm454, %v1122, 0
      %v1162 = vsel %vm454, %v1124, 0
      %v1165 = vsel %vm454, %v1126, 0
      %v1168 = vsel %vm454, %v1128, 0
      %v1171 = vsel %vm454, %v1130, 0
      %v1174 = vsel %vm454, %v1132, 0
      %v1177 = vsel %vm454, %v1134, 0
      %v1180 = vsel %vm454, %v1136, 0
      %v1183 = vsel %vm454, %v1138, 0
      %v1186 = vsel %vm454, %v1140, 0
      %v1189 = vsel %vm454, %v1142, 0
      %v1192 = vsel %vm454, %v1144, 0
      %v1195 = vsel %vm454, %v1146, 0
      %v1198 = vsel %vm454, %v1148, 0
      %v1201 = vsel %vm454, %v1150, 0
      %v1204 = vsel %vm454, %v1152, 0
      %v1207 = vsel %vm454, %v1154, 0
      %v1210 = vsel %vm509, %v1024, 0
      %1212 = vmatpush.bf16.msra.mxu0 0
      %1213 = vmatpush.bf16.msra.mxu0 0
      %1214 = vmatpush.bf16.msra.mxu0 0
      %1215 = vmatpush.bf16.msra.mxu0 0
      %1216 = vmatpush.bf16.msra.mxu0 0
      %1217 = vmatpush.bf16.msra.mxu0 0
      %1218 = vmatpush.bf16.msra.mxu0 0
      %1219 = vmatpush.bf16.msra.mxu0 %v1210
      %1220 = vmatmul.bf16.gmra.mxu0 %v1156
      %v1221 = vpop.f32.mrf.mxu0
      %v1222 = vadd.f32 0.0, %v1221
      %v1223 = vpop.f32.mrf.mxu0
      %v1224 = vadd.f32 0.0, %v1223
      %1225 = vmatmul.bf16.gmra.mxu0 %v1159
      %v1226 = vpop.f32.mrf.mxu0
      %v1227 = vadd.f32 0.0, %v1226
      %v1228 = vpop.f32.mrf.mxu0
      %v1229 = vadd.f32 0.0, %v1228
      %1230 = vmatmul.bf16.gmra.mxu0 %v1162
      %v1231 = vpop.f32.mrf.mxu0
      %v1232 = vadd.f32 0.0, %v1231
      %v1233 = vpop.f32.mrf.mxu0
      %v1234 = vadd.f32 0.0, %v1233
      %1235 = vmatmul.bf16.gmra.mxu0 %v1165
      %v1236 = vpop.f32.mrf.mxu0
      %v1237 = vadd.f32 0.0, %v1236
      %v1238 = vpop.f32.mrf.mxu0
      %v1239 = vadd.f32 0.0, %v1238
      %1240 = vmatmul.bf16.gmra.mxu0 %v1168
      %v1241 = vpop.f32.mrf.mxu0
      %v1242 = vadd.f32 0.0, %v1241
      %v1243 = vpop.f32.mrf.mxu0
      %v1244 = vadd.f32 0.0, %v1243
      %1245 = vmatmul.bf16.gmra.mxu0 %v1171
      %v1246 = vpop.f32.mrf.mxu0
      %v1247 = vadd.f32 0.0, %v1246
      %v1248 = vpop.f32.mrf.mxu0
      %v1249 = vadd.f32 0.0, %v1248
      %1250 = vmatmul.bf16.gmra.mxu0 %v1174
      %v1251 = vpop.f32.mrf.mxu0
      %v1252 = vadd.f32 0.0, %v1251
      %v1253 = vpop.f32.mrf.mxu0
      %v1254 = vadd.f32 0.0, %v1253
      %1255 = vmatmul.bf16.gmra.mxu0 %v1177
      %v1256 = vpop.f32.mrf.mxu0
      %v1257 = vadd.f32 0.0, %v1256
      %v1258 = vpop.f32.mrf.mxu0
      %v1259 = vadd.f32 0.0, %v1258
      %1260 = vmatmul.bf16.gmra.mxu0 %v1180
      %v1261 = vpop.f32.mrf.mxu0
      %v1262 = vadd.f32 0.0, %v1261
      %v1263 = vpop.f32.mrf.mxu0
      %v1264 = vadd.f32 0.0, %v1263
      %1265 = vmatmul.bf16.gmra.mxu0 %v1183
      %v1266 = vpop.f32.mrf.mxu0
      %v1267 = vadd.f32 0.0, %v1266
      %v1268 = vpop.f32.mrf.mxu0
      %v1269 = vadd.f32 0.0, %v1268
      %1270 = vmatmul.bf16.gmra.mxu0 %v1186
      %v1271 = vpop.f32.mrf.mxu0
      %v1272 = vadd.f32 0.0, %v1271
      %v1273 = vpop.f32.mrf.mxu0
      %v1274 = vadd.f32 0.0, %v1273
      %1275 = vmatmul.bf16.gmra.mxu0 %v1189
      %v1276 = vpop.f32.mrf.mxu0
      %v1277 = vadd.f32 0.0, %v1276
      %v1278 = vpop.f32.mrf.mxu0
      %v1279 = vadd.f32 0.0, %v1278
      %1280 = vmatmul.bf16.gmra.mxu0 %v1192
      %v1281 = vpop.f32.mrf.mxu0
      %v1282 = vadd.f32 0.0, %v1281
      %v1283 = vpop.f32.mrf.mxu0
      %v1284 = vadd.f32 0.0, %v1283
      %1285 = vmatmul.bf16.gmra.mxu0 %v1195
      %v1286 = vpop.f32.mrf.mxu0
      %v1287 = vadd.f32 0.0, %v1286
      %v1288 = vpop.f32.mrf.mxu0
      %v1289 = vadd.f32 0.0, %v1288
      %1290 = vmatmul.bf16.gmra.mxu0 %v1198
      %v1291 = vpop.f32.mrf.mxu0
      %v1292 = vadd.f32 0.0, %v1291
      %v1293 = vpop.f32.mrf.mxu0
      %v1294 = vadd.f32 0.0, %v1293
      %1295 = vmatmul.bf16.gmra.mxu0 %v1201
      %v1296 = vpop.f32.mrf.mxu0
      %v1297 = vadd.f32 0.0, %v1296
      %v1298 = vpop.f32.mrf.mxu0
      %v1299 = vadd.f32 0.0, %v1298
      %1300 = vmatmul.bf16.gmra.mxu0 %v1204
      %v1301 = vpop.f32.mrf.mxu0
      %v1302 = vadd.f32 0.0, %v1301
      %v1303 = vpop.f32.mrf.mxu0
      %v1304 = vadd.f32 0.0, %v1303
      %1305 = vmatmul.bf16.gmra.mxu0 %v1207
      %v1306 = vpop.f32.mrf.mxu0
      %v1307 = vadd.f32 0.0, %v1306
      %v1308 = vpop.f32.mrf.mxu0
      %v1309 = vadd.f32 0.0, %v1308
      %1310 = vdwg.mxu0
      %v1311 = vadd.f32 %v950, %v1222
      %v1312 = vadd.f32 %v951, %v1224
      %v1313 = vadd.f32 %v952, %v1227
      %v1314 = vadd.f32 %v953, %v1229
      %v1315 = vadd.f32 %v954, %v1232
      %v1316 = vadd.f32 %v955, %v1234
      %v1317 = vadd.f32 %v956, %v1237
      %v1318 = vadd.f32 %v957, %v1239
      %v1319 = vadd.f32 %v958, %v1242
      %v1320 = vadd.f32 %v959, %v1244
      %v1321 = vadd.f32 %v960, %v1247
      %v1322 = vadd.f32 %v961, %v1249
      %v1323 = vadd.f32 %v962, %v1252
      %v1324 = vadd.f32 %v963, %v1254
      %v1325 = vadd.f32 %v964, %v1257
      %v1326 = vadd.f32 %v965, %v1259
      %v1327 = vadd.f32 %v966, %v1262
      %v1328 = vadd.f32 %v967, %v1264
      %v1329 = vadd.f32 %v968, %v1267
      %v1330 = vadd.f32 %v969, %v1269
      %v1331 = vadd.f32 %v970, %v1272
      %v1332 = vadd.f32 %v971, %v1274
      %v1333 = vadd.f32 %v972, %v1277
      %v1334 = vadd.f32 %v973, %v1279
      %v1335 = vadd.f32 %v974, %v1282
      %v1336 = vadd.f32 %v975, %v1284
      %v1337 = vadd.f32 %v976, %v1287
      %v1338 = vadd.f32 %v977, %v1289
      %v1339 = vadd.f32 %v978, %v1292
      %v1340 = vadd.f32 %v979, %v1294
      %v1341 = vadd.f32 %v980, %v1297
      %v1342 = vadd.f32 %v981, %v1299
      %v1343 = vadd.f32 %v982, %v1302
      %v1344 = vadd.f32 %v983, %v1304
      %v1345 = vadd.f32 %v984, %v1307
      %v1346 = vadd.f32 %v985, %v1309
      %v1347 = vld [vmem:[%s165 + $0x98] sm:$0x3]
      %s1348 = scalar_lea.vmem %s1, 8
      %v1349 = vld [vmem:[%s1348] sm:$0x3]
      %v1351 = vunpack.c.l.b16 %v1347
      %v1352 = vpack.c.b16 %v1351, %v1351
      %vm1353 = vsmask.f32 6400
      %v1355 = vshrl.u32 %v1099, 16
      %v1357 = vrot.slane %v1355, 1
      %v1358 = vshll.u32 %v1099, 16
      %v1360 = vrot.slane %v1358, 2
      %v1361 = vor.u32 %v1357, %v1360
      %v1363 = vshrl.u32 %v1100, 16
      %v1365 = vrot.slane %v1363, 1
      %v1366 = vshll.u32 %v1100, 16
      %v1368 = vrot.slane %v1366, 2
      %v1369 = vor.u32 %v1365, %v1368
      %v1370 = vsel %vm1353, %v1361, %v1369
      %v1372 = vshrl.u32 %v1101, 16
      %v1374 = vrot.slane %v1372, 1
      %v1375 = vshll.u32 %v1101, 16
      %v1377 = vrot.slane %v1375, 2
      %v1378 = vor.u32 %v1374, %v1377
      %v1379 = vsel %vm1353, %v1369, %v1378
      %v1381 = vshrl.u32 %v1102, 16
      %v1383 = vrot.slane %v1381, 1
      %v1384 = vshll.u32 %v1102, 16
      %v1386 = vrot.slane %v1384, 2
      %v1387 = vor.u32 %v1383, %v1386
      %v1388 = vsel %vm1353, %v1378, %v1387
      %v1390 = vshrl.u32 %v1103, 16
      %v1392 = vrot.slane %v1390, 1
      %v1393 = vshll.u32 %v1103, 16
      %v1395 = vrot.slane %v1393, 2
      %v1396 = vor.u32 %v1392, %v1395
      %v1397 = vsel %vm1353, %v1387, %v1396
      %v1399 = vshrl.u32 %v1104, 16
      %v1401 = vrot.slane %v1399, 1
      %v1402 = vshll.u32 %v1104, 16
      %v1404 = vrot.slane %v1402, 2
      %v1405 = vor.u32 %v1401, %v1404
      %v1406 = vsel %vm1353, %v1396, %v1405
      %v1408 = vshrl.u32 %v1105, 16
      %v1410 = vrot.slane %v1408, 1
      %v1411 = vshll.u32 %v1105, 16
      %v1413 = vrot.slane %v1411, 2
      %v1414 = vor.u32 %v1410, %v1413
      %v1415 = vsel %vm1353, %v1405, %v1414
      %v1417 = vshrl.u32 %v1106, 16
      %v1419 = vrot.slane %v1417, 1
      %v1420 = vshll.u32 %v1106, 16
      %v1422 = vrot.slane %v1420, 2
      %v1423 = vor.u32 %v1419, %v1422
      %v1424 = vsel %vm1353, %v1414, %v1423
      %v1426 = vshrl.u32 %v1107, 16
      %v1428 = vrot.slane %v1426, 1
      %v1429 = vshll.u32 %v1107, 16
      %v1431 = vrot.slane %v1429, 2
      %v1432 = vor.u32 %v1428, %v1431
      %v1433 = vsel %vm1353, %v1423, %v1432
      %v1435 = vshrl.u32 %v1108, 16
      %v1437 = vrot.slane %v1435, 1
      %v1438 = vshll.u32 %v1108, 16
      %v1440 = vrot.slane %v1438, 2
      %v1441 = vor.u32 %v1437, %v1440
      %v1442 = vsel %vm1353, %v1432, %v1441
      %v1444 = vshrl.u32 %v1109, 16
      %v1446 = vrot.slane %v1444, 1
      %v1447 = vshll.u32 %v1109, 16
      %v1449 = vrot.slane %v1447, 2
      %v1450 = vor.u32 %v1446, %v1449
      %v1451 = vsel %vm1353, %v1441, %v1450
      %v1453 = vshrl.u32 %v1110, 16
      %v1455 = vrot.slane %v1453, 1
      %v1456 = vshll.u32 %v1110, 16
      %v1458 = vrot.slane %v1456, 2
      %v1459 = vor.u32 %v1455, %v1458
      %v1460 = vsel %vm1353, %v1450, %v1459
      %v1462 = vshrl.u32 %v1111, 16
      %v1464 = vrot.slane %v1462, 1
      %v1465 = vshll.u32 %v1111, 16
      %v1467 = vrot.slane %v1465, 2
      %v1468 = vor.u32 %v1464, %v1467
      %v1469 = vsel %vm1353, %v1459, %v1468
      %v1471 = vshrl.u32 %v1112, 16
      %v1473 = vrot.slane %v1471, 1
      %v1474 = vshll.u32 %v1112, 16
      %v1476 = vrot.slane %v1474, 2
      %v1477 = vor.u32 %v1473, %v1476
      %v1478 = vsel %vm1353, %v1468, %v1477
      %v1480 = vshrl.u32 %v1113, 16
      %v1482 = vrot.slane %v1480, 1
      %v1483 = vshll.u32 %v1113, 16
      %v1485 = vrot.slane %v1483, 2
      %v1486 = vor.u32 %v1482, %v1485
      %v1487 = vsel %vm1353, %v1477, %v1486
      %v1489 = vshrl.u32 %v1114, 16
      %v1491 = vrot.slane %v1489, 1
      %v1492 = vshll.u32 %v1114, 16
      %v1494 = vrot.slane %v1492, 2
      %v1495 = vor.u32 %v1491, %v1494
      %v1496 = vsel %vm1353, %v1486, %v1495
      %v1498 = vshrl.u32 %v1115, 16
      %v1500 = vrot.slane %v1498, 1
      %v1501 = vshll.u32 %v1115, 16
      %v1503 = vrot.slane %v1501, 2
      %v1504 = vor.u32 %v1500, %v1503
      %v1505 = vsel %vm1353, %v1495, %v1504
      %v1507 = vshrl.u32 %v1116, 16
      %v1509 = vrot.slane %v1507, 1
      %v1510 = vshll.u32 %v1116, 16
      %v1512 = vrot.slane %v1510, 2
      %v1513 = vor.u32 %v1509, %v1512
      %v1514 = vsel %vm1353, %v1504, %v1513
      %v1516 = vshrl.u32 %v1352, 16
      %v1518 = vrot.slane %v1516, 1
      %v1519 = vshll.u32 %v1352, 16
      %v1521 = vrot.slane %v1519, 2
      %v1522 = vor.u32 %v1518, %v1521
      %v1523 = vsel %vm1353, %v1513, %v1522
      %v1525 = vsel %vm454, %v1370, 0
      %v1528 = vsel %vm454, %v1379, 0
      %v1531 = vsel %vm454, %v1388, 0
      %v1534 = vsel %vm454, %v1397, 0
      %v1537 = vsel %vm454, %v1406, 0
      %v1540 = vsel %vm454, %v1415, 0
      %v1543 = vsel %vm454, %v1424, 0
      %v1546 = vsel %vm454, %v1433, 0
      %v1549 = vsel %vm454, %v1442, 0
      %v1552 = vsel %vm454, %v1451, 0
      %v1555 = vsel %vm454, %v1460, 0
      %v1558 = vsel %vm454, %v1469, 0
      %v1561 = vsel %vm454, %v1478, 0
      %v1564 = vsel %vm454, %v1487, 0
      %v1567 = vsel %vm454, %v1496, 0
      %v1570 = vsel %vm454, %v1505, 0
      %v1573 = vsel %vm454, %v1514, 0
      %v1576 = vsel %vm454, %v1523, 0
      %v1579 = vsel %vm509, %v1349, 0
      %1581 = vmatpush.bf16.msra.mxu0 0
      %1582 = vmatpush.bf16.msra.mxu0 0
      %1583 = vmatpush.bf16.msra.mxu0 0
      %1584 = vmatpush.bf16.msra.mxu0 0
      %1585 = vmatpush.bf16.msra.mxu0 0
      %1586 = vmatpush.bf16.msra.mxu0 0
      %1587 = vmatpush.bf16.msra.mxu0 0
      %1588 = vmatpush.bf16.msra.mxu0 %v1579
      %1589 = vmatmul.bf16.gmra.mxu0 %v1525
      %v1590 = vpop.f32.mrf.mxu0
      %v1591 = vadd.f32 0.0, %v1590
      %v1592 = vpop.f32.mrf.mxu0
      %v1593 = vadd.f32 0.0, %v1592
      %1594 = vmatmul.bf16.gmra.mxu0 %v1528
      %v1595 = vpop.f32.mrf.mxu0
      %v1596 = vadd.f32 0.0, %v1595
      %v1597 = vpop.f32.mrf.mxu0
      %v1598 = vadd.f32 0.0, %v1597
      %1599 = vmatmul.bf16.gmra.mxu0 %v1531
      %v1600 = vpop.f32.mrf.mxu0
      %v1601 = vadd.f32 0.0, %v1600
      %v1602 = vpop.f32.mrf.mxu0
      %v1603 = vadd.f32 0.0, %v1602
      %1604 = vmatmul.bf16.gmra.mxu0 %v1534
      %v1605 = vpop.f32.mrf.mxu0
      %v1606 = vadd.f32 0.0, %v1605
      %v1607 = vpop.f32.mrf.mxu0
      %v1608 = vadd.f32 0.0, %v1607
      %1609 = vmatmul.bf16.gmra.mxu0 %v1537
      %v1610 = vpop.f32.mrf.mxu0
      %v1611 = vadd.f32 0.0, %v1610
      %v1612 = vpop.f32.mrf.mxu0
      %v1613 = vadd.f32 0.0, %v1612
      %1614 = vmatmul.bf16.gmra.mxu0 %v1540
      %v1615 = vpop.f32.mrf.mxu0
      %v1616 = vadd.f32 0.0, %v1615
      %v1617 = vpop.f32.mrf.mxu0
      %v1618 = vadd.f32 0.0, %v1617
      %1619 = vmatmul.bf16.gmra.mxu0 %v1543
      %v1620 = vpop.f32.mrf.mxu0
      %v1621 = vadd.f32 0.0, %v1620
      %v1622 = vpop.f32.mrf.mxu0
      %v1623 = vadd.f32 0.0, %v1622
      %1624 = vmatmul.bf16.gmra.mxu0 %v1546
      %v1625 = vpop.f32.mrf.mxu0
      %v1626 = vadd.f32 0.0, %v1625
      %v1627 = vpop.f32.mrf.mxu0
      %v1628 = vadd.f32 0.0, %v1627
      %1629 = vmatmul.bf16.gmra.mxu0 %v1549
      %v1630 = vpop.f32.mrf.mxu0
      %v1631 = vadd.f32 0.0, %v1630
      %v1632 = vpop.f32.mrf.mxu0
      %v1633 = vadd.f32 0.0, %v1632
      %1634 = vmatmul.bf16.gmra.mxu0 %v1552
      %v1635 = vpop.f32.mrf.mxu0
      %v1636 = vadd.f32 0.0, %v1635
      %v1637 = vpop.f32.mrf.mxu0
      %v1638 = vadd.f32 0.0, %v1637
      %1639 = vmatmul.bf16.gmra.mxu0 %v1555
      %v1640 = vpop.f32.mrf.mxu0
      %v1641 = vadd.f32 0.0, %v1640
      %v1642 = vpop.f32.mrf.mxu0
      %v1643 = vadd.f32 0.0, %v1642
      %1644 = vmatmul.bf16.gmra.mxu0 %v1558
      %v1645 = vpop.f32.mrf.mxu0
      %v1646 = vadd.f32 0.0, %v1645
      %v1647 = vpop.f32.mrf.mxu0
      %v1648 = vadd.f32 0.0, %v1647
      %1649 = vmatmul.bf16.gmra.mxu0 %v1561
      %v1650 = vpop.f32.mrf.mxu0
      %v1651 = vadd.f32 0.0, %v1650
      %v1652 = vpop.f32.mrf.mxu0
      %v1653 = vadd.f32 0.0, %v1652
      %1654 = vmatmul.bf16.gmra.mxu0 %v1564
      %v1655 = vpop.f32.mrf.mxu0
      %v1656 = vadd.f32 0.0, %v1655
      %v1657 = vpop.f32.mrf.mxu0
      %v1658 = vadd.f32 0.0, %v1657
      %1659 = vmatmul.bf16.gmra.mxu0 %v1567
      %v1660 = vpop.f32.mrf.mxu0
      %v1661 = vadd.f32 0.0, %v1660
      %v1662 = vpop.f32.mrf.mxu0
      %v1663 = vadd.f32 0.0, %v1662
      %1664 = vmatmul.bf16.gmra.mxu0 %v1570
      %v1665 = vpop.f32.mrf.mxu0
      %v1666 = vadd.f32 0.0, %v1665
      %v1667 = vpop.f32.mrf.mxu0
      %v1668 = vadd.f32 0.0, %v1667
      %1669 = vmatmul.bf16.gmra.mxu0 %v1573
      %v1670 = vpop.f32.mrf.mxu0
      %v1671 = vadd.f32 0.0, %v1670
      %v1672 = vpop.f32.mrf.mxu0
      %v1673 = vadd.f32 0.0, %v1672
      %1674 = vmatmul.bf16.gmra.mxu0 %v1576
      %v1675 = vpop.f32.mrf.mxu0
      %v1676 = vadd.f32 0.0, %v1675
      %v1677 = vpop.f32.mrf.mxu0
      %v1678 = vadd.f32 0.0, %v1677
      %1679 = vdwg.mxu0
      %v1680 = vadd.f32 %v1311, %v1591
      %v1681 = vadd.f32 %v1312, %v1593
      %v1682 = vadd.f32 %v1313, %v1596
      %v1683 = vadd.f32 %v1314, %v1598
      %v1684 = vadd.f32 %v1315, %v1601
      %v1685 = vadd.f32 %v1316, %v1603
      %v1686 = vadd.f32 %v1317, %v1606
      %v1687 = vadd.f32 %v1318, %v1608
      %v1688 = vadd.f32 %v1319, %v1611
      %v1689 = vadd.f32 %v1320, %v1613
      %v1690 = vadd.f32 %v1321, %v1616
      %v1691 = vadd.f32 %v1322, %v1618
      %v1692 = vadd.f32 %v1323, %v1621
      %v1693 = vadd.f32 %v1324, %v1623
      %v1694 = vadd.f32 %v1325, %v1626
      %v1695 = vadd.f32 %v1326, %v1628
      %v1696 = vadd.f32 %v1327, %v1631
      %v1697 = vadd.f32 %v1328, %v1633
      %v1698 = vadd.f32 %v1329, %v1636
      %v1699 = vadd.f32 %v1330, %v1638
      %v1700 = vadd.f32 %v1331, %v1641
      %v1701 = vadd.f32 %v1332, %v1643
      %v1702 = vadd.f32 %v1333, %v1646
      %v1703 = vadd.f32 %v1334, %v1648
      %v1704 = vadd.f32 %v1335, %v1651
      %v1705 = vadd.f32 %v1336, %v1653
      %v1706 = vadd.f32 %v1337, %v1656
      %v1707 = vadd.f32 %v1338, %v1658
      %v1708 = vadd.f32 %v1339, %v1661
      %v1709 = vadd.f32 %v1340, %v1663
      %v1710 = vadd.f32 %v1341, %v1666
      %v1711 = vadd.f32 %v1342, %v1668
      %v1712 = vadd.f32 %v1343, %v1671
      %v1713 = vadd.f32 %v1344, %v1673
      %v1714 = vadd.f32 %v1345, %v1676
      %v1715 = vadd.f32 %v1346, %v1678
      %v1716 = vld [vmem:[%s165 + $0x8] sm:$0xc]
      %s1717 = scalar_lea.vmem %s1, 10
      %v1718 = vld [vmem:[%s1717] sm:$0x3]
      %v1720 = vunpack.c.l.b16 %v1716
      %v1721 = vpack.c.b16 %v1063, %v1720
      %vm1722 = vcmask 1045504
      %v1723 = vrot.slane %v1721, 2
      %v1724 = vrot.slane %v1100, 2
      %v1725 = vsel %vm1722, %v1723, %v1724
      %v1726 = vrot.slane %v1101, 2
      %v1727 = vsel %vm1722, %v1724, %v1726
      %v1728 = vrot.slane %v1102, 2
      %v1729 = vsel %vm1722, %v1726, %v1728
      %v1730 = vrot.slane %v1103, 2
      %v1731 = vsel %vm1722, %v1728, %v1730
      %v1732 = vrot.slane %v1104, 2
      %v1733 = vsel %vm1722, %v1730, %v1732
      %v1734 = vrot.slane %v1105, 2
      %v1735 = vsel %vm1722, %v1732, %v1734
      %v1736 = vrot.slane %v1106, 2
      %v1737 = vsel %vm1722, %v1734, %v1736
      %v1738 = vrot.slane %v1107, 2
      %v1739 = vsel %vm1722, %v1736, %v1738
      %v1740 = vrot.slane %v1108, 2
      %v1741 = vsel %vm1722, %v1738, %v1740
      %v1742 = vrot.slane %v1109, 2
      %v1743 = vsel %vm1722, %v1740, %v1742
      %v1744 = vrot.slane %v1110, 2
      %v1745 = vsel %vm1722, %v1742, %v1744
      %v1746 = vrot.slane %v1111, 2
      %v1747 = vsel %vm1722, %v1744, %v1746
      %v1748 = vrot.slane %v1112, 2
      %v1749 = vsel %vm1722, %v1746, %v1748
      %v1750 = vrot.slane %v1113, 2
      %v1751 = vsel %vm1722, %v1748, %v1750
      %v1752 = vrot.slane %v1114, 2
      %v1753 = vsel %vm1722, %v1750, %v1752
      %v1754 = vrot.slane %v1115, 2
      %v1755 = vsel %vm1722, %v1752, %v1754
      %v1756 = vrot.slane %v1116, 2
      %v1757 = vsel %vm1722, %v1754, %v1756
      %v1758 = vrot.slane %v1352, 2
      %v1759 = vsel %vm1722, %v1756, %v1758
      %v1761 = vsel %vm454, %v1725, 0
      %v1764 = vsel %vm454, %v1727, 0
      %v1767 = vsel %vm454, %v1729, 0
      %v1770 = vsel %vm454, %v1731, 0
      %v1773 = vsel %vm454, %v1733, 0
      %v1776 = vsel %vm454, %v1735, 0
      %v1779 = vsel %vm454, %v1737, 0
      %v1782 = vsel %vm454, %v1739, 0
      %v1785 = vsel %vm454, %v1741, 0
      %v1788 = vsel %vm454, %v1743, 0
      %v1791 = vsel %vm454, %v1745, 0
      %v1794 = vsel %vm454, %v1747, 0
      %v1797 = vsel %vm454, %v1749, 0
      %v1800 = vsel %vm454, %v1751, 0
      %v1803 = vsel %vm454, %v1753, 0
      %v1806 = vsel %vm454, %v1755, 0
      %v1809 = vsel %vm454, %v1757, 0
      %v1812 = vsel %vm454, %v1759, 0
      %v1815 = vsel %vm509, %v1718, 0
      %1817 = vmatpush.bf16.msra.mxu0 0
      %1818 = vmatpush.bf16.msra.mxu0 0
      %1819 = vmatpush.bf16.msra.mxu0 0
      %1820 = vmatpush.bf16.msra.mxu0 0
      %1821 = vmatpush.bf16.msra.mxu0 0
      %1822 = vmatpush.bf16.msra.mxu0 0
      %1823 = vmatpush.bf16.msra.mxu0 0
      %1824 = vmatpush.bf16.msra.mxu0 %v1815
      %1825 = vmatmul.bf16.gmra.mxu0 %v1761
      %v1826 = vpop.f32.mrf.mxu0
      %v1827 = vadd.f32 0.0, %v1826
      %v1828 = vpop.f32.mrf.mxu0
      %v1829 = vadd.f32 0.0, %v1828
      %1830 = vmatmul.bf16.gmra.mxu0 %v1764
      %v1831 = vpop.f32.mrf.mxu0
      %v1832 = vadd.f32 0.0, %v1831
      %v1833 = vpop.f32.mrf.mxu0
      %v1834 = vadd.f32 0.0, %v1833
      %1835 = vmatmul.bf16.gmra.mxu0 %v1767
      %v1836 = vpop.f32.mrf.mxu0
      %v1837 = vadd.f32 0.0, %v1836
      %v1838 = vpop.f32.mrf.mxu0
      %v1839 = vadd.f32 0.0, %v1838
      %1840 = vmatmul.bf16.gmra.mxu0 %v1770
      %v1841 = vpop.f32.mrf.mxu0
      %v1842 = vadd.f32 0.0, %v1841
      %v1843 = vpop.f32.mrf.mxu0
      %v1844 = vadd.f32 0.0, %v1843
      %1845 = vmatmul.bf16.gmra.mxu0 %v1773
      %v1846 = vpop.f32.mrf.mxu0
      %v1847 = vadd.f32 0.0, %v1846
      %v1848 = vpop.f32.mrf.mxu0
      %v1849 = vadd.f32 0.0, %v1848
      %1850 = vmatmul.bf16.gmra.mxu0 %v1776
      %v1851 = vpop.f32.mrf.mxu0
      %v1852 = vadd.f32 0.0, %v1851
      %v1853 = vpop.f32.mrf.mxu0
      %v1854 = vadd.f32 0.0, %v1853
      %1855 = vmatmul.bf16.gmra.mxu0 %v1779
      %v1856 = vpop.f32.mrf.mxu0
      %v1857 = vadd.f32 0.0, %v1856
      %v1858 = vpop.f32.mrf.mxu0
      %v1859 = vadd.f32 0.0, %v1858
      %1860 = vmatmul.bf16.gmra.mxu0 %v1782
      %v1861 = vpop.f32.mrf.mxu0
      %v1862 = vadd.f32 0.0, %v1861
      %v1863 = vpop.f32.mrf.mxu0
      %v1864 = vadd.f32 0.0, %v1863
      %1865 = vmatmul.bf16.gmra.mxu0 %v1785
      %v1866 = vpop.f32.mrf.mxu0
      %v1867 = vadd.f32 0.0, %v1866
      %v1868 = vpop.f32.mrf.mxu0
      %v1869 = vadd.f32 0.0, %v1868
      %1870 = vmatmul.bf16.gmra.mxu0 %v1788
      %v1871 = vpop.f32.mrf.mxu0
      %v1872 = vadd.f32 0.0, %v1871
      %v1873 = vpop.f32.mrf.mxu0
      %v1874 = vadd.f32 0.0, %v1873
      %1875 = vmatmul.bf16.gmra.mxu0 %v1791
      %v1876 = vpop.f32.mrf.mxu0
      %v1877 = vadd.f32 0.0, %v1876
      %v1878 = vpop.f32.mrf.mxu0
      %v1879 = vadd.f32 0.0, %v1878
      %1880 = vmatmul.bf16.gmra.mxu0 %v1794
      %v1881 = vpop.f32.mrf.mxu0
      %v1882 = vadd.f32 0.0, %v1881
      %v1883 = vpop.f32.mrf.mxu0
      %v1884 = vadd.f32 0.0, %v1883
      %1885 = vmatmul.bf16.gmra.mxu0 %v1797
      %v1886 = vpop.f32.mrf.mxu0
      %v1887 = vadd.f32 0.0, %v1886
      %v1888 = vpop.f32.mrf.mxu0
      %v1889 = vadd.f32 0.0, %v1888
      %1890 = vmatmul.bf16.gmra.mxu0 %v1800
      %v1891 = vpop.f32.mrf.mxu0
      %v1892 = vadd.f32 0.0, %v1891
      %v1893 = vpop.f32.mrf.mxu0
      %v1894 = vadd.f32 0.0, %v1893
      %1895 = vmatmul.bf16.gmra.mxu0 %v1803
      %v1896 = vpop.f32.mrf.mxu0
      %v1897 = vadd.f32 0.0, %v1896
      %v1898 = vpop.f32.mrf.mxu0
      %v1899 = vadd.f32 0.0, %v1898
      %1900 = vmatmul.bf16.gmra.mxu0 %v1806
      %v1901 = vpop.f32.mrf.mxu0
      %v1902 = vadd.f32 0.0, %v1901
      %v1903 = vpop.f32.mrf.mxu0
      %v1904 = vadd.f32 0.0, %v1903
      %1905 = vmatmul.bf16.gmra.mxu0 %v1809
      %v1906 = vpop.f32.mrf.mxu0
      %v1907 = vadd.f32 0.0, %v1906
      %v1908 = vpop.f32.mrf.mxu0
      %v1909 = vadd.f32 0.0, %v1908
      %1910 = vmatmul.bf16.gmra.mxu0 %v1812
      %v1911 = vpop.f32.mrf.mxu0
      %v1912 = vadd.f32 0.0, %v1911
      %v1913 = vpop.f32.mrf.mxu0
      %v1914 = vadd.f32 0.0, %v1913
      %1915 = vdwg.mxu0
      %v1916 = vadd.f32 %v1680, %v1827
      %v1917 = vadd.f32 %v1681, %v1829
      %v1918 = vadd.f32 %v1682, %v1832
      %v1919 = vadd.f32 %v1683, %v1834
      %v1920 = vadd.f32 %v1684, %v1837
      %v1921 = vadd.f32 %v1685, %v1839
      %v1922 = vadd.f32 %v1686, %v1842
      %v1923 = vadd.f32 %v1687, %v1844
      %v1924 = vadd.f32 %v1688, %v1847
      %v1925 = vadd.f32 %v1689, %v1849
      %v1926 = vadd.f32 %v1690, %v1852
      %v1927 = vadd.f32 %v1691, %v1854
      %v1928 = vadd.f32 %v1692, %v1857
      %v1929 = vadd.f32 %v1693, %v1859
      %v1930 = vadd.f32 %v1694, %v1862
      %v1931 = vadd.f32 %v1695, %v1864
      %v1932 = vadd.f32 %v1696, %v1867
      %v1933 = vadd.f32 %v1697, %v1869
      %v1934 = vadd.f32 %v1698, %v1872
      %v1935 = vadd.f32 %v1699, %v1874
      %v1936 = vadd.f32 %v1700, %v1877
      %v1937 = vadd.f32 %v1701, %v1879
      %v1938 = vadd.f32 %v1702, %v1882
      %v1939 = vadd.f32 %v1703, %v1884
      %v1940 = vadd.f32 %v1704, %v1887
      %v1941 = vadd.f32 %v1705, %v1889
      %v1942 = vadd.f32 %v1706, %v1892
      %v1943 = vadd.f32 %v1707, %v1894
      %v1944 = vadd.f32 %v1708, %v1897
      %v1945 = vadd.f32 %v1709, %v1899
      %v1946 = vadd.f32 %v1710, %v1902
      %v1947 = vadd.f32 %v1711, %v1904
      %v1948 = vadd.f32 %v1712, %v1907
      %v1949 = vadd.f32 %v1713, %v1909
      %v1950 = vadd.f32 %v1714, %v1912
      %v1951 = vadd.f32 %v1715, %v1914
      %v1952 = vld [vmem:[%s165 + $0x10] sm:$0xc]
      %v1953 = vld [vmem:[%s165 + $0x14] sm:$0xf]
      %v1954 = vld [vmem:[%s165 + $0x18] sm:$0xf]
      %v1955 = vld [vmem:[%s165 + $0x1c] sm:$0xf]
      %v1956 = vld [vmem:[%s165 + $0x20] sm:$0xf]
      %v1957 = vld [vmem:[%s165 + $0x24] sm:$0xf]
      %v1958 = vld [vmem:[%s165 + $0x28] sm:$0xf]
      %v1959 = vld [vmem:[%s165 + $0x2c] sm:$0xf]
      %v1960 = vld [vmem:[%s165 + $0x30] sm:$0xf]
      %v1961 = vld [vmem:[%s165 + $0x34] sm:$0xf]
      %v1962 = vld [vmem:[%s165 + $0x38] sm:$0xf]
      %v1963 = vld [vmem:[%s165 + $0x3c] sm:$0xf]
      %v1964 = vld [vmem:[%s165 + $0x40] sm:$0xf]
      %v1965 = vld [vmem:[%s165 + $0x44] sm:$0xf]
      %v1966 = vld [vmem:[%s165 + $0x48] sm:$0xf]
      %v1967 = vld [vmem:[%s165 + $0x4c] sm:$0xf]
      %v1968 = vld [vmem:[%s165 + $0x50] sm:$0xf]
      %v1969 = vld [vmem:[%s165 + $0x54] sm:$0xf]
      %v1970 = vld [vmem:[%s165 + $0x58] sm:$0xf]
      %v1971 = vld [vmem:[%s165 + $0x5c] sm:$0xf]
      %v1972 = vld [vmem:[%s165 + $0x60] sm:$0xf]
      %v1973 = vld [vmem:[%s165 + $0x64] sm:$0xf]
      %v1974 = vld [vmem:[%s165 + $0x68] sm:$0xf]
      %v1975 = vld [vmem:[%s165 + $0x6c] sm:$0xf]
      %v1976 = vld [vmem:[%s165 + $0x70] sm:$0xf]
      %v1977 = vld [vmem:[%s165 + $0x74] sm:$0xf]
      %v1978 = vld [vmem:[%s165 + $0x78] sm:$0xf]
      %v1979 = vld [vmem:[%s165 + $0x7c] sm:$0xf]
      %v1980 = vld [vmem:[%s165 + $0x80] sm:$0xf]
      %v1981 = vld [vmem:[%s165 + $0x84] sm:$0xf]
      %v1982 = vld [vmem:[%s165 + $0x88] sm:$0xf]
      %v1983 = vld [vmem:[%s165 + $0x8c] sm:$0xf]
      %v1984 = vld [vmem:[%s165 + $0x90] sm:$0xf]
      %v1985 = vld [vmem:[%s165 + $0x94] sm:$0xf]
      %v1986 = vld [vmem:[%s165 + $0x98] sm:$0xf]
      %v1987 = vld [vmem:[%s165 + $0x9c] sm:$0xf]
      %v1988 = vld [vmem:[%s165 + $0xa0] sm:$0x3]
      %s1989 = scalar_lea.vmem %s1, 12
      %v1990 = vld [vmem:[%s1989] sm:$0x3]
      %v2028 = vunpack.c.l.b16 %v1952
      %v2029 = vunpack.c.l.b16 %v1953
      %v2030 = vunpack.c.l.b16 %v1954
      %v2031 = vunpack.c.l.b16 %v1955
      %v2032 = vunpack.c.l.b16 %v1956
      %v2033 = vunpack.c.l.b16 %v1957
      %v2034 = vunpack.c.l.b16 %v1958
      %v2035 = vunpack.c.l.b16 %v1959
      %v2036 = vunpack.c.l.b16 %v1960
      %v2037 = vunpack.c.l.b16 %v1961
      %v2038 = vunpack.c.l.b16 %v1962
      %v2039 = vunpack.c.l.b16 %v1963
      %v2040 = vunpack.c.l.b16 %v1964
      %v2041 = vunpack.c.l.b16 %v1965
      %v2042 = vunpack.c.l.b16 %v1966
      %v2043 = vunpack.c.l.b16 %v1967
      %v2044 = vunpack.c.l.b16 %v1968
      %v2045 = vunpack.c.l.b16 %v1969
      %v2046 = vunpack.c.l.b16 %v1970
      %v2047 = vunpack.c.l.b16 %v1971
      %v2048 = vunpack.c.l.b16 %v1972
      %v2049 = vunpack.c.l.b16 %v1973
      %v2050 = vunpack.c.l.b16 %v1974
      %v2051 = vunpack.c.l.b16 %v1975
      %v2052 = vunpack.c.l.b16 %v1976
      %v2053 = vunpack.c.l.b16 %v1977
      %v2054 = vunpack.c.l.b16 %v1978
      %v2055 = vunpack.c.l.b16 %v1979
      %v2056 = vunpack.c.l.b16 %v1980
      %v2057 = vunpack.c.l.b16 %v1981
      %v2058 = vunpack.c.l.b16 %v1982
      %v2059 = vunpack.c.l.b16 %v1983
      %v2060 = vunpack.c.l.b16 %v1984
      %v2061 = vunpack.c.l.b16 %v1985
      %v2062 = vunpack.c.l.b16 %v1986
      %v2063 = vunpack.c.l.b16 %v1987
      %v2064 = vunpack.c.l.b16 %v1988
      %v2065 = vpack.c.b16 %v2029, %v2028
      %v2066 = vpack.c.b16 %v2031, %v2030
      %v2067 = vpack.c.b16 %v2033, %v2032
      %v2068 = vpack.c.b16 %v2035, %v2034
      %v2069 = vpack.c.b16 %v2037, %v2036
      %v2070 = vpack.c.b16 %v2039, %v2038
      %v2071 = vpack.c.b16 %v2041, %v2040
      %v2072 = vpack.c.b16 %v2043, %v2042
      %v2073 = vpack.c.b16 %v2045, %v2044
      %v2074 = vpack.c.b16 %v2047, %v2046
      %v2075 = vpack.c.b16 %v2049, %v2048
      %v2076 = vpack.c.b16 %v2051, %v2050
      %v2077 = vpack.c.b16 %v2053, %v2052
      %v2078 = vpack.c.b16 %v2055, %v2054
      %v2079 = vpack.c.b16 %v2057, %v2056
      %v2080 = vpack.c.b16 %v2059, %v2058
      %v2081 = vpack.c.b16 %v2061, %v2060
      %v2082 = vpack.c.b16 %v2063, %v2062
      %v2083 = vpack.c.b16 %v2064, %v2064
      %v2084 = vrot.slane %v2065, 2
      %v2085 = vrot.slane %v2066, 2
      %v2086 = vsel %vm1722, %v2084, %v2085
      %v2087 = vrot.slane %v2067, 2
      %v2088 = vsel %vm1722, %v2085, %v2087
      %v2089 = vrot.slane %v2068, 2
      %v2090 = vsel %vm1722, %v2087, %v2089
      %v2091 = vrot.slane %v2069, 2
      %v2092 = vsel %vm1722, %v2089, %v2091
      %v2093 = vrot.slane %v2070, 2
      %v2094 = vsel %vm1722, %v2091, %v2093
      %v2095 = vrot.slane %v2071, 2
      %v2096 = vsel %vm1722, %v2093, %v2095
      %v2097 = vrot.slane %v2072, 2
      %v2098 = vsel %vm1722, %v2095, %v2097
      %v2099 = vrot.slane %v2073, 2
      %v2100 = vsel %vm1722, %v2097, %v2099
      %v2101 = vrot.slane %v2074, 2
      %v2102 = vsel %vm1722, %v2099, %v2101
      %v2103 = vrot.slane %v2075, 2
      %v2104 = vsel %vm1722, %v2101, %v2103
      %v2105 = vrot.slane %v2076, 2
      %v2106 = vsel %vm1722, %v2103, %v2105
      %v2107 = vrot.slane %v2077, 2
      %v2108 = vsel %vm1722, %v2105, %v2107
      %v2109 = vrot.slane %v2078, 2
      %v2110 = vsel %vm1722, %v2107, %v2109
      %v2111 = vrot.slane %v2079, 2
      %v2112 = vsel %vm1722, %v2109, %v2111
      %v2113 = vrot.slane %v2080, 2
      %v2114 = vsel %vm1722, %v2111, %v2113
      %v2115 = vrot.slane %v2081, 2
      %v2116 = vsel %vm1722, %v2113, %v2115
      %v2117 = vrot.slane %v2082, 2
      %v2118 = vsel %vm1722, %v2115, %v2117
      %v2119 = vrot.slane %v2083, 2
      %v2120 = vsel %vm1722, %v2117, %v2119
      %v2122 = vsel %vm454, %v2086, 0
      %v2125 = vsel %vm454, %v2088, 0
      %v2128 = vsel %vm454, %v2090, 0
      %v2131 = vsel %vm454, %v2092, 0
      %v2134 = vsel %vm454, %v2094, 0
      %v2137 = vsel %vm454, %v2096, 0
      %v2140 = vsel %vm454, %v2098, 0
      %v2143 = vsel %vm454, %v2100, 0
      %v2146 = vsel %vm454, %v2102, 0
      %v2149 = vsel %vm454, %v2104, 0
      %v2152 = vsel %vm454, %v2106, 0
      %v2155 = vsel %vm454, %v2108, 0
      %v2158 = vsel %vm454, %v2110, 0
      %v2161 = vsel %vm454, %v2112, 0
      %v2164 = vsel %vm454, %v2114, 0
      %v2167 = vsel %vm454, %v2116, 0
      %v2170 = vsel %vm454, %v2118, 0
      %v2173 = vsel %vm454, %v2120, 0
      %v2176 = vsel %vm509, %v1990, 0
      %2178 = vmatpush.bf16.msra.mxu0 0
      %2179 = vmatpush.bf16.msra.mxu0 0
      %2180 = vmatpush.bf16.msra.mxu0 0
      %2181 = vmatpush.bf16.msra.mxu0 0
      %2182 = vmatpush.bf16.msra.mxu0 0
      %2183 = vmatpush.bf16.msra.mxu0 0
      %2184 = vmatpush.bf16.msra.mxu0 0
      %2185 = vmatpush.bf16.msra.mxu0 %v2176
      %2186 = vmatmul.bf16.gmra.mxu0 %v2122
      %v2187 = vpop.f32.mrf.mxu0
      %v2188 = vadd.f32 0.0, %v2187
      %v2189 = vpop.f32.mrf.mxu0
      %v2190 = vadd.f32 0.0, %v2189
      %2191 = vmatmul.bf16.gmra.mxu0 %v2125
      %v2192 = vpop.f32.mrf.mxu0
      %v2193 = vadd.f32 0.0, %v2192
      %v2194 = vpop.f32.mrf.mxu0
      %v2195 = vadd.f32 0.0, %v2194
      %2196 = vmatmul.bf16.gmra.mxu0 %v2128
      %v2197 = vpop.f32.mrf.mxu0
      %v2198 = vadd.f32 0.0, %v2197
      %v2199 = vpop.f32.mrf.mxu0
      %v2200 = vadd.f32 0.0, %v2199
      %2201 = vmatmul.bf16.gmra.mxu0 %v2131
      %v2202 = vpop.f32.mrf.mxu0
      %v2203 = vadd.f32 0.0, %v2202
      %v2204 = vpop.f32.mrf.mxu0
      %v2205 = vadd.f32 0.0, %v2204
      %2206 = vmatmul.bf16.gmra.mxu0 %v2134
      %v2207 = vpop.f32.mrf.mxu0
      %v2208 = vadd.f32 0.0, %v2207
      %v2209 = vpop.f32.mrf.mxu0
      %v2210 = vadd.f32 0.0, %v2209
      %2211 = vmatmul.bf16.gmra.mxu0 %v2137
      %v2212 = vpop.f32.mrf.mxu0
      %v2213 = vadd.f32 0.0, %v2212
      %v2214 = vpop.f32.mrf.mxu0
      %v2215 = vadd.f32 0.0, %v2214
      %2216 = vmatmul.bf16.gmra.mxu0 %v2140
      %v2217 = vpop.f32.mrf.mxu0
      %v2218 = vadd.f32 0.0, %v2217
      %v2219 = vpop.f32.mrf.mxu0
      %v2220 = vadd.f32 0.0, %v2219
      %2221 = vmatmul.bf16.gmra.mxu0 %v2143
      %v2222 = vpop.f32.mrf.mxu0
      %v2223 = vadd.f32 0.0, %v2222
      %v2224 = vpop.f32.mrf.mxu0
      %v2225 = vadd.f32 0.0, %v2224
      %2226 = vmatmul.bf16.gmra.mxu0 %v2146
      %v2227 = vpop.f32.mrf.mxu0
      %v2228 = vadd.f32 0.0, %v2227
      %v2229 = vpop.f32.mrf.mxu0
      %v2230 = vadd.f32 0.0, %v2229
      %2231 = vmatmul.bf16.gmra.mxu0 %v2149
      %v2232 = vpop.f32.mrf.mxu0
      %v2233 = vadd.f32 0.0, %v2232
      %v2234 = vpop.f32.mrf.mxu0
      %v2235 = vadd.f32 0.0, %v2234
      %2236 = vmatmul.bf16.gmra.mxu0 %v2152
      %v2237 = vpop.f32.mrf.mxu0
      %v2238 = vadd.f32 0.0, %v2237
      %v2239 = vpop.f32.mrf.mxu0
      %v2240 = vadd.f32 0.0, %v2239
      %2241 = vmatmul.bf16.gmra.mxu0 %v2155
      %v2242 = vpop.f32.mrf.mxu0
      %v2243 = vadd.f32 0.0, %v2242
      %v2244 = vpop.f32.mrf.mxu0
      %v2245 = vadd.f32 0.0, %v2244
      %2246 = vmatmul.bf16.gmra.mxu0 %v2158
      %v2247 = vpop.f32.mrf.mxu0
      %v2248 = vadd.f32 0.0, %v2247
      %v2249 = vpop.f32.mrf.mxu0
      %v2250 = vadd.f32 0.0, %v2249
      %2251 = vmatmul.bf16.gmra.mxu0 %v2161
      %v2252 = vpop.f32.mrf.mxu0
      %v2253 = vadd.f32 0.0, %v2252
      %v2254 = vpop.f32.mrf.mxu0
      %v2255 = vadd.f32 0.0, %v2254
      %2256 = vmatmul.bf16.gmra.mxu0 %v2164
      %v2257 = vpop.f32.mrf.mxu0
      %v2258 = vadd.f32 0.0, %v2257
      %v2259 = vpop.f32.mrf.mxu0
      %v2260 = vadd.f32 0.0, %v2259
      %2261 = vmatmul.bf16.gmra.mxu0 %v2167
      %v2262 = vpop.f32.mrf.mxu0
      %v2263 = vadd.f32 0.0, %v2262
      %v2264 = vpop.f32.mrf.mxu0
      %v2265 = vadd.f32 0.0, %v2264
      %2266 = vmatmul.bf16.gmra.mxu0 %v2170
      %v2267 = vpop.f32.mrf.mxu0
      %v2268 = vadd.f32 0.0, %v2267
      %v2269 = vpop.f32.mrf.mxu0
      %v2270 = vadd.f32 0.0, %v2269
      %2271 = vmatmul.bf16.gmra.mxu0 %v2173
      %v2272 = vpop.f32.mrf.mxu0
      %v2273 = vadd.f32 0.0, %v2272
      %v2274 = vpop.f32.mrf.mxu0
      %v2275 = vadd.f32 0.0, %v2274
      %2276 = vdwg.mxu0
      %v2277 = vadd.f32 %v1916, %v2188
      %v2278 = vadd.f32 %v1917, %v2190
      %v2279 = vadd.f32 %v1918, %v2193
      %v2280 = vadd.f32 %v1919, %v2195
      %v2281 = vadd.f32 %v1920, %v2198
      %v2282 = vadd.f32 %v1921, %v2200
      %v2283 = vadd.f32 %v1922, %v2203
      %v2284 = vadd.f32 %v1923, %v2205
      %v2285 = vadd.f32 %v1924, %v2208
      %v2286 = vadd.f32 %v1925, %v2210
      %v2287 = vadd.f32 %v1926, %v2213
      %v2288 = vadd.f32 %v1927, %v2215
      %v2289 = vadd.f32 %v1928, %v2218
      %v2290 = vadd.f32 %v1929, %v2220
      %v2291 = vadd.f32 %v1930, %v2223
      %v2292 = vadd.f32 %v1931, %v2225
      %v2293 = vadd.f32 %v1932, %v2228
      %v2294 = vadd.f32 %v1933, %v2230
      %v2295 = vadd.f32 %v1934, %v2233
      %v2296 = vadd.f32 %v1935, %v2235
      %v2297 = vadd.f32 %v1936, %v2238
      %v2298 = vadd.f32 %v1937, %v2240
      %v2299 = vadd.f32 %v1938, %v2243
      %v2300 = vadd.f32 %v1939, %v2245
      %v2301 = vadd.f32 %v1940, %v2248
      %v2302 = vadd.f32 %v1941, %v2250
      %v2303 = vadd.f32 %v1942, %v2253
      %v2304 = vadd.f32 %v1943, %v2255
      %v2305 = vadd.f32 %v1944, %v2258
      %v2306 = vadd.f32 %v1945, %v2260
      %v2307 = vadd.f32 %v1946, %v2263
      %v2308 = vadd.f32 %v1947, %v2265
      %v2309 = vadd.f32 %v1948, %v2268
      %v2310 = vadd.f32 %v1949, %v2270
      %v2311 = vadd.f32 %v1950, %v2273
      %v2312 = vadd.f32 %v1951, %v2275
      %v2313 = vld [vmem:[%s165 + $0xa0] sm:$0x7]
      %s2314 = scalar_lea.vmem %s1, 14
      %v2315 = vld [vmem:[%s2314] sm:$0x3]
      %v2317 = vunpack.c.l.b16 %v2313
      %v2318 = vpack.c.b16 %v2317, %v2317
      %vm2319 = vsmask.f32 5376
      %v2321 = vshrl.u32 %v2065, 16
      %v2323 = vrot.slane %v2321, 2
      %v2324 = vshll.u32 %v2065, 16
      %v2326 = vrot.slane %v2324, 3
      %v2327 = vor.u32 %v2323, %v2326
      %v2329 = vshrl.u32 %v2066, 16
      %v2331 = vrot.slane %v2329, 2
      %v2332 = vshll.u32 %v2066, 16
      %v2334 = vrot.slane %v2332, 3
      %v2335 = vor.u32 %v2331, %v2334
      %v2336 = vsel %vm2319, %v2327, %v2335
      %v2338 = vshrl.u32 %v2067, 16
      %v2340 = vrot.slane %v2338, 2
      %v2341 = vshll.u32 %v2067, 16
      %v2343 = vrot.slane %v2341, 3
      %v2344 = vor.u32 %v2340, %v2343
      %v2345 = vsel %vm2319, %v2335, %v2344
      %v2347 = vshrl.u32 %v2068, 16
      %v2349 = vrot.slane %v2347, 2
      %v2350 = vshll.u32 %v2068, 16
      %v2352 = vrot.slane %v2350, 3
      %v2353 = vor.u32 %v2349, %v2352
      %v2354 = vsel %vm2319, %v2344, %v2353
      %v2356 = vshrl.u32 %v2069, 16
      %v2358 = vrot.slane %v2356, 2
      %v2359 = vshll.u32 %v2069, 16
      %v2361 = vrot.slane %v2359, 3
      %v2362 = vor.u32 %v2358, %v2361
      %v2363 = vsel %vm2319, %v2353, %v2362
      %v2365 = vshrl.u32 %v2070, 16
      %v2367 = vrot.slane %v2365, 2
      %v2368 = vshll.u32 %v2070, 16
      %v2370 = vrot.slane %v2368, 3
      %v2371 = vor.u32 %v2367, %v2370
      %v2372 = vsel %vm2319, %v2362, %v2371
      %v2374 = vshrl.u32 %v2071, 16
      %v2376 = vrot.slane %v2374, 2
      %v2377 = vshll.u32 %v2071, 16
      %v2379 = vrot.slane %v2377, 3
      %v2380 = vor.u32 %v2376, %v2379
      %v2381 = vsel %vm2319, %v2371, %v2380
      %v2383 = vshrl.u32 %v2072, 16
      %v2385 = vrot.slane %v2383, 2
      %v2386 = vshll.u32 %v2072, 16
      %v2388 = vrot.slane %v2386, 3
      %v2389 = vor.u32 %v2385, %v2388
      %v2390 = vsel %vm2319, %v2380, %v2389
      %v2392 = vshrl.u32 %v2073, 16
      %v2394 = vrot.slane %v2392, 2
      %v2395 = vshll.u32 %v2073, 16
      %v2397 = vrot.slane %v2395, 3
      %v2398 = vor.u32 %v2394, %v2397
      %v2399 = vsel %vm2319, %v2389, %v2398
      %v2401 = vshrl.u32 %v2074, 16
      %v2403 = vrot.slane %v2401, 2
      %v2404 = vshll.u32 %v2074, 16
      %v2406 = vrot.slane %v2404, 3
      %v2407 = vor.u32 %v2403, %v2406
      %v2408 = vsel %vm2319, %v2398, %v2407
      %v2410 = vshrl.u32 %v2075, 16
      %v2412 = vrot.slane %v2410, 2
      %v2413 = vshll.u32 %v2075, 16
      %v2415 = vrot.slane %v2413, 3
      %v2416 = vor.u32 %v2412, %v2415
      %v2417 = vsel %vm2319, %v2407, %v2416
      %v2419 = vshrl.u32 %v2076, 16
      %v2421 = vrot.slane %v2419, 2
      %v2422 = vshll.u32 %v2076, 16
      %v2424 = vrot.slane %v2422, 3
      %v2425 = vor.u32 %v2421, %v2424
      %v2426 = vsel %vm2319, %v2416, %v2425
      %v2428 = vshrl.u32 %v2077, 16
      %v2430 = vrot.slane %v2428, 2
      %v2431 = vshll.u32 %v2077, 16
      %v2433 = vrot.slane %v2431, 3
      %v2434 = vor.u32 %v2430, %v2433
      %v2435 = vsel %vm2319, %v2425, %v2434
      %v2437 = vshrl.u32 %v2078, 16
      %v2439 = vrot.slane %v2437, 2
      %v2440 = vshll.u32 %v2078, 16
      %v2442 = vrot.slane %v2440, 3
      %v2443 = vor.u32 %v2439, %v2442
      %v2444 = vsel %vm2319, %v2434, %v2443
      %v2446 = vshrl.u32 %v2079, 16
      %v2448 = vrot.slane %v2446, 2
      %v2449 = vshll.u32 %v2079, 16
      %v2451 = vrot.slane %v2449, 3
      %v2452 = vor.u32 %v2448, %v2451
      %v2453 = vsel %vm2319, %v2443, %v2452
      %v2455 = vshrl.u32 %v2080, 16
      %v2457 = vrot.slane %v2455, 2
      %v2458 = vshll.u32 %v2080, 16
      %v2460 = vrot.slane %v2458, 3
      %v2461 = vor.u32 %v2457, %v2460
      %v2462 = vsel %vm2319, %v2452, %v2461
      %v2464 = vshrl.u32 %v2081, 16
      %v2466 = vrot.slane %v2464, 2
      %v2467 = vshll.u32 %v2081, 16
      %v2469 = vrot.slane %v2467, 3
      %v2470 = vor.u32 %v2466, %v2469
      %v2471 = vsel %vm2319, %v2461, %v2470
      %v2473 = vshrl.u32 %v2082, 16
      %v2475 = vrot.slane %v2473, 2
      %v2476 = vshll.u32 %v2082, 16
      %v2478 = vrot.slane %v2476, 3
      %v2479 = vor.u32 %v2475, %v2478
      %v2480 = vsel %vm2319, %v2470, %v2479
      %v2482 = vshrl.u32 %v2318, 16
      %v2484 = vrot.slane %v2482, 2
      %v2485 = vshll.u32 %v2318, 16
      %v2487 = vrot.slane %v2485, 3
      %v2488 = vor.u32 %v2484, %v2487
      %v2489 = vsel %vm2319, %v2479, %v2488
      %v2491 = vsel %vm454, %v2336, 0
      %v2494 = vsel %vm454, %v2345, 0
      %v2497 = vsel %vm454, %v2354, 0
      %v2500 = vsel %vm454, %v2363, 0
      %v2503 = vsel %vm454, %v2372, 0
      %v2506 = vsel %vm454, %v2381, 0
      %v2509 = vsel %vm454, %v2390, 0
      %v2512 = vsel %vm454, %v2399, 0
      %v2515 = vsel %vm454, %v2408, 0
      %v2518 = vsel %vm454, %v2417, 0
      %v2521 = vsel %vm454, %v2426, 0
      %v2524 = vsel %vm454, %v2435, 0
      %v2527 = vsel %vm454, %v2444, 0
      %v2530 = vsel %vm454, %v2453, 0
      %v2533 = vsel %vm454, %v2462, 0
      %v2536 = vsel %vm454, %v2471, 0
      %v2539 = vsel %vm454, %v2480, 0
      %v2542 = vsel %vm454, %v2489, 0
      %v2545 = vsel %vm509, %v2315, 0
      %2547 = vmatpush.bf16.msra.mxu0 0
      %2548 = vmatpush.bf16.msra.mxu0 0
      %2549 = vmatpush.bf16.msra.mxu0 0
      %2550 = vmatpush.bf16.msra.mxu0 0
      %2551 = vmatpush.bf16.msra.mxu0 0
      %2552 = vmatpush.bf16.msra.mxu0 0
      %2553 = vmatpush.bf16.msra.mxu0 0
      %2554 = vmatpush.bf16.msra.mxu0 %v2545
      %2555 = vmatmul.bf16.gmra.mxu0 %v2491
      %v2556 = vpop.f32.mrf.mxu0
      %v2557 = vadd.f32 0.0, %v2556
      %v2558 = vpop.f32.mrf.mxu0
      %v2559 = vadd.f32 0.0, %v2558
      %2560 = vmatmul.bf16.gmra.mxu0 %v2494
      %v2561 = vpop.f32.mrf.mxu0
      %v2562 = vadd.f32 0.0, %v2561
      %v2563 = vpop.f32.mrf.mxu0
      %v2564 = vadd.f32 0.0, %v2563
      %2565 = vmatmul.bf16.gmra.mxu0 %v2497
      %v2566 = vpop.f32.mrf.mxu0
      %v2567 = vadd.f32 0.0, %v2566
      %v2568 = vpop.f32.mrf.mxu0
      %v2569 = vadd.f32 0.0, %v2568
      %2570 = vmatmul.bf16.gmra.mxu0 %v2500
      %v2571 = vpop.f32.mrf.mxu0
      %v2572 = vadd.f32 0.0, %v2571
      %v2573 = vpop.f32.mrf.mxu0
      %v2574 = vadd.f32 0.0, %v2573
      %2575 = vmatmul.bf16.gmra.mxu0 %v2503
      %v2576 = vpop.f32.mrf.mxu0
      %v2577 = vadd.f32 0.0, %v2576
      %v2578 = vpop.f32.mrf.mxu0
      %v2579 = vadd.f32 0.0, %v2578
      %2580 = vmatmul.bf16.gmra.mxu0 %v2506
      %v2581 = vpop.f32.mrf.mxu0
      %v2582 = vadd.f32 0.0, %v2581
      %v2583 = vpop.f32.mrf.mxu0
      %v2584 = vadd.f32 0.0, %v2583
      %2585 = vmatmul.bf16.gmra.mxu0 %v2509
      %v2586 = vpop.f32.mrf.mxu0
      %v2587 = vadd.f32 0.0, %v2586
      %v2588 = vpop.f32.mrf.mxu0
      %v2589 = vadd.f32 0.0, %v2588
      %2590 = vmatmul.bf16.gmra.mxu0 %v2512
      %v2591 = vpop.f32.mrf.mxu0
      %v2592 = vadd.f32 0.0, %v2591
      %v2593 = vpop.f32.mrf.mxu0
      %v2594 = vadd.f32 0.0, %v2593
      %2595 = vmatmul.bf16.gmra.mxu0 %v2515
      %v2596 = vpop.f32.mrf.mxu0
      %v2597 = vadd.f32 0.0, %v2596
      %v2598 = vpop.f32.mrf.mxu0
      %v2599 = vadd.f32 0.0, %v2598
      %2600 = vmatmul.bf16.gmra.mxu0 %v2518
      %v2601 = vpop.f32.mrf.mxu0
      %v2602 = vadd.f32 0.0, %v2601
      %v2603 = vpop.f32.mrf.mxu0
      %v2604 = vadd.f32 0.0, %v2603
      %2605 = vmatmul.bf16.gmra.mxu0 %v2521
      %v2606 = vpop.f32.mrf.mxu0
      %v2607 = vadd.f32 0.0, %v2606
      %v2608 = vpop.f32.mrf.mxu0
      %v2609 = vadd.f32 0.0, %v2608
      %2610 = vmatmul.bf16.gmra.mxu0 %v2524
      %v2611 = vpop.f32.mrf.mxu0
      %v2612 = vadd.f32 0.0, %v2611
      %v2613 = vpop.f32.mrf.mxu0
      %v2614 = vadd.f32 0.0, %v2613
      %2615 = vmatmul.bf16.gmra.mxu0 %v2527
      %v2616 = vpop.f32.mrf.mxu0
      %v2617 = vadd.f32 0.0, %v2616
      %v2618 = vpop.f32.mrf.mxu0
      %v2619 = vadd.f32 0.0, %v2618
      %2620 = vmatmul.bf16.gmra.mxu0 %v2530
      %v2621 = vpop.f32.mrf.mxu0
      %v2622 = vadd.f32 0.0, %v2621
      %v2623 = vpop.f32.mrf.mxu0
      %v2624 = vadd.f32 0.0, %v2623
      %2625 = vmatmul.bf16.gmra.mxu0 %v2533
      %v2626 = vpop.f32.mrf.mxu0
      %v2627 = vadd.f32 0.0, %v2626
      %v2628 = vpop.f32.mrf.mxu0
      %v2629 = vadd.f32 0.0, %v2628
      %2630 = vmatmul.bf16.gmra.mxu0 %v2536
      %v2631 = vpop.f32.mrf.mxu0
      %v2632 = vadd.f32 0.0, %v2631
      %v2633 = vpop.f32.mrf.mxu0
      %v2634 = vadd.f32 0.0, %v2633
      %2635 = vmatmul.bf16.gmra.mxu0 %v2539
      %v2636 = vpop.f32.mrf.mxu0
      %v2637 = vadd.f32 0.0, %v2636
      %v2638 = vpop.f32.mrf.mxu0
      %v2639 = vadd.f32 0.0, %v2638
      %2640 = vmatmul.bf16.gmra.mxu0 %v2542
      %v2641 = vpop.f32.mrf.mxu0
      %v2642 = vadd.f32 0.0, %v2641
      %v2643 = vpop.f32.mrf.mxu0
      %v2644 = vadd.f32 0.0, %v2643
      %2645 = vdwg.mxu0
      %v2646 = vadd.f32 %v2277, %v2557
      %v2647 = vadd.f32 %v2278, %v2559
      %v2648 = vadd.f32 %v2279, %v2562
      %v2649 = vadd.f32 %v2280, %v2564
      %v2650 = vadd.f32 %v2281, %v2567
      %v2651 = vadd.f32 %v2282, %v2569
      %v2652 = vadd.f32 %v2283, %v2572
      %v2653 = vadd.f32 %v2284, %v2574
      %v2654 = vadd.f32 %v2285, %v2577
      %v2655 = vadd.f32 %v2286, %v2579
      %v2656 = vadd.f32 %v2287, %v2582
      %v2657 = vadd.f32 %v2288, %v2584
      %v2658 = vadd.f32 %v2289, %v2587
      %v2659 = vadd.f32 %v2290, %v2589
      %v2660 = vadd.f32 %v2291, %v2592
      %v2661 = vadd.f32 %v2292, %v2594
      %v2662 = vadd.f32 %v2293, %v2597
      %v2663 = vadd.f32 %v2294, %v2599
      %v2664 = vadd.f32 %v2295, %v2602
      %v2665 = vadd.f32 %v2296, %v2604
      %v2666 = vadd.f32 %v2297, %v2607
      %v2667 = vadd.f32 %v2298, %v2609
      %v2668 = vadd.f32 %v2299, %v2612
      %v2669 = vadd.f32 %v2300, %v2614
      %v2670 = vadd.f32 %v2301, %v2617
      %v2671 = vadd.f32 %v2302, %v2619
      %v2672 = vadd.f32 %v2303, %v2622
      %v2673 = vadd.f32 %v2304, %v2624
      %v2674 = vadd.f32 %v2305, %v2627
      %v2675 = vadd.f32 %v2306, %v2629
      %v2676 = vadd.f32 %v2307, %v2632
      %v2677 = vadd.f32 %v2308, %v2634
      %v2678 = vadd.f32 %v2309, %v2637
      %v2679 = vadd.f32 %v2310, %v2639
      %v2680 = vadd.f32 %v2311, %v2642
      %v2681 = vadd.f32 %v2312, %v2644
      %v2682 = vld [vmem:[%s165 + $0x10] sm:$0x8]
      %s2683 = scalar_lea.vmem %s1, 16
      %v2684 = vld [vmem:[%s2683] sm:$0x3]
      %v2686 = vunpack.c.l.b16 %v2682
      %v2687 = vpack.c.b16 %v2029, %v2686
      %vm2688 = vcmask 1044480
      %v2689 = vrot.slane %v2687, 3
      %v2690 = vrot.slane %v2066, 3
      %v2691 = vsel %vm2688, %v2689, %v2690
      %v2692 = vrot.slane %v2067, 3
      %v2693 = vsel %vm2688, %v2690, %v2692
      %v2694 = vrot.slane %v2068, 3
      %v2695 = vsel %vm2688, %v2692, %v2694
      %v2696 = vrot.slane %v2069, 3
      %v2697 = vsel %vm2688, %v2694, %v2696
      %v2698 = vrot.slane %v2070, 3
      %v2699 = vsel %vm2688, %v2696, %v2698
      %v2700 = vrot.slane %v2071, 3
      %v2701 = vsel %vm2688, %v2698, %v2700
      %v2702 = vrot.slane %v2072, 3
      %v2703 = vsel %vm2688, %v2700, %v2702
      %v2704 = vrot.slane %v2073, 3
      %v2705 = vsel %vm2688, %v2702, %v2704
      %v2706 = vrot.slane %v2074, 3
      %v2707 = vsel %vm2688, %v2704, %v2706
      %v2708 = vrot.slane %v2075, 3
      %v2709 = vsel %vm2688, %v2706, %v2708
      %v2710 = vrot.slane %v2076, 3
      %v2711 = vsel %vm2688, %v2708, %v2710
      %v2712 = vrot.slane %v2077, 3
      %v2713 = vsel %vm2688, %v2710, %v2712
      %v2714 = vrot.slane %v2078, 3
      %v2715 = vsel %vm2688, %v2712, %v2714
      %v2716 = vrot.slane %v2079, 3
      %v2717 = vsel %vm2688, %v2714, %v2716
      %v2718 = vrot.slane %v2080, 3
      %v2719 = vsel %vm2688, %v2716, %v2718
      %v2720 = vrot.slane %v2081, 3
      %v2721 = vsel %vm2688, %v2718, %v2720
      %v2722 = vrot.slane %v2082, 3
      %v2723 = vsel %vm2688, %v2720, %v2722
      %v2724 = vrot.slane %v2318, 3
      %v2725 = vsel %vm2688, %v2722, %v2724
      %v2727 = vsel %vm454, %v2691, 0
      %v2730 = vsel %vm454, %v2693, 0
      %v2733 = vsel %vm454, %v2695, 0
      %v2736 = vsel %vm454, %v2697, 0
      %v2739 = vsel %vm454, %v2699, 0
      %v2742 = vsel %vm454, %v2701, 0
      %v2745 = vsel %vm454, %v2703, 0
      %v2748 = vsel %vm454, %v2705, 0
      %v2751 = vsel %vm454, %v2707, 0
      %v2754 = vsel %vm454, %v2709, 0
      %v2757 = vsel %vm454, %v2711, 0
      %v2760 = vsel %vm454, %v2713, 0
      %v2763 = vsel %vm454, %v2715, 0
      %v2766 = vsel %vm454, %v2717, 0
      %v2769 = vsel %vm454, %v2719, 0
      %v2772 = vsel %vm454, %v2721, 0
      %v2775 = vsel %vm454, %v2723, 0
      %v2778 = vsel %vm454, %v2725, 0
      %v2781 = vsel %vm509, %v2684, 0
      %2783 = vmatpush.bf16.msra.mxu0 0
      %2784 = vmatpush.bf16.msra.mxu0 0
      %2785 = vmatpush.bf16.msra.mxu0 0
      %2786 = vmatpush.bf16.msra.mxu0 0
      %2787 = vmatpush.bf16.msra.mxu0 0
      %2788 = vmatpush.bf16.msra.mxu0 0
      %2789 = vmatpush.bf16.msra.mxu0 0
      %2790 = vmatpush.bf16.msra.mxu0 %v2781
      %2791 = vmatmul.bf16.gmra.mxu0 %v2727
      %v2792 = vpop.f32.mrf.mxu0
      %v2793 = vadd.f32 0.0, %v2792
      %v2794 = vpop.f32.mrf.mxu0
      %v2795 = vadd.f32 0.0, %v2794
      %2796 = vmatmul.bf16.gmra.mxu0 %v2730
      %v2797 = vpop.f32.mrf.mxu0
      %v2798 = vadd.f32 0.0, %v2797
      %v2799 = vpop.f32.mrf.mxu0
      %v2800 = vadd.f32 0.0, %v2799
      %2801 = vmatmul.bf16.gmra.mxu0 %v2733
      %v2802 = vpop.f32.mrf.mxu0
      %v2803 = vadd.f32 0.0, %v2802
      %v2804 = vpop.f32.mrf.mxu0
      %v2805 = vadd.f32 0.0, %v2804
      %2806 = vmatmul.bf16.gmra.mxu0 %v2736
      %v2807 = vpop.f32.mrf.mxu0
      %v2808 = vadd.f32 0.0, %v2807
      %v2809 = vpop.f32.mrf.mxu0
      %v2810 = vadd.f32 0.0, %v2809
      %2811 = vmatmul.bf16.gmra.mxu0 %v2739
      %v2812 = vpop.f32.mrf.mxu0
      %v2813 = vadd.f32 0.0, %v2812
      %v2814 = vpop.f32.mrf.mxu0
      %v2815 = vadd.f32 0.0, %v2814
      %2816 = vmatmul.bf16.gmra.mxu0 %v2742
      %v2817 = vpop.f32.mrf.mxu0
      %v2818 = vadd.f32 0.0, %v2817
      %v2819 = vpop.f32.mrf.mxu0
      %v2820 = vadd.f32 0.0, %v2819
      %2821 = vmatmul.bf16.gmra.mxu0 %v2745
      %v2822 = vpop.f32.mrf.mxu0
      %v2823 = vadd.f32 0.0, %v2822
      %v2824 = vpop.f32.mrf.mxu0
      %v2825 = vadd.f32 0.0, %v2824
      %2826 = vmatmul.bf16.gmra.mxu0 %v2748
      %v2827 = vpop.f32.mrf.mxu0
      %v2828 = vadd.f32 0.0, %v2827
      %v2829 = vpop.f32.mrf.mxu0
      %v2830 = vadd.f32 0.0, %v2829
      %2831 = vmatmul.bf16.gmra.mxu0 %v2751
      %v2832 = vpop.f32.mrf.mxu0
      %v2833 = vadd.f32 0.0, %v2832
      %v2834 = vpop.f32.mrf.mxu0
      %v2835 = vadd.f32 0.0, %v2834
      %2836 = vmatmul.bf16.gmra.mxu0 %v2754
      %v2837 = vpop.f32.mrf.mxu0
      %v2838 = vadd.f32 0.0, %v2837
      %v2839 = vpop.f32.mrf.mxu0
      %v2840 = vadd.f32 0.0, %v2839
      %2841 = vmatmul.bf16.gmra.mxu0 %v2757
      %v2842 = vpop.f32.mrf.mxu0
      %v2843 = vadd.f32 0.0, %v2842
      %v2844 = vpop.f32.mrf.mxu0
      %v2845 = vadd.f32 0.0, %v2844
      %2846 = vmatmul.bf16.gmra.mxu0 %v2760
      %v2847 = vpop.f32.mrf.mxu0
      %v2848 = vadd.f32 0.0, %v2847
      %v2849 = vpop.f32.mrf.mxu0
      %v2850 = vadd.f32 0.0, %v2849
      %2851 = vmatmul.bf16.gmra.mxu0 %v2763
      %v2852 = vpop.f32.mrf.mxu0
      %v2853 = vadd.f32 0.0, %v2852
      %v2854 = vpop.f32.mrf.mxu0
      %v2855 = vadd.f32 0.0, %v2854
      %2856 = vmatmul.bf16.gmra.mxu0 %v2766
      %v2857 = vpop.f32.mrf.mxu0
      %v2858 = vadd.f32 0.0, %v2857
      %v2859 = vpop.f32.mrf.mxu0
      %v2860 = vadd.f32 0.0, %v2859
      %2861 = vmatmul.bf16.gmra.mxu0 %v2769
      %v2862 = vpop.f32.mrf.mxu0
      %v2863 = vadd.f32 0.0, %v2862
      %v2864 = vpop.f32.mrf.mxu0
      %v2865 = vadd.f32 0.0, %v2864
      %2866 = vmatmul.bf16.gmra.mxu0 %v2772
      %v2867 = vpop.f32.mrf.mxu0
      %v2868 = vadd.f32 0.0, %v2867
      %v2869 = vpop.f32.mrf.mxu0
      %v2870 = vadd.f32 0.0, %v2869
      %2871 = vmatmul.bf16.gmra.mxu0 %v2775
      %v2872 = vpop.f32.mrf.mxu0
      %v2873 = vadd.f32 0.0, %v2872
      %v2874 = vpop.f32.mrf.mxu0
      %v2875 = vadd.f32 0.0, %v2874
      %2876 = vmatmul.bf16.gmra.mxu0 %v2778
      %v2877 = vpop.f32.mrf.mxu0
      %v2878 = vadd.f32 0.0, %v2877
      %v2879 = vpop.f32.mrf.mxu0
      %v2880 = vadd.f32 0.0, %v2879
      %2881 = vdwg.mxu0
      %v2882 = vadd.f32 %v2646, %v2793
      %v2883 = vadd.f32 %v2647, %v2795
      %v2884 = vadd.f32 %v2648, %v2798
      %v2885 = vadd.f32 %v2649, %v2800
      %v2886 = vadd.f32 %v2650, %v2803
      %v2887 = vadd.f32 %v2651, %v2805
      %v2888 = vadd.f32 %v2652, %v2808
      %v2889 = vadd.f32 %v2653, %v2810
      %v2890 = vadd.f32 %v2654, %v2813
      %v2891 = vadd.f32 %v2655, %v2815
      %v2892 = vadd.f32 %v2656, %v2818
      %v2893 = vadd.f32 %v2657, %v2820
      %v2894 = vadd.f32 %v2658, %v2823
      %v2895 = vadd.f32 %v2659, %v2825
      %v2896 = vadd.f32 %v2660, %v2828
      %v2897 = vadd.f32 %v2661, %v2830
      %v2898 = vadd.f32 %v2662, %v2833
      %v2899 = vadd.f32 %v2663, %v2835
      %v2900 = vadd.f32 %v2664, %v2838
      %v2901 = vadd.f32 %v2665, %v2840
      %v2902 = vadd.f32 %v2666, %v2843
      %v2903 = vadd.f32 %v2667, %v2845
      %v2904 = vadd.f32 %v2668, %v2848
      %v2905 = vadd.f32 %v2669, %v2850
      %v2906 = vadd.f32 %v2670, %v2853
      %v2907 = vadd.f32 %v2671, %v2855
      %v2908 = vadd.f32 %v2672, %v2858
      %v2909 = vadd.f32 %v2673, %v2860
      %v2910 = vadd.f32 %v2674, %v2863
      %v2911 = vadd.f32 %v2675, %v2865
      %v2912 = vadd.f32 %v2676, %v2868
      %v2913 = vadd.f32 %v2677, %v2870
      %v2914 = vadd.f32 %v2678, %v2873
      %v2915 = vadd.f32 %v2679, %v2875
      %v2916 = vadd.f32 %v2680, %v2878
      %v2917 = vadd.f32 %v2681, %v2880
      %v2918 = vld [vmem:[%s2] sm:$0x1]
      %v2920 = vperm.slane %v2918, 0
      %v2922 = vadd.f32 %v2882, %v2920
      %v2923 = vadd.f32 %v2883, %v2920
      %v2924 = vadd.f32 %v2884, %v2920
      %v2925 = vadd.f32 %v2885, %v2920
      %v2926 = vadd.f32 %v2886, %v2920
      %v2927 = vadd.f32 %v2887, %v2920
      %v2928 = vadd.f32 %v2888, %v2920
      %v2929 = vadd.f32 %v2889, %v2920
      %v2930 = vadd.f32 %v2890, %v2920
      %v2931 = vadd.f32 %v2891, %v2920
      %v2932 = vadd.f32 %v2892, %v2920
      %v2933 = vadd.f32 %v2893, %v2920
      %v2934 = vadd.f32 %v2894, %v2920
      %v2935 = vadd.f32 %v2895, %v2920
      %v2936 = vadd.f32 %v2896, %v2920
      %v2937 = vadd.f32 %v2897, %v2920
      %v2938 = vadd.f32 %v2898, %v2920
      %v2939 = vadd.f32 %v2899, %v2920
      %v2940 = vadd.f32 %v2900, %v2920
      %v2941 = vadd.f32 %v2901, %v2920
      %v2942 = vadd.f32 %v2902, %v2920
      %v2943 = vadd.f32 %v2903, %v2920
      %v2944 = vadd.f32 %v2904, %v2920
      %v2945 = vadd.f32 %v2905, %v2920
      %v2946 = vadd.f32 %v2906, %v2920
      %v2947 = vadd.f32 %v2907, %v2920
      %v2948 = vadd.f32 %v2908, %v2920
      %v2949 = vadd.f32 %v2909, %v2920
      %v2950 = vadd.f32 %v2910, %v2920
      %v2951 = vadd.f32 %v2911, %v2920
      %v2952 = vadd.f32 %v2912, %v2920
      %v2953 = vadd.f32 %v2913, %v2920
      %v2954 = vadd.f32 %v2914, %v2920
      %v2955 = vadd.f32 %v2915, %v2920
      %v2956 = vadd.f32 %v2916, %v2920
      %v2957 = vadd.f32 %v2917, %v2920
      %v2958 = vmax.f32 %v2922, 0.0
      %v2959 = vmax.f32 %v2923, 0.0
      %v2960 = vmax.f32 %v2924, 0.0
      %v2961 = vmax.f32 %v2925, 0.0
      %v2962 = vmax.f32 %v2926, 0.0
      %v2963 = vmax.f32 %v2927, 0.0
      %v2964 = vmax.f32 %v2928, 0.0
      %v2965 = vmax.f32 %v2929, 0.0
      %v2966 = vmax.f32 %v2930, 0.0
      %v2967 = vmax.f32 %v2931, 0.0
      %v2968 = vmax.f32 %v2932, 0.0
      %v2969 = vmax.f32 %v2933, 0.0
      %v2970 = vmax.f32 %v2934, 0.0
      %v2971 = vmax.f32 %v2935, 0.0
      %v2972 = vmax.f32 %v2936, 0.0
      %v2973 = vmax.f32 %v2937, 0.0
      %v2974 = vmax.f32 %v2938, 0.0
      %v2975 = vmax.f32 %v2939, 0.0
      %v2976 = vmax.f32 %v2940, 0.0
      %v2977 = vmax.f32 %v2941, 0.0
      %v2978 = vmax.f32 %v2942, 0.0
      %v2979 = vmax.f32 %v2943, 0.0
      %v2980 = vmax.f32 %v2944, 0.0
      %v2981 = vmax.f32 %v2945, 0.0
      %v2982 = vmax.f32 %v2946, 0.0
      %v2983 = vmax.f32 %v2947, 0.0
      %v2984 = vmax.f32 %v2948, 0.0
      %v2985 = vmax.f32 %v2949, 0.0
      %v2986 = vmax.f32 %v2950, 0.0
      %v2987 = vmax.f32 %v2951, 0.0
      %v2988 = vmax.f32 %v2952, 0.0
      %v2989 = vmax.f32 %v2953, 0.0
      %v2990 = vmax.f32 %v2954, 0.0
      %v2991 = vmax.f32 %v2955, 0.0
      %v2992 = vmax.f32 %v2956, 0.0
      %v2993 = vmax.f32 %v2957, 0.0
      %v2994 = vpack.c.bf16 %v2958, %v2958
      %v2995 = vpack.c.bf16 %v2959, %v2959
      %v2996 = vpack.c.bf16 %v2960, %v2960
      %v2997 = vpack.c.bf16 %v2961, %v2961
      %v2998 = vpack.c.bf16 %v2962, %v2962
      %v2999 = vpack.c.bf16 %v2963, %v2963
      %v3000 = vpack.c.bf16 %v2964, %v2964
      %v3001 = vpack.c.bf16 %v2965, %v2965
      %v3002 = vpack.c.bf16 %v2966, %v2966
      %v3003 = vpack.c.bf16 %v2967, %v2967
      %v3004 = vpack.c.bf16 %v2968, %v2968
      %v3005 = vpack.c.bf16 %v2969, %v2969
      %v3006 = vpack.c.bf16 %v2970, %v2970
      %v3007 = vpack.c.bf16 %v2971, %v2971
      %v3008 = vpack.c.bf16 %v2972, %v2972
      %v3009 = vpack.c.bf16 %v2973, %v2973
      %v3010 = vpack.c.bf16 %v2974, %v2974
      %v3011 = vpack.c.bf16 %v2975, %v2975
      %v3012 = vpack.c.bf16 %v2976, %v2976
      %v3013 = vpack.c.bf16 %v2977, %v2977
      %v3014 = vpack.c.bf16 %v2978, %v2978
      %v3015 = vpack.c.bf16 %v2979, %v2979
      %v3016 = vpack.c.bf16 %v2980, %v2980
      %v3017 = vpack.c.bf16 %v2981, %v2981
      %v3018 = vpack.c.bf16 %v2982, %v2982
      %v3019 = vpack.c.bf16 %v2983, %v2983
      %v3020 = vpack.c.bf16 %v2984, %v2984
      %v3021 = vpack.c.bf16 %v2985, %v2985
      %v3022 = vpack.c.bf16 %v2986, %v2986
      %v3023 = vpack.c.bf16 %v2987, %v2987
      %v3024 = vpack.c.bf16 %v2988, %v2988
      %v3025 = vpack.c.bf16 %v2989, %v2989
      %v3026 = vpack.c.bf16 %v2990, %v2990
      %v3027 = vpack.c.bf16 %v2991, %v2991
      %v3028 = vpack.c.bf16 %v2992, %v2992
      %v3029 = vpack.c.bf16 %v2993, %v2993
      %vm3030 = vcmask 27648
      %3031 = vst.msk [vmem:[%s170] sm:$0xf] %vm3030, %v2994
      %3032 = vst.msk [vmem:[%s170 + $0x4] sm:$0xf] %vm3030, %v2995
      %3033 = vst.msk [vmem:[%s170 + $0x8] sm:$0xf] %vm3030, %v2996
      %3034 = vst.msk [vmem:[%s170 + $0xc] sm:$0xf] %vm3030, %v2997
      %3035 = vst.msk [vmem:[%s170 + $0x10] sm:$0xf] %vm3030, %v2998
      %3036 = vst.msk [vmem:[%s170 + $0x14] sm:$0xf] %vm3030, %v2999
      %3037 = vst.msk [vmem:[%s170 + $0x18] sm:$0xf] %vm3030, %v3000
      %3038 = vst.msk [vmem:[%s170 + $0x1c] sm:$0xf] %vm3030, %v3001
      %3039 = vst.msk [vmem:[%s170 + $0x20] sm:$0xf] %vm3030, %v3002
      %3040 = vst.msk [vmem:[%s170 + $0x24] sm:$0xf] %vm3030, %v3003
      %3041 = vst.msk [vmem:[%s170 + $0x28] sm:$0xf] %vm3030, %v3004
      %3042 = vst.msk [vmem:[%s170 + $0x2c] sm:$0xf] %vm3030, %v3005
      %3043 = vst.msk [vmem:[%s170 + $0x30] sm:$0xf] %vm3030, %v3006
      %3044 = vst.msk [vmem:[%s170 + $0x34] sm:$0xf] %vm3030, %v3007
      %3045 = vst.msk [vmem:[%s170 + $0x38] sm:$0xf] %vm3030, %v3008
      %3046 = vst.msk [vmem:[%s170 + $0x3c] sm:$0xf] %vm3030, %v3009
      %3047 = vst.msk [vmem:[%s170 + $0x40] sm:$0xf] %vm3030, %v3010
      %3048 = vst.msk [vmem:[%s170 + $0x44] sm:$0xf] %vm3030, %v3011
      %3049 = vst.msk [vmem:[%s170 + $0x48] sm:$0xf] %vm3030, %v3012
      %3050 = vst.msk [vmem:[%s170 + $0x4c] sm:$0xf] %vm3030, %v3013
      %3051 = vst.msk [vmem:[%s170 + $0x50] sm:$0xf] %vm3030, %v3014
      %3052 = vst.msk [vmem:[%s170 + $0x54] sm:$0xf] %vm3030, %v3015
      %3053 = vst.msk [vmem:[%s170 + $0x58] sm:$0xf] %vm3030, %v3016
      %3054 = vst.msk [vmem:[%s170 + $0x5c] sm:$0xf] %vm3030, %v3017
      %3055 = vst.msk [vmem:[%s170 + $0x60] sm:$0xf] %vm3030, %v3018
      %3056 = vst.msk [vmem:[%s170 + $0x64] sm:$0xf] %vm3030, %v3019
      %3057 = vst.msk [vmem:[%s170 + $0x68] sm:$0xf] %vm3030, %v3020
      %3058 = vst.msk [vmem:[%s170 + $0x6c] sm:$0xf] %vm3030, %v3021
      %3059 = vst.msk [vmem:[%s170 + $0x70] sm:$0xf] %vm3030, %v3022
      %3060 = vst.msk [vmem:[%s170 + $0x74] sm:$0xf] %vm3030, %v3023
      %3061 = vst.msk [vmem:[%s170 + $0x78] sm:$0xf] %vm3030, %v3024
      %3062 = vst.msk [vmem:[%s170 + $0x7c] sm:$0xf] %vm3030, %v3025
      %3063 = vst.msk [vmem:[%s170 + $0x80] sm:$0xf] %vm3030, %v3026
      %3064 = vst.msk [vmem:[%s170 + $0x84] sm:$0xf] %vm3030, %v3027
      %3065 = vst.msk [vmem:[%s170 + $0x88] sm:$0xf] %vm3030, %v3028
      %3066 = vst.msk [vmem:[%s170 + $0x8c] sm:$0xf] %vm3030, %v3029
      %p3067 = scmp.lt.s32.totalorder %s14, 1
      %s3068 = scalar_select %p3067, %s14, 1
      %s3069 = smul.addr %s3068, 36
      %s3070 = smul.addr %s3069, 4
      %s3071 = scalar_lea.vmem %s3, %s3070
      // Predicated region
      $region33: #{hw_scale_ratio_forward.3} parent=31 // pred_check
        %p3072 = pneg %p100
      $region34: #{hw_scale_ratio_forward.3} parent=31 // pred_check_branch
        %3074 = sbr.rel (%p3072) target = $region36
      $region35: #{hw_scale_ratio_forward.3} parent=31 // pred_region
        _
      $region36: #{hw_scale_ratio_forward.3} parent=31 // pred_fallthru
        _
    $region32: #{hw_scale_ratio_forward.3} parent=5 // pred_fallthru
      _
    %p3075 = scmp.le.s32.totalorder 2, %s9
    // Predicated region
    $region37: #{hw_scale_ratio_forward.3} parent=5 // pred_check
      %p3076 = pneg %p3075
    $region38: #{hw_scale_ratio_forward.3} parent=5 // pred_check_branch
      %3078 = sbr.rel (%p3076) target = $region40
    $region39: #{hw_scale_ratio_forward.3} parent=5 // pred_region
      %s3079 = ssub.s32 %s9, 2
      // Predicated region
      $region41: #{hw_scale_ratio_forward.3} parent=39 // pred_check
        %p3080 = pneg %p106
      $region42: #{hw_scale_ratio_forward.3} parent=39 // pred_check_branch
        %3082 = sbr.rel (%p3080) target = $region44
      $region43: #{hw_scale_ratio_forward.3} parent=39 // pred_region
        %p3083 = scmp.lt.s32.totalorder %s15, 1
        %s3084 = scalar_select %p3083, %s15, 1
        %s3085 = smul.addr %s3084, 36
        %s3086 = smul.addr %s3085, 4
        %s3087 = scalar_lea.vmem %s3, %s3086
      $region44: #{hw_scale_ratio_forward.3} parent=39 // pred_fallthru
        _
    $region40: #{hw_scale_ratio_forward.3} parent=5 // pred_fallthru
      _
  $region6: #{hw_scale_ratio_forward.3} parent=0 // loop_footer
    %s13 = sadd.s32 1, %s9
  $region7: #{hw_scale_ratio_forward.3} parent=0 // loop_footer_branch
    %8 = sbr.rel target = $region3
  $region8: #{hw_scale_ratio_forward.3} parent=0 // loop_exit
    _

// kernel: hw_scale_ratio_forward.2
$region0: #{hw_scale_ratio_forward.2}
  #allocation0 [shape = 'u32[]', space=smem, size = 0x4, offset = 0x4, fixed_abs, tag = 'smem constant byte address 0x4 - core index']
  #allocation1 [shape = 'u32[72,128]{1,0:T(1,128)}', space=vmem, size = 0x9000, scoped, tag = 'internal scratch']
  %s0 = inlined_call_operand.vmem [shape: bf16[2,1190,8], index: 0, kind: input, shape index: {}]
  %s1 = inlined_call_operand.vmem [shape: bf16[9,8,4], index: 1, kind: input, shape index: {}]
  %s2 = inlined_call_operand.vmem [shape: f32[1,4], index: 2, kind: input, shape index: {}]
  %s3 = inlined_call_operand.vmem [shape: bf16[2,1088,4], index: 3, kind: output, shape index: {}]
  %s4 = sld [smem:[#allocation0]]
  $region45: #{hw_scale_ratio_forward.2} parent=0
    _
  %s6 = ssub.s32 1, %s4
  %s7 = scalar_select 0, %s6, %s4
  loop: start=0, step=1, limit=4
  $region2: #{hw_scale_ratio_forward.2} parent=0 // loop_pre_header
    _
  $region3: #{hw_scale_ratio_forward.2} parent=0 // loop_header
    %s9 = sphi 0, %s13
    %p10 = scmp.ge.s32.totalorder %s9, 4
    %s19 = sphi 0, %s21
    %s22 = sphi 0, %s19
    %s23 = sphi 0, %s22
    %s39 = sphi 0, %s23
    %s43 = sphi 0, %s43
    %s45 = sphi 0, %s43
    %s46 = sphi 0, %s45
    %s60 = sphi 0, %s46
    %s64 = sphi 0, %s64
    %s66 = sphi 0, %s64
    %s67 = sphi 0, %s66
    %s81 = sphi 0, %s67
    %s87 = sphi 0, %s89
    %s90 = sphi 0, %s87
    %s91 = sphi 0, %s90
    %s107 = sphi 0, %s91
  $region4: #{hw_scale_ratio_forward.2} parent=0 // loop_header_branch
    %12 = sbr.rel (%p10) target = $region8
  $region5: #{hw_scale_ratio_forward.2} parent=0 // loop_body
    %s14 = ssub.s32 %s9, 1
    %s15 = ssub.s32 %s9, 2
    %s16 = sadd.s32 %s9, 1
    %s17 = ssub.s32 %s9, %s16
    %p18 = scmp.eq.s32.totalorder %s17, 0
    %s20 = sadd.s32 %s19, 1
    %s21 = scalar_select %p18, %s19, %s20
    %p24 = pneg %p18
    %p25 = scmp.eq.s32.totalorder %s9, 1
    %p26 = por %p24, %p25
    %p27 = scmp.ne.s32.totalorder %s19, %s22
    %p28 = scmp.eq.s32.totalorder %s9, 0
    %p29 = por %p27, %p28
    %p30 = scmp.ne.s32.totalorder %s19, %s22
    %p31 = scmp.eq.s32.totalorder %s14, 1
    %p32 = por %p30, %p31
    %p33 = scmp.ne.s32.totalorder %s22, %s23
    %p34 = scmp.eq.s32.totalorder %s14, 0
    %p35 = por %p33, %p34
    %p36 = scmp.ne.s32.totalorder %s22, %s23
    %p37 = scmp.eq.s32.totalorder %s15, 1
    %p38 = por %p36, %p37
    %p40 = scmp.ne.s32.totalorder %s23, %s39
    %p41 = scmp.eq.s32.totalorder %s15, 0
    %p42 = por %p40, %p41
    %s44 = sadd.s32 %s43, 1
    %p47 = scmp.eq.s32.totalorder %s9, 1
    %p48 = scmp.ne.s32.totalorder %s43, %s45
    %p49 = scmp.eq.s32.totalorder %s9, 0
    %p50 = por %p48, %p49
    %p51 = scmp.ne.s32.totalorder %s43, %s45
    %p52 = scmp.eq.s32.totalorder %s14, 1
    %p53 = por %p51, %p52
    %p54 = scmp.ne.s32.totalorder %s45, %s46
    %p55 = scmp.eq.s32.totalorder %s14, 0
    %p56 = por %p54, %p55
    %p57 = scmp.ne.s32.totalorder %s45, %s46
    %p58 = scmp.eq.s32.totalorder %s15, 1
    %p59 = por %p57, %p58
    %p61 = scmp.ne.s32.totalorder %s46, %s60
    %p62 = scmp.eq.s32.totalorder %s15, 0
    %p63 = por %p61, %p62
    %s65 = sadd.s32 %s64, 1
    %p68 = scmp.eq.s32.totalorder %s9, 1
    %p69 = scmp.ne.s32.totalorder %s64, %s66
    %p70 = scmp.eq.s32.totalorder %s9, 0
    %p71 = por %p69, %p70
    %p72 = scmp.ne.s32.totalorder %s64, %s66
    %p73 = scmp.eq.s32.totalorder %s14, 1
    %p74 = por %p72, %p73
    %p75 = scmp.ne.s32.totalorder %s66, %s67
    %p76 = scmp.eq.s32.totalorder %s14, 0
    %p77 = por %p75, %p76
    %p78 = scmp.ne.s32.totalorder %s66, %s67
    %p79 = scmp.eq.s32.totalorder %s15, 1
    %p80 = por %p78, %p79
    %p82 = scmp.ne.s32.totalorder %s67, %s81
    %p83 = scmp.eq.s32.totalorder %s15, 0
    %p84 = por %p82, %p83
    %s85 = ssub.s32 %s9, %s16
    %p86 = scmp.eq.s32.totalorder %s85, 0
    %s88 = sadd.s32 %s87, 1
    %s89 = scalar_select %p86, %s87, %s88
    %p92 = pneg %p86
    %p93 = scmp.eq.s32.totalorder %s9, 1
    %p94 = por %p92, %p93
    %p95 = scmp.ne.s32.totalorder %s87, %s90
    %p96 = scmp.eq.s32.totalorder %s9, 0
    %p97 = por %p95, %p96
    %p98 = scmp.ne.s32.totalorder %s87, %s90
    %p99 = scmp.eq.s32.totalorder %s14, 1
    %p100 = por %p98, %p99
    %p101 = scmp.ne.s32.totalorder %s90, %s91
    %p102 = scmp.eq.s32.totalorder %s14, 0
    %p103 = por %p101, %p102
    %p104 = scmp.ne.s32.totalorder %s90, %s91
    %p105 = scmp.eq.s32.totalorder %s15, 1
    %p106 = por %p104, %p105
    %p108 = scmp.ne.s32.totalorder %s91, %s107
    %p109 = scmp.eq.s32.totalorder %s15, 0
    %p110 = por %p108, %p109
    %p111 = scmp.le.s32.totalorder 1, %s9
    %p112 = scmp.lt.s32.totalorder %s9, 3
    %p113 = pnand %p111, %p112
    %p114 = pneg %p113
    // Predicated region
    $region9: #{hw_scale_ratio_forward.2} parent=5 // pred_check
      _
    $region10: #{hw_scale_ratio_forward.2} parent=5 // pred_check_branch
      %116 = sbr.rel (%p113) target = $region12
    $region11: #{hw_scale_ratio_forward.2} parent=5 // pred_region
      %s117 = ssub.s32 %s9, 1
      // Predicated region
      $region13: #{hw_scale_ratio_forward.2} parent=11 // pred_check
        %p118 = pneg %p56
      $region14: #{hw_scale_ratio_forward.2} parent=11 // pred_check_branch
        %120 = sbr.rel (%p118) target = $region16
      $region15: #{hw_scale_ratio_forward.2} parent=11 // pred_region
        _
      $region16: #{hw_scale_ratio_forward.2} parent=11 // pred_fallthru
        _
      // Predicated region
      $region17: #{hw_scale_ratio_forward.2} parent=11 // pred_check
        %p121 = pneg %p77
      $region18: #{hw_scale_ratio_forward.2} parent=11 // pred_check_branch
        %123 = sbr.rel (%p121) target = $region20
      $region19: #{hw_scale_ratio_forward.2} parent=11 // pred_region
        _
      $region20: #{hw_scale_ratio_forward.2} parent=11 // pred_fallthru
        _
    $region12: #{hw_scale_ratio_forward.2} parent=5 // pred_fallthru
      _
    %p124 = scmp.lt.s32.totalorder %s9, 2
    // Predicated region
    $region21: #{hw_scale_ratio_forward.2} parent=5 // pred_check
      %p125 = pneg %p124
    $region22: #{hw_scale_ratio_forward.2} parent=5 // pred_check_branch
      %127 = sbr.rel (%p125) target = $region24
    $region23: #{hw_scale_ratio_forward.2} parent=5 // pred_region
      // Predicated region
      $region25: #{hw_scale_ratio_forward.2} parent=23 // pred_check
        %p128 = pneg %p29
      $region26: #{hw_scale_ratio_forward.2} parent=23 // pred_check_branch
        %130 = sbr.rel (%p128) target = $region28
      $region27: #{hw_scale_ratio_forward.2} parent=23 // pred_region
        %p131 = scmp.lt.s32.totalorder %s9, 1
        %s132 = scalar_select %p131, %s9, 1
        %s133 = smul.addr %s132, 149
        %s134 = smul.addr %s133, 4
        %s135 = scalar_lea.vmem %s0, %s134
      $region28: #{hw_scale_ratio_forward.2} parent=23 // pred_fallthru
        _
    $region24: #{hw_scale_ratio_forward.2} parent=5 // pred_fallthru
      _
    %p136 = scmp.le.s32.totalorder 1, %s9
    %p137 = scmp.lt.s32.totalorder %s9, 3
    %p138 = pnand %p136, %p137
    %p139 = pneg %p138
    // Predicated region
    $region29: #{hw_scale_ratio_forward.2} parent=5 // pred_check
      _
    $region30: #{hw_scale_ratio_forward.2} parent=5 // pred_check_branch
      %141 = sbr.rel (%p138) target = $region32
    $region31: #{hw_scale_ratio_forward.2} parent=5 // pred_region
      %s142 = ssub.s32 %s9, 1
      %p143 = scmp.lt.s32.totalorder %s14, 1
      %s144 = scalar_select %p143, %s14, 1
      %s145 = smul.addr %s144, 149
      %s146 = smul.addr %s145, 4
      %s147 = scalar_lea.vmem %s0, %s146
      %p148 = pneg %p35
      %p149 = pneg %p32
      %p150 = pneg %p56
      %p151 = pneg %p53
      %p152 = pneg %p77
      %p153 = pneg %p74
      %p154 = pneg %p103
      %p155 = pneg %p100
      %p156 = scmp.lt.s32.totalorder %s14, 1
      %s157 = scalar_select %p156, %s14, 1
      %s158 = smul.addr %s157, 136
      %s159 = smul.addr %s158, 4
      %s160 = scalar_lea.vmem %s3, %s159
      %p161 = scmp.lt.s32.totalorder %s14, 1
      %s162 = scalar_select %p161, %s14, 1
      %s163 = smul.addr %s162, 149
      %s164 = smul.addr %s163, 4
      %s165 = scalar_lea.vmem %s0, %s164
      %p166 = scmp.lt.s32.totalorder %s14, 1
      %s167 = scalar_select %p166, %s14, 1
      %s168 = smul.addr %s167, 136
      %s169 = smul.addr %s168, 4
      %s170 = scalar_lea.vmem %s3, %s169
      %v172 = vld [vmem:[%s165] sm:$0xf]
      %v173 = vld [vmem:[%s165 + $0x4] sm:$0xf]
      %v174 = vld [vmem:[%s165 + $0x8] sm:$0xf]
      %v175 = vld [vmem:[%s165 + $0xc] sm:$0xf]
      %v176 = vld [vmem:[%s165 + $0x10] sm:$0xf]
      %v177 = vld [vmem:[%s165 + $0x14] sm:$0xf]
      %v178 = vld [vmem:[%s165 + $0x18] sm:$0xf]
      %v179 = vld [vmem:[%s165 + $0x1c] sm:$0xf]
      %v180 = vld [vmem:[%s165 + $0x20] sm:$0xf]
      %v181 = vld [vmem:[%s165 + $0x24] sm:$0xf]
      %v182 = vld [vmem:[%s165 + $0x28] sm:$0xf]
      %v183 = vld [vmem:[%s165 + $0x2c] sm:$0xf]
      %v184 = vld [vmem:[%s165 + $0x30] sm:$0xf]
      %v185 = vld [vmem:[%s165 + $0x34] sm:$0xf]
      %v186 = vld [vmem:[%s165 + $0x38] sm:$0xf]
      %v187 = vld [vmem:[%s165 + $0x3c] sm:$0xf]
      %v188 = vld [vmem:[%s165 + $0x40] sm:$0xf]
      %v189 = vld [vmem:[%s165 + $0x44] sm:$0xf]
      %v190 = vld [vmem:[%s165 + $0x48] sm:$0xf]
      %v191 = vld [vmem:[%s165 + $0x4c] sm:$0xf]
      %v192 = vld [vmem:[%s165 + $0x50] sm:$0xf]
      %v193 = vld [vmem:[%s165 + $0x54] sm:$0xf]
      %v194 = vld [vmem:[%s165 + $0x58] sm:$0xf]
      %v195 = vld [vmem:[%s165 + $0x5c] sm:$0xf]
      %v196 = vld [vmem:[%s165 + $0x60] sm:$0xf]
      %v197 = vld [vmem:[%s165 + $0x64] sm:$0xf]
      %v198 = vld [vmem:[%s165 + $0x68] sm:$0xf]
      %v199 = vld [vmem:[%s165 + $0x6c] sm:$0xf]
      %v200 = vld [vmem:[%s165 + $0x70] sm:$0xf]
      %v201 = vld [vmem:[%s165 + $0x74] sm:$0xf]
      %v202 = vld [vmem:[%s165 + $0x78] sm:$0xf]
      %v203 = vld [vmem:[%s165 + $0x7c] sm:$0xf]
      %v204 = vld [vmem:[%s165 + $0x80] sm:$0xf]
      %v205 = vld [vmem:[%s165 + $0x84] sm:$0xf]
      %v206 = vld [vmem:[%s165 + $0x88] sm:$0xf]
      %v207 = vld [vmem:[%s165 + $0x8c] sm:$0xf]
      %v208 = vld [vmem:[%s165 + $0x90] sm:$0xf]
      %v209 = vld [vmem:[%s165 + $0x94] sm:$0xf]
      %v210 = vld [vmem:[%s165 + $0x98] sm:$0xf]
      %v211 = vld [vmem:[%s165 + $0x9c] sm:$0xf]
      %v212 = vld [vmem:[%s165 + $0xa0] sm:$0xf]
      %v213 = vld [vmem:[%s165 + $0xa4] sm:$0xf]
      %v214 = vld [vmem:[%s165 + $0xa8] sm:$0xf]
      %v215 = vld [vmem:[%s165 + $0xac] sm:$0xf]
      %v216 = vld [vmem:[%s165 + $0xb0] sm:$0xf]
      %v217 = vld [vmem:[%s165 + $0xb4] sm:$0xf]
      %v218 = vld [vmem:[%s165 + $0xb8] sm:$0xf]
      %v219 = vld [vmem:[%s165 + $0xbc] sm:$0xf]
      %v220 = vld [vmem:[%s165 + $0xc0] sm:$0xf]
      %v221 = vld [vmem:[%s165 + $0xc4] sm:$0xf]
      %v222 = vld [vmem:[%s165 + $0xc8] sm:$0xf]
      %v223 = vld [vmem:[%s165 + $0xcc] sm:$0xf]
      %v224 = vld [vmem:[%s165 + $0xd0] sm:$0xf]
      %v225 = vld [vmem:[%s165 + $0xd4] sm:$0xf]
      %v226 = vld [vmem:[%s165 + $0xd8] sm:$0xf]
      %v227 = vld [vmem:[%s165 + $0xdc] sm:$0xf]
      %v228 = vld [vmem:[%s165 + $0xe0] sm:$0xf]
      %v229 = vld [vmem:[%s165 + $0xe4] sm:$0xf]
      %v230 = vld [vmem:[%s165 + $0xe8] sm:$0xf]
      %v231 = vld [vmem:[%s165 + $0xec] sm:$0xf]
      %v232 = vld [vmem:[%s165 + $0xf0] sm:$0xf]
      %v233 = vld [vmem:[%s165 + $0xf4] sm:$0xf]
      %v234 = vld [vmem:[%s165 + $0xf8] sm:$0xf]
      %v235 = vld [vmem:[%s165 + $0xfc] sm:$0xf]
      %v236 = vld [vmem:[%s165 + $0x100] sm:$0xf]
      %v237 = vld [vmem:[%s165 + $0x104] sm:$0xf]
      %v238 = vld [vmem:[%s165 + $0x108] sm:$0xf]
      %v239 = vld [vmem:[%s165 + $0x10c] sm:$0xf]
      %v240 = vld [vmem:[%s165 + $0x110] sm:$0xf]
      %v241 = vld [vmem:[%s165 + $0x114] sm:$0xf]
      %v242 = vld [vmem:[%s165 + $0x118] sm:$0xf]
      %v243 = vld [vmem:[%s165 + $0x11c] sm:$0xf]
      %v244 = vld [vmem:[%s165 + $0x120] sm:$0xf]
      %v245 = vld [vmem:[%s165 + $0x124] sm:$0xf]
      %v246 = vld [vmem:[%s165 + $0x128] sm:$0xf]
      %v247 = vld [vmem:[%s165 + $0x12c] sm:$0xf]
      %v248 = vld [vmem:[%s165 + $0x130] sm:$0xf]
      %v249 = vld [vmem:[%s165 + $0x134] sm:$0xf]
      %v250 = vld [vmem:[%s165 + $0x138] sm:$0xf]
      %v251 = vld [vmem:[%s165 + $0x13c] sm:$0xf]
      %v252 = vld [vmem:[%s165 + $0x140] sm:$0xf]
      %v253 = vld [vmem:[%s165 + $0x144] sm:$0xf]
      %v254 = vld [vmem:[%s165 + $0x148] sm:$0xf]
      %v255 = vld [vmem:[%s165 + $0x14c] sm:$0xf]
      %v256 = vld [vmem:[%s165 + $0x150] sm:$0xf]
      %v257 = vld [vmem:[%s165 + $0x154] sm:$0xf]
      %v258 = vld [vmem:[%s165 + $0x158] sm:$0xf]
      %v259 = vld [vmem:[%s165 + $0x15c] sm:$0xf]
      %v260 = vld [vmem:[%s165 + $0x160] sm:$0xf]
      %v261 = vld [vmem:[%s165 + $0x164] sm:$0xf]
      %v262 = vld [vmem:[%s165 + $0x168] sm:$0xf]
      %v263 = vld [vmem:[%s165 + $0x16c] sm:$0xf]
      %v264 = vld [vmem:[%s165 + $0x170] sm:$0xf]
      %v265 = vld [vmem:[%s165 + $0x174] sm:$0xf]
      %v266 = vld [vmem:[%s165 + $0x178] sm:$0xf]
      %v267 = vld [vmem:[%s165 + $0x17c] sm:$0xf]
      %v268 = vld [vmem:[%s165 + $0x180] sm:$0xf]
      %v269 = vld [vmem:[%s165 + $0x184] sm:$0xf]
      %v270 = vld [vmem:[%s165 + $0x188] sm:$0xf]
      %v271 = vld [vmem:[%s165 + $0x18c] sm:$0xf]
      %v272 = vld [vmem:[%s165 + $0x190] sm:$0xf]
      %v273 = vld [vmem:[%s165 + $0x194] sm:$0xf]
      %v274 = vld [vmem:[%s165 + $0x198] sm:$0xf]
      %v275 = vld [vmem:[%s165 + $0x19c] sm:$0xf]
      %v276 = vld [vmem:[%s165 + $0x1a0] sm:$0xf]
      %v277 = vld [vmem:[%s165 + $0x1a4] sm:$0xf]
      %v278 = vld [vmem:[%s165 + $0x1a8] sm:$0xf]
      %v279 = vld [vmem:[%s165 + $0x1ac] sm:$0xf]
      %v280 = vld [vmem:[%s165 + $0x1b0] sm:$0xf]
      %v281 = vld [vmem:[%s165 + $0x1b4] sm:$0xf]
      %v282 = vld [vmem:[%s165 + $0x1b8] sm:$0xf]
      %v283 = vld [vmem:[%s165 + $0x1bc] sm:$0xf]
      %v284 = vld [vmem:[%s165 + $0x1c0] sm:$0xf]
      %v285 = vld [vmem:[%s165 + $0x1c4] sm:$0xf]
      %v286 = vld [vmem:[%s165 + $0x1c8] sm:$0xf]
      %v287 = vld [vmem:[%s165 + $0x1cc] sm:$0xf]
      %v288 = vld [vmem:[%s165 + $0x1d0] sm:$0xf]
      %v289 = vld [vmem:[%s165 + $0x1d4] sm:$0xf]
      %v290 = vld [vmem:[%s165 + $0x1d8] sm:$0xf]
      %v291 = vld [vmem:[%s165 + $0x1dc] sm:$0xf]
      %v292 = vld [vmem:[%s165 + $0x1e0] sm:$0xf]
      %v293 = vld [vmem:[%s165 + $0x1e4] sm:$0xf]
      %v294 = vld [vmem:[%s165 + $0x1e8] sm:$0xf]
      %v295 = vld [vmem:[%s165 + $0x1ec] sm:$0xf]
      %v296 = vld [vmem:[%s165 + $0x1f0] sm:$0xf]
      %v297 = vld [vmem:[%s165 + $0x1f4] sm:$0xf]
      %v298 = vld [vmem:[%s165 + $0x1f8] sm:$0xf]
      %v299 = vld [vmem:[%s165 + $0x1fc] sm:$0xf]
      %v300 = vld [vmem:[%s165 + $0x200] sm:$0xf]
      %v301 = vld [vmem:[%s165 + $0x204] sm:$0xf]
      %v302 = vld [vmem:[%s165 + $0x208] sm:$0xf]
      %v303 = vld [vmem:[%s165 + $0x20c] sm:$0xf]
      %v304 = vld [vmem:[%s165 + $0x210] sm:$0xf]
      %v305 = vld [vmem:[%s165 + $0x214] sm:$0xf]
      %v306 = vld [vmem:[%s165 + $0x218] sm:$0xf]
      %v307 = vld [vmem:[%s165 + $0x21c] sm:$0xf]
      %v308 = vld [vmem:[%s1] sm:$0xf]
      %v309 = vld [vmem:[%s165 + $0x220] sm:$0x1]
      %s310 = scalar_lea.vmem %s1, 4
      %v311 = vld [vmem:[%s310] sm:$0xf]
      %v449 = vunpack.c.l.b16 %v172
      %v450 = vunpack.c.l.b16 %v173
      %v451 = vunpack.c.l.b16 %v174
      %v452 = vunpack.c.l.b16 %v175
      %v453 = vunpack.c.l.b16 %v176
      %v454 = vunpack.c.l.b16 %v177
      %v455 = vunpack.c.l.b16 %v178
      %v456 = vunpack.c.l.b16 %v179
      %v457 = vunpack.c.l.b16 %v180
      %v458 = vunpack.c.l.b16 %v181
      %v459 = vunpack.c.l.b16 %v182
      %v460 = vunpack.c.l.b16 %v183
      %v461 = vunpack.c.l.b16 %v184
      %v462 = vunpack.c.l.b16 %v185
      %v463 = vunpack.c.l.b16 %v186
      %v464 = vunpack.c.l.b16 %v187
      %v465 = vunpack.c.l.b16 %v188
      %v466 = vunpack.c.l.b16 %v189
      %v467 = vunpack.c.l.b16 %v190
      %v468 = vunpack.c.l.b16 %v191
      %v469 = vunpack.c.l.b16 %v192
      %v470 = vunpack.c.l.b16 %v193
      %v471 = vunpack.c.l.b16 %v194
      %v472 = vunpack.c.l.b16 %v195
      %v473 = vunpack.c.l.b16 %v196
      %v474 = vunpack.c.l.b16 %v197
      %v475 = vunpack.c.l.b16 %v198
      %v476 = vunpack.c.l.b16 %v199
      %v477 = vunpack.c.l.b16 %v200
      %v478 = vunpack.c.l.b16 %v201
      %v479 = vunpack.c.l.b16 %v202
      %v480 = vunpack.c.l.b16 %v203
      %v481 = vunpack.c.l.b16 %v204
      %v482 = vunpack.c.l.b16 %v205
      %v483 = vunpack.c.l.b16 %v206
      %v484 = vunpack.c.l.b16 %v207
      %v485 = vunpack.c.l.b16 %v208
      %v486 = vunpack.c.l.b16 %v209
      %v487 = vunpack.c.l.b16 %v210
      %v488 = vunpack.c.l.b16 %v211
      %v489 = vunpack.c.l.b16 %v212
      %v490 = vunpack.c.l.b16 %v213
      %v491 = vunpack.c.l.b16 %v214
      %v492 = vunpack.c.l.b16 %v215
      %v493 = vunpack.c.l.b16 %v216
      %v494 = vunpack.c.l.b16 %v217
      %v495 = vunpack.c.l.b16 %v218
      %v496 = vunpack.c.l.b16 %v219
      %v497 = vunpack.c.l.b16 %v220
      %v498 = vunpack.c.l.b16 %v221
      %v499 = vunpack.c.l.b16 %v222
      %v500 = vunpack.c.l.b16 %v223
      %v501 = vunpack.c.l.b16 %v224
      %v502 = vunpack.c.l.b16 %v225
      %v503 = vunpack.c.l.b16 %v226
      %v504 = vunpack.c.l.b16 %v227
      %v505 = vunpack.c.l.b16 %v228
      %v506 = vunpack.c.l.b16 %v229
      %v507 = vunpack.c.l.b16 %v230
      %v508 = vunpack.c.l.b16 %v231
      %v509 = vunpack.c.l.b16 %v232
      %v510 = vunpack.c.l.b16 %v233
      %v511 = vunpack.c.l.b16 %v234
      %v512 = vunpack.c.l.b16 %v235
      %v513 = vunpack.c.l.b16 %v236
      %v514 = vunpack.c.l.b16 %v237
      %v515 = vunpack.c.l.b16 %v238
      %v516 = vunpack.c.l.b16 %v239
      %v517 = vunpack.c.l.b16 %v240
      %v518 = vunpack.c.l.b16 %v241
      %v519 = vunpack.c.l.b16 %v242
      %v520 = vunpack.c.l.b16 %v243
      %v521 = vunpack.c.l.b16 %v244
      %v522 = vunpack.c.l.b16 %v245
      %v523 = vunpack.c.l.b16 %v246
      %v524 = vunpack.c.l.b16 %v247
      %v525 = vunpack.c.l.b16 %v248
      %v526 = vunpack.c.l.b16 %v249
      %v527 = vunpack.c.l.b16 %v250
      %v528 = vunpack.c.l.b16 %v251
      %v529 = vunpack.c.l.b16 %v252
      %v530 = vunpack.c.l.b16 %v253
      %v531 = vunpack.c.l.b16 %v254
      %v532 = vunpack.c.l.b16 %v255
      %v533 = vunpack.c.l.b16 %v256
      %v534 = vunpack.c.l.b16 %v257
      %v535 = vunpack.c.l.b16 %v258
      %v536 = vunpack.c.l.b16 %v259
      %v537 = vunpack.c.l.b16 %v260
      %v538 = vunpack.c.l.b16 %v261
      %v539 = vunpack.c.l.b16 %v262
      %v540 = vunpack.c.l.b16 %v263
      %v541 = vunpack.c.l.b16 %v264
      %v542 = vunpack.c.l.b16 %v265
      %v543 = vunpack.c.l.b16 %v266
      %v544 = vunpack.c.l.b16 %v267
      %v545 = vunpack.c.l.b16 %v268
      %v546 = vunpack.c.l.b16 %v269
      %v547 = vunpack.c.l.b16 %v270
      %v548 = vunpack.c.l.b16 %v271
      %v549 = vunpack.c.l.b16 %v272
      %v550 = vunpack.c.l.b16 %v273
      %v551 = vunpack.c.l.b16 %v274
      %v552 = vunpack.c.l.b16 %v275
      %v553 = vunpack.c.l.b16 %v276
      %v554 = vunpack.c.l.b16 %v277
      %v555 = vunpack.c.l.b16 %v278
      %v556 = vunpack.c.l.b16 %v279
      %v557 = vunpack.c.l.b16 %v280
      %v558 = vunpack.c.l.b16 %v281
      %v559 = vunpack.c.l.b16 %v282
      %v560 = vunpack.c.l.b16 %v283
      %v561 = vunpack.c.l.b16 %v284
      %v562 = vunpack.c.l.b16 %v285
      %v563 = vunpack.c.l.b16 %v286
      %v564 = vunpack.c.l.b16 %v287
      %v565 = vunpack.c.l.b16 %v288
      %v566 = vunpack.c.l.b16 %v289
      %v567 = vunpack.c.l.b16 %v290
      %v568 = vunpack.c.l.b16 %v291
      %v569 = vunpack.c.l.b16 %v292
      %v570 = vunpack.c.l.b16 %v293
      %v571 = vunpack.c.l.b16 %v294
      %v572 = vunpack.c.l.b16 %v295
      %v573 = vunpack.c.l.b16 %v296
      %v574 = vunpack.c.l.b16 %v297
      %v575 = vunpack.c.l.b16 %v298
      %v576 = vunpack.c.l.b16 %v299
      %v577 = vunpack.c.l.b16 %v300
      %v578 = vunpack.c.l.b16 %v301
      %v579 = vunpack.c.l.b16 %v302
      %v580 = vunpack.c.l.b16 %v303
      %v581 = vunpack.c.l.b16 %v304
      %v582 = vunpack.c.l.b16 %v305
      %v583 = vunpack.c.l.b16 %v306
      %v584 = vunpack.c.l.b16 %v307
      %v585 = vunpack.c.l.b16 %v309
      %v586 = vpack.c.b16 %v450, %v449
      %v587 = vpack.c.b16 %v452, %v451
      %v588 = vpack.c.b16 %v454, %v453
      %v589 = vpack.c.b16 %v456, %v455
      %v590 = vpack.c.b16 %v458, %v457
      %v591 = vpack.c.b16 %v460, %v459
      %v592 = vpack.c.b16 %v462, %v461
      %v593 = vpack.c.b16 %v464, %v463
      %v594 = vpack.c.b16 %v466, %v465
      %v595 = vpack.c.b16 %v468, %v467
      %v596 = vpack.c.b16 %v470, %v469
      %v597 = vpack.c.b16 %v472, %v471
      %v598 = vpack.c.b16 %v474, %v473
      %v599 = vpack.c.b16 %v476, %v475
      %v600 = vpack.c.b16 %v478, %v477
      %v601 = vpack.c.b16 %v480, %v479
      %v602 = vpack.c.b16 %v482, %v481
      %v603 = vpack.c.b16 %v484, %v483
      %v604 = vpack.c.b16 %v486, %v485
      %v605 = vpack.c.b16 %v488, %v487
      %v606 = vpack.c.b16 %v490, %v489
      %v607 = vpack.c.b16 %v492, %v491
      %v608 = vpack.c.b16 %v494, %v493
      %v609 = vpack.c.b16 %v496, %v495
      %v610 = vpack.c.b16 %v498, %v497
      %v611 = vpack.c.b16 %v500, %v499
      %v612 = vpack.c.b16 %v502, %v501
      %v613 = vpack.c.b16 %v504, %v503
      %v614 = vpack.c.b16 %v506, %v505
      %v615 = vpack.c.b16 %v508, %v507
      %v616 = vpack.c.b16 %v510, %v509
      %v617 = vpack.c.b16 %v512, %v511
      %v618 = vpack.c.b16 %v514, %v513
      %v619 = vpack.c.b16 %v516, %v515
      %v620 = vpack.c.b16 %v518, %v517
      %v621 = vpack.c.b16 %v520, %v519
      %v622 = vpack.c.b16 %v522, %v521
      %v623 = vpack.c.b16 %v524, %v523
      %v624 = vpack.c.b16 %v526, %v525
      %v625 = vpack.c.b16 %v528, %v527
      %v626 = vpack.c.b16 %v530, %v529
      %v627 = vpack.c.b16 %v532, %v531
      %v628 = vpack.c.b16 %v534, %v533
      %v629 = vpack.c.b16 %v536, %v535
      %v630 = vpack.c.b16 %v538, %v537
      %v631 = vpack.c.b16 %v540, %v539
      %v632 = vpack.c.b16 %v542, %v541
      %v633 = vpack.c.b16 %v544, %v543
      %v634 = vpack.c.b16 %v546, %v545
      %v635 = vpack.c.b16 %v548, %v547
      %v636 = vpack.c.b16 %v550, %v549
      %v637 = vpack.c.b16 %v552, %v551
      %v638 = vpack.c.b16 %v554, %v553
      %v639 = vpack.c.b16 %v556, %v555
      %v640 = vpack.c.b16 %v558, %v557
      %v641 = vpack.c.b16 %v560, %v559
      %v642 = vpack.c.b16 %v562, %v561
      %v643 = vpack.c.b16 %v564, %v563
      %v644 = vpack.c.b16 %v566, %v565
      %v645 = vpack.c.b16 %v568, %v567
      %v646 = vpack.c.b16 %v570, %v569
      %v647 = vpack.c.b16 %v572, %v571
      %v648 = vpack.c.b16 %v574, %v573
      %v649 = vpack.c.b16 %v576, %v575
      %v650 = vpack.c.b16 %v578, %v577
      %v651 = vpack.c.b16 %v580, %v579
      %v652 = vpack.c.b16 %v582, %v581
      %v653 = vpack.c.b16 %v584, %v583
      %v654 = vpack.c.b16 %v585, %v585
      %vm655 = vsmask.f32 7424
      %v657 = vshrl.u32 %v586, 16
      %v659 = vshll.u32 %v586, 16
      %v661 = vrot.slane %v659, 1
      %v662 = vor.u32 %v657, %v661
      %v664 = vshll.u32 %v587, 16
      %v666 = vrot.slane %v664, 1
      %v667 = vsel %vm655, %v662, %v666
      %v668 = vshrl.u32 %v587, 16
      %v670 = vor.u32 %v668, %v666
      %v672 = vshll.u32 %v588, 16
      %v674 = vrot.slane %v672, 1
      %v675 = vsel %vm655, %v670, %v674
      %v676 = vshrl.u32 %v588, 16
      %v678 = vor.u32 %v676, %v674
      %v680 = vshll.u32 %v589, 16
      %v682 = vrot.slane %v680, 1
      %v683 = vsel %vm655, %v678, %v682
      %v684 = vshrl.u32 %v589, 16
      %v686 = vor.u32 %v684, %v682
      %v688 = vshll.u32 %v590, 16
      %v690 = vrot.slane %v688, 1
      %v691 = vsel %vm655, %v686, %v690
      %v692 = vshrl.u32 %v590, 16
      %v694 = vor.u32 %v692, %v690
      %v696 = vshll.u32 %v591, 16
      %v698 = vrot.slane %v696, 1
      %v699 = vsel %vm655, %v694, %v698
      %v700 = vshrl.u32 %v591, 16
      %v702 = vor.u32 %v700, %v698
      %v704 = vshll.u32 %v592, 16
      %v706 = vrot.slane %v704, 1
      %v707 = vsel %vm655, %v702, %v706
      %v708 = vshrl.u32 %v592, 16
      %v710 = vor.u32 %v708, %v706
      %v712 = vshll.u32 %v593, 16
      %v714 = vrot.slane %v712, 1
      %v715 = vsel %vm655, %v710, %v714
      %v716 = vshrl.u32 %v593, 16
      %v718 = vor.u32 %v716, %v714
      %v720 = vshll.u32 %v594, 16
      %v722 = vrot.slane %v720, 1
      %v723 = vsel %vm655, %v718, %v722
      %v724 = vshrl.u32 %v594, 16
      %v726 = vor.u32 %v724, %v722
      %v728 = vshll.u32 %v595, 16
      %v730 = vrot.slane %v728, 1
      %v731 = vsel %vm655, %v726, %v730
      %v732 = vshrl.u32 %v595, 16
      %v734 = vor.u32 %v732, %v730
      %v736 = vshll.u32 %v596, 16
      %v738 = vrot.slane %v736, 1
      %v739 = vsel %vm655, %v734, %v738
      %v740 = vshrl.u32 %v596, 16
      %v742 = vor.u32 %v740, %v738
      %v744 = vshll.u32 %v597, 16
      %v746 = vrot.slane %v744, 1
      %v747 = vsel %vm655, %v742, %v746
      %v748 = vshrl.u32 %v597, 16
      %v750 = vor.u32 %v748, %v746
      %v752 = vshll.u32 %v598, 16
      %v754 = vrot.slane %v752, 1
      %v755 = vsel %vm655, %v750, %v754
      %v756 = vshrl.u32 %v598, 16
      %v758 = vor.u32 %v756, %v754
      %v760 = vshll.u32 %v599, 16
      %v762 = vrot.slane %v760, 1
      %v763 = vsel %vm655, %v758, %v762
      %v764 = vshrl.u32 %v599, 16
      %v766 = vor.u32 %v764, %v762
      %v768 = vshll.u32 %v600, 16
      %v770 = vrot.slane %v768, 1
      %v771 = vsel %vm655, %v766, %v770
      %v772 = vshrl.u32 %v600, 16
      %v774 = vor.u32 %v772, %v770
      %v776 = vshll.u32 %v601, 16
      %v778 = vrot.slane %v776, 1
      %v779 = vsel %vm655, %v774, %v778
      %v780 = vshrl.u32 %v601, 16
      %v782 = vor.u32 %v780, %v778
      %v784 = vshll.u32 %v602, 16
      %v786 = vrot.slane %v784, 1
      %v787 = vsel %vm655, %v782, %v786
      %v788 = vshrl.u32 %v602, 16
      %v790 = vor.u32 %v788, %v786
      %v792 = vshll.u32 %v603, 16
      %v794 = vrot.slane %v792, 1
      %v795 = vsel %vm655, %v790, %v794
      %v796 = vshrl.u32 %v603, 16
      %v798 = vor.u32 %v796, %v794
      %v800 = vshll.u32 %v604, 16
      %v802 = vrot.slane %v800, 1
      %v803 = vsel %vm655, %v798, %v802
      %v804 = vshrl.u32 %v604, 16
      %v806 = vor.u32 %v804, %v802
      %v808 = vshll.u32 %v605, 16
      %v810 = vrot.slane %v808, 1
      %v811 = vsel %vm655, %v806, %v810
      %v812 = vshrl.u32 %v605, 16
      %v814 = vor.u32 %v812, %v810
      %v816 = vshll.u32 %v606, 16
      %v818 = vrot.slane %v816, 1
      %v819 = vsel %vm655, %v814, %v818
      %v820 = vshrl.u32 %v606, 16
      %v822 = vor.u32 %v820, %v818
      %v824 = vshll.u32 %v607, 16
      %v826 = vrot.slane %v824, 1
      %v827 = vsel %vm655, %v822, %v826
      %v828 = vshrl.u32 %v607, 16
      %v830 = vor.u32 %v828, %v826
      %v832 = vshll.u32 %v608, 16
      %v834 = vrot.slane %v832, 1
      %v835 = vsel %vm655, %v830, %v834
      %v836 = vshrl.u32 %v608, 16
      %v838 = vor.u32 %v836, %v834
      %v840 = vshll.u32 %v609, 16
      %v842 = vrot.slane %v840, 1
      %v843 = vsel %vm655, %v838, %v842
      %v844 = vshrl.u32 %v609, 16
      %v846 = vor.u32 %v844, %v842
      %v848 = vshll.u32 %v610, 16
      %v850 = vrot.slane %v848, 1
      %v851 = vsel %vm655, %v846, %v850
      %v852 = vshrl.u32 %v610, 16
      %v854 = vor.u32 %v852, %v850
      %v856 = vshll.u32 %v611, 16
      %v858 = vrot.slane %v856, 1
      %v859 = vsel %vm655, %v854, %v858
      %v860 = vshrl.u32 %v611, 16
      %v862 = vor.u32 %v860, %v858
      %v864 = vshll.u32 %v612, 16
      %v866 = vrot.slane %v864, 1
      %v867 = vsel %vm655, %v862, %v866
      %v868 = vshrl.u32 %v612, 16
      %v870 = vor.u32 %v868, %v866
      %v872 = vshll.u32 %v613, 16
      %v874 = vrot.slane %v872, 1
      %v875 = vsel %vm655, %v870, %v874
      %v876 = vshrl.u32 %v613, 16
      %v878 = vor.u32 %v876, %v874
      %v880 = vshll.u32 %v614, 16
      %v882 = vrot.slane %v880, 1
      %v883 = vsel %vm655, %v878, %v882
      %v884 = vshrl.u32 %v614, 16
      %v886 = vor.u32 %v884, %v882
      %v888 = vshll.u32 %v615, 16
      %v890 = vrot.slane %v888, 1
      %v891 = vsel %vm655, %v886, %v890
      %v892 = vshrl.u32 %v615, 16
      %v894 = vor.u32 %v892, %v890
      %v896 = vshll.u32 %v616, 16
      %v898 = vrot.slane %v896, 1
      %v899 = vsel %vm655, %v894, %v898
      %v900 = vshrl.u32 %v616, 16
      %v902 = vor.u32 %v900, %v898
      %v904 = vshll.u32 %v617, 16
      %v906 = vrot.slane %v904, 1
      %v907 = vsel %vm655, %v902, %v906
      %v908 = vshrl.u32 %v617, 16
      %v910 = vor.u32 %v908, %v906
      %v912 = vshll.u32 %v618, 16
      %v914 = vrot.slane %v912, 1
      %v915 = vsel %vm655, %v910, %v914
      %v916 = vshrl.u32 %v618, 16
      %v918 = vor.u32 %v916, %v914
      %v920 = vshll.u32 %v619, 16
      %v922 = vrot.slane %v920, 1
      %v923 = vsel %vm655, %v918, %v922
      %v924 = vshrl.u32 %v619, 16
      %v926 = vor.u32 %v924, %v922
      %v928 = vshll.u32 %v620, 16
      %v930 = vrot.slane %v928, 1
      %v931 = vsel %vm655, %v926, %v930
      %v932 = vshrl.u32 %v620, 16
      %v934 = vor.u32 %v932, %v930
      %v936 = vshll.u32 %v621, 16
      %v938 = vrot.slane %v936, 1
      %v939 = vsel %vm655, %v934, %v938
      %v940 = vshrl.u32 %v621, 16
      %v942 = vor.u32 %v940, %v938
      %v944 = vshll.u32 %v622, 16
      %v946 = vrot.slane %v944, 1
      %v947 = vsel %vm655, %v942, %v946
      %v948 = vshrl.u32 %v622, 16
      %v950 = vor.u32 %v948, %v946
      %v952 = vshll.u32 %v623, 16
      %v954 = vrot.slane %v952, 1
      %v955 = vsel %vm655, %v950, %v954
      %v956 = vshrl.u32 %v623, 16
      %v958 = vor.u32 %v956, %v954
      %v960 = vshll.u32 %v624, 16
      %v962 = vrot.slane %v960, 1
      %v963 = vsel %vm655, %v958, %v962
      %v964 = vshrl.u32 %v624, 16
      %v966 = vor.u32 %v964, %v962
      %v968 = vshll.u32 %v625, 16
      %v970 = vrot.slane %v968, 1
      %v971 = vsel %vm655, %v966, %v970
      %v972 = vshrl.u32 %v625, 16
      %v974 = vor.u32 %v972, %v970
      %v976 = vshll.u32 %v626, 16
      %v978 = vrot.slane %v976, 1
      %v979 = vsel %vm655, %v974, %v978
      %v980 = vshrl.u32 %v626, 16
      %v982 = vor.u32 %v980, %v978
      %v984 = vshll.u32 %v627, 16
      %v986 = vrot.slane %v984, 1
      %v987 = vsel %vm655, %v982, %v986
      %v988 = vshrl.u32 %v627, 16
      %v990 = vor.u32 %v988, %v986
      %v992 = vshll.u32 %v628, 16
      %v994 = vrot.slane %v992, 1
      %v995 = vsel %vm655, %v990, %v994
      %v996 = vshrl.u32 %v628, 16
      %v998 = vor.u32 %v996, %v994
      %v1000 = vshll.u32 %v629, 16
      %v1002 = vrot.slane %v1000, 1
      %v1003 = vsel %vm655, %v998, %v1002
      %v1004 = vshrl.u32 %v629, 16
      %v1006 = vor.u32 %v1004, %v1002
      %v1008 = vshll.u32 %v630, 16
      %v1010 = vrot.slane %v1008, 1
      %v1011 = vsel %vm655, %v1006, %v1010
      %v1012 = vshrl.u32 %v630, 16
      %v1014 = vor.u32 %v1012, %v1010
      %v1016 = vshll.u32 %v631, 16
      %v1018 = vrot.slane %v1016, 1
      %v1019 = vsel %vm655, %v1014, %v1018
      %v1020 = vshrl.u32 %v631, 16
      %v1022 = vor.u32 %v1020, %v1018
      %v1024 = vshll.u32 %v632, 16
      %v1026 = vrot.slane %v1024, 1
      %v1027 = vsel %vm655, %v1022, %v1026
      %v1028 = vshrl.u32 %v632, 16
      %v1030 = vor.u32 %v1028, %v1026
      %v1032 = vshll.u32 %v633, 16
      %v1034 = vrot.slane %v1032, 1
      %v1035 = vsel %vm655, %v1030, %v1034
      %v1036 = vshrl.u32 %v633, 16
      %v1038 = vor.u32 %v1036, %v1034
      %v1040 = vshll.u32 %v634, 16
      %v1042 = vrot.slane %v1040, 1
      %v1043 = vsel %vm655, %v1038, %v1042
      %v1044 = vshrl.u32 %v634, 16
      %v1046 = vor.u32 %v1044, %v1042
      %v1048 = vshll.u32 %v635, 16
      %v1050 = vrot.slane %v1048, 1
      %v1051 = vsel %vm655, %v1046, %v1050
      %v1052 = vshrl.u32 %v635, 16
      %v1054 = vor.u32 %v1052, %v1050
      %v1056 = vshll.u32 %v636, 16
      %v1058 = vrot.slane %v1056, 1
      %v1059 = vsel %vm655, %v1054, %v1058
      %v1060 = vshrl.u32 %v636, 16
      %v1062 = vor.u32 %v1060, %v1058
      %v1064 = vshll.u32 %v637, 16
      %v1066 = vrot.slane %v1064, 1
      %v1067 = vsel %vm655, %v1062, %v1066
      %v1068 = vshrl.u32 %v637, 16
      %v1070 = vor.u32 %v1068, %v1066
      %v1072 = vshll.u32 %v638, 16
      %v1074 = vrot.slane %v1072, 1
      %v1075 = vsel %vm655, %v1070, %v1074
      %v1076 = vshrl.u32 %v638, 16
      %v1078 = vor.u32 %v1076, %v1074
      %v1080 = vshll.u32 %v639, 16
      %v1082 = vrot.slane %v1080, 1
      %v1083 = vsel %vm655, %v1078, %v1082
      %v1084 = vshrl.u32 %v639, 16
      %v1086 = vor.u32 %v1084, %v1082
      %v1088 = vshll.u32 %v640, 16
      %v1090 = vrot.slane %v1088, 1
      %v1091 = vsel %vm655, %v1086, %v1090
      %v1092 = vshrl.u32 %v640, 16
      %v1094 = vor.u32 %v1092, %v1090
      %v1096 = vshll.u32 %v641, 16
      %v1098 = vrot.slane %v1096, 1
      %v1099 = vsel %vm655, %v1094, %v1098
      %v1100 = vshrl.u32 %v641, 16
      %v1102 = vor.u32 %v1100, %v1098
      %v1104 = vshll.u32 %v642, 16
      %v1106 = vrot.slane %v1104, 1
      %v1107 = vsel %vm655, %v1102, %v1106
      %v1108 = vshrl.u32 %v642, 16
      %v1110 = vor.u32 %v1108, %v1106
      %v1112 = vshll.u32 %v643, 16
      %v1114 = vrot.slane %v1112, 1
      %v1115 = vsel %vm655, %v1110, %v1114
      %v1116 = vshrl.u32 %v643, 16
      %v1118 = vor.u32 %v1116, %v1114
      %v1120 = vshll.u32 %v644, 16
      %v1122 = vrot.slane %v1120, 1
      %v1123 = vsel %vm655, %v1118, %v1122
      %v1124 = vshrl.u32 %v644, 16
      %v1126 = vor.u32 %v1124, %v1122
      %v1128 = vshll.u32 %v645, 16
      %v1130 = vrot.slane %v1128, 1
      %v1131 = vsel %vm655, %v1126, %v1130
      %v1132 = vshrl.u32 %v645, 16
      %v1134 = vor.u32 %v1132, %v1130
      %v1136 = vshll.u32 %v646, 16
      %v1138 = vrot.slane %v1136, 1
      %v1139 = vsel %vm655, %v1134, %v1138
      %v1140 = vshrl.u32 %v646, 16
      %v1142 = vor.u32 %v1140, %v1138
      %v1144 = vshll.u32 %v647, 16
      %v1146 = vrot.slane %v1144, 1
      %v1147 = vsel %vm655, %v1142, %v1146
      %v1148 = vshrl.u32 %v647, 16
      %v1150 = vor.u32 %v1148, %v1146
      %v1152 = vshll.u32 %v648, 16
      %v1154 = vrot.slane %v1152, 1
      %v1155 = vsel %vm655, %v1150, %v1154
      %v1156 = vshrl.u32 %v648, 16
      %v1158 = vor.u32 %v1156, %v1154
      %v1160 = vshll.u32 %v649, 16
      %v1162 = vrot.slane %v1160, 1
      %v1163 = vsel %vm655, %v1158, %v1162
      %v1164 = vshrl.u32 %v649, 16
      %v1166 = vor.u32 %v1164, %v1162
      %v1168 = vshll.u32 %v650, 16
      %v1170 = vrot.slane %v1168, 1
      %v1171 = vsel %vm655, %v1166, %v1170
      %v1172 = vshrl.u32 %v650, 16
      %v1174 = vor.u32 %v1172, %v1170
      %v1176 = vshll.u32 %v651, 16
      %v1178 = vrot.slane %v1176, 1
      %v1179 = vsel %vm655, %v1174, %v1178
      %v1180 = vshrl.u32 %v651, 16
      %v1182 = vor.u32 %v1180, %v1178
      %v1184 = vshll.u32 %v652, 16
      %v1186 = vrot.slane %v1184, 1
      %v1187 = vsel %vm655, %v1182, %v1186
      %v1188 = vshrl.u32 %v652, 16
      %v1190 = vor.u32 %v1188, %v1186
      %v1192 = vshll.u32 %v653, 16
      %v1194 = vrot.slane %v1192, 1
      %v1195 = vsel %vm655, %v1190, %v1194
      %v1196 = vshrl.u32 %v653, 16
      %v1198 = vor.u32 %v1196, %v1194
      %v1200 = vshll.u32 %v654, 16
      %v1202 = vrot.slane %v1200, 1
      %v1203 = vsel %vm655, %v1198, %v1202
      %vm1204 = vcmask 64512
      %v1206 = vsel %vm1204, %v667, 0
      %v1209 = vsel %vm1204, %v675, 0
      %v1212 = vsel %vm1204, %v683, 0
      %v1215 = vsel %vm1204, %v691, 0
      %v1218 = vsel %vm1204, %v699, 0
      %v1221 = vsel %vm1204, %v707, 0
      %v1224 = vsel %vm1204, %v715, 0
      %v1227 = vsel %vm1204, %v723, 0
      %v1230 = vsel %vm1204, %v731, 0
      %v1233 = vsel %vm1204, %v739, 0
      %v1236 = vsel %vm1204, %v747, 0
      %v1239 = vsel %vm1204, %v755, 0
      %v1242 = vsel %vm1204, %v763, 0
      %v1245 = vsel %vm1204, %v771, 0
      %v1248 = vsel %vm1204, %v779, 0
      %v1251 = vsel %vm1204, %v787, 0
      %v1254 = vsel %vm1204, %v795, 0
      %v1257 = vsel %vm1204, %v803, 0
      %v1260 = vsel %vm1204, %v811, 0
      %v1263 = vsel %vm1204, %v819, 0
      %v1266 = vsel %vm1204, %v827, 0
      %v1269 = vsel %vm1204, %v835, 0
      %v1272 = vsel %vm1204, %v843, 0
      %v1275 = vsel %vm1204, %v851, 0
      %v1278 = vsel %vm1204, %v859, 0
      %v1281 = vsel %vm1204, %v867, 0
      %v1284 = vsel %vm1204, %v875, 0
      %v1287 = vsel %vm1204, %v883, 0
      %v1290 = vsel %vm1204, %v891, 0
      %v1293 = vsel %vm1204, %v899, 0
      %v1296 = vsel %vm1204, %v907, 0
      %v1299 = vsel %vm1204, %v915, 0
      %v1302 = vsel %vm1204, %v923, 0
      %v1305 = vsel %vm1204, %v931, 0
      %v1308 = vsel %vm1204, %v939, 0
      %v1311 = vsel %vm1204, %v947, 0
      %v1314 = vsel %vm1204, %v955, 0
      %v1317 = vsel %vm1204, %v963, 0
      %v1320 = vsel %vm1204, %v971, 0
      %v1323 = vsel %vm1204, %v979, 0
      %v1326 = vsel %vm1204, %v987, 0
      %v1329 = vsel %vm1204, %v995, 0
      %v1332 = vsel %vm1204, %v1003, 0
      %v1335 = vsel %vm1204, %v1011, 0
      %v1338 = vsel %vm1204, %v1019, 0
      %v1341 = vsel %vm1204, %v1027, 0
      %v1344 = vsel %vm1204, %v1035, 0
      %v1347 = vsel %vm1204, %v1043, 0
      %v1350 = vsel %vm1204, %v1051, 0
      %v1353 = vsel %vm1204, %v1059, 0
      %v1356 = vsel %vm1204, %v1067, 0
      %v1359 = vsel %vm1204, %v1075, 0
      %v1362 = vsel %vm1204, %v1083, 0
      %v1365 = vsel %vm1204, %v1091, 0
      %v1368 = vsel %vm1204, %v1099, 0
      %v1371 = vsel %vm1204, %v1107, 0
      %v1374 = vsel %vm1204, %v1115, 0
      %v1377 = vsel %vm1204, %v1123, 0
      %v1380 = vsel %vm1204, %v1131, 0
      %v1383 = vsel %vm1204, %v1139, 0
      %v1386 = vsel %vm1204, %v1147, 0
      %v1389 = vsel %vm1204, %v1155, 0
      %v1392 = vsel %vm1204, %v1163, 0
      %v1395 = vsel %vm1204, %v1171, 0
      %v1398 = vsel %vm1204, %v1179, 0
      %v1401 = vsel %vm1204, %v1187, 0
      %v1404 = vsel %vm1204, %v1195, 0
      %v1407 = vsel %vm1204, %v1203, 0
      %vm1409 = vcmask 1043456
      %v1411 = vsel %vm1409, %v311, 0
      %1413 = vmatpush.bf16.msra.mxu0 0
      %1414 = vmatpush.bf16.msra.mxu0 0
      %1415 = vmatpush.bf16.msra.mxu0 0
      %1416 = vmatpush.bf16.msra.mxu0 0
      %1417 = vmatpush.bf16.msra.mxu0 0
      %1418 = vmatpush.bf16.msra.mxu0 0
      %1419 = vmatpush.bf16.msra.mxu0 0
      %1420 = vmatpush.bf16.msra.mxu0 %v1411
      %1421 = vmatmul.bf16.gmra.mxu0 %v1206
      %v1422 = vpop.f32.mrf.mxu0
      %v1423 = vadd.f32 0.0, %v1422
      %v1424 = vpop.f32.mrf.mxu0
      %v1425 = vadd.f32 0.0, %v1424
      %1426 = vmatmul.bf16.gmra.mxu0 %v1209
      %v1427 = vpop.f32.mrf.mxu0
      %v1428 = vadd.f32 0.0, %v1427
      %v1429 = vpop.f32.mrf.mxu0
      %v1430 = vadd.f32 0.0, %v1429
      %1431 = vmatmul.bf16.gmra.mxu0 %v1212
      %v1432 = vpop.f32.mrf.mxu0
      %v1433 = vadd.f32 0.0, %v1432
      %v1434 = vpop.f32.mrf.mxu0
      %v1435 = vadd.f32 0.0, %v1434
      %1436 = vmatmul.bf16.gmra.mxu0 %v1215
      %v1437 = vpop.f32.mrf.mxu0
      %v1438 = vadd.f32 0.0, %v1437
      %v1439 = vpop.f32.mrf.mxu0
      %v1440 = vadd.f32 0.0, %v1439
      %1441 = vmatmul.bf16.gmra.mxu0 %v1218
      %v1442 = vpop.f32.mrf.mxu0
      %v1443 = vadd.f32 0.0, %v1442
      %v1444 = vpop.f32.mrf.mxu0
      %v1445 = vadd.f32 0.0, %v1444
      %1446 = vmatmul.bf16.gmra.mxu0 %v1221
      %v1447 = vpop.f32.mrf.mxu0
      %v1448 = vadd.f32 0.0, %v1447
      %v1449 = vpop.f32.mrf.mxu0
      %v1450 = vadd.f32 0.0, %v1449
      %1451 = vmatmul.bf16.gmra.mxu0 %v1224
      %v1452 = vpop.f32.mrf.mxu0
      %v1453 = vadd.f32 0.0, %v1452
      %v1454 = vpop.f32.mrf.mxu0
      %v1455 = vadd.f32 0.0, %v1454
      %1456 = vmatmul.bf16.gmra.mxu0 %v1227
      %v1457 = vpop.f32.mrf.mxu0
      %v1458 = vadd.f32 0.0, %v1457
      %v1459 = vpop.f32.mrf.mxu0
      %v1460 = vadd.f32 0.0, %v1459
      %1461 = vmatmul.bf16.gmra.mxu0 %v1230
      %v1462 = vpop.f32.mrf.mxu0
      %v1463 = vadd.f32 0.0, %v1462
      %v1464 = vpop.f32.mrf.mxu0
      %v1465 = vadd.f32 0.0, %v1464
      %1466 = vmatmul.bf16.gmra.mxu0 %v1233
      %v1467 = vpop.f32.mrf.mxu0
      %v1468 = vadd.f32 0.0, %v1467
      %v1469 = vpop.f32.mrf.mxu0
      %v1470 = vadd.f32 0.0, %v1469
      %1471 = vmatmul.bf16.gmra.mxu0 %v1236
      %v1472 = vpop.f32.mrf.mxu0
      %v1473 = vadd.f32 0.0, %v1472
      %v1474 = vpop.f32.mrf.mxu0
      %v1475 = vadd.f32 0.0, %v1474
      %1476 = vmatmul.bf16.gmra.mxu0 %v1239
      %v1477 = vpop.f32.mrf.mxu0
      %v1478 = vadd.f32 0.0, %v1477
      %v1479 = vpop.f32.mrf.mxu0
      %v1480 = vadd.f32 0.0, %v1479
      %1481 = vmatmul.bf16.gmra.mxu0 %v1242
      %v1482 = vpop.f32.mrf.mxu0
      %v1483 = vadd.f32 0.0, %v1482
      %v1484 = vpop.f32.mrf.mxu0
      %v1485 = vadd.f32 0.0, %v1484
      %1486 = vmatmul.bf16.gmra.mxu0 %v1245
      %v1487 = vpop.f32.mrf.mxu0
      %v1488 = vadd.f32 0.0, %v1487
      %v1489 = vpop.f32.mrf.mxu0
      %v1490 = vadd.f32 0.0, %v1489
      %1491 = vmatmul.bf16.gmra.mxu0 %v1248
      %v1492 = vpop.f32.mrf.mxu0
      %v1493 = vadd.f32 0.0, %v1492
      %v1494 = vpop.f32.mrf.mxu0
      %v1495 = vadd.f32 0.0, %v1494
      %1496 = vmatmul.bf16.gmra.mxu0 %v1251
      %v1497 = vpop.f32.mrf.mxu0
      %v1498 = vadd.f32 0.0, %v1497
      %v1499 = vpop.f32.mrf.mxu0
      %v1500 = vadd.f32 0.0, %v1499
      %1501 = vmatmul.bf16.gmra.mxu0 %v1254
      %v1502 = vpop.f32.mrf.mxu0
      %v1503 = vadd.f32 0.0, %v1502
      %v1504 = vpop.f32.mrf.mxu0
      %v1505 = vadd.f32 0.0, %v1504
      %1506 = vmatmul.bf16.gmra.mxu0 %v1257
      %v1507 = vpop.f32.mrf.mxu0
      %v1508 = vadd.f32 0.0, %v1507
      %v1509 = vpop.f32.mrf.mxu0
      %v1510 = vadd.f32 0.0, %v1509
      %1511 = vmatmul.bf16.gmra.mxu0 %v1260
      %v1512 = vpop.f32.mrf.mxu0
      %v1513 = vadd.f32 0.0, %v1512
      %v1514 = vpop.f32.mrf.mxu0
      %v1515 = vadd.f32 0.0, %v1514
      %1516 = vmatmul.bf16.gmra.mxu0 %v1263
      %v1517 = vpop.f32.mrf.mxu0
      %v1518 = vadd.f32 0.0, %v1517
      %v1519 = vpop.f32.mrf.mxu0
      %v1520 = vadd.f32 0.0, %v1519
      %1521 = vmatmul.bf16.gmra.mxu0 %v1266
      %v1522 = vpop.f32.mrf.mxu0
      %v1523 = vadd.f32 0.0, %v1522
      %v1524 = vpop.f32.mrf.mxu0
      %v1525 = vadd.f32 0.0, %v1524
      %1526 = vmatmul.bf16.gmra.mxu0 %v1269
      %v1527 = vpop.f32.mrf.mxu0
      %v1528 = vadd.f32 0.0, %v1527
      %v1529 = vpop.f32.mrf.mxu0
      %v1530 = vadd.f32 0.0, %v1529
      %1531 = vmatmul.bf16.gmra.mxu0 %v1272
      %v1532 = vpop.f32.mrf.mxu0
      %v1533 = vadd.f32 0.0, %v1532
      %v1534 = vpop.f32.mrf.mxu0
      %v1535 = vadd.f32 0.0, %v1534
      %1536 = vmatmul.bf16.gmra.mxu0 %v1275
      %v1537 = vpop.f32.mrf.mxu0
      %v1538 = vadd.f32 0.0, %v1537
      %v1539 = vpop.f32.mrf.mxu0
      %v1540 = vadd.f32 0.0, %v1539
      %1541 = vmatmul.bf16.gmra.mxu0 %v1278
      %v1542 = vpop.f32.mrf.mxu0
      %v1543 = vadd.f32 0.0, %v1542
      %v1544 = vpop.f32.mrf.mxu0
      %v1545 = vadd.f32 0.0, %v1544
      %1546 = vmatmul.bf16.gmra.mxu0 %v1281
      %v1547 = vpop.f32.mrf.mxu0
      %v1548 = vadd.f32 0.0, %v1547
      %v1549 = vpop.f32.mrf.mxu0
      %v1550 = vadd.f32 0.0, %v1549
      %1551 = vmatmul.bf16.gmra.mxu0 %v1284
      %v1552 = vpop.f32.mrf.mxu0
      %v1553 = vadd.f32 0.0, %v1552
      %v1554 = vpop.f32.mrf.mxu0
      %v1555 = vadd.f32 0.0, %v1554
      %1556 = vmatmul.bf16.gmra.mxu0 %v1287
      %v1557 = vpop.f32.mrf.mxu0
      %v1558 = vadd.f32 0.0, %v1557
      %v1559 = vpop.f32.mrf.mxu0
      %v1560 = vadd.f32 0.0, %v1559
      %1561 = vmatmul.bf16.gmra.mxu0 %v1290
      %v1562 = vpop.f32.mrf.mxu0
      %v1563 = vadd.f32 0.0, %v1562
      %v1564 = vpop.f32.mrf.mxu0
      %v1565 = vadd.f32 0.0, %v1564
      %1566 = vmatmul.bf16.gmra.mxu0 %v1293
      %v1567 = vpop.f32.mrf.mxu0
      %v1568 = vadd.f32 0.0, %v1567
      %v1569 = vpop.f32.mrf.mxu0
      %v1570 = vadd.f32 0.0, %v1569
      %1571 = vmatmul.bf16.gmra.mxu0 %v1296
      %v1572 = vpop.f32.mrf.mxu0
      %v1573 = vadd.f32 0.0, %v1572
      %v1574 = vpop.f32.mrf.mxu0
      %v1575 = vadd.f32 0.0, %v1574
      %1576 = vmatmul.bf16.gmra.mxu0 %v1299
      %v1577 = vpop.f32.mrf.mxu0
      %v1578 = vadd.f32 0.0, %v1577
      %v1579 = vpop.f32.mrf.mxu0
      %v1580 = vadd.f32 0.0, %v1579
      %1581 = vmatmul.bf16.gmra.mxu0 %v1302
      %v1582 = vpop.f32.mrf.mxu0
      %v1583 = vadd.f32 0.0, %v1582
      %v1584 = vpop.f32.mrf.mxu0
      %v1585 = vadd.f32 0.0, %v1584
      %1586 = vmatmul.bf16.gmra.mxu0 %v1305
      %v1587 = vpop.f32.mrf.mxu0
      %v1588 = vadd.f32 0.0, %v1587
      %v1589 = vpop.f32.mrf.mxu0
      %v1590 = vadd.f32 0.0, %v1589
      %1591 = vmatmul.bf16.gmra.mxu0 %v1308
      %v1592 = vpop.f32.mrf.mxu0
      %v1593 = vadd.f32 0.0, %v1592
      %v1594 = vpop.f32.mrf.mxu0
      %v1595 = vadd.f32 0.0, %v1594
      %1596 = vmatmul.bf16.gmra.mxu0 %v1311
      %v1597 = vpop.f32.mrf.mxu0
      %v1598 = vadd.f32 0.0, %v1597
      %v1599 = vpop.f32.mrf.mxu0
      %v1600 = vadd.f32 0.0, %v1599
      %1601 = vmatmul.bf16.gmra.mxu0 %v1314
      %v1602 = vpop.f32.mrf.mxu0
      %v1603 = vadd.f32 0.0, %v1602
      %v1604 = vpop.f32.mrf.mxu0
      %v1605 = vadd.f32 0.0, %v1604
      %1606 = vmatmul.bf16.gmra.mxu0 %v1317
      %v1607 = vpop.f32.mrf.mxu0
      %v1608 = vadd.f32 0.0, %v1607
      %v1609 = vpop.f32.mrf.mxu0
      %v1610 = vadd.f32 0.0, %v1609
      %1611 = vmatmul.bf16.gmra.mxu0 %v1320
      %v1612 = vpop.f32.mrf.mxu0
      %v1613 = vadd.f32 0.0, %v1612
      %v1614 = vpop.f32.mrf.mxu0
      %v1615 = vadd.f32 0.0, %v1614
      %1616 = vmatmul.bf16.gmra.mxu0 %v1323
      %v1617 = vpop.f32.mrf.mxu0
      %v1618 = vadd.f32 0.0, %v1617
      %v1619 = vpop.f32.mrf.mxu0
      %v1620 = vadd.f32 0.0, %v1619
      %1621 = vmatmul.bf16.gmra.mxu0 %v1326
      %v1622 = vpop.f32.mrf.mxu0
      %v1623 = vadd.f32 0.0, %v1622
      %v1624 = vpop.f32.mrf.mxu0
      %v1625 = vadd.f32 0.0, %v1624
      %1626 = vmatmul.bf16.gmra.mxu0 %v1329
      %v1627 = vpop.f32.mrf.mxu0
      %v1628 = vadd.f32 0.0, %v1627
      %v1629 = vpop.f32.mrf.mxu0
      %v1630 = vadd.f32 0.0, %v1629
      %1631 = vmatmul.bf16.gmra.mxu0 %v1332
      %v1632 = vpop.f32.mrf.mxu0
      %v1633 = vadd.f32 0.0, %v1632
      %v1634 = vpop.f32.mrf.mxu0
      %v1635 = vadd.f32 0.0, %v1634
      %1636 = vmatmul.bf16.gmra.mxu0 %v1335
      %v1637 = vpop.f32.mrf.mxu0
      %v1638 = vadd.f32 0.0, %v1637
      %v1639 = vpop.f32.mrf.mxu0
      %v1640 = vadd.f32 0.0, %v1639
      %1641 = vmatmul.bf16.gmra.mxu0 %v1338
      %v1642 = vpop.f32.mrf.mxu0
      %v1643 = vadd.f32 0.0, %v1642
      %v1644 = vpop.f32.mrf.mxu0
      %v1645 = vadd.f32 0.0, %v1644
      %1646 = vmatmul.bf16.gmra.mxu0 %v1341
      %v1647 = vpop.f32.mrf.mxu0
      %v1648 = vadd.f32 0.0, %v1647
      %v1649 = vpop.f32.mrf.mxu0
      %v1650 = vadd.f32 0.0, %v1649
      %1651 = vmatmul.bf16.gmra.mxu0 %v1344
      %v1652 = vpop.f32.mrf.mxu0
      %v1653 = vadd.f32 0.0, %v1652
      %v1654 = vpop.f32.mrf.mxu0
      %v1655 = vadd.f32 0.0, %v1654
      %1656 = vmatmul.bf16.gmra.mxu0 %v1347
      %v1657 = vpop.f32.mrf.mxu0
      %v1658 = vadd.f32 0.0, %v1657
      %v1659 = vpop.f32.mrf.mxu0
      %v1660 = vadd.f32 0.0, %v1659
      %1661 = vmatmul.bf16.gmra.mxu0 %v1350
      %v1662 = vpop.f32.mrf.mxu0
      %v1663 = vadd.f32 0.0, %v1662
      %v1664 = vpop.f32.mrf.mxu0
      %v1665 = vadd.f32 0.0, %v1664
      %1666 = vmatmul.bf16.gmra.mxu0 %v1353
      %v1667 = vpop.f32.mrf.mxu0
      %v1668 = vadd.f32 0.0, %v1667
      %v1669 = vpop.f32.mrf.mxu0
      %v1670 = vadd.f32 0.0, %v1669
      %1671 = vmatmul.bf16.gmra.mxu0 %v1356
      %v1672 = vpop.f32.mrf.mxu0
      %v1673 = vadd.f32 0.0, %v1672
      %v1674 = vpop.f32.mrf.mxu0
      %v1675 = vadd.f32 0.0, %v1674
      %1676 = vmatmul.bf16.gmra.mxu0 %v1359
      %v1677 = vpop.f32.mrf.mxu0
      %v1678 = vadd.f32 0.0, %v1677
      %v1679 = vpop.f32.mrf.mxu0
      %v1680 = vadd.f32 0.0, %v1679
      %1681 = vmatmul.bf16.gmra.mxu0 %v1362
      %v1682 = vpop.f32.mrf.mxu0
      %v1683 = vadd.f32 0.0, %v1682
      %v1684 = vpop.f32.mrf.mxu0
      %v1685 = vadd.f32 0.0, %v1684
      %1686 = vmatmul.bf16.gmra.mxu0 %v1365
      %v1687 = vpop.f32.mrf.mxu0
      %v1688 = vadd.f32 0.0, %v1687
      %v1689 = vpop.f32.mrf.mxu0
      %v1690 = vadd.f32 0.0, %v1689
      %1691 = vmatmul.bf16.gmra.mxu0 %v1368
      %v1692 = vpop.f32.mrf.mxu0
      %v1693 = vadd.f32 0.0, %v1692
      %v1694 = vpop.f32.mrf.mxu0
      %v1695 = vadd.f32 0.0, %v1694
      %1696 = vmatmul.bf16.gmra.mxu0 %v1371
      %v1697 = vpop.f32.mrf.mxu0
      %v1698 = vadd.f32 0.0, %v1697
      %v1699 = vpop.f32.mrf.mxu0
      %v1700 = vadd.f32 0.0, %v1699
      %1701 = vmatmul.bf16.gmra.mxu0 %v1374
      %v1702 = vpop.f32.mrf.mxu0
      %v1703 = vadd.f32 0.0, %v1702
      %v1704 = vpop.f32.mrf.mxu0
      %v1705 = vadd.f32 0.0, %v1704
      %1706 = vmatmul.bf16.gmra.mxu0 %v1377
      %v1707 = vpop.f32.mrf.mxu0
      %v1708 = vadd.f32 0.0, %v1707
      %v1709 = vpop.f32.mrf.mxu0
      %v1710 = vadd.f32 0.0, %v1709
      %1711 = vmatmul.bf16.gmra.mxu0 %v1380
      %v1712 = vpop.f32.mrf.mxu0
      %v1713 = vadd.f32 0.0, %v1712
      %v1714 = vpop.f32.mrf.mxu0
      %v1715 = vadd.f32 0.0, %v1714
      %1716 = vmatmul.bf16.gmra.mxu0 %v1383
      %v1717 = vpop.f32.mrf.mxu0
      %v1718 = vadd.f32 0.0, %v1717
      %v1719 = vpop.f32.mrf.mxu0
      %v1720 = vadd.f32 0.0, %v1719
      %1721 = vmatmul.bf16.gmra.mxu0 %v1386
      %v1722 = vpop.f32.mrf.mxu0
      %v1723 = vadd.f32 0.0, %v1722
      %v1724 = vpop.f32.mrf.mxu0
      %v1725 = vadd.f32 0.0, %v1724
      %1726 = vmatmul.bf16.gmra.mxu0 %v1389
      %v1727 = vpop.f32.mrf.mxu0
      %v1728 = vadd.f32 0.0, %v1727
      %v1729 = vpop.f32.mrf.mxu0
      %v1730 = vadd.f32 0.0, %v1729
      %1731 = vmatmul.bf16.gmra.mxu0 %v1392
      %v1732 = vpop.f32.mrf.mxu0
      %v1733 = vadd.f32 0.0, %v1732
      %v1734 = vpop.f32.mrf.mxu0
      %v1735 = vadd.f32 0.0, %v1734
      %1736 = vmatmul.bf16.gmra.mxu0 %v1395
      %v1737 = vpop.f32.mrf.mxu0
      %v1738 = vadd.f32 0.0, %v1737
      %v1739 = vpop.f32.mrf.mxu0
      %v1740 = vadd.f32 0.0, %v1739
      %1741 = vmatmul.bf16.gmra.mxu0 %v1398
      %v1742 = vpop.f32.mrf.mxu0
      %v1743 = vadd.f32 0.0, %v1742
      %v1744 = vpop.f32.mrf.mxu0
      %v1745 = vadd.f32 0.0, %v1744
      %1746 = vmatmul.bf16.gmra.mxu0 %v1401
      %v1747 = vpop.f32.mrf.mxu0
      %v1748 = vadd.f32 0.0, %v1747
      %v1749 = vpop.f32.mrf.mxu0
      %v1750 = vadd.f32 0.0, %v1749
      %1751 = vmatmul.bf16.gmra.mxu0 %v1404
      %v1752 = vpop.f32.mrf.mxu0
      %v1753 = vadd.f32 0.0, %v1752
      %v1754 = vpop.f32.mrf.mxu0
      %v1755 = vadd.f32 0.0, %v1754
      %1756 = vmatmul.bf16.gmra.mxu0 %v1407
      %v1757 = vpop.f32.mrf.mxu0
      %v1758 = vadd.f32 0.0, %v1757
      %v1759 = vpop.f32.mrf.mxu0
      %v1760 = vadd.f32 0.0, %v1759
      %1761 = vdwg.mxu0
      %v1762 = vsel %vm1204, %v586, 0
      %v1764 = vsel %vm1204, %v587, 0
      %v1766 = vsel %vm1204, %v588, 0
      %v1768 = vsel %vm1204, %v589, 0
      %v1770 = vsel %vm1204, %v590, 0
      %v1772 = vsel %vm1204, %v591, 0
      %v1774 = vsel %vm1204, %v592, 0
      %v1776 = vsel %vm1204, %v593, 0
      %v1778 = vsel %vm1204, %v594, 0
      %v1780 = vsel %vm1204, %v595, 0
      %v1782 = vsel %vm1204, %v596, 0
      %v1784 = vsel %vm1204, %v597, 0
      %v1786 = vsel %vm1204, %v598, 0
      %v1788 = vsel %vm1204, %v599, 0
      %v1790 = vsel %vm1204, %v600, 0
      %v1792 = vsel %vm1204, %v601, 0
      %v1794 = vsel %vm1204, %v602, 0
      %v1796 = vsel %vm1204, %v603, 0
      %v1798 = vsel %vm1204, %v604, 0
      %v1800 = vsel %vm1204, %v605, 0
      %v1802 = vsel %vm1204, %v606, 0
      %v1804 = vsel %vm1204, %v607, 0
      %v1806 = vsel %vm1204, %v608, 0
      %v1808 = vsel %vm1204, %v609, 0
      %v1810 = vsel %vm1204, %v610, 0
      %v1812 = vsel %vm1204, %v611, 0
      %v1814 = vsel %vm1204, %v612, 0
      %v1816 = vsel %vm1204, %v613, 0
      %v1818 = vsel %vm1204, %v614, 0
      %v1820 = vsel %vm1204, %v615, 0
      %v1822 = vsel %vm1204, %v616, 0
      %v1824 = vsel %vm1204, %v617, 0
      %v1826 = vsel %vm1204, %v618, 0
      %v1828 = vsel %vm1204, %v619, 0
      %v1830 = vsel %vm1204, %v620, 0
      %v1832 = vsel %vm1204, %v621, 0
      %v1834 = vsel %vm1204, %v622, 0
      %v1836 = vsel %vm1204, %v623, 0
      %v1838 = vsel %vm1204, %v624, 0
      %v1840 = vsel %vm1204, %v625, 0
      %v1842 = vsel %vm1204, %v626, 0
      %v1844 = vsel %vm1204, %v627, 0
      %v1846 = vsel %vm1204, %v628, 0
      %v1848 = vsel %vm1204, %v629, 0
      %v1850 = vsel %vm1204, %v630, 0
      %v1852 = vsel %vm1204, %v631, 0
      %v1854 = vsel %vm1204, %v632, 0
      %v1856 = vsel %vm1204, %v633, 0
      %v1858 = vsel %vm1204, %v634, 0
      %v1860 = vsel %vm1204, %v635, 0
      %v1862 = vsel %vm1204, %v636, 0
      %v1864 = vsel %vm1204, %v637, 0
      %v1866 = vsel %vm1204, %v638, 0
      %v1868 = vsel %vm1204, %v639, 0
      %v1870 = vsel %vm1204, %v640, 0
      %v1872 = vsel %vm1204, %v641, 0
      %v1874 = vsel %vm1204, %v642, 0
      %v1876 = vsel %vm1204, %v643, 0
      %v1878 = vsel %vm1204, %v644, 0
      %v1880 = vsel %vm1204, %v645, 0
      %v1882 = vsel %vm1204, %v646, 0
      %v1884 = vsel %vm1204, %v647, 0
      %v1886 = vsel %vm1204, %v648, 0
      %v1888 = vsel %vm1204, %v649, 0
      %v1890 = vsel %vm1204, %v650, 0
      %v1892 = vsel %vm1204, %v651, 0
      %v1894 = vsel %vm1204, %v652, 0
      %v1896 = vsel %vm1204, %v653, 0
      %v1899 = vsel %vm1409, %v308, 0
      %1901 = vmatpush.bf16.msra.mxu0 0
      %1902 = vmatpush.bf16.msra.mxu0 0
      %1903 = vmatpush.bf16.msra.mxu0 0
      %1904 = vmatpush.bf16.msra.mxu0 0
      %1905 = vmatpush.bf16.msra.mxu0 0
      %1906 = vmatpush.bf16.msra.mxu0 0
      %1907 = vmatpush.bf16.msra.mxu0 0
      %1908 = vmatpush.bf16.msra.mxu0 %v1899
      %1909 = vmatmul.bf16.gmra.mxu0 %v1762
      %v1910 = vpop.f32.mrf.mxu0
      %v1911 = vadd.f32 %v1423, %v1910
      %v1912 = vpop.f32.mrf.mxu0
      %v1913 = vadd.f32 %v1425, %v1912
      %1914 = vmatmul.bf16.gmra.mxu0 %v1764
      %v1915 = vpop.f32.mrf.mxu0
      %v1916 = vadd.f32 %v1428, %v1915
      %v1917 = vpop.f32.mrf.mxu0
      %v1918 = vadd.f32 %v1430, %v1917
      %1919 = vmatmul.bf16.gmra.mxu0 %v1766
      %v1920 = vpop.f32.mrf.mxu0
      %v1921 = vadd.f32 %v1433, %v1920
      %v1922 = vpop.f32.mrf.mxu0
      %v1923 = vadd.f32 %v1435, %v1922
      %1924 = vmatmul.bf16.gmra.mxu0 %v1768
      %v1925 = vpop.f32.mrf.mxu0
      %v1926 = vadd.f32 %v1438, %v1925
      %v1927 = vpop.f32.mrf.mxu0
      %v1928 = vadd.f32 %v1440, %v1927
      %1929 = vmatmul.bf16.gmra.mxu0 %v1770
      %v1930 = vpop.f32.mrf.mxu0
      %v1931 = vadd.f32 %v1443, %v1930
      %v1932 = vpop.f32.mrf.mxu0
      %v1933 = vadd.f32 %v1445, %v1932
      %1934 = vmatmul.bf16.gmra.mxu0 %v1772
      %v1935 = vpop.f32.mrf.mxu0
      %v1936 = vadd.f32 %v1448, %v1935
      %v1937 = vpop.f32.mrf.mxu0
      %v1938 = vadd.f32 %v1450, %v1937
      %1939 = vmatmul.bf16.gmra.mxu0 %v1774
      %v1940 = vpop.f32.mrf.mxu0
      %v1941 = vadd.f32 %v1453, %v1940
      %v1942 = vpop.f32.mrf.mxu0
      %v1943 = vadd.f32 %v1455, %v1942
      %1944 = vmatmul.bf16.gmra.mxu0 %v1776
      %v1945 = vpop.f32.mrf.mxu0
      %v1946 = vadd.f32 %v1458, %v1945
      %v1947 = vpop.f32.mrf.mxu0
      %v1948 = vadd.f32 %v1460, %v1947
      %1949 = vmatmul.bf16.gmra.mxu0 %v1778
      %v1950 = vpop.f32.mrf.mxu0
      %v1951 = vadd.f32 %v1463, %v1950
      %v1952 = vpop.f32.mrf.mxu0
      %v1953 = vadd.f32 %v1465, %v1952
      %1954 = vmatmul.bf16.gmra.mxu0 %v1780
      %v1955 = vpop.f32.mrf.mxu0
      %v1956 = vadd.f32 %v1468, %v1955
      %v1957 = vpop.f32.mrf.mxu0
      %v1958 = vadd.f32 %v1470, %v1957
      %1959 = vmatmul.bf16.gmra.mxu0 %v1782
      %v1960 = vpop.f32.mrf.mxu0
      %v1961 = vadd.f32 %v1473, %v1960
      %v1962 = vpop.f32.mrf.mxu0
      %v1963 = vadd.f32 %v1475, %v1962
      %1964 = vmatmul.bf16.gmra.mxu0 %v1784
      %v1965 = vpop.f32.mrf.mxu0
      %v1966 = vadd.f32 %v1478, %v1965
      %v1967 = vpop.f32.mrf.mxu0
      %v1968 = vadd.f32 %v1480, %v1967
      %1969 = vmatmul.bf16.gmra.mxu0 %v1786
      %v1970 = vpop.f32.mrf.mxu0
      %v1971 = vadd.f32 %v1483, %v1970
      %v1972 = vpop.f32.mrf.mxu0
      %v1973 = vadd.f32 %v1485, %v1972
      %1974 = vmatmul.bf16.gmra.mxu0 %v1788
      %v1975 = vpop.f32.mrf.mxu0
      %v1976 = vadd.f32 %v1488, %v1975
      %v1977 = vpop.f32.mrf.mxu0
      %v1978 = vadd.f32 %v1490, %v1977
      %1979 = vmatmul.bf16.gmra.mxu0 %v1790
      %v1980 = vpop.f32.mrf.mxu0
      %v1981 = vadd.f32 %v1493, %v1980
      %v1982 = vpop.f32.mrf.mxu0
      %v1983 = vadd.f32 %v1495, %v1982
      %1984 = vmatmul.bf16.gmra.mxu0 %v1792
      %v1985 = vpop.f32.mrf.mxu0
      %v1986 = vadd.f32 %v1498, %v1985
      %v1987 = vpop.f32.mrf.mxu0
      %v1988 = vadd.f32 %v1500, %v1987
      %1989 = vmatmul.bf16.gmra.mxu0 %v1794
      %v1990 = vpop.f32.mrf.mxu0
      %v1991 = vadd.f32 %v1503, %v1990
      %v1992 = vpop.f32.mrf.mxu0
      %v1993 = vadd.f32 %v1505, %v1992
      %1994 = vmatmul.bf16.gmra.mxu0 %v1796
      %v1995 = vpop.f32.mrf.mxu0
      %v1996 = vadd.f32 %v1508, %v1995
      %v1997 = vpop.f32.mrf.mxu0
      %v1998 = vadd.f32 %v1510, %v1997
      %1999 = vmatmul.bf16.gmra.mxu0 %v1798
      %v2000 = vpop.f32.mrf.mxu0
      %v2001 = vadd.f32 %v1513, %v2000
      %v2002 = vpop.f32.mrf.mxu0
      %v2003 = vadd.f32 %v1515, %v2002
      %2004 = vmatmul.bf16.gmra.mxu0 %v1800
      %v2005 = vpop.f32.mrf.mxu0
      %v2006 = vadd.f32 %v1518, %v2005
      %v2007 = vpop.f32.mrf.mxu0
      %v2008 = vadd.f32 %v1520, %v2007
      %2009 = vmatmul.bf16.gmra.mxu0 %v1802
      %v2010 = vpop.f32.mrf.mxu0
      %v2011 = vadd.f32 %v1523, %v2010
      %v2012 = vpop.f32.mrf.mxu0
      %v2013 = vadd.f32 %v1525, %v2012
      %2014 = vmatmul.bf16.gmra.mxu0 %v1804
      %v2015 = vpop.f32.mrf.mxu0
      %v2016 = vadd.f32 %v1528, %v2015
      %v2017 = vpop.f32.mrf.mxu0
      %v2018 = vadd.f32 %v1530, %v2017
      %2019 = vmatmul.bf16.gmra.mxu0 %v1806
      %v2020 = vpop.f32.mrf.mxu0
      %v2021 = vadd.f32 %v1533, %v2020
      %v2022 = vpop.f32.mrf.mxu0
      %v2023 = vadd.f32 %v1535, %v2022
      %2024 = vmatmul.bf16.gmra.mxu0 %v1808
      %v2025 = vpop.f32.mrf.mxu0
      %v2026 = vadd.f32 %v1538, %v2025
      %v2027 = vpop.f32.mrf.mxu0
      %v2028 = vadd.f32 %v1540, %v2027
      %2029 = vmatmul.bf16.gmra.mxu0 %v1810
      %v2030 = vpop.f32.mrf.mxu0
      %v2031 = vadd.f32 %v1543, %v2030
      %v2032 = vpop.f32.mrf.mxu0
      %v2033 = vadd.f32 %v1545, %v2032
      %2034 = vmatmul.bf16.gmra.mxu0 %v1812
      %v2035 = vpop.f32.mrf.mxu0
      %v2036 = vadd.f32 %v1548, %v2035
      %v2037 = vpop.f32.mrf.mxu0
      %v2038 = vadd.f32 %v1550, %v2037
      %2039 = vmatmul.bf16.gmra.mxu0 %v1814
      %v2040 = vpop.f32.mrf.mxu0
      %v2041 = vadd.f32 %v1553, %v2040
      %v2042 = vpop.f32.mrf.mxu0
      %v2043 = vadd.f32 %v1555, %v2042
      %2044 = vmatmul.bf16.gmra.mxu0 %v1816
      %v2045 = vpop.f32.mrf.mxu0
      %v2046 = vadd.f32 %v1558, %v2045
      %v2047 = vpop.f32.mrf.mxu0
      %v2048 = vadd.f32 %v1560, %v2047
      %2049 = vmatmul.bf16.gmra.mxu0 %v1818
      %v2050 = vpop.f32.mrf.mxu0
      %v2051 = vadd.f32 %v1563, %v2050
      %v2052 = vpop.f32.mrf.mxu0
      %v2053 = vadd.f32 %v1565, %v2052
      %2054 = vmatmul.bf16.gmra.mxu0 %v1820
      %v2055 = vpop.f32.mrf.mxu0
      %v2056 = vadd.f32 %v1568, %v2055
      %v2057 = vpop.f32.mrf.mxu0
      %v2058 = vadd.f32 %v1570, %v2057
      %2059 = vmatmul.bf16.gmra.mxu0 %v1822
      %v2060 = vpop.f32.mrf.mxu0
      %v2061 = vadd.f32 %v1573, %v2060
      %v2062 = vpop.f32.mrf.mxu0
      %v2063 = vadd.f32 %v1575, %v2062
      %2064 = vmatmul.bf16.gmra.mxu0 %v1824
      %v2065 = vpop.f32.mrf.mxu0
      %v2066 = vadd.f32 %v1578, %v2065
      %v2067 = vpop.f32.mrf.mxu0
      %v2068 = vadd.f32 %v1580, %v2067
      %2069 = vmatmul.bf16.gmra.mxu0 %v1826
      %v2070 = vpop.f32.mrf.mxu0
      %v2071 = vadd.f32 %v1583, %v2070
      %v2072 = vpop.f32.mrf.mxu0
      %v2073 = vadd.f32 %v1585, %v2072
      %2074 = vmatmul.bf16.gmra.mxu0 %v1828
      %v2075 = vpop.f32.mrf.mxu0
      %v2076 = vadd.f32 %v1588, %v2075
      %v2077 = vpop.f32.mrf.mxu0
      %v2078 = vadd.f32 %v1590, %v2077
      %2079 = vmatmul.bf16.gmra.mxu0 %v1830
      %v2080 = vpop.f32.mrf.mxu0
      %v2081 = vadd.f32 %v1593, %v2080
      %v2082 = vpop.f32.mrf.mxu0
      %v2083 = vadd.f32 %v1595, %v2082
      %2084 = vmatmul.bf16.gmra.mxu0 %v1832
      %v2085 = vpop.f32.mrf.mxu0
      %v2086 = vadd.f32 %v1598, %v2085
      %v2087 = vpop.f32.mrf.mxu0
      %v2088 = vadd.f32 %v1600, %v2087
      %2089 = vmatmul.bf16.gmra.mxu0 %v1834
      %v2090 = vpop.f32.mrf.mxu0
      %v2091 = vadd.f32 %v1603, %v2090
      %v2092 = vpop.f32.mrf.mxu0
      %v2093 = vadd.f32 %v1605, %v2092
      %2094 = vmatmul.bf16.gmra.mxu0 %v1836
      %v2095 = vpop.f32.mrf.mxu0
      %v2096 = vadd.f32 %v1608, %v2095
      %v2097 = vpop.f32.mrf.mxu0
      %v2098 = vadd.f32 %v1610, %v2097
      %2099 = vmatmul.bf16.gmra.mxu0 %v1838
      %v2100 = vpop.f32.mrf.mxu0
      %v2101 = vadd.f32 %v1613, %v2100
      %v2102 = vpop.f32.mrf.mxu0
      %v2103 = vadd.f32 %v1615, %v2102
      %2104 = vmatmul.bf16.gmra.mxu0 %v1840
      %v2105 = vpop.f32.mrf.mxu0
      %v2106 = vadd.f32 %v1618, %v2105
      %v2107 = vpop.f32.mrf.mxu0
      %v2108 = vadd.f32 %v1620, %v2107
      %2109 = vmatmul.bf16.gmra.mxu0 %v1842
      %v2110 = vpop.f32.mrf.mxu0
      %v2111 = vadd.f32 %v1623, %v2110
      %v2112 = vpop.f32.mrf.mxu0
      %v2113 = vadd.f32 %v1625, %v2112
      %2114 = vmatmul.bf16.gmra.mxu0 %v1844
      %v2115 = vpop.f32.mrf.mxu0
      %v2116 = vadd.f32 %v1628, %v2115
      %v2117 = vpop.f32.mrf.mxu0
      %v2118 = vadd.f32 %v1630, %v2117
      %2119 = vmatmul.bf16.gmra.mxu0 %v1846
      %v2120 = vpop.f32.mrf.mxu0
      %v2121 = vadd.f32 %v1633, %v2120
      %v2122 = vpop.f32.mrf.mxu0
      %v2123 = vadd.f32 %v1635, %v2122
      %2124 = vmatmul.bf16.gmra.mxu0 %v1848
      %v2125 = vpop.f32.mrf.mxu0
      %v2126 = vadd.f32 %v1638, %v2125
      %v2127 = vpop.f32.mrf.mxu0
      %v2128 = vadd.f32 %v1640, %v2127
      %2129 = vmatmul.bf16.gmra.mxu0 %v1850
      %v2130 = vpop.f32.mrf.mxu0
      %v2131 = vadd.f32 %v1643, %v2130
      %v2132 = vpop.f32.mrf.mxu0
      %v2133 = vadd.f32 %v1645, %v2132
      %2134 = vmatmul.bf16.gmra.mxu0 %v1852
      %v2135 = vpop.f32.mrf.mxu0
      %v2136 = vadd.f32 %v1648, %v2135
      %v2137 = vpop.f32.mrf.mxu0
      %v2138 = vadd.f32 %v1650, %v2137
      %2139 = vmatmul.bf16.gmra.mxu0 %v1854
      %v2140 = vpop.f32.mrf.mxu0
      %v2141 = vadd.f32 %v1653, %v2140
      %v2142 = vpop.f32.mrf.mxu0
      %v2143 = vadd.f32 %v1655, %v2142
      %2144 = vmatmul.bf16.gmra.mxu0 %v1856
      %v2145 = vpop.f32.mrf.mxu0
      %v2146 = vadd.f32 %v1658, %v2145
      %v2147 = vpop.f32.mrf.mxu0
      %v2148 = vadd.f32 %v1660, %v2147
      %2149 = vmatmul.bf16.gmra.mxu0 %v1858
      %v2150 = vpop.f32.mrf.mxu0
      %v2151 = vadd.f32 %v1663, %v2150
      %v2152 = vpop.f32.mrf.mxu0
      %v2153 = vadd.f32 %v1665, %v2152
      %2154 = vmatmul.bf16.gmra.mxu0 %v1860
      %v2155 = vpop.f32.mrf.mxu0
      %v2156 = vadd.f32 %v1668, %v2155
      %v2157 = vpop.f32.mrf.mxu0
      %v2158 = vadd.f32 %v1670, %v2157
      %2159 = vmatmul.bf16.gmra.mxu0 %v1862
      %v2160 = vpop.f32.mrf.mxu0
      %v2161 = vadd.f32 %v1673, %v2160
      %v2162 = vpop.f32.mrf.mxu0
      %v2163 = vadd.f32 %v1675, %v2162
      %2164 = vmatmul.bf16.gmra.mxu0 %v1864
      %v2165 = vpop.f32.mrf.mxu0
      %v2166 = vadd.f32 %v1678, %v2165
      %v2167 = vpop.f32.mrf.mxu0
      %v2168 = vadd.f32 %v1680, %v2167
      %2169 = vmatmul.bf16.gmra.mxu0 %v1866
      %v2170 = vpop.f32.mrf.mxu0
      %v2171 = vadd.f32 %v1683, %v2170
      %v2172 = vpop.f32.mrf.mxu0
      %v2173 = vadd.f32 %v1685, %v2172
      %2174 = vmatmul.bf16.gmra.mxu0 %v1868
      %v2175 = vpop.f32.mrf.mxu0
      %v2176 = vadd.f32 %v1688, %v2175
      %v2177 = vpop.f32.mrf.mxu0
      %v2178 = vadd.f32 %v1690, %v2177
      %2179 = vmatmul.bf16.gmra.mxu0 %v1870
      %v2180 = vpop.f32.mrf.mxu0
      %v2181 = vadd.f32 %v1693, %v2180
      %v2182 = vpop.f32.mrf.mxu0
      %v2183 = vadd.f32 %v1695, %v2182
      %2184 = vmatmul.bf16.gmra.mxu0 %v1872
      %v2185 = vpop.f32.mrf.mxu0
      %v2186 = vadd.f32 %v1698, %v2185
      %v2187 = vpop.f32.mrf.mxu0
      %v2188 = vadd.f32 %v1700, %v2187
      %2189 = vmatmul.bf16.gmra.mxu0 %v1874
      %v2190 = vpop.f32.mrf.mxu0
      %v2191 = vadd.f32 %v1703, %v2190
      %v2192 = vpop.f32.mrf.mxu0
      %v2193 = vadd.f32 %v1705, %v2192
      %2194 = vmatmul.bf16.gmra.mxu0 %v1876
      %v2195 = vpop.f32.mrf.mxu0
      %v2196 = vadd.f32 %v1708, %v2195
      %v2197 = vpop.f32.mrf.mxu0
      %v2198 = vadd.f32 %v1710, %v2197
      %2199 = vmatmul.bf16.gmra.mxu0 %v1878
      %v2200 = vpop.f32.mrf.mxu0
      %v2201 = vadd.f32 %v1713, %v2200
      %v2202 = vpop.f32.mrf.mxu0
      %v2203 = vadd.f32 %v1715, %v2202
      %2204 = vmatmul.bf16.gmra.mxu0 %v1880
      %v2205 = vpop.f32.mrf.mxu0
      %v2206 = vadd.f32 %v1718, %v2205
      %v2207 = vpop.f32.mrf.mxu0
      %v2208 = vadd.f32 %v1720, %v2207
      %2209 = vmatmul.bf16.gmra.mxu0 %v1882
      %v2210 = vpop.f32.mrf.mxu0
      %v2211 = vadd.f32 %v1723, %v2210
      %v2212 = vpop.f32.mrf.mxu0
      %v2213 = vadd.f32 %v1725, %v2212
      %2214 = vmatmul.bf16.gmra.mxu0 %v1884
      %v2215 = vpop.f32.mrf.mxu0
      %v2216 = vadd.f32 %v1728, %v2215
      %v2217 = vpop.f32.mrf.mxu0
      %v2218 = vadd.f32 %v1730, %v2217
      %2219 = vmatmul.bf16.gmra.mxu0 %v1886
      %v2220 = vpop.f32.mrf.mxu0
      %v2221 = vadd.f32 %v1733, %v2220
      %v2222 = vpop.f32.mrf.mxu0
      %v2223 = vadd.f32 %v1735, %v2222
      %2224 = vmatmul.bf16.gmra.mxu0 %v1888
      %v2225 = vpop.f32.mrf.mxu0
      %v2226 = vadd.f32 %v1738, %v2225
      %v2227 = vpop.f32.mrf.mxu0
      %v2228 = vadd.f32 %v1740, %v2227
      %2229 = vmatmul.bf16.gmra.mxu0 %v1890
      %v2230 = vpop.f32.mrf.mxu0
      %v2231 = vadd.f32 %v1743, %v2230
      %v2232 = vpop.f32.mrf.mxu0
      %v2233 = vadd.f32 %v1745, %v2232
      %2234 = vmatmul.bf16.gmra.mxu0 %v1892
      %v2235 = vpop.f32.mrf.mxu0
      %v2236 = vadd.f32 %v1748, %v2235
      %v2237 = vpop.f32.mrf.mxu0
      %v2238 = vadd.f32 %v1750, %v2237
      %2239 = vmatmul.bf16.gmra.mxu0 %v1894
      %v2240 = vpop.f32.mrf.mxu0
      %v2241 = vadd.f32 %v1753, %v2240
      %v2242 = vpop.f32.mrf.mxu0
      %v2243 = vadd.f32 %v1755, %v2242
      %2244 = vmatmul.bf16.gmra.mxu0 %v1896
      %v2245 = vpop.f32.mrf.mxu0
      %v2246 = vadd.f32 %v1758, %v2245
      %v2247 = vpop.f32.mrf.mxu0
      %v2248 = vadd.f32 %v1760, %v2247
      %2249 = vdwg.mxu0
      %v2250 = vld [vmem:[%s165] sm:$0xe]
      %s2251 = scalar_lea.vmem %s1, 8
      %v2252 = vld [vmem:[%s2251] sm:$0xf]
      %v2254 = vunpack.c.l.b16 %v2250
      %v2255 = vpack.c.b16 %v450, %v2254
      %vm2256 = vcmask 1046528
      %v2257 = vrot.slane %v2255, 1
      %v2258 = vrot.slane %v587, 1
      %v2259 = vsel %vm2256, %v2257, %v2258
      %v2260 = vrot.slane %v588, 1
      %v2261 = vsel %vm2256, %v2258, %v2260
      %v2262 = vrot.slane %v589, 1
      %v2263 = vsel %vm2256, %v2260, %v2262
      %v2264 = vrot.slane %v590, 1
      %v2265 = vsel %vm2256, %v2262, %v2264
      %v2266 = vrot.slane %v591, 1
      %v2267 = vsel %vm2256, %v2264, %v2266
      %v2268 = vrot.slane %v592, 1
      %v2269 = vsel %vm2256, %v2266, %v2268
      %v2270 = vrot.slane %v593, 1
      %v2271 = vsel %vm2256, %v2268, %v2270
      %v2272 = vrot.slane %v594, 1
      %v2273 = vsel %vm2256, %v2270, %v2272
      %v2274 = vrot.slane %v595, 1
      %v2275 = vsel %vm2256, %v2272, %v2274
      %v2276 = vrot.slane %v596, 1
      %v2277 = vsel %vm2256, %v2274, %v2276
      %v2278 = vrot.slane %v597, 1
      %v2279 = vsel %vm2256, %v2276, %v2278
      %v2280 = vrot.slane %v598, 1
      %v2281 = vsel %vm2256, %v2278, %v2280
      %v2282 = vrot.slane %v599, 1
      %v2283 = vsel %vm2256, %v2280, %v2282
      %v2284 = vrot.slane %v600, 1
      %v2285 = vsel %vm2256, %v2282, %v2284
      %v2286 = vrot.slane %v601, 1
      %v2287 = vsel %vm2256, %v2284, %v2286
      %v2288 = vrot.slane %v602, 1
      %v2289 = vsel %vm2256, %v2286, %v2288
      %v2290 = vrot.slane %v603, 1
      %v2291 = vsel %vm2256, %v2288, %v2290
      %v2292 = vrot.slane %v604, 1
      %v2293 = vsel %vm2256, %v2290, %v2292
      %v2294 = vrot.slane %v605, 1
      %v2295 = vsel %vm2256, %v2292, %v2294
      %v2296 = vrot.slane %v606, 1
      %v2297 = vsel %vm2256, %v2294, %v2296
      %v2298 = vrot.slane %v607, 1
      %v2299 = vsel %vm2256, %v2296, %v2298
      %v2300 = vrot.slane %v608, 1
      %v2301 = vsel %vm2256, %v2298, %v2300
      %v2302 = vrot.slane %v609, 1
      %v2303 = vsel %vm2256, %v2300, %v2302
      %v2304 = vrot.slane %v610, 1
      %v2305 = vsel %vm2256, %v2302, %v2304
      %v2306 = vrot.slane %v611, 1
      %v2307 = vsel %vm2256, %v2304, %v2306
      %v2308 = vrot.slane %v612, 1
      %v2309 = vsel %vm2256, %v2306, %v2308
      %v2310 = vrot.slane %v613, 1
      %v2311 = vsel %vm2256, %v2308, %v2310
      %v2312 = vrot.slane %v614, 1
      %v2313 = vsel %vm2256, %v2310, %v2312
      %v2314 = vrot.slane %v615, 1
      %v2315 = vsel %vm2256, %v2312, %v2314
      %v2316 = vrot.slane %v616, 1
      %v2317 = vsel %vm2256, %v2314, %v2316
      %v2318 = vrot.slane %v617, 1
      %v2319 = vsel %vm2256, %v2316, %v2318
      %v2320 = vrot.slane %v618, 1
      %v2321 = vsel %vm2256, %v2318, %v2320
      %v2322 = vrot.slane %v619, 1
      %v2323 = vsel %vm2256, %v2320, %v2322
      %v2324 = vrot.slane %v620, 1
      %v2325 = vsel %vm2256, %v2322, %v2324
      %v2326 = vrot.slane %v621, 1
      %v2327 = vsel %vm2256, %v2324, %v2326
      %v2328 = vrot.slane %v622, 1
      %v2329 = vsel %vm2256, %v2326, %v2328
      %v2330 = vrot.slane %v623, 1
      %v2331 = vsel %vm2256, %v2328, %v2330
      %v2332 = vrot.slane %v624, 1
      %v2333 = vsel %vm2256, %v2330, %v2332
      %v2334 = vrot.slane %v625, 1
      %v2335 = vsel %vm2256, %v2332, %v2334
      %v2336 = vrot.slane %v626, 1
      %v2337 = vsel %vm2256, %v2334, %v2336
      %v2338 = vrot.slane %v627, 1
      %v2339 = vsel %vm2256, %v2336, %v2338
      %v2340 = vrot.slane %v628, 1
      %v2341 = vsel %vm2256, %v2338, %v2340
      %v2342 = vrot.slane %v629, 1
      %v2343 = vsel %vm2256, %v2340, %v2342
      %v2344 = vrot.slane %v630, 1
      %v2345 = vsel %vm2256, %v2342, %v2344
      %v2346 = vrot.slane %v631, 1
      %v2347 = vsel %vm2256, %v2344, %v2346
      %v2348 = vrot.slane %v632, 1
      %v2349 = vsel %vm2256, %v2346, %v2348
      %v2350 = vrot.slane %v633, 1
      %v2351 = vsel %vm2256, %v2348, %v2350
      %v2352 = vrot.slane %v634, 1
      %v2353 = vsel %vm2256, %v2350, %v2352
      %v2354 = vrot.slane %v635, 1
      %v2355 = vsel %vm2256, %v2352, %v2354
      %v2356 = vrot.slane %v636, 1
      %v2357 = vsel %vm2256, %v2354, %v2356
      %v2358 = vrot.slane %v637, 1
      %v2359 = vsel %vm2256, %v2356, %v2358
      %v2360 = vrot.slane %v638, 1
      %v2361 = vsel %vm2256, %v2358, %v2360
      %v2362 = vrot.slane %v639, 1
      %v2363 = vsel %vm2256, %v2360, %v2362
      %v2364 = vrot.slane %v640, 1
      %v2365 = vsel %vm2256, %v2362, %v2364
      %v2366 = vrot.slane %v641, 1
      %v2367 = vsel %vm2256, %v2364, %v2366
      %v2368 = vrot.slane %v642, 1
      %v2369 = vsel %vm2256, %v2366, %v2368
      %v2370 = vrot.slane %v643, 1
      %v2371 = vsel %vm2256, %v2368, %v2370
      %v2372 = vrot.slane %v644, 1
      %v2373 = vsel %vm2256, %v2370, %v2372
      %v2374 = vrot.slane %v645, 1
      %v2375 = vsel %vm2256, %v2372, %v2374
      %v2376 = vrot.slane %v646, 1
      %v2377 = vsel %vm2256, %v2374, %v2376
      %v2378 = vrot.slane %v647, 1
      %v2379 = vsel %vm2256, %v2376, %v2378
      %v2380 = vrot.slane %v648, 1
      %v2381 = vsel %vm2256, %v2378, %v2380
      %v2382 = vrot.slane %v649, 1
      %v2383 = vsel %vm2256, %v2380, %v2382
      %v2384 = vrot.slane %v650, 1
      %v2385 = vsel %vm2256, %v2382, %v2384
      %v2386 = vrot.slane %v651, 1
      %v2387 = vsel %vm2256, %v2384, %v2386
      %v2388 = vrot.slane %v652, 1
      %v2389 = vsel %vm2256, %v2386, %v2388
      %v2390 = vrot.slane %v653, 1
      %v2391 = vsel %vm2256, %v2388, %v2390
      %v2392 = vrot.slane %v654, 1
      %v2393 = vsel %vm2256, %v2390, %v2392
      %v2395 = vsel %vm1204, %v2259, 0
      %v2398 = vsel %vm1204, %v2261, 0
      %v2401 = vsel %vm1204, %v2263, 0
      %v2404 = vsel %vm1204, %v2265, 0
      %v2407 = vsel %vm1204, %v2267, 0
      %v2410 = vsel %vm1204, %v2269, 0
      %v2413 = vsel %vm1204, %v2271, 0
      %v2416 = vsel %vm1204, %v2273, 0
      %v2419 = vsel %vm1204, %v2275, 0
      %v2422 = vsel %vm1204, %v2277, 0
      %v2425 = vsel %vm1204, %v2279, 0
      %v2428 = vsel %vm1204, %v2281, 0
      %v2431 = vsel %vm1204, %v2283, 0
      %v2434 = vsel %vm1204, %v2285, 0
      %v2437 = vsel %vm1204, %v2287, 0
      %v2440 = vsel %vm1204, %v2289, 0
      %v2443 = vsel %vm1204, %v2291, 0
      %v2446 = vsel %vm1204, %v2293, 0
      %v2449 = vsel %vm1204, %v2295, 0
      %v2452 = vsel %vm1204, %v2297, 0
      %v2455 = vsel %vm1204, %v2299, 0
      %v2458 = vsel %vm1204, %v2301, 0
      %v2461 = vsel %vm1204, %v2303, 0
      %v2464 = vsel %vm1204, %v2305, 0
      %v2467 = vsel %vm1204, %v2307, 0
      %v2470 = vsel %vm1204, %v2309, 0
      %v2473 = vsel %vm1204, %v2311, 0
      %v2476 = vsel %vm1204, %v2313, 0
      %v2479 = vsel %vm1204, %v2315, 0
      %v2482 = vsel %vm1204, %v2317, 0
      %v2485 = vsel %vm1204, %v2319, 0
      %v2488 = vsel %vm1204, %v2321, 0
      %v2491 = vsel %vm1204, %v2323, 0
      %v2494 = vsel %vm1204, %v2325, 0
      %v2497 = vsel %vm1204, %v2327, 0
      %v2500 = vsel %vm1204, %v2329, 0
      %v2503 = vsel %vm1204, %v2331, 0
      %v2506 = vsel %vm1204, %v2333, 0
      %v2509 = vsel %vm1204, %v2335, 0
      %v2512 = vsel %vm1204, %v2337, 0
      %v2515 = vsel %vm1204, %v2339, 0
      %v2518 = vsel %vm1204, %v2341, 0
      %v2521 = vsel %vm1204, %v2343, 0
      %v2524 = vsel %vm1204, %v2345, 0
      %v2527 = vsel %vm1204, %v2347, 0
      %v2530 = vsel %vm1204, %v2349, 0
      %v2533 = vsel %vm1204, %v2351, 0
      %v2536 = vsel %vm1204, %v2353, 0
      %v2539 = vsel %vm1204, %v2355, 0
      %v2542 = vsel %vm1204, %v2357, 0
      %v2545 = vsel %vm1204, %v2359, 0
      %v2548 = vsel %vm1204, %v2361, 0
      %v2551 = vsel %vm1204, %v2363, 0
      %v2554 = vsel %vm1204, %v2365, 0
      %v2557 = vsel %vm1204, %v2367, 0
      %v2560 = vsel %vm1204, %v2369, 0
      %v2563 = vsel %vm1204, %v2371, 0
      %v2566 = vsel %vm1204, %v2373, 0
      %v2569 = vsel %vm1204, %v2375, 0
      %v2572 = vsel %vm1204, %v2377, 0
      %v2575 = vsel %vm1204, %v2379, 0
      %v2578 = vsel %vm1204, %v2381, 0
      %v2581 = vsel %vm1204, %v2383, 0
      %v2584 = vsel %vm1204, %v2385, 0
      %v2587 = vsel %vm1204, %v2387, 0
      %v2590 = vsel %vm1204, %v2389, 0
      %v2593 = vsel %vm1204, %v2391, 0
      %v2596 = vsel %vm1204, %v2393, 0
      %v2599 = vsel %vm1409, %v2252, 0
      %2601 = vmatpush.bf16.msra.mxu0 0
      %2602 = vmatpush.bf16.msra.mxu0 0
      %2603 = vmatpush.bf16.msra.mxu0 0
      %2604 = vmatpush.bf16.msra.mxu0 0
      %2605 = vmatpush.bf16.msra.mxu0 0
      %2606 = vmatpush.bf16.msra.mxu0 0
      %2607 = vmatpush.bf16.msra.mxu0 0
      %2608 = vmatpush.bf16.msra.mxu0 %v2599
      %2609 = vmatmul.bf16.gmra.mxu0 %v2395
      %v2610 = vpop.f32.mrf.mxu0
      %v2611 = vadd.f32 0.0, %v2610
      %v2612 = vpop.f32.mrf.mxu0
      %v2613 = vadd.f32 0.0, %v2612
      %2614 = vmatmul.bf16.gmra.mxu0 %v2398
      %v2615 = vpop.f32.mrf.mxu0
      %v2616 = vadd.f32 0.0, %v2615
      %v2617 = vpop.f32.mrf.mxu0
      %v2618 = vadd.f32 0.0, %v2617
      %2619 = vmatmul.bf16.gmra.mxu0 %v2401
      %v2620 = vpop.f32.mrf.mxu0
      %v2621 = vadd.f32 0.0, %v2620
      %v2622 = vpop.f32.mrf.mxu0
      %v2623 = vadd.f32 0.0, %v2622
      %2624 = vmatmul.bf16.gmra.mxu0 %v2404
      %v2625 = vpop.f32.mrf.mxu0
      %v2626 = vadd.f32 0.0, %v2625
      %v2627 = vpop.f32.mrf.mxu0
      %v2628 = vadd.f32 0.0, %v2627
      %2629 = vmatmul.bf16.gmra.mxu0 %v2407
      %v2630 = vpop.f32.mrf.mxu0
      %v2631 = vadd.f32 0.0, %v2630
      %v2632 = vpop.f32.mrf.mxu0
      %v2633 = vadd.f32 0.0, %v2632
      %2634 = vmatmul.bf16.gmra.mxu0 %v2410
      %v2635 = vpop.f32.mrf.mxu0
      %v2636 = vadd.f32 0.0, %v2635
      %v2637 = vpop.f32.mrf.mxu0
      %v2638 = vadd.f32 0.0, %v2637
      %2639 = vmatmul.bf16.gmra.mxu0 %v2413
      %v2640 = vpop.f32.mrf.mxu0
      %v2641 = vadd.f32 0.0, %v2640
      %v2642 = vpop.f32.mrf.mxu0
      %v2643 = vadd.f32 0.0, %v2642
      %2644 = vmatmul.bf16.gmra.mxu0 %v2416
      %v2645 = vpop.f32.mrf.mxu0
      %v2646 = vadd.f32 0.0, %v2645
      %v2647 = vpop.f32.mrf.mxu0
      %v2648 = vadd.f32 0.0, %v2647
      %2649 = vmatmul.bf16.gmra.mxu0 %v2419
      %v2650 = vpop.f32.mrf.mxu0
      %v2651 = vadd.f32 0.0, %v2650
      %v2652 = vpop.f32.mrf.mxu0
      %v2653 = vadd.f32 0.0, %v2652
      %2654 = vmatmul.bf16.gmra.mxu0 %v2422
      %v2655 = vpop.f32.mrf.mxu0
      %v2656 = vadd.f32 0.0, %v2655
      %v2657 = vpop.f32.mrf.mxu0
      %v2658 = vadd.f32 0.0, %v2657
      %2659 = vmatmul.bf16.gmra.mxu0 %v2425
      %v2660 = vpop.f32.mrf.mxu0
      %v2661 = vadd.f32 0.0, %v2660
      %v2662 = vpop.f32.mrf.mxu0
      %v2663 = vadd.f32 0.0, %v2662
      %2664 = vmatmul.bf16.gmra.mxu0 %v2428
      %v2665 = vpop.f32.mrf.mxu0
      %v2666 = vadd.f32 0.0, %v2665
      %v2667 = vpop.f32.mrf.mxu0
      %v2668 = vadd.f32 0.0, %v2667
      %2669 = vmatmul.bf16.gmra.mxu0 %v2431
      %v2670 = vpop.f32.mrf.mxu0
      %v2671 = vadd.f32 0.0, %v2670
      %v2672 = vpop.f32.mrf.mxu0
      %v2673 = vadd.f32 0.0, %v2672
      %2674 = vmatmul.bf16.gmra.mxu0 %v2434
      %v2675 = vpop.f32.mrf.mxu0
      %v2676 = vadd.f32 0.0, %v2675
      %v2677 = vpop.f32.mrf.mxu0
      %v2678 = vadd.f32 0.0, %v2677
      %2679 = vmatmul.bf16.gmra.mxu0 %v2437
      %v2680 = vpop.f32.mrf.mxu0
      %v2681 = vadd.f32 0.0, %v2680
      %v2682 = vpop.f32.mrf.mxu0
      %v2683 = vadd.f32 0.0, %v2682
      %2684 = vmatmul.bf16.gmra.mxu0 %v2440
      %v2685 = vpop.f32.mrf.mxu0
      %v2686 = vadd.f32 0.0, %v2685
      %v2687 = vpop.f32.mrf.mxu0
      %v2688 = vadd.f32 0.0, %v2687
      %2689 = vmatmul.bf16.gmra.mxu0 %v2443
      %v2690 = vpop.f32.mrf.mxu0
      %v2691 = vadd.f32 0.0, %v2690
      %v2692 = vpop.f32.mrf.mxu0
      %v2693 = vadd.f32 0.0, %v2692
      %2694 = vmatmul.bf16.gmra.mxu0 %v2446
      %v2695 = vpop.f32.mrf.mxu0
      %v2696 = vadd.f32 0.0, %v2695
      %v2697 = vpop.f32.mrf.mxu0
      %v2698 = vadd.f32 0.0, %v2697
      %2699 = vmatmul.bf16.gmra.mxu0 %v2449
      %v2700 = vpop.f32.mrf.mxu0
      %v2701 = vadd.f32 0.0, %v2700
      %v2702 = vpop.f32.mrf.mxu0
      %v2703 = vadd.f32 0.0, %v2702
      %2704 = vmatmul.bf16.gmra.mxu0 %v2452
      %v2705 = vpop.f32.mrf.mxu0
      %v2706 = vadd.f32 0.0, %v2705
      %v2707 = vpop.f32.mrf.mxu0
      %v2708 = vadd.f32 0.0, %v2707
      %2709 = vmatmul.bf16.gmra.mxu0 %v2455
      %v2710 = vpop.f32.mrf.mxu0
      %v2711 = vadd.f32 0.0, %v2710
      %v2712 = vpop.f32.mrf.mxu0
      %v2713 = vadd.f32 0.0, %v2712
      %2714 = vmatmul.bf16.gmra.mxu0 %v2458
      %v2715 = vpop.f32.mrf.mxu0
      %v2716 = vadd.f32 0.0, %v2715
      %v2717 = vpop.f32.mrf.mxu0
      %v2718 = vadd.f32 0.0, %v2717
      %2719 = vmatmul.bf16.gmra.mxu0 %v2461
      %v2720 = vpop.f32.mrf.mxu0
      %v2721 = vadd.f32 0.0, %v2720
      %v2722 = vpop.f32.mrf.mxu0
      %v2723 = vadd.f32 0.0, %v2722
      %2724 = vmatmul.bf16.gmra.mxu0 %v2464
      %v2725 = vpop.f32.mrf.mxu0
      %v2726 = vadd.f32 0.0, %v2725
      %v2727 = vpop.f32.mrf.mxu0
      %v2728 = vadd.f32 0.0, %v2727
      %2729 = vmatmul.bf16.gmra.mxu0 %v2467
      %v2730 = vpop.f32.mrf.mxu0
      %v2731 = vadd.f32 0.0, %v2730
      %v2732 = vpop.f32.mrf.mxu0
      %v2733 = vadd.f32 0.0, %v2732
      %2734 = vmatmul.bf16.gmra.mxu0 %v2470
      %v2735 = vpop.f32.mrf.mxu0
      %v2736 = vadd.f32 0.0, %v2735
      %v2737 = vpop.f32.mrf.mxu0
      %v2738 = vadd.f32 0.0, %v2737
      %2739 = vmatmul.bf16.gmra.mxu0 %v2473
      %v2740 = vpop.f32.mrf.mxu0
      %v2741 = vadd.f32 0.0, %v2740
      %v2742 = vpop.f32.mrf.mxu0
      %v2743 = vadd.f32 0.0, %v2742
      %2744 = vmatmul.bf16.gmra.mxu0 %v2476
      %v2745 = vpop.f32.mrf.mxu0
      %v2746 = vadd.f32 0.0, %v2745
      %v2747 = vpop.f32.mrf.mxu0
      %v2748 = vadd.f32 0.0, %v2747
      %2749 = vmatmul.bf16.gmra.mxu0 %v2479
      %v2750 = vpop.f32.mrf.mxu0
      %v2751 = vadd.f32 0.0, %v2750
      %v2752 = vpop.f32.mrf.mxu0
      %v2753 = vadd.f32 0.0, %v2752
      %2754 = vmatmul.bf16.gmra.mxu0 %v2482
      %v2755 = vpop.f32.mrf.mxu0
      %v2756 = vadd.f32 0.0, %v2755
      %v2757 = vpop.f32.mrf.mxu0
      %v2758 = vadd.f32 0.0, %v2757
      %2759 = vmatmul.bf16.gmra.mxu0 %v2485
      %v2760 = vpop.f32.mrf.mxu0
      %v2761 = vadd.f32 0.0, %v2760
      %v2762 = vpop.f32.mrf.mxu0
      %v2763 = vadd.f32 0.0, %v2762
      %2764 = vmatmul.bf16.gmra.mxu0 %v2488
      %v2765 = vpop.f32.mrf.mxu0
      %v2766 = vadd.f32 0.0, %v2765
      %v2767 = vpop.f32.mrf.mxu0
      %v2768 = vadd.f32 0.0, %v2767
      %2769 = vmatmul.bf16.gmra.mxu0 %v2491
      %v2770 = vpop.f32.mrf.mxu0
      %v2771 = vadd.f32 0.0, %v2770
      %v2772 = vpop.f32.mrf.mxu0
      %v2773 = vadd.f32 0.0, %v2772
      %2774 = vmatmul.bf16.gmra.mxu0 %v2494
      %v2775 = vpop.f32.mrf.mxu0
      %v2776 = vadd.f32 0.0, %v2775
      %v2777 = vpop.f32.mrf.mxu0
      %v2778 = vadd.f32 0.0, %v2777
      %2779 = vmatmul.bf16.gmra.mxu0 %v2497
      %v2780 = vpop.f32.mrf.mxu0
      %v2781 = vadd.f32 0.0, %v2780
      %v2782 = vpop.f32.mrf.mxu0
      %v2783 = vadd.f32 0.0, %v2782
      %2784 = vmatmul.bf16.gmra.mxu0 %v2500
      %v2785 = vpop.f32.mrf.mxu0
      %v2786 = vadd.f32 0.0, %v2785
      %v2787 = vpop.f32.mrf.mxu0
      %v2788 = vadd.f32 0.0, %v2787
      %2789 = vmatmul.bf16.gmra.mxu0 %v2503
      %v2790 = vpop.f32.mrf.mxu0
      %v2791 = vadd.f32 0.0, %v2790
      %v2792 = vpop.f32.mrf.mxu0
      %v2793 = vadd.f32 0.0, %v2792
      %2794 = vmatmul.bf16.gmra.mxu0 %v2506
      %v2795 = vpop.f32.mrf.mxu0
      %v2796 = vadd.f32 0.0, %v2795
      %v2797 = vpop.f32.mrf.mxu0
      %v2798 = vadd.f32 0.0, %v2797
      %2799 = vmatmul.bf16.gmra.mxu0 %v2509
      %v2800 = vpop.f32.mrf.mxu0
      %v2801 = vadd.f32 0.0, %v2800
      %v2802 = vpop.f32.mrf.mxu0
      %v2803 = vadd.f32 0.0, %v2802
      %2804 = vmatmul.bf16.gmra.mxu0 %v2512
      %v2805 = vpop.f32.mrf.mxu0
      %v2806 = vadd.f32 0.0, %v2805
      %v2807 = vpop.f32.mrf.mxu0
      %v2808 = vadd.f32 0.0, %v2807
      %2809 = vmatmul.bf16.gmra.mxu0 %v2515
      %v2810 = vpop.f32.mrf.mxu0
      %v2811 = vadd.f32 0.0, %v2810
      %v2812 = vpop.f32.mrf.mxu0
      %v2813 = vadd.f32 0.0, %v2812
      %2814 = vmatmul.bf16.gmra.mxu0 %v2518
      %v2815 = vpop.f32.mrf.mxu0
      %v2816 = vadd.f32 0.0, %v2815
      %v2817 = vpop.f32.mrf.mxu0
      %v2818 = vadd.f32 0.0, %v2817
      %2819 = vmatmul.bf16.gmra.mxu0 %v2521
      %v2820 = vpop.f32.mrf.mxu0
      %v2821 = vadd.f32 0.0, %v2820
      %v2822 = vpop.f32.mrf.mxu0
      %v2823 = vadd.f32 0.0, %v2822
      %2824 = vmatmul.bf16.gmra.mxu0 %v2524
      %v2825 = vpop.f32.mrf.mxu0
      %v2826 = vadd.f32 0.0, %v2825
      %v2827 = vpop.f32.mrf.mxu0
      %v2828 = vadd.f32 0.0, %v2827
      %2829 = vmatmul.bf16.gmra.mxu0 %v2527
      %v2830 = vpop.f32.mrf.mxu0
      %v2831 = vadd.f32 0.0, %v2830
      %v2832 = vpop.f32.mrf.mxu0
      %v2833 = vadd.f32 0.0, %v2832
      %2834 = vmatmul.bf16.gmra.mxu0 %v2530
      %v2835 = vpop.f32.mrf.mxu0
      %v2836 = vadd.f32 0.0, %v2835
      %v2837 = vpop.f32.mrf.mxu0
      %v2838 = vadd.f32 0.0, %v2837
      %2839 = vmatmul.bf16.gmra.mxu0 %v2533
      %v2840 = vpop.f32.mrf.mxu0
      %v2841 = vadd.f32 0.0, %v2840
      %v2842 = vpop.f32.mrf.mxu0
      %v2843 = vadd.f32 0.0, %v2842
      %2844 = vmatmul.bf16.gmra.mxu0 %v2536
      %v2845 = vpop.f32.mrf.mxu0
      %v2846 = vadd.f32 0.0, %v2845
      %v2847 = vpop.f32.mrf.mxu0
      %v2848 = vadd.f32 0.0, %v2847
      %2849 = vmatmul.bf16.gmra.mxu0 %v2539
      %v2850 = vpop.f32.mrf.mxu0
      %v2851 = vadd.f32 0.0, %v2850
      %v2852 = vpop.f32.mrf.mxu0
      %v2853 = vadd.f32 0.0, %v2852
      %2854 = vmatmul.bf16.gmra.mxu0 %v2542
      %v2855 = vpop.f32.mrf.mxu0
      %v2856 = vadd.f32 0.0, %v2855
      %v2857 = vpop.f32.mrf.mxu0
      %v2858 = vadd.f32 0.0, %v2857
      %2859 = vmatmul.bf16.gmra.mxu0 %v2545
      %v2860 = vpop.f32.mrf.mxu0
      %v2861 = vadd.f32 0.0, %v2860
      %v2862 = vpop.f32.mrf.mxu0
      %v2863 = vadd.f32 0.0, %v2862
      %2864 = vmatmul.bf16.gmra.mxu0 %v2548
      %v2865 = vpop.f32.mrf.mxu0
      %v2866 = vadd.f32 0.0, %v2865
      %v2867 = vpop.f32.mrf.mxu0
      %v2868 = vadd.f32 0.0, %v2867
      %2869 = vmatmul.bf16.gmra.mxu0 %v2551
      %v2870 = vpop.f32.mrf.mxu0
      %v2871 = vadd.f32 0.0, %v2870
      %v2872 = vpop.f32.mrf.mxu0
      %v2873 = vadd.f32 0.0, %v2872
      %2874 = vmatmul.bf16.gmra.mxu0 %v2554
      %v2875 = vpop.f32.mrf.mxu0
      %v2876 = vadd.f32 0.0, %v2875
      %v2877 = vpop.f32.mrf.mxu0
      %v2878 = vadd.f32 0.0, %v2877
      %2879 = vmatmul.bf16.gmra.mxu0 %v2557
      %v2880 = vpop.f32.mrf.mxu0
      %v2881 = vadd.f32 0.0, %v2880
      %v2882 = vpop.f32.mrf.mxu0
      %v2883 = vadd.f32 0.0, %v2882
      %2884 = vmatmul.bf16.gmra.mxu0 %v2560
      %v2885 = vpop.f32.mrf.mxu0
      %v2886 = vadd.f32 0.0, %v2885
      %v2887 = vpop.f32.mrf.mxu0
      %v2888 = vadd.f32 0.0, %v2887
      %2889 = vmatmul.bf16.gmra.mxu0 %v2563
      %v2890 = vpop.f32.mrf.mxu0
      %v2891 = vadd.f32 0.0, %v2890
      %v2892 = vpop.f32.mrf.mxu0
      %v2893 = vadd.f32 0.0, %v2892
      %2894 = vmatmul.bf16.gmra.mxu0 %v2566
      %v2895 = vpop.f32.mrf.mxu0
      %v2896 = vadd.f32 0.0, %v2895
      %v2897 = vpop.f32.mrf.mxu0
      %v2898 = vadd.f32 0.0, %v2897
      %2899 = vmatmul.bf16.gmra.mxu0 %v2569
      %v2900 = vpop.f32.mrf.mxu0
      %v2901 = vadd.f32 0.0, %v2900
      %v2902 = vpop.f32.mrf.mxu0
      %v2903 = vadd.f32 0.0, %v2902
      %2904 = vmatmul.bf16.gmra.mxu0 %v2572
      %v2905 = vpop.f32.mrf.mxu0
      %v2906 = vadd.f32 0.0, %v2905
      %v2907 = vpop.f32.mrf.mxu0
      %v2908 = vadd.f32 0.0, %v2907
      %2909 = vmatmul.bf16.gmra.mxu0 %v2575
      %v2910 = vpop.f32.mrf.mxu0
      %v2911 = vadd.f32 0.0, %v2910
      %v2912 = vpop.f32.mrf.mxu0
      %v2913 = vadd.f32 0.0, %v2912
      %2914 = vmatmul.bf16.gmra.mxu0 %v2578
      %v2915 = vpop.f32.mrf.mxu0
      %v2916 = vadd.f32 0.0, %v2915
      %v2917 = vpop.f32.mrf.mxu0
      %v2918 = vadd.f32 0.0, %v2917
      %2919 = vmatmul.bf16.gmra.mxu0 %v2581
      %v2920 = vpop.f32.mrf.mxu0
      %v2921 = vadd.f32 0.0, %v2920
      %v2922 = vpop.f32.mrf.mxu0
      %v2923 = vadd.f32 0.0, %v2922
      %2924 = vmatmul.bf16.gmra.mxu0 %v2584
      %v2925 = vpop.f32.mrf.mxu0
      %v2926 = vadd.f32 0.0, %v2925
      %v2927 = vpop.f32.mrf.mxu0
      %v2928 = vadd.f32 0.0, %v2927
      %2929 = vmatmul.bf16.gmra.mxu0 %v2587
      %v2930 = vpop.f32.mrf.mxu0
      %v2931 = vadd.f32 0.0, %v2930
      %v2932 = vpop.f32.mrf.mxu0
      %v2933 = vadd.f32 0.0, %v2932
      %2934 = vmatmul.bf16.gmra.mxu0 %v2590
      %v2935 = vpop.f32.mrf.mxu0
      %v2936 = vadd.f32 0.0, %v2935
      %v2937 = vpop.f32.mrf.mxu0
      %v2938 = vadd.f32 0.0, %v2937
      %2939 = vmatmul.bf16.gmra.mxu0 %v2593
      %v2940 = vpop.f32.mrf.mxu0
      %v2941 = vadd.f32 0.0, %v2940
      %v2942 = vpop.f32.mrf.mxu0
      %v2943 = vadd.f32 0.0, %v2942
      %2944 = vmatmul.bf16.gmra.mxu0 %v2596
      %v2945 = vpop.f32.mrf.mxu0
      %v2946 = vadd.f32 0.0, %v2945
      %v2947 = vpop.f32.mrf.mxu0
      %v2948 = vadd.f32 0.0, %v2947
      %2949 = vdwg.mxu0
      %v2950 = vadd.f32 %v1911, %v2611
      %v2951 = vadd.f32 %v1913, %v2613
      %v2952 = vadd.f32 %v1916, %v2616
      %v2953 = vadd.f32 %v1918, %v2618
      %v2954 = vadd.f32 %v1921, %v2621
      %v2955 = vadd.f32 %v1923, %v2623
      %v2956 = vadd.f32 %v1926, %v2626
      %v2957 = vadd.f32 %v1928, %v2628
      %v2958 = vadd.f32 %v1931, %v2631
      %v2959 = vadd.f32 %v1933, %v2633
      %v2960 = vadd.f32 %v1936, %v2636
      %v2961 = vadd.f32 %v1938, %v2638
      %v2962 = vadd.f32 %v1941, %v2641
      %v2963 = vadd.f32 %v1943, %v2643
      %v2964 = vadd.f32 %v1946, %v2646
      %v2965 = vadd.f32 %v1948, %v2648
      %v2966 = vadd.f32 %v1951, %v2651
      %v2967 = vadd.f32 %v1953, %v2653
      %v2968 = vadd.f32 %v1956, %v2656
      %v2969 = vadd.f32 %v1958, %v2658
      %v2970 = vadd.f32 %v1961, %v2661
      %v2971 = vadd.f32 %v1963, %v2663
      %v2972 = vadd.f32 %v1966, %v2666
      %v2973 = vadd.f32 %v1968, %v2668
      %v2974 = vadd.f32 %v1971, %v2671
      %v2975 = vadd.f32 %v1973, %v2673
      %v2976 = vadd.f32 %v1976, %v2676
      %v2977 = vadd.f32 %v1978, %v2678
      %v2978 = vadd.f32 %v1981, %v2681
      %v2979 = vadd.f32 %v1983, %v2683
      %v2980 = vadd.f32 %v1986, %v2686
      %v2981 = vadd.f32 %v1988, %v2688
      %v2982 = vadd.f32 %v1991, %v2691
      %v2983 = vadd.f32 %v1993, %v2693
      %v2984 = vadd.f32 %v1996, %v2696
      %v2985 = vadd.f32 %v1998, %v2698
      %v2986 = vadd.f32 %v2001, %v2701
      %v2987 = vadd.f32 %v2003, %v2703
      %v2988 = vadd.f32 %v2006, %v2706
      %v2989 = vadd.f32 %v2008, %v2708
      %v2990 = vadd.f32 %v2011, %v2711
      %v2991 = vadd.f32 %v2013, %v2713
      %v2992 = vadd.f32 %v2016, %v2716
      %v2993 = vadd.f32 %v2018, %v2718
      %v2994 = vadd.f32 %v2021, %v2721
      %v2995 = vadd.f32 %v2023, %v2723
      %v2996 = vadd.f32 %v2026, %v2726
      %v2997 = vadd.f32 %v2028, %v2728
      %v2998 = vadd.f32 %v2031, %v2731
      %v2999 = vadd.f32 %v2033, %v2733
      %v3000 = vadd.f32 %v2036, %v2736
      %v3001 = vadd.f32 %v2038, %v2738
      %v3002 = vadd.f32 %v2041, %v2741
      %v3003 = vadd.f32 %v2043, %v2743
      %v3004 = vadd.f32 %v2046, %v2746
      %v3005 = vadd.f32 %v2048, %v2748
      %v3006 = vadd.f32 %v2051, %v2751
      %v3007 = vadd.f32 %v2053, %v2753
      %v3008 = vadd.f32 %v2056, %v2756
      %v3009 = vadd.f32 %v2058, %v2758
      %v3010 = vadd.f32 %v2061, %v2761
      %v3011 = vadd.f32 %v2063, %v2763
      %v3012 = vadd.f32 %v2066, %v2766
      %v3013 = vadd.f32 %v2068, %v2768
      %v3014 = vadd.f32 %v2071, %v2771
      %v3015 = vadd.f32 %v2073, %v2773
      %v3016 = vadd.f32 %v2076, %v2776
      %v3017 = vadd.f32 %v2078, %v2778
      %v3018 = vadd.f32 %v2081, %v2781
      %v3019 = vadd.f32 %v2083, %v2783
      %v3020 = vadd.f32 %v2086, %v2786
      %v3021 = vadd.f32 %v2088, %v2788
      %v3022 = vadd.f32 %v2091, %v2791
      %v3023 = vadd.f32 %v2093, %v2793
      %v3024 = vadd.f32 %v2096, %v2796
      %v3025 = vadd.f32 %v2098, %v2798
      %v3026 = vadd.f32 %v2101, %v2801
      %v3027 = vadd.f32 %v2103, %v2803
      %v3028 = vadd.f32 %v2106, %v2806
      %v3029 = vadd.f32 %v2108, %v2808
      %v3030 = vadd.f32 %v2111, %v2811
      %v3031 = vadd.f32 %v2113, %v2813
      %v3032 = vadd.f32 %v2116, %v2816
      %v3033 = vadd.f32 %v2118, %v2818
      %v3034 = vadd.f32 %v2121, %v2821
      %v3035 = vadd.f32 %v2123, %v2823
      %v3036 = vadd.f32 %v2126, %v2826
      %v3037 = vadd.f32 %v2128, %v2828
      %v3038 = vadd.f32 %v2131, %v2831
      %v3039 = vadd.f32 %v2133, %v2833
      %v3040 = vadd.f32 %v2136, %v2836
      %v3041 = vadd.f32 %v2138, %v2838
      %v3042 = vadd.f32 %v2141, %v2841
      %v3043 = vadd.f32 %v2143, %v2843
      %v3044 = vadd.f32 %v2146, %v2846
      %v3045 = vadd.f32 %v2148, %v2848
      %v3046 = vadd.f32 %v2151, %v2851
      %v3047 = vadd.f32 %v2153, %v2853
      %v3048 = vadd.f32 %v2156, %v2856
      %v3049 = vadd.f32 %v2158, %v2858
      %v3050 = vadd.f32 %v2161, %v2861
      %v3051 = vadd.f32 %v2163, %v2863
      %v3052 = vadd.f32 %v2166, %v2866
      %v3053 = vadd.f32 %v2168, %v2868
      %v3054 = vadd.f32 %v2171, %v2871
      %v3055 = vadd.f32 %v2173, %v2873
      %v3056 = vadd.f32 %v2176, %v2876
      %v3057 = vadd.f32 %v2178, %v2878
      %v3058 = vadd.f32 %v2181, %v2881
      %v3059 = vadd.f32 %v2183, %v2883
      %v3060 = vadd.f32 %v2186, %v2886
      %v3061 = vadd.f32 %v2188, %v2888
      %v3062 = vadd.f32 %v2191, %v2891
      %v3063 = vadd.f32 %v2193, %v2893
      %v3064 = vadd.f32 %v2196, %v2896
      %v3065 = vadd.f32 %v2198, %v2898
      %v3066 = vadd.f32 %v2201, %v2901
      %v3067 = vadd.f32 %v2203, %v2903
      %v3068 = vadd.f32 %v2206, %v2906
      %v3069 = vadd.f32 %v2208, %v2908
      %v3070 = vadd.f32 %v2211, %v2911
      %v3071 = vadd.f32 %v2213, %v2913
      %v3072 = vadd.f32 %v2216, %v2916
      %v3073 = vadd.f32 %v2218, %v2918
      %v3074 = vadd.f32 %v2221, %v2921
      %v3075 = vadd.f32 %v2223, %v2923
      %v3076 = vadd.f32 %v2226, %v2926
      %v3077 = vadd.f32 %v2228, %v2928
      %v3078 = vadd.f32 %v2231, %v2931
      %v3079 = vadd.f32 %v2233, %v2933
      %v3080 = vadd.f32 %v2236, %v2936
      %v3081 = vadd.f32 %v2238, %v2938
      %v3082 = vadd.f32 %v2241, %v2941
      %v3083 = vadd.f32 %v2243, %v2943
      %v3084 = vadd.f32 %v2246, %v2946
      %v3085 = vadd.f32 %v2248, %v2948
      %v3086 = vld [vmem:[%s165 + $0x10] sm:$0xe]
      %v3087 = vld [vmem:[%s165 + $0x14] sm:$0xf]
      %v3088 = vld [vmem:[%s165 + $0x18] sm:$0xf]
      %v3089 = vld [vmem:[%s165 + $0x1c] sm:$0xf]
      %v3090 = vld [vmem:[%s165 + $0x20] sm:$0xf]
      %v3091 = vld [vmem:[%s165 + $0x24] sm:$0xf]
      %v3092 = vld [vmem:[%s165 + $0x28] sm:$0xf]
      %v3093 = vld [vmem:[%s165 + $0x2c] sm:$0xf]
      %v3094 = vld [vmem:[%s165 + $0x30] sm:$0xf]
      %v3095 = vld [vmem:[%s165 + $0x34] sm:$0xf]
      %v3096 = vld [vmem:[%s165 + $0x38] sm:$0xf]
      %v3097 = vld [vmem:[%s165 + $0x3c] sm:$0xf]
      %v3098 = vld [vmem:[%s165 + $0x40] sm:$0xf]
      %v3099 = vld [vmem:[%s165 + $0x44] sm:$0xf]
      %v3100 = vld [vmem:[%s165 + $0x48] sm:$0xf]
      %v3101 = vld [vmem:[%s165 + $0x4c] sm:$0xf]
      %v3102 = vld [vmem:[%s165 + $0x50] sm:$0xf]
      %v3103 = vld [vmem:[%s165 + $0x54] sm:$0xf]
      %v3104 = vld [vmem:[%s165 + $0x58] sm:$0xf]
      %v3105 = vld [vmem:[%s165 + $0x5c] sm:$0xf]
      %v3106 = vld [vmem:[%s165 + $0x60] sm:$0xf]
      %v3107 = vld [vmem:[%s165 + $0x64] sm:$0xf]
      %v3108 = vld [vmem:[%s165 + $0x68] sm:$0xf]
      %v3109 = vld [vmem:[%s165 + $0x6c] sm:$0xf]
      %v3110 = vld [vmem:[%s165 + $0x70] sm:$0xf]
      %v3111 = vld [vmem:[%s165 + $0x74] sm:$0xf]
      %v3112 = vld [vmem:[%s165 + $0x78] sm:$0xf]
      %v3113 = vld [vmem:[%s165 + $0x7c] sm:$0xf]
      %v3114 = vld [vmem:[%s165 + $0x80] sm:$0xf]
      %v3115 = vld [vmem:[%s165 + $0x84] sm:$0xf]
      %v3116 = vld [vmem:[%s165 + $0x88] sm:$0xf]
      %v3117 = vld [vmem:[%s165 + $0x8c] sm:$0xf]
      %v3118 = vld [vmem:[%s165 + $0x90] sm:$0xf]
      %v3119 = vld [vmem:[%s165 + $0x94] sm:$0xf]
      %v3120 = vld [vmem:[%s165 + $0x98] sm:$0xf]
      %v3121 = vld [vmem:[%s165 + $0x9c] sm:$0xf]
      %v3122 = vld [vmem:[%s165 + $0xa0] sm:$0xf]
      %v3123 = vld [vmem:[%s165 + $0xa4] sm:$0xf]
      %v3124 = vld [vmem:[%s165 + $0xa8] sm:$0xf]
      %v3125 = vld [vmem:[%s165 + $0xac] sm:$0xf]
      %v3126 = vld [vmem:[%s165 + $0xb0] sm:$0xf]
      %v3127 = vld [vmem:[%s165 + $0xb4] sm:$0xf]
      %v3128 = vld [vmem:[%s165 + $0xb8] sm:$0xf]
      %v3129 = vld [vmem:[%s165 + $0xbc] sm:$0xf]
      %v3130 = vld [vmem:[%s165 + $0xc0] sm:$0xf]
      %v3131 = vld [vmem:[%s165 + $0xc4] sm:$0xf]
      %v3132 = vld [vmem:[%s165 + $0xc8] sm:$0xf]
      %v3133 = vld [vmem:[%s165 + $0xcc] sm:$0xf]
      %v3134 = vld [vmem:[%s165 + $0xd0] sm:$0xf]
      %v3135 = vld [vmem:[%s165 + $0xd4] sm:$0xf]
      %v3136 = vld [vmem:[%s165 + $0xd8] sm:$0xf]
      %v3137 = vld [vmem:[%s165 + $0xdc] sm:$0xf]
      %v3138 = vld [vmem:[%s165 + $0xe0] sm:$0xf]
      %v3139 = vld [vmem:[%s165 + $0xe4] sm:$0xf]
      %v3140 = vld [vmem:[%s165 + $0xe8] sm:$0xf]
      %v3141 = vld [vmem:[%s165 + $0xec] sm:$0xf]
      %v3142 = vld [vmem:[%s165 + $0xf0] sm:$0xf]
      %v3143 = vld [vmem:[%s165 + $0xf4] sm:$0xf]
      %v3144 = vld [vmem:[%s165 + $0xf8] sm:$0xf]
      %v3145 = vld [vmem:[%s165 + $0xfc] sm:$0xf]
      %v3146 = vld [vmem:[%s165 + $0x100] sm:$0xf]
      %v3147 = vld [vmem:[%s165 + $0x104] sm:$0xf]
      %v3148 = vld [vmem:[%s165 + $0x108] sm:$0xf]
      %v3149 = vld [vmem:[%s165 + $0x10c] sm:$0xf]
      %v3150 = vld [vmem:[%s165 + $0x110] sm:$0xf]
      %v3151 = vld [vmem:[%s165 + $0x114] sm:$0xf]
      %v3152 = vld [vmem:[%s165 + $0x118] sm:$0xf]
      %v3153 = vld [vmem:[%s165 + $0x11c] sm:$0xf]
      %v3154 = vld [vmem:[%s165 + $0x120] sm:$0xf]
      %v3155 = vld [vmem:[%s165 + $0x124] sm:$0xf]
      %v3156 = vld [vmem:[%s165 + $0x128] sm:$0xf]
      %v3157 = vld [vmem:[%s165 + $0x12c] sm:$0xf]
      %v3158 = vld [vmem:[%s165 + $0x130] sm:$0xf]
      %v3159 = vld [vmem:[%s165 + $0x134] sm:$0xf]
      %v3160 = vld [vmem:[%s165 + $0x138] sm:$0xf]
      %v3161 = vld [vmem:[%s165 + $0x13c] sm:$0xf]
      %v3162 = vld [vmem:[%s165 + $0x140] sm:$0xf]
      %v3163 = vld [vmem:[%s165 + $0x144] sm:$0xf]
      %v3164 = vld [vmem:[%s165 + $0x148] sm:$0xf]
      %v3165 = vld [vmem:[%s165 + $0x14c] sm:$0xf]
      %v3166 = vld [vmem:[%s165 + $0x150] sm:$0xf]
      %v3167 = vld [vmem:[%s165 + $0x154] sm:$0xf]
      %v3168 = vld [vmem:[%s165 + $0x158] sm:$0xf]
      %v3169 = vld [vmem:[%s165 + $0x15c] sm:$0xf]
      %v3170 = vld [vmem:[%s165 + $0x160] sm:$0xf]
      %v3171 = vld [vmem:[%s165 + $0x164] sm:$0xf]
      %v3172 = vld [vmem:[%s165 + $0x168] sm:$0xf]
      %v3173 = vld [vmem:[%s165 + $0x16c] sm:$0xf]
      %v3174 = vld [vmem:[%s165 + $0x170] sm:$0xf]
      %v3175 = vld [vmem:[%s165 + $0x174] sm:$0xf]
      %v3176 = vld [vmem:[%s165 + $0x178] sm:$0xf]
      %v3177 = vld [vmem:[%s165 + $0x17c] sm:$0xf]
      %v3178 = vld [vmem:[%s165 + $0x180] sm:$0xf]
      %v3179 = vld [vmem:[%s165 + $0x184] sm:$0xf]
      %v3180 = vld [vmem:[%s165 + $0x188] sm:$0xf]
      %v3181 = vld [vmem:[%s165 + $0x18c] sm:$0xf]
      %v3182 = vld [vmem:[%s165 + $0x190] sm:$0xf]
      %v3183 = vld [vmem:[%s165 + $0x194] sm:$0xf]
      %v3184 = vld [vmem:[%s165 + $0x198] sm:$0xf]
      %v3185 = vld [vmem:[%s165 + $0x19c] sm:$0xf]
      %v3186 = vld [vmem:[%s165 + $0x1a0] sm:$0xf]
      %v3187 = vld [vmem:[%s165 + $0x1a4] sm:$0xf]
      %v3188 = vld [vmem:[%s165 + $0x1a8] sm:$0xf]
      %v3189 = vld [vmem:[%s165 + $0x1ac] sm:$0xf]
      %v3190 = vld [vmem:[%s165 + $0x1b0] sm:$0xf]
      %v3191 = vld [vmem:[%s165 + $0x1b4] sm:$0xf]
      %v3192 = vld [vmem:[%s165 + $0x1b8] sm:$0xf]
      %v3193 = vld [vmem:[%s165 + $0x1bc] sm:$0xf]
      %v3194 = vld [vmem:[%s165 + $0x1c0] sm:$0xf]
      %v3195 = vld [vmem:[%s165 + $0x1c4] sm:$0xf]
      %v3196 = vld [vmem:[%s165 + $0x1c8] sm:$0xf]
      %v3197 = vld [vmem:[%s165 + $0x1cc] sm:$0xf]
      %v3198 = vld [vmem:[%s165 + $0x1d0] sm:$0xf]
      %v3199 = vld [vmem:[%s165 + $0x1d4] sm:$0xf]
      %v3200 = vld [vmem:[%s165 + $0x1d8] sm:$0xf]
      %v3201 = vld [vmem:[%s165 + $0x1dc] sm:$0xf]
      %v3202 = vld [vmem:[%s165 + $0x1e0] sm:$0xf]
      %v3203 = vld [vmem:[%s165 + $0x1e4] sm:$0xf]
      %v3204 = vld [vmem:[%s165 + $0x1e8] sm:$0xf]
      %v3205 = vld [vmem:[%s165 + $0x1ec] sm:$0xf]
      %v3206 = vld [vmem:[%s165 + $0x1f0] sm:$0xf]
      %v3207 = vld [vmem:[%s165 + $0x1f4] sm:$0xf]
      %v3208 = vld [vmem:[%s165 + $0x1f8] sm:$0xf]
      %v3209 = vld [vmem:[%s165 + $0x1fc] sm:$0xf]
      %v3210 = vld [vmem:[%s165 + $0x200] sm:$0xf]
      %v3211 = vld [vmem:[%s165 + $0x204] sm:$0xf]
      %v3212 = vld [vmem:[%s165 + $0x208] sm:$0xf]
      %v3213 = vld [vmem:[%s165 + $0x20c] sm:$0xf]
      %v3214 = vld [vmem:[%s165 + $0x210] sm:$0xf]
      %v3215 = vld [vmem:[%s165 + $0x214] sm:$0xf]
      %v3216 = vld [vmem:[%s165 + $0x218] sm:$0xf]
      %v3217 = vld [vmem:[%s165 + $0x21c] sm:$0xf]
      %v3218 = vld [vmem:[%s165 + $0x220] sm:$0xf]
      %v3219 = vld [vmem:[%s165 + $0x224] sm:$0xf]
      %v3220 = vld [vmem:[%s165 + $0x228] sm:$0xf]
      %v3221 = vld [vmem:[%s165 + $0x22c] sm:$0xf]
      %v3222 = vld [vmem:[%s165 + $0x230] sm:$0x1]
      %s3223 = scalar_lea.vmem %s1, 12
      %v3224 = vld [vmem:[%s3223] sm:$0xf]
      %v3362 = vunpack.c.l.b16 %v3086
      %v3363 = vunpack.c.l.b16 %v3087
      %v3364 = vunpack.c.l.b16 %v3088
      %v3365 = vunpack.c.l.b16 %v3089
      %v3366 = vunpack.c.l.b16 %v3090
      %v3367 = vunpack.c.l.b16 %v3091
      %v3368 = vunpack.c.l.b16 %v3092
      %v3369 = vunpack.c.l.b16 %v3093
      %v3370 = vunpack.c.l.b16 %v3094
      %v3371 = vunpack.c.l.b16 %v3095
      %v3372 = vunpack.c.l.b16 %v3096
      %v3373 = vunpack.c.l.b16 %v3097
      %v3374 = vunpack.c.l.b16 %v3098
      %v3375 = vunpack.c.l.b16 %v3099
      %v3376 = vunpack.c.l.b16 %v3100
      %v3377 = vunpack.c.l.b16 %v3101
      %v3378 = vunpack.c.l.b16 %v3102
      %v3379 = vunpack.c.l.b16 %v3103
      %v3380 = vunpack.c.l.b16 %v3104
      %v3381 = vunpack.c.l.b16 %v3105
      %v3382 = vunpack.c.l.b16 %v3106
      %v3383 = vunpack.c.l.b16 %v3107
      %v3384 = vunpack.c.l.b16 %v3108
      %v3385 = vunpack.c.l.b16 %v3109
      %v3386 = vunpack.c.l.b16 %v3110
      %v3387 = vunpack.c.l.b16 %v3111
      %v3388 = vunpack.c.l.b16 %v3112
      %v3389 = vunpack.c.l.b16 %v3113
      %v3390 = vunpack.c.l.b16 %v3114
      %v3391 = vunpack.c.l.b16 %v3115
      %v3392 = vunpack.c.l.b16 %v3116
      %v3393 = vunpack.c.l.b16 %v3117
      %v3394 = vunpack.c.l.b16 %v3118
      %v3395 = vunpack.c.l.b16 %v3119
      %v3396 = vunpack.c.l.b16 %v3120
      %v3397 = vunpack.c.l.b16 %v3121
      %v3398 = vunpack.c.l.b16 %v3122
      %v3399 = vunpack.c.l.b16 %v3123
      %v3400 = vunpack.c.l.b16 %v3124
      %v3401 = vunpack.c.l.b16 %v3125
      %v3402 = vunpack.c.l.b16 %v3126
      %v3403 = vunpack.c.l.b16 %v3127
      %v3404 = vunpack.c.l.b16 %v3128
      %v3405 = vunpack.c.l.b16 %v3129
      %v3406 = vunpack.c.l.b16 %v3130
      %v3407 = vunpack.c.l.b16 %v3131
      %v3408 = vunpack.c.l.b16 %v3132
      %v3409 = vunpack.c.l.b16 %v3133
      %v3410 = vunpack.c.l.b16 %v3134
      %v3411 = vunpack.c.l.b16 %v3135
      %v3412 = vunpack.c.l.b16 %v3136
      %v3413 = vunpack.c.l.b16 %v3137
      %v3414 = vunpack.c.l.b16 %v3138
      %v3415 = vunpack.c.l.b16 %v3139
      %v3416 = vunpack.c.l.b16 %v3140
      %v3417 = vunpack.c.l.b16 %v3141
      %v3418 = vunpack.c.l.b16 %v3142
      %v3419 = vunpack.c.l.b16 %v3143
      %v3420 = vunpack.c.l.b16 %v3144
      %v3421 = vunpack.c.l.b16 %v3145
      %v3422 = vunpack.c.l.b16 %v3146
      %v3423 = vunpack.c.l.b16 %v3147
      %v3424 = vunpack.c.l.b16 %v3148
      %v3425 = vunpack.c.l.b16 %v3149
      %v3426 = vunpack.c.l.b16 %v3150
      %v3427 = vunpack.c.l.b16 %v3151
      %v3428 = vunpack.c.l.b16 %v3152
      %v3429 = vunpack.c.l.b16 %v3153
      %v3430 = vunpack.c.l.b16 %v3154
      %v3431 = vunpack.c.l.b16 %v3155
      %v3432 = vunpack.c.l.b16 %v3156
      %v3433 = vunpack.c.l.b16 %v3157
      %v3434 = vunpack.c.l.b16 %v3158
      %v3435 = vunpack.c.l.b16 %v3159
      %v3436 = vunpack.c.l.b16 %v3160
      %v3437 = vunpack.c.l.b16 %v3161
      %v3438 = vunpack.c.l.b16 %v3162
      %v3439 = vunpack.c.l.b16 %v3163
      %v3440 = vunpack.c.l.b16 %v3164
      %v3441 = vunpack.c.l.b16 %v3165
      %v3442 = vunpack.c.l.b16 %v3166
      %v3443 = vunpack.c.l.b16 %v3167
      %v3444 = vunpack.c.l.b16 %v3168
      %v3445 = vunpack.c.l.b16 %v3169
      %v3446 = vunpack.c.l.b16 %v3170
      %v3447 = vunpack.c.l.b16 %v3171
      %v3448 = vunpack.c.l.b16 %v3172
      %v3449 = vunpack.c.l.b16 %v3173
      %v3450 = vunpack.c.l.b16 %v3174
      %v3451 = vunpack.c.l.b16 %v3175
      %v3452 = vunpack.c.l.b16 %v3176
      %v3453 = vunpack.c.l.b16 %v3177
      %v3454 = vunpack.c.l.b16 %v3178
      %v3455 = vunpack.c.l.b16 %v3179
      %v3456 = vunpack.c.l.b16 %v3180
      %v3457 = vunpack.c.l.b16 %v3181
      %v3458 = vunpack.c.l.b16 %v3182
      %v3459 = vunpack.c.l.b16 %v3183
      %v3460 = vunpack.c.l.b16 %v3184
      %v3461 = vunpack.c.l.b16 %v3185
      %v3462 = vunpack.c.l.b16 %v3186
      %v3463 = vunpack.c.l.b16 %v3187
      %v3464 = vunpack.c.l.b16 %v3188
      %v3465 = vunpack.c.l.b16 %v3189
      %v3466 = vunpack.c.l.b16 %v3190
      %v3467 = vunpack.c.l.b16 %v3191
      %v3468 = vunpack.c.l.b16 %v3192
      %v3469 = vunpack.c.l.b16 %v3193
      %v3470 = vunpack.c.l.b16 %v3194
      %v3471 = vunpack.c.l.b16 %v3195
      %v3472 = vunpack.c.l.b16 %v3196
      %v3473 = vunpack.c.l.b16 %v3197
      %v3474 = vunpack.c.l.b16 %v3198
      %v3475 = vunpack.c.l.b16 %v3199
      %v3476 = vunpack.c.l.b16 %v3200
      %v3477 = vunpack.c.l.b16 %v3201
      %v3478 = vunpack.c.l.b16 %v3202
      %v3479 = vunpack.c.l.b16 %v3203
      %v3480 = vunpack.c.l.b16 %v3204
      %v3481 = vunpack.c.l.b16 %v3205
      %v3482 = vunpack.c.l.b16 %v3206
      %v3483 = vunpack.c.l.b16 %v3207
      %v3484 = vunpack.c.l.b16 %v3208
      %v3485 = vunpack.c.l.b16 %v3209
      %v3486 = vunpack.c.l.b16 %v3210
      %v3487 = vunpack.c.l.b16 %v3211
      %v3488 = vunpack.c.l.b16 %v3212
      %v3489 = vunpack.c.l.b16 %v3213
      %v3490 = vunpack.c.l.b16 %v3214
      %v3491 = vunpack.c.l.b16 %v3215
      %v3492 = vunpack.c.l.b16 %v3216
      %v3493 = vunpack.c.l.b16 %v3217
      %v3494 = vunpack.c.l.b16 %v3218
      %v3495 = vunpack.c.l.b16 %v3219
      %v3496 = vunpack.c.l.b16 %v3220
      %v3497 = vunpack.c.l.b16 %v3221
      %v3498 = vunpack.c.l.b16 %v3222
      %v3499 = vpack.c.b16 %v3363, %v3362
      %v3500 = vpack.c.b16 %v3365, %v3364
      %v3501 = vpack.c.b16 %v3367, %v3366
      %v3502 = vpack.c.b16 %v3369, %v3368
      %v3503 = vpack.c.b16 %v3371, %v3370
      %v3504 = vpack.c.b16 %v3373, %v3372
      %v3505 = vpack.c.b16 %v3375, %v3374
      %v3506 = vpack.c.b16 %v3377, %v3376
      %v3507 = vpack.c.b16 %v3379, %v3378
      %v3508 = vpack.c.b16 %v3381, %v3380
      %v3509 = vpack.c.b16 %v3383, %v3382
      %v3510 = vpack.c.b16 %v3385, %v3384
      %v3511 = vpack.c.b16 %v3387, %v3386
      %v3512 = vpack.c.b16 %v3389, %v3388
      %v3513 = vpack.c.b16 %v3391, %v3390
      %v3514 = vpack.c.b16 %v3393, %v3392
      %v3515 = vpack.c.b16 %v3395, %v3394
      %v3516 = vpack.c.b16 %v3397, %v3396
      %v3517 = vpack.c.b16 %v3399, %v3398
      %v3518 = vpack.c.b16 %v3401, %v3400
      %v3519 = vpack.c.b16 %v3403, %v3402
      %v3520 = vpack.c.b16 %v3405, %v3404
      %v3521 = vpack.c.b16 %v3407, %v3406
      %v3522 = vpack.c.b16 %v3409, %v3408
      %v3523 = vpack.c.b16 %v3411, %v3410
      %v3524 = vpack.c.b16 %v3413, %v3412
      %v3525 = vpack.c.b16 %v3415, %v3414
      %v3526 = vpack.c.b16 %v3417, %v3416
      %v3527 = vpack.c.b16 %v3419, %v3418
      %v3528 = vpack.c.b16 %v3421, %v3420
      %v3529 = vpack.c.b16 %v3423, %v3422
      %v3530 = vpack.c.b16 %v3425, %v3424
      %v3531 = vpack.c.b16 %v3427, %v3426
      %v3532 = vpack.c.b16 %v3429, %v3428
      %v3533 = vpack.c.b16 %v3431, %v3430
      %v3534 = vpack.c.b16 %v3433, %v3432
      %v3535 = vpack.c.b16 %v3435, %v3434
      %v3536 = vpack.c.b16 %v3437, %v3436
      %v3537 = vpack.c.b16 %v3439, %v3438
      %v3538 = vpack.c.b16 %v3441, %v3440
      %v3539 = vpack.c.b16 %v3443, %v3442
      %v3540 = vpack.c.b16 %v3445, %v3444
      %v3541 = vpack.c.b16 %v3447, %v3446
      %v3542 = vpack.c.b16 %v3449, %v3448
      %v3543 = vpack.c.b16 %v3451, %v3450
      %v3544 = vpack.c.b16 %v3453, %v3452
      %v3545 = vpack.c.b16 %v3455, %v3454
      %v3546 = vpack.c.b16 %v3457, %v3456
      %v3547 = vpack.c.b16 %v3459, %v3458
      %v3548 = vpack.c.b16 %v3461, %v3460
      %v3549 = vpack.c.b16 %v3463, %v3462
      %v3550 = vpack.c.b16 %v3465, %v3464
      %v3551 = vpack.c.b16 %v3467, %v3466
      %v3552 = vpack.c.b16 %v3469, %v3468
      %v3553 = vpack.c.b16 %v3471, %v3470
      %v3554 = vpack.c.b16 %v3473, %v3472
      %v3555 = vpack.c.b16 %v3475, %v3474
      %v3556 = vpack.c.b16 %v3477, %v3476
      %v3557 = vpack.c.b16 %v3479, %v3478
      %v3558 = vpack.c.b16 %v3481, %v3480
      %v3559 = vpack.c.b16 %v3483, %v3482
      %v3560 = vpack.c.b16 %v3485, %v3484
      %v3561 = vpack.c.b16 %v3487, %v3486
      %v3562 = vpack.c.b16 %v3489, %v3488
      %v3563 = vpack.c.b16 %v3491, %v3490
      %v3564 = vpack.c.b16 %v3493, %v3492
      %v3565 = vpack.c.b16 %v3495, %v3494
      %v3566 = vpack.c.b16 %v3497, %v3496
      %v3567 = vpack.c.b16 %v3498, %v3498
      %v3568 = vrot.slane %v3499, 1
      %v3569 = vrot.slane %v3500, 1
      %v3570 = vsel %vm2256, %v3568, %v3569
      %v3571 = vrot.slane %v3501, 1
      %v3572 = vsel %vm2256, %v3569, %v3571
      %v3573 = vrot.slane %v3502, 1
      %v3574 = vsel %vm2256, %v3571, %v3573
      %v3575 = vrot.slane %v3503, 1
      %v3576 = vsel %vm2256, %v3573, %v3575
      %v3577 = vrot.slane %v3504, 1
      %v3578 = vsel %vm2256, %v3575, %v3577
      %v3579 = vrot.slane %v3505, 1
      %v3580 = vsel %vm2256, %v3577, %v3579
      %v3581 = vrot.slane %v3506, 1
      %v3582 = vsel %vm2256, %v3579, %v3581
      %v3583 = vrot.slane %v3507, 1
      %v3584 = vsel %vm2256, %v3581, %v3583
      %v3585 = vrot.slane %v3508, 1
      %v3586 = vsel %vm2256, %v3583, %v3585
      %v3587 = vrot.slane %v3509, 1
      %v3588 = vsel %vm2256, %v3585, %v3587
      %v3589 = vrot.slane %v3510, 1
      %v3590 = vsel %vm2256, %v3587, %v3589
      %v3591 = vrot.slane %v3511, 1
      %v3592 = vsel %vm2256, %v3589, %v3591
      %v3593 = vrot.slane %v3512, 1
      %v3594 = vsel %vm2256, %v3591, %v3593
      %v3595 = vrot.slane %v3513, 1
      %v3596 = vsel %vm2256, %v3593, %v3595
      %v3597 = vrot.slane %v3514, 1
      %v3598 = vsel %vm2256, %v3595, %v3597
      %v3599 = vrot.slane %v3515, 1
      %v3600 = vsel %vm2256, %v3597, %v3599
      %v3601 = vrot.slane %v3516, 1
      %v3602 = vsel %vm2256, %v3599, %v3601
      %v3603 = vrot.slane %v3517, 1
      %v3604 = vsel %vm2256, %v3601, %v3603
      %v3605 = vrot.slane %v3518, 1
      %v3606 = vsel %vm2256, %v3603, %v3605
      %v3607 = vrot.slane %v3519, 1
      %v3608 = vsel %vm2256, %v3605, %v3607
      %v3609 = vrot.slane %v3520, 1
      %v3610 = vsel %vm2256, %v3607, %v3609
      %v3611 = vrot.slane %v3521, 1
      %v3612 = vsel %vm2256, %v3609, %v3611
      %v3613 = vrot.slane %v3522, 1
      %v3614 = vsel %vm2256, %v3611, %v3613
      %v3615 = vrot.slane %v3523, 1
      %v3616 = vsel %vm2256, %v3613, %v3615
      %v3617 = vrot.slane %v3524, 1
      %v3618 = vsel %vm2256, %v3615, %v3617
      %v3619 = vrot.slane %v3525, 1
      %v3620 = vsel %vm2256, %v3617, %v3619
      %v3621 = vrot.slane %v3526, 1
      %v3622 = vsel %vm2256, %v3619, %v3621
      %v3623 = vrot.slane %v3527, 1
      %v3624 = vsel %vm2256, %v3621, %v3623
      %v3625 = vrot.slane %v3528, 1
      %v3626 = vsel %vm2256, %v3623, %v3625
      %v3627 = vrot.slane %v3529, 1
      %v3628 = vsel %vm2256, %v3625, %v3627
      %v3629 = vrot.slane %v3530, 1
      %v3630 = vsel %vm2256, %v3627, %v3629
      %v3631 = vrot.slane %v3531, 1
      %v3632 = vsel %vm2256, %v3629, %v3631
      %v3633 = vrot.slane %v3532, 1
      %v3634 = vsel %vm2256, %v3631, %v3633
      %v3635 = vrot.slane %v3533, 1
      %v3636 = vsel %vm2256, %v3633, %v3635
      %v3637 = vrot.slane %v3534, 1
      %v3638 = vsel %vm2256, %v3635, %v3637
      %v3639 = vrot.slane %v3535, 1
      %v3640 = vsel %vm2256, %v3637, %v3639
      %v3641 = vrot.slane %v3536, 1
      %v3642 = vsel %vm2256, %v3639, %v3641
      %v3643 = vrot.slane %v3537, 1
      %v3644 = vsel %vm2256, %v3641, %v3643
      %v3645 = vrot.slane %v3538, 1
      %v3646 = vsel %vm2256, %v3643, %v3645
      %v3647 = vrot.slane %v3539, 1
      %v3648 = vsel %vm2256, %v3645, %v3647
      %v3649 = vrot.slane %v3540, 1
      %v3650 = vsel %vm2256, %v3647, %v3649
      %v3651 = vrot.slane %v3541, 1
      %v3652 = vsel %vm2256, %v3649, %v3651
      %v3653 = vrot.slane %v3542, 1
      %v3654 = vsel %vm2256, %v3651, %v3653
      %v3655 = vrot.slane %v3543, 1
      %v3656 = vsel %vm2256, %v3653, %v3655
      %v3657 = vrot.slane %v3544, 1
      %v3658 = vsel %vm2256, %v3655, %v3657
      %v3659 = vrot.slane %v3545, 1
      %v3660 = vsel %vm2256, %v3657, %v3659
      %v3661 = vrot.slane %v3546, 1
      %v3662 = vsel %vm2256, %v3659, %v3661
      %v3663 = vrot.slane %v3547, 1
      %v3664 = vsel %vm2256, %v3661, %v3663
      %v3665 = vrot.slane %v3548, 1
      %v3666 = vsel %vm2256, %v3663, %v3665
      %v3667 = vrot.slane %v3549, 1
      %v3668 = vsel %vm2256, %v3665, %v3667
      %v3669 = vrot.slane %v3550, 1
      %v3670 = vsel %vm2256, %v3667, %v3669
      %v3671 = vrot.slane %v3551, 1
      %v3672 = vsel %vm2256, %v3669, %v3671
      %v3673 = vrot.slane %v3552, 1
      %v3674 = vsel %vm2256, %v3671, %v3673
      %v3675 = vrot.slane %v3553, 1
      %v3676 = vsel %vm2256, %v3673, %v3675
      %v3677 = vrot.slane %v3554, 1
      %v3678 = vsel %vm2256, %v3675, %v3677
      %v3679 = vrot.slane %v3555, 1
      %v3680 = vsel %vm2256, %v3677, %v3679
      %v3681 = vrot.slane %v3556, 1
      %v3682 = vsel %vm2256, %v3679, %v3681
      %v3683 = vrot.slane %v3557, 1
      %v3684 = vsel %vm2256, %v3681, %v3683
      %v3685 = vrot.slane %v3558, 1
      %v3686 = vsel %vm2256, %v3683, %v3685
      %v3687 = vrot.slane %v3559, 1
      %v3688 = vsel %vm2256, %v3685, %v3687
      %v3689 = vrot.slane %v3560, 1
      %v3690 = vsel %vm2256, %v3687, %v3689
      %v3691 = vrot.slane %v3561, 1
      %v3692 = vsel %vm2256, %v3689, %v3691
      %v3693 = vrot.slane %v3562, 1
      %v3694 = vsel %vm2256, %v3691, %v3693
      %v3695 = vrot.slane %v3563, 1
      %v3696 = vsel %vm2256, %v3693, %v3695
      %v3697 = vrot.slane %v3564, 1
      %v3698 = vsel %vm2256, %v3695, %v3697
      %v3699 = vrot.slane %v3565, 1
      %v3700 = vsel %vm2256, %v3697, %v3699
      %v3701 = vrot.slane %v3566, 1
      %v3702 = vsel %vm2256, %v3699, %v3701
      %v3703 = vrot.slane %v3567, 1
      %v3704 = vsel %vm2256, %v3701, %v3703
      %v3706 = vsel %vm1204, %v3570, 0
      %v3709 = vsel %vm1204, %v3572, 0
      %v3712 = vsel %vm1204, %v3574, 0
      %v3715 = vsel %vm1204, %v3576, 0
      %v3718 = vsel %vm1204, %v3578, 0
      %v3721 = vsel %vm1204, %v3580, 0
      %v3724 = vsel %vm1204, %v3582, 0
      %v3727 = vsel %vm1204, %v3584, 0
      %v3730 = vsel %vm1204, %v3586, 0
      %v3733 = vsel %vm1204, %v3588, 0
      %v3736 = vsel %vm1204, %v3590, 0
      %v3739 = vsel %vm1204, %v3592, 0
      %v3742 = vsel %vm1204, %v3594, 0
      %v3745 = vsel %vm1204, %v3596, 0
      %v3748 = vsel %vm1204, %v3598, 0
      %v3751 = vsel %vm1204, %v3600, 0
      %v3754 = vsel %vm1204, %v3602, 0
      %v3757 = vsel %vm1204, %v3604, 0
      %v3760 = vsel %vm1204, %v3606, 0
      %v3763 = vsel %vm1204, %v3608, 0
      %v3766 = vsel %vm1204, %v3610, 0
      %v3769 = vsel %vm1204, %v3612, 0
      %v3772 = vsel %vm1204, %v3614, 0
      %v3775 = vsel %vm1204, %v3616, 0
      %v3778 = vsel %vm1204, %v3618, 0
      %v3781 = vsel %vm1204, %v3620, 0
      %v3784 = vsel %vm1204, %v3622, 0
      %v3787 = vsel %vm1204, %v3624, 0
      %v3790 = vsel %vm1204, %v3626, 0
      %v3793 = vsel %vm1204, %v3628, 0
      %v3796 = vsel %vm1204, %v3630, 0
      %v3799 = vsel %vm1204, %v3632, 0
      %v3802 = vsel %vm1204, %v3634, 0
      %v3805 = vsel %vm1204, %v3636, 0
      %v3808 = vsel %vm1204, %v3638, 0
      %v3811 = vsel %vm1204, %v3640, 0
      %v3814 = vsel %vm1204, %v3642, 0
      %v3817 = vsel %vm1204, %v3644, 0
      %v3820 = vsel %vm1204, %v3646, 0
      %v3823 = vsel %vm1204, %v3648, 0
      %v3826 = vsel %vm1204, %v3650, 0
      %v3829 = vsel %vm1204, %v3652, 0
      %v3832 = vsel %vm1204, %v3654, 0
      %v3835 = vsel %vm1204, %v3656, 0
      %v3838 = vsel %vm1204, %v3658, 0
      %v3841 = vsel %vm1204, %v3660, 0
      %v3844 = vsel %vm1204, %v3662, 0
      %v3847 = vsel %vm1204, %v3664, 0
      %v3850 = vsel %vm1204, %v3666, 0
      %v3853 = vsel %vm1204, %v3668, 0
      %v3856 = vsel %vm1204, %v3670, 0
      %v3859 = vsel %vm1204, %v3672, 0
      %v3862 = vsel %vm1204, %v3674, 0
      %v3865 = vsel %vm1204, %v3676, 0
      %v3868 = vsel %vm1204, %v3678, 0
      %v3871 = vsel %vm1204, %v3680, 0
      %v3874 = vsel %vm1204, %v3682, 0
      %v3877 = vsel %vm1204, %v3684, 0
      %v3880 = vsel %vm1204, %v3686, 0
      %v3883 = vsel %vm1204, %v3688, 0
      %v3886 = vsel %vm1204, %v3690, 0
      %v3889 = vsel %vm1204, %v3692, 0
      %v3892 = vsel %vm1204, %v3694, 0
      %v3895 = vsel %vm1204, %v3696, 0
      %v3898 = vsel %vm1204, %v3698, 0
      %v3901 = vsel %vm1204, %v3700, 0
      %v3904 = vsel %vm1204, %v3702, 0
      %v3907 = vsel %vm1204, %v3704, 0
      %v3910 = vsel %vm1409, %v3224, 0
      %3912 = vmatpush.bf16.msra.mxu0 0
      %3913 = vmatpush.bf16.msra.mxu0 0
      %3914 = vmatpush.bf16.msra.mxu0 0
      %3915 = vmatpush.bf16.msra.mxu0 0
      %3916 = vmatpush.bf16.msra.mxu0 0
      %3917 = vmatpush.bf16.msra.mxu0 0
      %3918 = vmatpush.bf16.msra.mxu0 0
      %3919 = vmatpush.bf16.msra.mxu0 %v3910
      %3920 = vmatmul.bf16.gmra.mxu0 %v3706
      %v3921 = vpop.f32.mrf.mxu0
      %v3922 = vadd.f32 0.0, %v3921
      %v3923 = vpop.f32.mrf.mxu0
      %v3924 = vadd.f32 0.0, %v3923
      %3925 = vmatmul.bf16.gmra.mxu0 %v3709
      %v3926 = vpop.f32.mrf.mxu0
      %v3927 = vadd.f32 0.0, %v3926
      %v3928 = vpop.f32.mrf.mxu0
      %v3929 = vadd.f32 0.0, %v3928
      %3930 = vmatmul.bf16.gmra.mxu0 %v3712
      %v3931 = vpop.f32.mrf.mxu0
      %v3932 = vadd.f32 0.0, %v3931
      %v3933 = vpop.f32.mrf.mxu0
      %v3934 = vadd.f32 0.0, %v3933
      %3935 = vmatmul.bf16.gmra.mxu0 %v3715
      %v3936 = vpop.f32.mrf.mxu0
      %v3937 = vadd.f32 0.0, %v3936
      %v3938 = vpop.f32.mrf.mxu0
      %v3939 = vadd.f32 0.0, %v3938
      %3940 = vmatmul.bf16.gmra.mxu0 %v3718
      %v3941 = vpop.f32.mrf.mxu0
      %v3942 = vadd.f32 0.0, %v3941
      %v3943 = vpop.f32.mrf.mxu0
      %v3944 = vadd.f32 0.0, %v3943
      %3945 = vmatmul.bf16.gmra.mxu0 %v3721
      %v3946 = vpop.f32.mrf.mxu0
      %v3947 = vadd.f32 0.0, %v3946
      %v3948 = vpop.f32.mrf.mxu0
      %v3949 = vadd.f32 0.0, %v3948
      %3950 = vmatmul.bf16.gmra.mxu0 %v3724
      %v3951 = vpop.f32.mrf.mxu0
      %v3952 = vadd.f32 0.0, %v3951
      %v3953 = vpop.f32.mrf.mxu0
      %v3954 = vadd.f32 0.0, %v3953
      %3955 = vmatmul.bf16.gmra.mxu0 %v3727
      %v3956 = vpop.f32.mrf.mxu0
      %v3957 = vadd.f32 0.0, %v3956
      %v3958 = vpop.f32.mrf.mxu0
      %v3959 = vadd.f32 0.0, %v3958
      %3960 = vmatmul.bf16.gmra.mxu0 %v3730
      %v3961 = vpop.f32.mrf.mxu0
      %v3962 = vadd.f32 0.0, %v3961
      %v3963 = vpop.f32.mrf.mxu0
      %v3964 = vadd.f32 0.0, %v3963
      %3965 = vmatmul.bf16.gmra.mxu0 %v3733
      %v3966 = vpop.f32.mrf.mxu0
      %v3967 = vadd.f32 0.0, %v3966
      %v3968 = vpop.f32.mrf.mxu0
      %v3969 = vadd.f32 0.0, %v3968
      %3970 = vmatmul.bf16.gmra.mxu0 %v3736
      %v3971 = vpop.f32.mrf.mxu0
      %v3972 = vadd.f32 0.0, %v3971
      %v3973 = vpop.f32.mrf.mxu0
      %v3974 = vadd.f32 0.0, %v3973
      %3975 = vmatmul.bf16.gmra.mxu0 %v3739
      %v3976 = vpop.f32.mrf.mxu0
      %v3977 = vadd.f32 0.0, %v3976
      %v3978 = vpop.f32.mrf.mxu0
      %v3979 = vadd.f32 0.0, %v3978
      %3980 = vmatmul.bf16.gmra.mxu0 %v3742
      %v3981 = vpop.f32.mrf.mxu0
      %v3982 = vadd.f32 0.0, %v3981
      %v3983 = vpop.f32.mrf.mxu0
      %v3984 = vadd.f32 0.0, %v3983
      %3985 = vmatmul.bf16.gmra.mxu0 %v3745
      %v3986 = vpop.f32.mrf.mxu0
      %v3987 = vadd.f32 0.0, %v3986
      %v3988 = vpop.f32.mrf.mxu0
      %v3989 = vadd.f32 0.0, %v3988
      %3990 = vmatmul.bf16.gmra.mxu0 %v3748
      %v3991 = vpop.f32.mrf.mxu0
      %v3992 = vadd.f32 0.0, %v3991
      %v3993 = vpop.f32.mrf.mxu0
      %v3994 = vadd.f32 0.0, %v3993
      %3995 = vmatmul.bf16.gmra.mxu0 %v3751
      %v3996 = vpop.f32.mrf.mxu0
      %v3997 = vadd.f32 0.0, %v3996
      %v3998 = vpop.f32.mrf.mxu0
      %v3999 = vadd.f32 0.0, %v3998
      %4000 = vmatmul.bf16.gmra.mxu0 %v3754
      %v4001 = vpop.f32.mrf.mxu0
      %v4002 = vadd.f32 0.0, %v4001
      %v4003 = vpop.f32.mrf.mxu0
      %v4004 = vadd.f32 0.0, %v4003
      %4005 = vmatmul.bf16.gmra.mxu0 %v3757
      %v4006 = vpop.f32.mrf.mxu0
      %v4007 = vadd.f32 0.0, %v4006
      %v4008 = vpop.f32.mrf.mxu0
      %v4009 = vadd.f32 0.0, %v4008
      %4010 = vmatmul.bf16.gmra.mxu0 %v3760
      %v4011 = vpop.f32.mrf.mxu0
      %v4012 = vadd.f32 0.0, %v4011
      %v4013 = vpop.f32.mrf.mxu0
      %v4014 = vadd.f32 0.0, %v4013
      %4015 = vmatmul.bf16.gmra.mxu0 %v3763
      %v4016 = vpop.f32.mrf.mxu0
      %v4017 = vadd.f32 0.0, %v4016
      %v4018 = vpop.f32.mrf.mxu0
      %v4019 = vadd.f32 0.0, %v4018
      %4020 = vmatmul.bf16.gmra.mxu0 %v3766
      %v4021 = vpop.f32.mrf.mxu0
      %v4022 = vadd.f32 0.0, %v4021
      %v4023 = vpop.f32.mrf.mxu0
      %v4024 = vadd.f32 0.0, %v4023
      %4025 = vmatmul.bf16.gmra.mxu0 %v3769
      %v4026 = vpop.f32.mrf.mxu0
      %v4027 = vadd.f32 0.0, %v4026
      %v4028 = vpop.f32.mrf.mxu0
      %v4029 = vadd.f32 0.0, %v4028
      %4030 = vmatmul.bf16.gmra.mxu0 %v3772
      %v4031 = vpop.f32.mrf.mxu0
      %v4032 = vadd.f32 0.0, %v4031
      %v4033 = vpop.f32.mrf.mxu0
      %v4034 = vadd.f32 0.0, %v4033
      %4035 = vmatmul.bf16.gmra.mxu0 %v3775
      %v4036 = vpop.f32.mrf.mxu0
      %v4037 = vadd.f32 0.0, %v4036
      %v4038 = vpop.f32.mrf.mxu0
      %v4039 = vadd.f32 0.0, %v4038
      %4040 = vmatmul.bf16.gmra.mxu0 %v3778
      %v4041 = vpop.f32.mrf.mxu0
      %v4042 = vadd.f32 0.0, %v4041
      %v4043 = vpop.f32.mrf.mxu0
      %v4044 = vadd.f32 0.0, %v4043
      %4045 = vmatmul.bf16.gmra.mxu0 %v3781
      %v4046 = vpop.f32.mrf.mxu0
      %v4047 = vadd.f32 0.0, %v4046
      %v4048 = vpop.f32.mrf.mxu0
      %v4049 = vadd.f32 0.0, %v4048
      %4050 = vmatmul.bf16.gmra.mxu0 %v3784
      %v4051 = vpop.f32.mrf.mxu0
      %v4052 = vadd.f32 0.0, %v4051
      %v4053 = vpop.f32.mrf.mxu0
      %v4054 = vadd.f32 0.0, %v4053
      %4055 = vmatmul.bf16.gmra.mxu0 %v3787
      %v4056 = vpop.f32.mrf.mxu0
      %v4057 = vadd.f32 0.0, %v4056
      %v4058 = vpop.f32.mrf.mxu0
      %v4059 = vadd.f32 0.0, %v4058
      %4060 = vmatmul.bf16.gmra.mxu0 %v3790
      %v4061 = vpop.f32.mrf.mxu0
      %v4062 = vadd.f32 0.0, %v4061
      %v4063 = vpop.f32.mrf.mxu0
      %v4064 = vadd.f32 0.0, %v4063
      %4065 = vmatmul.bf16.gmra.mxu0 %v3793
      %v4066 = vpop.f32.mrf.mxu0
      %v4067 = vadd.f32 0.0, %v4066
      %v4068 = vpop.f32.mrf.mxu0
      %v4069 = vadd.f32 0.0, %v4068
      %4070 = vmatmul.bf16.gmra.mxu0 %v3796
      %v4071 = vpop.f32.mrf.mxu0
      %v4072 = vadd.f32 0.0, %v4071
      %v4073 = vpop.f32.mrf.mxu0
      %v4074 = vadd.f32 0.0, %v4073
      %4075 = vmatmul.bf16.gmra.mxu0 %v3799
      %v4076 = vpop.f32.mrf.mxu0
      %v4077 = vadd.f32 0.0, %v4076
      %v4078 = vpop.f32.mrf.mxu0
      %v4079 = vadd.f32 0.0, %v4078
      %4080 = vmatmul.bf16.gmra.mxu0 %v3802
      %v4081 = vpop.f32.mrf.mxu0
      %v4082 = vadd.f32 0.0, %v4081
      %v4083 = vpop.f32.mrf.mxu0
      %v4084 = vadd.f32 0.0, %v4083
      %4085 = vmatmul.bf16.gmra.mxu0 %v3805
      %v4086 = vpop.f32.mrf.mxu0
      %v4087 = vadd.f32 0.0, %v4086
      %v4088 = vpop.f32.mrf.mxu0
      %v4089 = vadd.f32 0.0, %v4088
      %4090 = vmatmul.bf16.gmra.mxu0 %v3808
      %v4091 = vpop.f32.mrf.mxu0
      %v4092 = vadd.f32 0.0, %v4091
      %v4093 = vpop.f32.mrf.mxu0
      %v4094 = vadd.f32 0.0, %v4093
      %4095 = vmatmul.bf16.gmra.mxu0 %v3811
      %v4096 = vpop.f32.mrf.mxu0
      %v4097 = vadd.f32 0.0, %v4096
      %v4098 = vpop.f32.mrf.mxu0
      %v4099 = vadd.f32 0.0, %v4098
      %4100 = vmatmul.bf16.gmra.mxu0 %v3814
      %v4101 = vpop.f32.mrf.mxu0
      %v4102 = vadd.f32 0.0, %v4101
      %v4103 = vpop.f32.mrf.mxu0
      %v4104 = vadd.f32 0.0, %v4103
      %4105 = vmatmul.bf16.gmra.mxu0 %v3817
      %v4106 = vpop.f32.mrf.mxu0
      %v4107 = vadd.f32 0.0, %v4106
      %v4108 = vpop.f32.mrf.mxu0
      %v4109 = vadd.f32 0.0, %v4108
      %4110 = vmatmul.bf16.gmra.mxu0 %v3820
      %v4111 = vpop.f32.mrf.mxu0
      %v4112 = vadd.f32 0.0, %v4111
      %v4113 = vpop.f32.mrf.mxu0
      %v4114 = vadd.f32 0.0, %v4113
      %4115 = vmatmul.bf16.gmra.mxu0 %v3823
      %v4116 = vpop.f32.mrf.mxu0
      %v4117 = vadd.f32 0.0, %v4116
      %v4118 = vpop.f32.mrf.mxu0
      %v4119 = vadd.f32 0.0, %v4118
      %4120 = vmatmul.bf16.gmra.mxu0 %v3826
      %v4121 = vpop.f32.mrf.mxu0
      %v4122 = vadd.f32 0.0, %v4121
      %v4123 = vpop.f32.mrf.mxu0
      %v4124 = vadd.f32 0.0, %v4123
      %4125 = vmatmul.bf16.gmra.mxu0 %v3829
      %v4126 = vpop.f32.mrf.mxu0
      %v4127 = vadd.f32 0.0, %v4126
      %v4128 = vpop.f32.mrf.mxu0
      %v4129 = vadd.f32 0.0, %v4128
      %4130 = vmatmul.bf16.gmra.mxu0 %v3832
      %v4131 = vpop.f32.mrf.mxu0
      %v4132 = vadd.f32 0.0, %v4131
      %v4133 = vpop.f32.mrf.mxu0
      %v4134 = vadd.f32 0.0, %v4133
      %4135 = vmatmul.bf16.gmra.mxu0 %v3835
      %v4136 = vpop.f32.mrf.mxu0
      %v4137 = vadd.f32 0.0, %v4136
      %v4138 = vpop.f32.mrf.mxu0
      %v4139 = vadd.f32 0.0, %v4138
      %4140 = vmatmul.bf16.gmra.mxu0 %v3838
      %v4141 = vpop.f32.mrf.mxu0
      %v4142 = vadd.f32 0.0, %v4141
      %v4143 = vpop.f32.mrf.mxu0
      %v4144 = vadd.f32 0.0, %v4143
      %4145 = vmatmul.bf16.gmra.mxu0 %v3841
      %v4146 = vpop.f32.mrf.mxu0
      %v4147 = vadd.f32 0.0, %v4146
      %v4148 = vpop.f32.mrf.mxu0
      %v4149 = vadd.f32 0.0, %v4148
      %4150 = vmatmul.bf16.gmra.mxu0 %v3844
      %v4151 = vpop.f32.mrf.mxu0
      %v4152 = vadd.f32 0.0, %v4151
      %v4153 = vpop.f32.mrf.mxu0
      %v4154 = vadd.f32 0.0, %v4153
      %4155 = vmatmul.bf16.gmra.mxu0 %v3847
      %v4156 = vpop.f32.mrf.mxu0
      %v4157 = vadd.f32 0.0, %v4156
      %v4158 = vpop.f32.mrf.mxu0
      %v4159 = vadd.f32 0.0, %v4158
      %4160 = vmatmul.bf16.gmra.mxu0 %v3850
      %v4161 = vpop.f32.mrf.mxu0
      %v4162 = vadd.f32 0.0, %v4161
      %v4163 = vpop.f32.mrf.mxu0
      %v4164 = vadd.f32 0.0, %v4163
      %4165 = vmatmul.bf16.gmra.mxu0 %v3853
      %v4166 = vpop.f32.mrf.mxu0
      %v4167 = vadd.f32 0.0, %v4166
      %v4168 = vpop.f32.mrf.mxu0
      %v4169 = vadd.f32 0.0, %v4168
      %4170 = vmatmul.bf16.gmra.mxu0 %v3856
      %v4171 = vpop.f32.mrf.mxu0
      %v4172 = vadd.f32 0.0, %v4171
      %v4173 = vpop.f32.mrf.mxu0
      %v4174 = vadd.f32 0.0, %v4173
      %4175 = vmatmul.bf16.gmra.mxu0 %v3859
      %v4176 = vpop.f32.mrf.mxu0
      %v4177 = vadd.f32 0.0, %v4176
      %v4178 = vpop.f32.mrf.mxu0
      %v4179 = vadd.f32 0.0, %v4178
      %4180 = vmatmul.bf16.gmra.mxu0 %v3862
      %v4181 = vpop.f32.mrf.mxu0
      %v4182 = vadd.f32 0.0, %v4181
      %v4183 = vpop.f32.mrf.mxu0
      %v4184 = vadd.f32 0.0, %v4183
      %4185 = vmatmul.bf16.gmra.mxu0 %v3865
      %v4186 = vpop.f32.mrf.mxu0
      %v4187 = vadd.f32 0.0, %v4186
      %v4188 = vpop.f32.mrf.mxu0
      %v4189 = vadd.f32 0.0, %v4188
      %4190 = vmatmul.bf16.gmra.mxu0 %v3868
      %v4191 = vpop.f32.mrf.mxu0
      %v4192 = vadd.f32 0.0, %v4191
      %v4193 = vpop.f32.mrf.mxu0
      %v4194 = vadd.f32 0.0, %v4193
      %4195 = vmatmul.bf16.gmra.mxu0 %v3871
      %v4196 = vpop.f32.mrf.mxu0
      %v4197 = vadd.f32 0.0, %v4196
      %v4198 = vpop.f32.mrf.mxu0
      %v4199 = vadd.f32 0.0, %v4198
      %4200 = vmatmul.bf16.gmra.mxu0 %v3874
      %v4201 = vpop.f32.mrf.mxu0
      %v4202 = vadd.f32 0.0, %v4201
      %v4203 = vpop.f32.mrf.mxu0
      %v4204 = vadd.f32 0.0, %v4203
      %4205 = vmatmul.bf16.gmra.mxu0 %v3877
      %v4206 = vpop.f32.mrf.mxu0
      %v4207 = vadd.f32 0.0, %v4206
      %v4208 = vpop.f32.mrf.mxu0
      %v4209 = vadd.f32 0.0, %v4208
      %4210 = vmatmul.bf16.gmra.mxu0 %v3880
      %v4211 = vpop.f32.mrf.mxu0
      %v4212 = vadd.f32 0.0, %v4211
      %v4213 = vpop.f32.mrf.mxu0
      %v4214 = vadd.f32 0.0, %v4213
      %4215 = vmatmul.bf16.gmra.mxu0 %v3883
      %v4216 = vpop.f32.mrf.mxu0
      %v4217 = vadd.f32 0.0, %v4216
      %v4218 = vpop.f32.mrf.mxu0
      %v4219 = vadd.f32 0.0, %v4218
      %4220 = vmatmul.bf16.gmra.mxu0 %v3886
      %v4221 = vpop.f32.mrf.mxu0
      %v4222 = vadd.f32 0.0, %v4221
      %v4223 = vpop.f32.mrf.mxu0
      %v4224 = vadd.f32 0.0, %v4223
      %4225 = vmatmul.bf16.gmra.mxu0 %v3889
      %v4226 = vpop.f32.mrf.mxu0
      %v4227 = vadd.f32 0.0, %v4226
      %v4228 = vpop.f32.mrf.mxu0
      %v4229 = vadd.f32 0.0, %v4228
      %4230 = vmatmul.bf16.gmra.mxu0 %v3892
      %v4231 = vpop.f32.mrf.mxu0
      %v4232 = vadd.f32 0.0, %v4231
      %v4233 = vpop.f32.mrf.mxu0
      %v4234 = vadd.f32 0.0, %v4233
      %4235 = vmatmul.bf16.gmra.mxu0 %v3895
      %v4236 = vpop.f32.mrf.mxu0
      %v4237 = vadd.f32 0.0, %v4236
      %v4238 = vpop.f32.mrf.mxu0
      %v4239 = vadd.f32 0.0, %v4238
      %4240 = vmatmul.bf16.gmra.mxu0 %v3898
      %v4241 = vpop.f32.mrf.mxu0
      %v4242 = vadd.f32 0.0, %v4241
      %v4243 = vpop.f32.mrf.mxu0
      %v4244 = vadd.f32 0.0, %v4243
      %4245 = vmatmul.bf16.gmra.mxu0 %v3901
      %v4246 = vpop.f32.mrf.mxu0
      %v4247 = vadd.f32 0.0, %v4246
      %v4248 = vpop.f32.mrf.mxu0
      %v4249 = vadd.f32 0.0, %v4248
      %4250 = vmatmul.bf16.gmra.mxu0 %v3904
      %v4251 = vpop.f32.mrf.mxu0
      %v4252 = vadd.f32 0.0, %v4251
      %v4253 = vpop.f32.mrf.mxu0
      %v4254 = vadd.f32 0.0, %v4253
      %4255 = vmatmul.bf16.gmra.mxu0 %v3907
      %v4256 = vpop.f32.mrf.mxu0
      %v4257 = vadd.f32 0.0, %v4256
      %v4258 = vpop.f32.mrf.mxu0
      %v4259 = vadd.f32 0.0, %v4258
      %4260 = vdwg.mxu0
      %v4261 = vadd.f32 %v2950, %v3922
      %v4262 = vadd.f32 %v2951, %v3924
      %v4263 = vadd.f32 %v2952, %v3927
      %v4264 = vadd.f32 %v2953, %v3929
      %v4265 = vadd.f32 %v2954, %v3932
      %v4266 = vadd.f32 %v2955, %v3934
      %v4267 = vadd.f32 %v2956, %v3937
      %v4268 = vadd.f32 %v2957, %v3939
      %v4269 = vadd.f32 %v2958, %v3942
      %v4270 = vadd.f32 %v2959, %v3944
      %v4271 = vadd.f32 %v2960, %v3947
      %v4272 = vadd.f32 %v2961, %v3949
      %v4273 = vadd.f32 %v2962, %v3952
      %v4274 = vadd.f32 %v2963, %v3954
      %v4275 = vadd.f32 %v2964, %v3957
      %v4276 = vadd.f32 %v2965, %v3959
      %v4277 = vadd.f32 %v2966, %v3962
      %v4278 = vadd.f32 %v2967, %v3964
      %v4279 = vadd.f32 %v2968, %v3967
      %v4280 = vadd.f32 %v2969, %v3969
      %v4281 = vadd.f32 %v2970, %v3972
      %v4282 = vadd.f32 %v2971, %v3974
      %v4283 = vadd.f32 %v2972, %v3977
      %v4284 = vadd.f32 %v2973, %v3979
      %v4285 = vadd.f32 %v2974, %v3982
      %v4286 = vadd.f32 %v2975, %v3984
      %v4287 = vadd.f32 %v2976, %v3987
      %v4288 = vadd.f32 %v2977, %v3989
      %v4289 = vadd.f32 %v2978, %v3992
      %v4290 = vadd.f32 %v2979, %v3994
      %v4291 = vadd.f32 %v2980, %v3997
      %v4292 = vadd.f32 %v2981, %v3999
      %v4293 = vadd.f32 %v2982, %v4002
      %v4294 = vadd.f32 %v2983, %v4004
      %v4295 = vadd.f32 %v2984, %v4007
      %v4296 = vadd.f32 %v2985, %v4009
      %v4297 = vadd.f32 %v2986, %v4012
      %v4298 = vadd.f32 %v2987, %v4014
      %v4299 = vadd.f32 %v2988, %v4017
      %v4300 = vadd.f32 %v2989, %v4019
      %v4301 = vadd.f32 %v2990, %v4022
      %v4302 = vadd.f32 %v2991, %v4024
      %v4303 = vadd.f32 %v2992, %v4027
      %v4304 = vadd.f32 %v2993, %v4029
      %v4305 = vadd.f32 %v2994, %v4032
      %v4306 = vadd.f32 %v2995, %v4034
      %v4307 = vadd.f32 %v2996, %v4037
      %v4308 = vadd.f32 %v2997, %v4039
      %v4309 = vadd.f32 %v2998, %v4042
      %v4310 = vadd.f32 %v2999, %v4044
      %v4311 = vadd.f32 %v3000, %v4047
      %v4312 = vadd.f32 %v3001, %v4049
      %v4313 = vadd.f32 %v3002, %v4052
      %v4314 = vadd.f32 %v3003, %v4054
      %v4315 = vadd.f32 %v3004, %v4057
      %v4316 = vadd.f32 %v3005, %v4059
      %v4317 = vadd.f32 %v3006, %v4062
      %v4318 = vadd.f32 %v3007, %v4064
      %v4319 = vadd.f32 %v3008, %v4067
      %v4320 = vadd.f32 %v3009, %v4069
      %v4321 = vadd.f32 %v3010, %v4072
      %v4322 = vadd.f32 %v3011, %v4074
      %v4323 = vadd.f32 %v3012, %v4077
      %v4324 = vadd.f32 %v3013, %v4079
      %v4325 = vadd.f32 %v3014, %v4082
      %v4326 = vadd.f32 %v3015, %v4084
      %v4327 = vadd.f32 %v3016, %v4087
      %v4328 = vadd.f32 %v3017, %v4089
      %v4329 = vadd.f32 %v3018, %v4092
      %v4330 = vadd.f32 %v3019, %v4094
      %v4331 = vadd.f32 %v3020, %v4097
      %v4332 = vadd.f32 %v3021, %v4099
      %v4333 = vadd.f32 %v3022, %v4102
      %v4334 = vadd.f32 %v3023, %v4104
      %v4335 = vadd.f32 %v3024, %v4107
      %v4336 = vadd.f32 %v3025, %v4109
      %v4337 = vadd.f32 %v3026, %v4112
      %v4338 = vadd.f32 %v3027, %v4114
      %v4339 = vadd.f32 %v3028, %v4117
      %v4340 = vadd.f32 %v3029, %v4119
      %v4341 = vadd.f32 %v3030, %v4122
      %v4342 = vadd.f32 %v3031, %v4124
      %v4343 = vadd.f32 %v3032, %v4127
      %v4344 = vadd.f32 %v3033, %v4129
      %v4345 = vadd.f32 %v3034, %v4132
      %v4346 = vadd.f32 %v3035, %v4134
      %v4347 = vadd.f32 %v3036, %v4137
      %v4348 = vadd.f32 %v3037, %v4139
      %v4349 = vadd.f32 %v3038, %v4142
      %v4350 = vadd.f32 %v3039, %v4144
      %v4351 = vadd.f32 %v3040, %v4147
      %v4352 = vadd.f32 %v3041, %v4149
      %v4353 = vadd.f32 %v3042, %v4152
      %v4354 = vadd.f32 %v3043, %v4154
      %v4355 = vadd.f32 %v3044, %v4157
      %v4356 = vadd.f32 %v3045, %v4159
      %v4357 = vadd.f32 %v3046, %v4162
      %v4358 = vadd.f32 %v3047, %v4164
      %v4359 = vadd.f32 %v3048, %v4167
      %v4360 = vadd.f32 %v3049, %v4169
      %v4361 = vadd.f32 %v3050, %v4172
      %v4362 = vadd.f32 %v3051, %v4174
      %v4363 = vadd.f32 %v3052, %v4177
      %v4364 = vadd.f32 %v3053, %v4179
      %v4365 = vadd.f32 %v3054, %v4182
      %v4366 = vadd.f32 %v3055, %v4184
      %v4367 = vadd.f32 %v3056, %v4187
      %v4368 = vadd.f32 %v3057, %v4189
      %v4369 = vadd.f32 %v3058, %v4192
      %v4370 = vadd.f32 %v3059, %v4194
      %v4371 = vadd.f32 %v3060, %v4197
      %v4372 = vadd.f32 %v3061, %v4199
      %v4373 = vadd.f32 %v3062, %v4202
      %v4374 = vadd.f32 %v3063, %v4204
      %v4375 = vadd.f32 %v3064, %v4207
      %v4376 = vadd.f32 %v3065, %v4209
      %v4377 = vadd.f32 %v3066, %v4212
      %v4378 = vadd.f32 %v3067, %v4214
      %v4379 = vadd.f32 %v3068, %v4217
      %v4380 = vadd.f32 %v3069, %v4219
      %v4381 = vadd.f32 %v3070, %v4222
      %v4382 = vadd.f32 %v3071, %v4224
      %v4383 = vadd.f32 %v3072, %v4227
      %v4384 = vadd.f32 %v3073, %v4229
      %v4385 = vadd.f32 %v3074, %v4232
      %v4386 = vadd.f32 %v3075, %v4234
      %v4387 = vadd.f32 %v3076, %v4237
      %v4388 = vadd.f32 %v3077, %v4239
      %v4389 = vadd.f32 %v3078, %v4242
      %v4390 = vadd.f32 %v3079, %v4244
      %v4391 = vadd.f32 %v3080, %v4247
      %v4392 = vadd.f32 %v3081, %v4249
      %v4393 = vadd.f32 %v3082, %v4252
      %v4394 = vadd.f32 %v3083, %v4254
      %v4395 = vadd.f32 %v3084, %v4257
      %v4396 = vadd.f32 %v3085, %v4259
      %v4397 = vld [vmem:[%s165 + $0x230] sm:$0x3]
      %s4398 = scalar_lea.vmem %s1, 16
      %v4399 = vld [vmem:[%s4398] sm:$0xf]
      %v4401 = vunpack.c.l.b16 %v4397
      %v4402 = vpack.c.b16 %v4401, %v4401
      %vm4403 = vsmask.f32 6400
      %v4405 = vshrl.u32 %v3499, 16
      %v4407 = vrot.slane %v4405, 1
      %v4408 = vshll.u32 %v3499, 16
      %v4410 = vrot.slane %v4408, 2
      %v4411 = vor.u32 %v4407, %v4410
      %v4413 = vshrl.u32 %v3500, 16
      %v4415 = vrot.slane %v4413, 1
      %v4416 = vshll.u32 %v3500, 16
      %v4418 = vrot.slane %v4416, 2
      %v4419 = vor.u32 %v4415, %v4418
      %v4420 = vsel %vm4403, %v4411, %v4419
      %v4422 = vshrl.u32 %v3501, 16
      %v4424 = vrot.slane %v4422, 1
      %v4425 = vshll.u32 %v3501, 16
      %v4427 = vrot.slane %v4425, 2
      %v4428 = vor.u32 %v4424, %v4427
      %v4429 = vsel %vm4403, %v4419, %v4428
      %v4431 = vshrl.u32 %v3502, 16
      %v4433 = vrot.slane %v4431, 1
      %v4434 = vshll.u32 %v3502, 16
      %v4436 = vrot.slane %v4434, 2
      %v4437 = vor.u32 %v4433, %v4436
      %v4438 = vsel %vm4403, %v4428, %v4437
      %v4440 = vshrl.u32 %v3503, 16
      %v4442 = vrot.slane %v4440, 1
      %v4443 = vshll.u32 %v3503, 16
      %v4445 = vrot.slane %v4443, 2
      %v4446 = vor.u32 %v4442, %v4445
      %v4447 = vsel %vm4403, %v4437, %v4446
      %v4449 = vshrl.u32 %v3504, 16
      %v4451 = vrot.slane %v4449, 1
      %v4452 = vshll.u32 %v3504, 16
      %v4454 = vrot.slane %v4452, 2
      %v4455 = vor.u32 %v4451, %v4454
      %v4456 = vsel %vm4403, %v4446, %v4455
      %v4458 = vshrl.u32 %v3505, 16
      %v4460 = vrot.slane %v4458, 1
      %v4461 = vshll.u32 %v3505, 16
      %v4463 = vrot.slane %v4461, 2
      %v4464 = vor.u32 %v4460, %v4463
      %v4465 = vsel %vm4403, %v4455, %v4464
      %v4467 = vshrl.u32 %v3506, 16
      %v4469 = vrot.slane %v4467, 1
      %v4470 = vshll.u32 %v3506, 16
      %v4472 = vrot.slane %v4470, 2
      %v4473 = vor.u32 %v4469, %v4472
      %v4474 = vsel %vm4403, %v4464, %v4473
      %v4476 = vshrl.u32 %v3507, 16
      %v4478 = vrot.slane %v4476, 1
      %v4479 = vshll.u32 %v3507, 16
      %v4481 = vrot.slane %v4479, 2
      %v4482 = vor.u32 %v4478, %v4481
      %v4483 = vsel %vm4403, %v4473, %v4482
      %v4485 = vshrl.u32 %v3508, 16
      %v4487 = vrot.slane %v4485, 1
      %v4488 = vshll.u32 %v3508, 16
      %v4490 = vrot.slane %v4488, 2
      %v4491 = vor.u32 %v4487, %v4490
      %v4492 = vsel %vm4403, %v4482, %v4491
      %v4494 = vshrl.u32 %v3509, 16
      %v4496 = vrot.slane %v4494, 1
      %v4497 = vshll.u32 %v3509, 16
      %v4499 = vrot.slane %v4497, 2
      %v4500 = vor.u32 %v4496, %v4499
      %v4501 = vsel %vm4403, %v4491, %v4500
      %v4503 = vshrl.u32 %v3510, 16
      %v4505 = vrot.slane %v4503, 1
      %v4506 = vshll.u32 %v3510, 16
      %v4508 = vrot.slane %v4506, 2
      %v4509 = vor.u32 %v4505, %v4508
      %v4510 = vsel %vm4403, %v4500, %v4509
      %v4512 = vshrl.u32 %v3511, 16
      %v4514 = vrot.slane %v4512, 1
      %v4515 = vshll.u32 %v3511, 16
      %v4517 = vrot.slane %v4515, 2
      %v4518 = vor.u32 %v4514, %v4517
      %v4519 = vsel %vm4403, %v4509, %v4518
      %v4521 = vshrl.u32 %v3512, 16
      %v4523 = vrot.slane %v4521, 1
      %v4524 = vshll.u32 %v3512, 16
      %v4526 = vrot.slane %v4524, 2
      %v4527 = vor.u32 %v4523, %v4526
      %v4528 = vsel %vm4403, %v4518, %v4527
      %v4530 = vshrl.u32 %v3513, 16
      %v4532 = vrot.slane %v4530, 1
      %v4533 = vshll.u32 %v3513, 16
      %v4535 = vrot.slane %v4533, 2
      %v4536 = vor.u32 %v4532, %v4535
      %v4537 = vsel %vm4403, %v4527, %v4536
      %v4539 = vshrl.u32 %v3514, 16
      %v4541 = vrot.slane %v4539, 1
      %v4542 = vshll.u32 %v3514, 16
      %v4544 = vrot.slane %v4542, 2
      %v4545 = vor.u32 %v4541, %v4544
      %v4546 = vsel %vm4403, %v4536, %v4545
      %v4548 = vshrl.u32 %v3515, 16
      %v4550 = vrot.slane %v4548, 1
      %v4551 = vshll.u32 %v3515, 16
      %v4553 = vrot.slane %v4551, 2
      %v4554 = vor.u32 %v4550, %v4553
      %v4555 = vsel %vm4403, %v4545, %v4554
      %v4557 = vshrl.u32 %v3516, 16
      %v4559 = vrot.slane %v4557, 1
      %v4560 = vshll.u32 %v3516, 16
      %v4562 = vrot.slane %v4560, 2
      %v4563 = vor.u32 %v4559, %v4562
      %v4564 = vsel %vm4403, %v4554, %v4563
      %v4566 = vshrl.u32 %v3517, 16
      %v4568 = vrot.slane %v4566, 1
      %v4569 = vshll.u32 %v3517, 16
      %v4571 = vrot.slane %v4569, 2
      %v4572 = vor.u32 %v4568, %v4571
      %v4573 = vsel %vm4403, %v4563, %v4572
      %v4575 = vshrl.u32 %v3518, 16
      %v4577 = vrot.slane %v4575, 1
      %v4578 = vshll.u32 %v3518, 16
      %v4580 = vrot.slane %v4578, 2
      %v4581 = vor.u32 %v4577, %v4580
      %v4582 = vsel %vm4403, %v4572, %v4581
      %v4584 = vshrl.u32 %v3519, 16
      %v4586 = vrot.slane %v4584, 1
      %v4587 = vshll.u32 %v3519, 16
      %v4589 = vrot.slane %v4587, 2
      %v4590 = vor.u32 %v4586, %v4589
      %v4591 = vsel %vm4403, %v4581, %v4590
      %v4593 = vshrl.u32 %v3520, 16
      %v4595 = vrot.slane %v4593, 1
      %v4596 = vshll.u32 %v3520, 16
      %v4598 = vrot.slane %v4596, 2
      %v4599 = vor.u32 %v4595, %v4598
      %v4600 = vsel %vm4403, %v4590, %v4599
      %v4602 = vshrl.u32 %v3521, 16
      %v4604 = vrot.slane %v4602, 1
      %v4605 = vshll.u32 %v3521, 16
      %v4607 = vrot.slane %v4605, 2
      %v4608 = vor.u32 %v4604, %v4607
      %v4609 = vsel %vm4403, %v4599, %v4608
      %v4611 = vshrl.u32 %v3522, 16
      %v4613 = vrot.slane %v4611, 1
      %v4614 = vshll.u32 %v3522, 16
      %v4616 = vrot.slane %v4614, 2
      %v4617 = vor.u32 %v4613, %v4616
      %v4618 = vsel %vm4403, %v4608, %v4617
      %v4620 = vshrl.u32 %v3523, 16
      %v4622 = vrot.slane %v4620, 1
      %v4623 = vshll.u32 %v3523, 16
      %v4625 = vrot.slane %v4623, 2
      %v4626 = vor.u32 %v4622, %v4625
      %v4627 = vsel %vm4403, %v4617, %v4626
      %v4629 = vshrl.u32 %v3524, 16
      %v4631 = vrot.slane %v4629, 1
      %v4632 = vshll.u32 %v3524, 16
      %v4634 = vrot.slane %v4632, 2
      %v4635 = vor.u32 %v4631, %v4634
      %v4636 = vsel %vm4403, %v4626, %v4635
      %v4638 = vshrl.u32 %v3525, 16
      %v4640 = vrot.slane %v4638, 1
      %v4641 = vshll.u32 %v3525, 16
      %v4643 = vrot.slane %v4641, 2
      %v4644 = vor.u32 %v4640, %v4643
      %v4645 = vsel %vm4403, %v4635, %v4644
      %v4647 = vshrl.u32 %v3526, 16
      %v4649 = vrot.slane %v4647, 1
      %v4650 = vshll.u32 %v3526, 16
      %v4652 = vrot.slane %v4650, 2
      %v4653 = vor.u32 %v4649, %v4652
      %v4654 = vsel %vm4403, %v4644, %v4653
      %v4656 = vshrl.u32 %v3527, 16
      %v4658 = vrot.slane %v4656, 1
      %v4659 = vshll.u32 %v3527, 16
      %v4661 = vrot.slane %v4659, 2
      %v4662 = vor.u32 %v4658, %v4661
      %v4663 = vsel %vm4403, %v4653, %v4662
      %v4665 = vshrl.u32 %v3528, 16
      %v4667 = vrot.slane %v4665, 1
      %v4668 = vshll.u32 %v3528, 16
      %v4670 = vrot.slane %v4668, 2
      %v4671 = vor.u32 %v4667, %v4670
      %v4672 = vsel %vm4403, %v4662, %v4671
      %v4674 = vshrl.u32 %v3529, 16
      %v4676 = vrot.slane %v4674, 1
      %v4677 = vshll.u32 %v3529, 16
      %v4679 = vrot.slane %v4677, 2
      %v4680 = vor.u32 %v4676, %v4679
      %v4681 = vsel %vm4403, %v4671, %v4680
      %v4683 = vshrl.u32 %v3530, 16
      %v4685 = vrot.slane %v4683, 1
      %v4686 = vshll.u32 %v3530, 16
      %v4688 = vrot.slane %v4686, 2
      %v4689 = vor.u32 %v4685, %v4688
      %v4690 = vsel %vm4403, %v4680, %v4689
      %v4692 = vshrl.u32 %v3531, 16
      %v4694 = vrot.slane %v4692, 1
      %v4695 = vshll.u32 %v3531, 16
      %v4697 = vrot.slane %v4695, 2
      %v4698 = vor.u32 %v4694, %v4697
      %v4699 = vsel %vm4403, %v4689, %v4698
      %v4701 = vshrl.u32 %v3532, 16
      %v4703 = vrot.slane %v4701, 1
      %v4704 = vshll.u32 %v3532, 16
      %v4706 = vrot.slane %v4704, 2
      %v4707 = vor.u32 %v4703, %v4706
      %v4708 = vsel %vm4403, %v4698, %v4707
      %v4710 = vshrl.u32 %v3533, 16
      %v4712 = vrot.slane %v4710, 1
      %v4713 = vshll.u32 %v3533, 16
      %v4715 = vrot.slane %v4713, 2
      %v4716 = vor.u32 %v4712, %v4715
      %v4717 = vsel %vm4403, %v4707, %v4716
      %v4719 = vshrl.u32 %v3534, 16
      %v4721 = vrot.slane %v4719, 1
      %v4722 = vshll.u32 %v3534, 16
      %v4724 = vrot.slane %v4722, 2
      %v4725 = vor.u32 %v4721, %v4724
      %v4726 = vsel %vm4403, %v4716, %v4725
      %v4728 = vshrl.u32 %v3535, 16
      %v4730 = vrot.slane %v4728, 1
      %v4731 = vshll.u32 %v3535, 16
      %v4733 = vrot.slane %v4731, 2
      %v4734 = vor.u32 %v4730, %v4733
      %v4735 = vsel %vm4403, %v4725, %v4734
      %v4737 = vshrl.u32 %v3536, 16
      %v4739 = vrot.slane %v4737, 1
      %v4740 = vshll.u32 %v3536, 16
      %v4742 = vrot.slane %v4740, 2
      %v4743 = vor.u32 %v4739, %v4742
      %v4744 = vsel %vm4403, %v4734, %v4743
      %v4746 = vshrl.u32 %v3537, 16
      %v4748 = vrot.slane %v4746, 1
      %v4749 = vshll.u32 %v3537, 16
      %v4751 = vrot.slane %v4749, 2
      %v4752 = vor.u32 %v4748, %v4751
      %v4753 = vsel %vm4403, %v4743, %v4752
      %v4755 = vshrl.u32 %v3538, 16
      %v4757 = vrot.slane %v4755, 1
      %v4758 = vshll.u32 %v3538, 16
      %v4760 = vrot.slane %v4758, 2
      %v4761 = vor.u32 %v4757, %v4760
      %v4762 = vsel %vm4403, %v4752, %v4761
      %v4764 = vshrl.u32 %v3539, 16
      %v4766 = vrot.slane %v4764, 1
      %v4767 = vshll.u32 %v3539, 16
      %v4769 = vrot.slane %v4767, 2
      %v4770 = vor.u32 %v4766, %v4769
      %v4771 = vsel %vm4403, %v4761, %v4770
      %v4773 = vshrl.u32 %v3540, 16
      %v4775 = vrot.slane %v4773, 1
      %v4776 = vshll.u32 %v3540, 16
      %v4778 = vrot.slane %v4776, 2
      %v4779 = vor.u32 %v4775, %v4778
      %v4780 = vsel %vm4403, %v4770, %v4779
      %v4782 = vshrl.u32 %v3541, 16
      %v4784 = vrot.slane %v4782, 1
      %v4785 = vshll.u32 %v3541, 16
      %v4787 = vrot.slane %v4785, 2
      %v4788 = vor.u32 %v4784, %v4787
      %v4789 = vsel %vm4403, %v4779, %v4788
      %v4791 = vshrl.u32 %v3542, 16
      %v4793 = vrot.slane %v4791, 1
      %v4794 = vshll.u32 %v3542, 16
      %v4796 = vrot.slane %v4794, 2
      %v4797 = vor.u32 %v4793, %v4796
      %v4798 = vsel %vm4403, %v4788, %v4797
      %v4800 = vshrl.u32 %v3543, 16
      %v4802 = vrot.slane %v4800, 1
      %v4803 = vshll.u32 %v3543, 16
      %v4805 = vrot.slane %v4803, 2
      %v4806 = vor.u32 %v4802, %v4805
      %v4807 = vsel %vm4403, %v4797, %v4806
      %v4809 = vshrl.u32 %v3544, 16
      %v4811 = vrot.slane %v4809, 1
      %v4812 = vshll.u32 %v3544, 16
      %v4814 = vrot.slane %v4812, 2
      %v4815 = vor.u32 %v4811, %v4814
      %v4816 = vsel %vm4403, %v4806, %v4815
      %v4818 = vshrl.u32 %v3545, 16
      %v4820 = vrot.slane %v4818, 1
      %v4821 = vshll.u32 %v3545, 16
      %v4823 = vrot.slane %v4821, 2
      %v4824 = vor.u32 %v4820, %v4823
      %v4825 = vsel %vm4403, %v4815, %v4824
      %v4827 = vshrl.u32 %v3546, 16
      %v4829 = vrot.slane %v4827, 1
      %v4830 = vshll.u32 %v3546, 16
      %v4832 = vrot.slane %v4830, 2
      %v4833 = vor.u32 %v4829, %v4832
      %v4834 = vsel %vm4403, %v4824, %v4833
      %v4836 = vshrl.u32 %v3547, 16
      %v4838 = vrot.slane %v4836, 1
      %v4839 = vshll.u32 %v3547, 16
      %v4841 = vrot.slane %v4839, 2
      %v4842 = vor.u32 %v4838, %v4841
      %v4843 = vsel %vm4403, %v4833, %v4842
      %v4845 = vshrl.u32 %v3548, 16
      %v4847 = vrot.slane %v4845, 1
      %v4848 = vshll.u32 %v3548, 16
      %v4850 = vrot.slane %v4848, 2
      %v4851 = vor.u32 %v4847, %v4850
      %v4852 = vsel %vm4403, %v4842, %v4851
      %v4854 = vshrl.u32 %v3549, 16
      %v4856 = vrot.slane %v4854, 1
      %v4857 = vshll.u32 %v3549, 16
      %v4859 = vrot.slane %v4857, 2
      %v4860 = vor.u32 %v4856, %v4859
      %v4861 = vsel %vm4403, %v4851, %v4860
      %v4863 = vshrl.u32 %v3550, 16
      %v4865 = vrot.slane %v4863, 1
      %v4866 = vshll.u32 %v3550, 16
      %v4868 = vrot.slane %v4866, 2
      %v4869 = vor.u32 %v4865, %v4868
      %v4870 = vsel %vm4403, %v4860, %v4869
      %v4872 = vshrl.u32 %v3551, 16
      %v4874 = vrot.slane %v4872, 1
      %v4875 = vshll.u32 %v3551, 16
      %v4877 = vrot.slane %v4875, 2
      %v4878 = vor.u32 %v4874, %v4877
      %v4879 = vsel %vm4403, %v4869, %v4878
      %v4881 = vshrl.u32 %v3552, 16
      %v4883 = vrot.slane %v4881, 1
      %v4884 = vshll.u32 %v3552, 16
      %v4886 = vrot.slane %v4884, 2
      %v4887 = vor.u32 %v4883, %v4886
      %v4888 = vsel %vm4403, %v4878, %v4887
      %v4890 = vshrl.u32 %v3553, 16
      %v4892 = vrot.slane %v4890, 1
      %v4893 = vshll.u32 %v3553, 16
      %v4895 = vrot.slane %v4893, 2
      %v4896 = vor.u32 %v4892, %v4895
      %v4897 = vsel %vm4403, %v4887, %v4896
      %v4899 = vshrl.u32 %v3554, 16
      %v4901 = vrot.slane %v4899, 1
      %v4902 = vshll.u32 %v3554, 16
      %v4904 = vrot.slane %v4902, 2
      %v4905 = vor.u32 %v4901, %v4904
      %v4906 = vsel %vm4403, %v4896, %v4905
      %v4908 = vshrl.u32 %v3555, 16
      %v4910 = vrot.slane %v4908, 1
      %v4911 = vshll.u32 %v3555, 16
      %v4913 = vrot.slane %v4911, 2
      %v4914 = vor.u32 %v4910, %v4913
      %v4915 = vsel %vm4403, %v4905, %v4914
      %v4917 = vshrl.u32 %v3556, 16
      %v4919 = vrot.slane %v4917, 1
      %v4920 = vshll.u32 %v3556, 16
      %v4922 = vrot.slane %v4920, 2
      %v4923 = vor.u32 %v4919, %v4922
      %v4924 = vsel %vm4403, %v4914, %v4923
      %v4926 = vshrl.u32 %v3557, 16
      %v4928 = vrot.slane %v4926, 1
      %v4929 = vshll.u32 %v3557, 16
      %v4931 = vrot.slane %v4929, 2
      %v4932 = vor.u32 %v4928, %v4931
      %v4933 = vsel %vm4403, %v4923, %v4932
      %v4935 = vshrl.u32 %v3558, 16
      %v4937 = vrot.slane %v4935, 1
      %v4938 = vshll.u32 %v3558, 16
      %v4940 = vrot.slane %v4938, 2
      %v4941 = vor.u32 %v4937, %v4940
      %v4942 = vsel %vm4403, %v4932, %v4941
      %v4944 = vshrl.u32 %v3559, 16
      %v4946 = vrot.slane %v4944, 1
      %v4947 = vshll.u32 %v3559, 16
      %v4949 = vrot.slane %v4947, 2
      %v4950 = vor.u32 %v4946, %v4949
      %v4951 = vsel %vm4403, %v4941, %v4950
      %v4953 = vshrl.u32 %v3560, 16
      %v4955 = vrot.slane %v4953, 1
      %v4956 = vshll.u32 %v3560, 16
      %v4958 = vrot.slane %v4956, 2
      %v4959 = vor.u32 %v4955, %v4958
      %v4960 = vsel %vm4403, %v4950, %v4959
      %v4962 = vshrl.u32 %v3561, 16
      %v4964 = vrot.slane %v4962, 1
      %v4965 = vshll.u32 %v3561, 16
      %v4967 = vrot.slane %v4965, 2
      %v4968 = vor.u32 %v4964, %v4967
      %v4969 = vsel %vm4403, %v4959, %v4968
      %v4971 = vshrl.u32 %v3562, 16
      %v4973 = vrot.slane %v4971, 1
      %v4974 = vshll.u32 %v3562, 16
      %v4976 = vrot.slane %v4974, 2
      %v4977 = vor.u32 %v4973, %v4976
      %v4978 = vsel %vm4403, %v4968, %v4977
      %v4980 = vshrl.u32 %v3563, 16
      %v4982 = vrot.slane %v4980, 1
      %v4983 = vshll.u32 %v3563, 16
      %v4985 = vrot.slane %v4983, 2
      %v4986 = vor.u32 %v4982, %v4985
      %v4987 = vsel %vm4403, %v4977, %v4986
      %v4989 = vshrl.u32 %v3564, 16
      %v4991 = vrot.slane %v4989, 1
      %v4992 = vshll.u32 %v3564, 16
      %v4994 = vrot.slane %v4992, 2
      %v4995 = vor.u32 %v4991, %v4994
      %v4996 = vsel %vm4403, %v4986, %v4995
      %v4998 = vshrl.u32 %v3565, 16
      %v5000 = vrot.slane %v4998, 1
      %v5001 = vshll.u32 %v3565, 16
      %v5003 = vrot.slane %v5001, 2
      %v5004 = vor.u32 %v5000, %v5003
      %v5005 = vsel %vm4403, %v4995, %v5004
      %v5007 = vshrl.u32 %v3566, 16
      %v5009 = vrot.slane %v5007, 1
      %v5010 = vshll.u32 %v3566, 16
      %v5012 = vrot.slane %v5010, 2
      %v5013 = vor.u32 %v5009, %v5012
      %v5014 = vsel %vm4403, %v5004, %v5013
      %v5016 = vshrl.u32 %v4402, 16
      %v5018 = vrot.slane %v5016, 1
      %v5019 = vshll.u32 %v4402, 16
      %v5021 = vrot.slane %v5019, 2
      %v5022 = vor.u32 %v5018, %v5021
      %v5023 = vsel %vm4403, %v5013, %v5022
      %v5025 = vsel %vm1204, %v4420, 0
      %v5028 = vsel %vm1204, %v4429, 0
      %v5031 = vsel %vm1204, %v4438, 0
      %v5034 = vsel %vm1204, %v4447, 0
      %v5037 = vsel %vm1204, %v4456, 0
      %v5040 = vsel %vm1204, %v4465, 0
      %v5043 = vsel %vm1204, %v4474, 0
      %v5046 = vsel %vm1204, %v4483, 0
      %v5049 = vsel %vm1204, %v4492, 0
      %v5052 = vsel %vm1204, %v4501, 0
      %v5055 = vsel %vm1204, %v4510, 0
      %v5058 = vsel %vm1204, %v4519, 0
      %v5061 = vsel %vm1204, %v4528, 0
      %v5064 = vsel %vm1204, %v4537, 0
      %v5067 = vsel %vm1204, %v4546, 0
      %v5070 = vsel %vm1204, %v4555, 0
      %v5073 = vsel %vm1204, %v4564, 0
      %v5076 = vsel %vm1204, %v4573, 0
      %v5079 = vsel %vm1204, %v4582, 0
      %v5082 = vsel %vm1204, %v4591, 0
      %v5085 = vsel %vm1204, %v4600, 0
      %v5088 = vsel %vm1204, %v4609, 0
      %v5091 = vsel %vm1204, %v4618, 0
      %v5094 = vsel %vm1204, %v4627, 0
      %v5097 = vsel %vm1204, %v4636, 0
      %v5100 = vsel %vm1204, %v4645, 0
      %v5103 = vsel %vm1204, %v4654, 0
      %v5106 = vsel %vm1204, %v4663, 0
      %v5109 = vsel %vm1204, %v4672, 0
      %v5112 = vsel %vm1204, %v4681, 0
      %v5115 = vsel %vm1204, %v4690, 0
      %v5118 = vsel %vm1204, %v4699, 0
      %v5121 = vsel %vm1204, %v4708, 0
      %v5124 = vsel %vm1204, %v4717, 0
      %v5127 = vsel %vm1204, %v4726, 0
      %v5130 = vsel %vm1204, %v4735, 0
      %v5133 = vsel %vm1204, %v4744, 0
      %v5136 = vsel %vm1204, %v4753, 0
      %v5139 = vsel %vm1204, %v4762, 0
      %v5142 = vsel %vm1204, %v4771, 0
      %v5145 = vsel %vm1204, %v4780, 0
      %v5148 = vsel %vm1204, %v4789, 0
      %v5151 = vsel %vm1204, %v4798, 0
      %v5154 = vsel %vm1204, %v4807, 0
      %v5157 = vsel %vm1204, %v4816, 0
      %v5160 = vsel %vm1204, %v4825, 0
      %v5163 = vsel %vm1204, %v4834, 0
      %v5166 = vsel %vm1204, %v4843, 0
      %v5169 = vsel %vm1204, %v4852, 0
      %v5172 = vsel %vm1204, %v4861, 0
      %v5175 = vsel %vm1204, %v4870, 0
      %v5178 = vsel %vm1204, %v4879, 0
      %v5181 = vsel %vm1204, %v4888, 0
      %v5184 = vsel %vm1204, %v4897, 0
      %v5187 = vsel %vm1204, %v4906, 0
      %v5190 = vsel %vm1204, %v4915, 0
      %v5193 = vsel %vm1204, %v4924, 0
      %v5196 = vsel %vm1204, %v4933, 0
      %v5199 = vsel %vm1204, %v4942, 0
      %v5202 = vsel %vm1204, %v4951, 0
      %v5205 = vsel %vm1204, %v4960, 0
      %v5208 = vsel %vm1204, %v4969, 0
      %v5211 = vsel %vm1204, %v4978, 0
      %v5214 = vsel %vm1204, %v4987, 0
      %v5217 = vsel %vm1204, %v4996, 0
      %v5220 = vsel %vm1204, %v5005, 0
      %v5223 = vsel %vm1204, %v5014, 0
      %v5226 = vsel %vm1204, %v5023, 0
      %v5229 = vsel %vm1409, %v4399, 0
      %5231 = vmatpush.bf16.msra.mxu0 0
      %5232 = vmatpush.bf16.msra.mxu0 0
      %5233 = vmatpush.bf16.msra.mxu0 0
      %5234 = vmatpush.bf16.msra.mxu0 0
      %5235 = vmatpush.bf16.msra.mxu0 0
      %5236 = vmatpush.bf16.msra.mxu0 0
      %5237 = vmatpush.bf16.msra.mxu0 0
      %5238 = vmatpush.bf16.msra.mxu0 %v5229
      %5239 = vmatmul.bf16.gmra.mxu0 %v5025
      %v5240 = vpop.f32.mrf.mxu0
      %v5241 = vadd.f32 0.0, %v5240
      %v5242 = vpop.f32.mrf.mxu0
      %v5243 = vadd.f32 0.0, %v5242
      %5244 = vmatmul.bf16.gmra.mxu0 %v5028
      %v5245 = vpop.f32.mrf.mxu0
      %v5246 = vadd.f32 0.0, %v5245
      %v5247 = vpop.f32.mrf.mxu0
      %v5248 = vadd.f32 0.0, %v5247
      %5249 = vmatmul.bf16.gmra.mxu0 %v5031
      %v5250 = vpop.f32.mrf.mxu0
      %v5251 = vadd.f32 0.0, %v5250
      %v5252 = vpop.f32.mrf.mxu0
      %v5253 = vadd.f32 0.0, %v5252
      %5254 = vmatmul.bf16.gmra.mxu0 %v5034
      %v5255 = vpop.f32.mrf.mxu0
      %v5256 = vadd.f32 0.0, %v5255
      %v5257 = vpop.f32.mrf.mxu0
      %v5258 = vadd.f32 0.0, %v5257
      %5259 = vmatmul.bf16.gmra.mxu0 %v5037
      %v5260 = vpop.f32.mrf.mxu0
      %v5261 = vadd.f32 0.0, %v5260
      %v5262 = vpop.f32.mrf.mxu0
      %v5263 = vadd.f32 0.0, %v5262
      %5264 = vmatmul.bf16.gmra.mxu0 %v5040
      %v5265 = vpop.f32.mrf.mxu0
      %v5266 = vadd.f32 0.0, %v5265
      %v5267 = vpop.f32.mrf.mxu0
      %v5268 = vadd.f32 0.0, %v5267
      %5269 = vmatmul.bf16.gmra.mxu0 %v5043
      %v5270 = vpop.f32.mrf.mxu0
      %v5271 = vadd.f32 0.0, %v5270
      %v5272 = vpop.f32.mrf.mxu0
      %v5273 = vadd.f32 0.0, %v5272
      %5274 = vmatmul.bf16.gmra.mxu0 %v5046
      %v5275 = vpop.f32.mrf.mxu0
      %v5276 = vadd.f32 0.0, %v5275
      %v5277 = vpop.f32.mrf.mxu0
      %v5278 = vadd.f32 0.0, %v5277
      %5279 = vmatmul.bf16.gmra.mxu0 %v5049
      %v5280 = vpop.f32.mrf.mxu0
      %v5281 = vadd.f32 0.0, %v5280
      %v5282 = vpop.f32.mrf.mxu0
      %v5283 = vadd.f32 0.0, %v5282
      %5284 = vmatmul.bf16.gmra.mxu0 %v5052
      %v5285 = vpop.f32.mrf.mxu0
      %v5286 = vadd.f32 0.0, %v5285
      %v5287 = vpop.f32.mrf.mxu0
      %v5288 = vadd.f32 0.0, %v5287
      %5289 = vmatmul.bf16.gmra.mxu0 %v5055
      %v5290 = vpop.f32.mrf.mxu0
      %v5291 = vadd.f32 0.0, %v5290
      %v5292 = vpop.f32.mrf.mxu0
      %v5293 = vadd.f32 0.0, %v5292
      %5294 = vmatmul.bf16.gmra.mxu0 %v5058
      %v5295 = vpop.f32.mrf.mxu0
      %v5296 = vadd.f32 0.0, %v5295
      %v5297 = vpop.f32.mrf.mxu0
      %v5298 = vadd.f32 0.0, %v5297
      %5299 = vmatmul.bf16.gmra.mxu0 %v5061
      %v5300 = vpop.f32.mrf.mxu0
      %v5301 = vadd.f32 0.0, %v5300
      %v5302 = vpop.f32.mrf.mxu0
      %v5303 = vadd.f32 0.0, %v5302
      %5304 = vmatmul.bf16.gmra.mxu0 %v5064
      %v5305 = vpop.f32.mrf.mxu0
      %v5306 = vadd.f32 0.0, %v5305
      %v5307 = vpop.f32.mrf.mxu0
      %v5308 = vadd.f32 0.0, %v5307
      %5309 = vmatmul.bf16.gmra.mxu0 %v5067
      %v5310 = vpop.f32.mrf.mxu0
      %v5311 = vadd.f32 0.0, %v5310
      %v5312 = vpop.f32.mrf.mxu0
      %v5313 = vadd.f32 0.0, %v5312
      %5314 = vmatmul.bf16.gmra.mxu0 %v5070
      %v5315 = vpop.f32.mrf.mxu0
      %v5316 = vadd.f32 0.0, %v5315
      %v5317 = vpop.f32.mrf.mxu0
      %v5318 = vadd.f32 0.0, %v5317
      %5319 = vmatmul.bf16.gmra.mxu0 %v5073
      %v5320 = vpop.f32.mrf.mxu0
      %v5321 = vadd.f32 0.0, %v5320
      %v5322 = vpop.f32.mrf.mxu0
      %v5323 = vadd.f32 0.0, %v5322
      %5324 = vmatmul.bf16.gmra.mxu0 %v5076
      %v5325 = vpop.f32.mrf.mxu0
      %v5326 = vadd.f32 0.0, %v5325
      %v5327 = vpop.f32.mrf.mxu0
      %v5328 = vadd.f32 0.0, %v5327
      %5329 = vmatmul.bf16.gmra.mxu0 %v5079
      %v5330 = vpop.f32.mrf.mxu0
      %v5331 = vadd.f32 0.0, %v5330
      %v5332 = vpop.f32.mrf.mxu0
      %v5333 = vadd.f32 0.0, %v5332
      %5334 = vmatmul.bf16.gmra.mxu0 %v5082
      %v5335 = vpop.f32.mrf.mxu0
      %v5336 = vadd.f32 0.0, %v5335
      %v5337 = vpop.f32.mrf.mxu0
      %v5338 = vadd.f32 0.0, %v5337
      %5339 = vmatmul.bf16.gmra.mxu0 %v5085
      %v5340 = vpop.f32.mrf.mxu0
      %v5341 = vadd.f32 0.0, %v5340
      %v5342 = vpop.f32.mrf.mxu0
      %v5343 = vadd.f32 0.0, %v5342
      %5344 = vmatmul.bf16.gmra.mxu0 %v5088
      %v5345 = vpop.f32.mrf.mxu0
      %v5346 = vadd.f32 0.0, %v5345
      %v5347 = vpop.f32.mrf.mxu0
      %v5348 = vadd.f32 0.0, %v5347
      %5349 = vmatmul.bf16.gmra.mxu0 %v5091
      %v5350 = vpop.f32.mrf.mxu0
      %v5351 = vadd.f32 0.0, %v5350
      %v5352 = vpop.f32.mrf.mxu0
      %v5353 = vadd.f32 0.0, %v5352
      %5354 = vmatmul.bf16.gmra.mxu0 %v5094
      %v5355 = vpop.f32.mrf.mxu0
      %v5356 = vadd.f32 0.0, %v5355
      %v5357 = vpop.f32.mrf.mxu0
      %v5358 = vadd.f32 0.0, %v5357
      %5359 = vmatmul.bf16.gmra.mxu0 %v5097
      %v5360 = vpop.f32.mrf.mxu0
      %v5361 = vadd.f32 0.0, %v5360
      %v5362 = vpop.f32.mrf.mxu0
      %v5363 = vadd.f32 0.0, %v5362
      %5364 = vmatmul.bf16.gmra.mxu0 %v5100
      %v5365 = vpop.f32.mrf.mxu0
      %v5366 = vadd.f32 0.0, %v5365
      %v5367 = vpop.f32.mrf.mxu0
      %v5368 = vadd.f32 0.0, %v5367
      %5369 = vmatmul.bf16.gmra.mxu0 %v5103
      %v5370 = vpop.f32.mrf.mxu0
      %v5371 = vadd.f32 0.0, %v5370
      %v5372 = vpop.f32.mrf.mxu0
      %v5373 = vadd.f32 0.0, %v5372
      %5374 = vmatmul.bf16.gmra.mxu0 %v5106
      %v5375 = vpop.f32.mrf.mxu0
      %v5376 = vadd.f32 0.0, %v5375
      %v5377 = vpop.f32.mrf.mxu0
      %v5378 = vadd.f32 0.0, %v5377
      %5379 = vmatmul.bf16.gmra.mxu0 %v5109
      %v5380 = vpop.f32.mrf.mxu0
      %v5381 = vadd.f32 0.0, %v5380
      %v5382 = vpop.f32.mrf.mxu0
      %v5383 = vadd.f32 0.0, %v5382
      %5384 = vmatmul.bf16.gmra.mxu0 %v5112
      %v5385 = vpop.f32.mrf.mxu0
      %v5386 = vadd.f32 0.0, %v5385
      %v5387 = vpop.f32.mrf.mxu0
      %v5388 = vadd.f32 0.0, %v5387
      %5389 = vmatmul.bf16.gmra.mxu0 %v5115
      %v5390 = vpop.f32.mrf.mxu0
      %v5391 = vadd.f32 0.0, %v5390
      %v5392 = vpop.f32.mrf.mxu0
      %v5393 = vadd.f32 0.0, %v5392
      %5394 = vmatmul.bf16.gmra.mxu0 %v5118
      %v5395 = vpop.f32.mrf.mxu0
      %v5396 = vadd.f32 0.0, %v5395
      %v5397 = vpop.f32.mrf.mxu0
      %v5398 = vadd.f32 0.0, %v5397
      %5399 = vmatmul.bf16.gmra.mxu0 %v5121
      %v5400 = vpop.f32.mrf.mxu0
      %v5401 = vadd.f32 0.0, %v5400
      %v5402 = vpop.f32.mrf.mxu0
      %v5403 = vadd.f32 0.0, %v5402
      %5404 = vmatmul.bf16.gmra.mxu0 %v5124
      %v5405 = vpop.f32.mrf.mxu0
      %v5406 = vadd.f32 0.0, %v5405
      %v5407 = vpop.f32.mrf.mxu0
      %v5408 = vadd.f32 0.0, %v5407
      %5409 = vmatmul.bf16.gmra.mxu0 %v5127
      %v5410 = vpop.f32.mrf.mxu0
      %v5411 = vadd.f32 0.0, %v5410
      %v5412 = vpop.f32.mrf.mxu0
      %v5413 = vadd.f32 0.0, %v5412
      %5414 = vmatmul.bf16.gmra.mxu0 %v5130
      %v5415 = vpop.f32.mrf.mxu0
      %v5416 = vadd.f32 0.0, %v5415
      %v5417 = vpop.f32.mrf.mxu0
      %v5418 = vadd.f32 0.0, %v5417
      %5419 = vmatmul.bf16.gmra.mxu0 %v5133
      %v5420 = vpop.f32.mrf.mxu0
      %v5421 = vadd.f32 0.0, %v5420
      %v5422 = vpop.f32.mrf.mxu0
      %v5423 = vadd.f32 0.0, %v5422
      %5424 = vmatmul.bf16.gmra.mxu0 %v5136
      %v5425 = vpop.f32.mrf.mxu0
      %v5426 = vadd.f32 0.0, %v5425
      %v5427 = vpop.f32.mrf.mxu0
      %v5428 = vadd.f32 0.0, %v5427
      %5429 = vmatmul.bf16.gmra.mxu0 %v5139
      %v5430 = vpop.f32.mrf.mxu0
      %v5431 = vadd.f32 0.0, %v5430
      %v5432 = vpop.f32.mrf.mxu0
      %v5433 = vadd.f32 0.0, %v5432
      %5434 = vmatmul.bf16.gmra.mxu0 %v5142
      %v5435 = vpop.f32.mrf.mxu0
      %v5436 = vadd.f32 0.0, %v5435
      %v5437 = vpop.f32.mrf.mxu0
      %v5438 = vadd.f32 0.0, %v5437
      %5439 = vmatmul.bf16.gmra.mxu0 %v5145
      %v5440 = vpop.f32.mrf.mxu0
      %v5441 = vadd.f32 0.0, %v5440
      %v5442 = vpop.f32.mrf.mxu0
      %v5443 = vadd.f32 0.0, %v5442
      %5444 = vmatmul.bf16.gmra.mxu0 %v5148
      %v5445 = vpop.f32.mrf.mxu0
      %v5446 = vadd.f32 0.0, %v5445
      %v5447 = vpop.f32.mrf.mxu0
      %v5448 = vadd.f32 0.0, %v5447
      %5449 = vmatmul.bf16.gmra.mxu0 %v5151
      %v5450 = vpop.f32.mrf.mxu0
      %v5451 = vadd.f32 0.0, %v5450
      %v5452 = vpop.f32.mrf.mxu0
      %v5453 = vadd.f32 0.0, %v5452
      %5454 = vmatmul.bf16.gmra.mxu0 %v5154
      %v5455 = vpop.f32.mrf.mxu0
      %v5456 = vadd.f32 0.0, %v5455
      %v5457 = vpop.f32.mrf.mxu0
      %v5458 = vadd.f32 0.0, %v5457
      %5459 = vmatmul.bf16.gmra.mxu0 %v5157
      %v5460 = vpop.f32.mrf.mxu0
      %v5461 = vadd.f32 0.0, %v5460
      %v5462 = vpop.f32.mrf.mxu0
      %v5463 = vadd.f32 0.0, %v5462
      %5464 = vmatmul.bf16.gmra.mxu0 %v5160
      %v5465 = vpop.f32.mrf.mxu0
      %v5466 = vadd.f32 0.0, %v5465
      %v5467 = vpop.f32.mrf.mxu0
      %v5468 = vadd.f32 0.0, %v5467
      %5469 = vmatmul.bf16.gmra.mxu0 %v5163
      %v5470 = vpop.f32.mrf.mxu0
      %v5471 = vadd.f32 0.0, %v5470
      %v5472 = vpop.f32.mrf.mxu0
      %v5473 = vadd.f32 0.0, %v5472
      %5474 = vmatmul.bf16.gmra.mxu0 %v5166
      %v5475 = vpop.f32.mrf.mxu0
      %v5476 = vadd.f32 0.0, %v5475
      %v5477 = vpop.f32.mrf.mxu0
      %v5478 = vadd.f32 0.0, %v5477
      %5479 = vmatmul.bf16.gmra.mxu0 %v5169
      %v5480 = vpop.f32.mrf.mxu0
      %v5481 = vadd.f32 0.0, %v5480
      %v5482 = vpop.f32.mrf.mxu0
      %v5483 = vadd.f32 0.0, %v5482
      %5484 = vmatmul.bf16.gmra.mxu0 %v5172
      %v5485 = vpop.f32.mrf.mxu0
      %v5486 = vadd.f32 0.0, %v5485
      %v5487 = vpop.f32.mrf.mxu0
      %v5488 = vadd.f32 0.0, %v5487
      %5489 = vmatmul.bf16.gmra.mxu0 %v5175
      %v5490 = vpop.f32.mrf.mxu0
      %v5491 = vadd.f32 0.0, %v5490
      %v5492 = vpop.f32.mrf.mxu0
      %v5493 = vadd.f32 0.0, %v5492
      %5494 = vmatmul.bf16.gmra.mxu0 %v5178
      %v5495 = vpop.f32.mrf.mxu0
      %v5496 = vadd.f32 0.0, %v5495
      %v5497 = vpop.f32.mrf.mxu0
      %v5498 = vadd.f32 0.0, %v5497
      %5499 = vmatmul.bf16.gmra.mxu0 %v5181
      %v5500 = vpop.f32.mrf.mxu0
      %v5501 = vadd.f32 0.0, %v5500
      %v5502 = vpop.f32.mrf.mxu0
      %v5503 = vadd.f32 0.0, %v5502
      %5504 = vmatmul.bf16.gmra.mxu0 %v5184
      %v5505 = vpop.f32.mrf.mxu0
      %v5506 = vadd.f32 0.0, %v5505
      %v5507 = vpop.f32.mrf.mxu0
      %v5508 = vadd.f32 0.0, %v5507
      %5509 = vmatmul.bf16.gmra.mxu0 %v5187
      %v5510 = vpop.f32.mrf.mxu0
      %v5511 = vadd.f32 0.0, %v5510
      %v5512 = vpop.f32.mrf.mxu0
      %v5513 = vadd.f32 0.0, %v5512
      %5514 = vmatmul.bf16.gmra.mxu0 %v5190
      %v5515 = vpop.f32.mrf.mxu0
      %v5516 = vadd.f32 0.0, %v5515
      %v5517 = vpop.f32.mrf.mxu0
      %v5518 = vadd.f32 0.0, %v5517
      %5519 = vmatmul.bf16.gmra.mxu0 %v5193
      %v5520 = vpop.f32.mrf.mxu0
      %v5521 = vadd.f32 0.0, %v5520
      %v5522 = vpop.f32.mrf.mxu0
      %v5523 = vadd.f32 0.0, %v5522
      %5524 = vmatmul.bf16.gmra.mxu0 %v5196
      %v5525 = vpop.f32.mrf.mxu0
      %v5526 = vadd.f32 0.0, %v5525
      %v5527 = vpop.f32.mrf.mxu0
      %v5528 = vadd.f32 0.0, %v5527
      %5529 = vmatmul.bf16.gmra.mxu0 %v5199
      %v5530 = vpop.f32.mrf.mxu0
      %v5531 = vadd.f32 0.0, %v5530
      %v5532 = vpop.f32.mrf.mxu0
      %v5533 = vadd.f32 0.0, %v5532
      %5534 = vmatmul.bf16.gmra.mxu0 %v5202
      %v5535 = vpop.f32.mrf.mxu0
      %v5536 = vadd.f32 0.0, %v5535
      %v5537 = vpop.f32.mrf.mxu0
      %v5538 = vadd.f32 0.0, %v5537
      %5539 = vmatmul.bf16.gmra.mxu0 %v5205
      %v5540 = vpop.f32.mrf.mxu0
      %v5541 = vadd.f32 0.0, %v5540
      %v5542 = vpop.f32.mrf.mxu0
      %v5543 = vadd.f32 0.0, %v5542
      %5544 = vmatmul.bf16.gmra.mxu0 %v5208
      %v5545 = vpop.f32.mrf.mxu0
      %v5546 = vadd.f32 0.0, %v5545
      %v5547 = vpop.f32.mrf.mxu0
      %v5548 = vadd.f32 0.0, %v5547
      %5549 = vmatmul.bf16.gmra.mxu0 %v5211
      %v5550 = vpop.f32.mrf.mxu0
      %v5551 = vadd.f32 0.0, %v5550
      %v5552 = vpop.f32.mrf.mxu0
      %v5553 = vadd.f32 0.0, %v5552
      %5554 = vmatmul.bf16.gmra.mxu0 %v5214
      %v5555 = vpop.f32.mrf.mxu0
      %v5556 = vadd.f32 0.0, %v5555
      %v5557 = vpop.f32.mrf.mxu0
      %v5558 = vadd.f32 0.0, %v5557
      %5559 = vmatmul.bf16.gmra.mxu0 %v5217
      %v5560 = vpop.f32.mrf.mxu0
      %v5561 = vadd.f32 0.0, %v5560
      %v5562 = vpop.f32.mrf.mxu0
      %v5563 = vadd.f32 0.0, %v5562
      %5564 = vmatmul.bf16.gmra.mxu0 %v5220
      %v5565 = vpop.f32.mrf.mxu0
      %v5566 = vadd.f32 0.0, %v5565
      %v5567 = vpop.f32.mrf.mxu0
      %v5568 = vadd.f32 0.0, %v5567
      %5569 = vmatmul.bf16.gmra.mxu0 %v5223
      %v5570 = vpop.f32.mrf.mxu0
      %v5571 = vadd.f32 0.0, %v5570
      %v5572 = vpop.f32.mrf.mxu0
      %v5573 = vadd.f32 0.0, %v5572
      %5574 = vmatmul.bf16.gmra.mxu0 %v5226
      %v5575 = vpop.f32.mrf.mxu0
      %v5576 = vadd.f32 0.0, %v5575
      %v5577 = vpop.f32.mrf.mxu0
      %v5578 = vadd.f32 0.0, %v5577
      %5579 = vdwg.mxu0
      %v5580 = vadd.f32 %v4261, %v5241
      %v5581 = vadd.f32 %v4262, %v5243
      %v5582 = vadd.f32 %v4263, %v5246
      %v5583 = vadd.f32 %v4264, %v5248
      %v5584 = vadd.f32 %v4265, %v5251
      %v5585 = vadd.f32 %v4266, %v5253
      %v5586 = vadd.f32 %v4267, %v5256
      %v5587 = vadd.f32 %v4268, %v5258
      %v5588 = vadd.f32 %v4269, %v5261
      %v5589 = vadd.f32 %v4270, %v5263
      %v5590 = vadd.f32 %v4271, %v5266
      %v5591 = vadd.f32 %v4272, %v5268
      %v5592 = vadd.f32 %v4273, %v5271
      %v5593 = vadd.f32 %v4274, %v5273
      %v5594 = vadd.f32 %v4275, %v5276
      %v5595 = vadd.f32 %v4276, %v5278
      %v5596 = vadd.f32 %v4277, %v5281
      %v5597 = vadd.f32 %v4278, %v5283
      %v5598 = vadd.f32 %v4279, %v5286
      %v5599 = vadd.f32 %v4280, %v5288
      %v5600 = vadd.f32 %v4281, %v5291
      %v5601 = vadd.f32 %v4282, %v5293
      %v5602 = vadd.f32 %v4283, %v5296
      %v5603 = vadd.f32 %v4284, %v5298
      %v5604 = vadd.f32 %v4285, %v5301
      %v5605 = vadd.f32 %v4286, %v5303
      %v5606 = vadd.f32 %v4287, %v5306
      %v5607 = vadd.f32 %v4288, %v5308
      %v5608 = vadd.f32 %v4289, %v5311
      %v5609 = vadd.f32 %v4290, %v5313
      %v5610 = vadd.f32 %v4291, %v5316
      %v5611 = vadd.f32 %v4292, %v5318
      %v5612 = vadd.f32 %v4293, %v5321
      %v5613 = vadd.f32 %v4294, %v5323
      %v5614 = vadd.f32 %v4295, %v5326
      %v5615 = vadd.f32 %v4296, %v5328
      %v5616 = vadd.f32 %v4297, %v5331
      %v5617 = vadd.f32 %v4298, %v5333
      %v5618 = vadd.f32 %v4299, %v5336
      %v5619 = vadd.f32 %v4300, %v5338
      %v5620 = vadd.f32 %v4301, %v5341
      %v5621 = vadd.f32 %v4302, %v5343
      %v5622 = vadd.f32 %v4303, %v5346
      %v5623 = vadd.f32 %v4304, %v5348
      %v5624 = vadd.f32 %v4305, %v5351
      %v5625 = vadd.f32 %v4306, %v5353
      %v5626 = vadd.f32 %v4307, %v5356
      %v5627 = vadd.f32 %v4308, %v5358
      %v5628 = vadd.f32 %v4309, %v5361
      %v5629 = vadd.f32 %v4310, %v5363
      %v5630 = vadd.f32 %v4311, %v5366
      %v5631 = vadd.f32 %v4312, %v5368
      %v5632 = vadd.f32 %v4313, %v5371
      %v5633 = vadd.f32 %v4314, %v5373
      %v5634 = vadd.f32 %v4315, %v5376
      %v5635 = vadd.f32 %v4316, %v5378
      %v5636 = vadd.f32 %v4317, %v5381
      %v5637 = vadd.f32 %v4318, %v5383
      %v5638 = vadd.f32 %v4319, %v5386
      %v5639 = vadd.f32 %v4320, %v5388
      %v5640 = vadd.f32 %v4321, %v5391
      %v5641 = vadd.f32 %v4322, %v5393
      %v5642 = vadd.f32 %v4323, %v5396
      %v5643 = vadd.f32 %v4324, %v5398
      %v5644 = vadd.f32 %v4325, %v5401
      %v5645 = vadd.f32 %v4326, %v5403
      %v5646 = vadd.f32 %v4327, %v5406
      %v5647 = vadd.f32 %v4328, %v5408
      %v5648 = vadd.f32 %v4329, %v5411
      %v5649 = vadd.f32 %v4330, %v5413
      %v5650 = vadd.f32 %v4331, %v5416
      %v5651 = vadd.f32 %v4332, %v5418
      %v5652 = vadd.f32 %v4333, %v5421
      %v5653 = vadd.f32 %v4334, %v5423
      %v5654 = vadd.f32 %v4335, %v5426
      %v5655 = vadd.f32 %v4336, %v5428
      %v5656 = vadd.f32 %v4337, %v5431
      %v5657 = vadd.f32 %v4338, %v5433
      %v5658 = vadd.f32 %v4339, %v5436
      %v5659 = vadd.f32 %v4340, %v5438
      %v5660 = vadd.f32 %v4341, %v5441
      %v5661 = vadd.f32 %v4342, %v5443
      %v5662 = vadd.f32 %v4343, %v5446
      %v5663 = vadd.f32 %v4344, %v5448
      %v5664 = vadd.f32 %v4345, %v5451
      %v5665 = vadd.f32 %v4346, %v5453
      %v5666 = vadd.f32 %v4347, %v5456
      %v5667 = vadd.f32 %v4348, %v5458
      %v5668 = vadd.f32 %v4349, %v5461
      %v5669 = vadd.f32 %v4350, %v5463
      %v5670 = vadd.f32 %v4351, %v5466
      %v5671 = vadd.f32 %v4352, %v5468
      %v5672 = vadd.f32 %v4353, %v5471
      %v5673 = vadd.f32 %v4354, %v5473
      %v5674 = vadd.f32 %v4355, %v5476
      %v5675 = vadd.f32 %v4356, %v5478
      %v5676 = vadd.f32 %v4357, %v5481
      %v5677 = vadd.f32 %v4358, %v5483
      %v5678 = vadd.f32 %v4359, %v5486
      %v5679 = vadd.f32 %v4360, %v5488
      %v5680 = vadd.f32 %v4361, %v5491
      %v5681 = vadd.f32 %v4362, %v5493
      %v5682 = vadd.f32 %v4363, %v5496
      %v5683 = vadd.f32 %v4364, %v5498
      %v5684 = vadd.f32 %v4365, %v5501
      %v5685 = vadd.f32 %v4366, %v5503
      %v5686 = vadd.f32 %v4367, %v5506
      %v5687 = vadd.f32 %v4368, %v5508
      %v5688 = vadd.f32 %v4369, %v5511
      %v5689 = vadd.f32 %v4370, %v5513
      %v5690 = vadd.f32 %v4371, %v5516
      %v5691 = vadd.f32 %v4372, %v5518
      %v5692 = vadd.f32 %v4373, %v5521
      %v5693 = vadd.f32 %v4374, %v5523
      %v5694 = vadd.f32 %v4375, %v5526
      %v5695 = vadd.f32 %v4376, %v5528
      %v5696 = vadd.f32 %v4377, %v5531
      %v5697 = vadd.f32 %v4378, %v5533
      %v5698 = vadd.f32 %v4379, %v5536
      %v5699 = vadd.f32 %v4380, %v5538
      %v5700 = vadd.f32 %v4381, %v5541
      %v5701 = vadd.f32 %v4382, %v5543
      %v5702 = vadd.f32 %v4383, %v5546
      %v5703 = vadd.f32 %v4384, %v5548
      %v5704 = vadd.f32 %v4385, %v5551
      %v5705 = vadd.f32 %v4386, %v5553
      %v5706 = vadd.f32 %v4387, %v5556
      %v5707 = vadd.f32 %v4388, %v5558
      %v5708 = vadd.f32 %v4389, %v5561
      %v5709 = vadd.f32 %v4390, %v5563
      %v5710 = vadd.f32 %v4391, %v5566
      %v5711 = vadd.f32 %v4392, %v5568
      %v5712 = vadd.f32 %v4393, %v5571
      %v5713 = vadd.f32 %v4394, %v5573
      %v5714 = vadd.f32 %v4395, %v5576
      %v5715 = vadd.f32 %v4396, %v5578
      %v5716 = vld [vmem:[%s165 + $0x10] sm:$0xc]
      %s5717 = scalar_lea.vmem %s1, 20
      %v5718 = vld [vmem:[%s5717] sm:$0xf]
      %v5720 = vunpack.c.l.b16 %v5716
      %v5721 = vpack.c.b16 %v3363, %v5720
      %vm5722 = vcmask 1045504
      %v5723 = vrot.slane %v5721, 2
      %v5724 = vrot.slane %v3500, 2
      %v5725 = vsel %vm5722, %v5723, %v5724
      %v5726 = vrot.slane %v3501, 2
      %v5727 = vsel %vm5722, %v5724, %v5726
      %v5728 = vrot.slane %v3502, 2
      %v5729 = vsel %vm5722, %v5726, %v5728
      %v5730 = vrot.slane %v3503, 2
      %v5731 = vsel %vm5722, %v5728, %v5730
      %v5732 = vrot.slane %v3504, 2
      %v5733 = vsel %vm5722, %v5730, %v5732
      %v5734 = vrot.slane %v3505, 2
      %v5735 = vsel %vm5722, %v5732, %v5734
      %v5736 = vrot.slane %v3506, 2
      %v5737 = vsel %vm5722, %v5734, %v5736
      %v5738 = vrot.slane %v3507, 2
      %v5739 = vsel %vm5722, %v5736, %v5738
      %v5740 = vrot.slane %v3508, 2
      %v5741 = vsel %vm5722, %v5738, %v5740
      %v5742 = vrot.slane %v3509, 2
      %v5743 = vsel %vm5722, %v5740, %v5742
      %v5744 = vrot.slane %v3510, 2
      %v5745 = vsel %vm5722, %v5742, %v5744
      %v5746 = vrot.slane %v3511, 2
      %v5747 = vsel %vm5722, %v5744, %v5746
      %v5748 = vrot.slane %v3512, 2
      %v5749 = vsel %vm5722, %v5746, %v5748
      %v5750 = vrot.slane %v3513, 2
      %v5751 = vsel %vm5722, %v5748, %v5750
      %v5752 = vrot.slane %v3514, 2
      %v5753 = vsel %vm5722, %v5750, %v5752
      %v5754 = vrot.slane %v3515, 2
      %v5755 = vsel %vm5722, %v5752, %v5754
      %v5756 = vrot.slane %v3516, 2
      %v5757 = vsel %vm5722, %v5754, %v5756
      %v5758 = vrot.slane %v3517, 2
      %v5759 = vsel %vm5722, %v5756, %v5758
      %v5760 = vrot.slane %v3518, 2
      %v5761 = vsel %vm5722, %v5758, %v5760
      %v5762 = vrot.slane %v3519, 2
      %v5763 = vsel %vm5722, %v5760, %v5762
      %v5764 = vrot.slane %v3520, 2
      %v5765 = vsel %vm5722, %v5762, %v5764
      %v5766 = vrot.slane %v3521, 2
      %v5767 = vsel %vm5722, %v5764, %v5766
      %v5768 = vrot.slane %v3522, 2
      %v5769 = vsel %vm5722, %v5766, %v5768
      %v5770 = vrot.slane %v3523, 2
      %v5771 = vsel %vm5722, %v5768, %v5770
      %v5772 = vrot.slane %v3524, 2
      %v5773 = vsel %vm5722, %v5770, %v5772
      %v5774 = vrot.slane %v3525, 2
      %v5775 = vsel %vm5722, %v5772, %v5774
      %v5776 = vrot.slane %v3526, 2
      %v5777 = vsel %vm5722, %v5774, %v5776
      %v5778 = vrot.slane %v3527, 2
      %v5779 = vsel %vm5722, %v5776, %v5778
      %v5780 = vrot.slane %v3528, 2
      %v5781 = vsel %vm5722, %v5778, %v5780
      %v5782 = vrot.slane %v3529, 2
      %v5783 = vsel %vm5722, %v5780, %v5782
      %v5784 = vrot.slane %v3530, 2
      %v5785 = vsel %vm5722, %v5782, %v5784
      %v5786 = vrot.slane %v3531, 2
      %v5787 = vsel %vm5722, %v5784, %v5786
      %v5788 = vrot.slane %v3532, 2
      %v5789 = vsel %vm5722, %v5786, %v5788
      %v5790 = vrot.slane %v3533, 2
      %v5791 = vsel %vm5722, %v5788, %v5790
      %v5792 = vrot.slane %v3534, 2
      %v5793 = vsel %vm5722, %v5790, %v5792
      %v5794 = vrot.slane %v3535, 2
      %v5795 = vsel %vm5722, %v5792, %v5794
      %v5796 = vrot.slane %v3536, 2
      %v5797 = vsel %vm5722, %v5794, %v5796
      %v5798 = vrot.slane %v3537, 2
      %v5799 = vsel %vm5722, %v5796, %v5798
      %v5800 = vrot.slane %v3538, 2
      %v5801 = vsel %vm5722, %v5798, %v5800
      %v5802 = vrot.slane %v3539, 2
      %v5803 = vsel %vm5722, %v5800, %v5802
      %v5804 = vrot.slane %v3540, 2
      %v5805 = vsel %vm5722, %v5802, %v5804
      %v5806 = vrot.slane %v3541, 2
      %v5807 = vsel %vm5722, %v5804, %v5806
      %v5808 = vrot.slane %v3542, 2
      %v5809 = vsel %vm5722, %v5806, %v5808
      %v5810 = vrot.slane %v3543, 2
      %v5811 = vsel %vm5722, %v5808, %v5810
      %v5812 = vrot.slane %v3544, 2
      %v5813 = vsel %vm5722, %v5810, %v5812
      %v5814 = vrot.slane %v3545, 2
      %v5815 = vsel %vm5722, %v5812, %v5814
      %v5816 = vrot.slane %v3546, 2
      %v5817 = vsel %vm5722, %v5814, %v5816
      %v5818 = vrot.slane %v3547, 2
      %v5819 = vsel %vm5722, %v5816, %v5818
      %v5820 = vrot.slane %v3548, 2
      %v5821 = vsel %vm5722, %v5818, %v5820
      %v5822 = vrot.slane %v3549, 2
      %v5823 = vsel %vm5722, %v5820, %v5822
      %v5824 = vrot.slane %v3550, 2
      %v5825 = vsel %vm5722, %v5822, %v5824
      %v5826 = vrot.slane %v3551, 2
      %v5827 = vsel %vm5722, %v5824, %v5826
      %v5828 = vrot.slane %v3552, 2
      %v5829 = vsel %vm5722, %v5826, %v5828
      %v5830 = vrot.slane %v3553, 2
      %v5831 = vsel %vm5722, %v5828, %v5830
      %v5832 = vrot.slane %v3554, 2
      %v5833 = vsel %vm5722, %v5830, %v5832
      %v5834 = vrot.slane %v3555, 2
      %v5835 = vsel %vm5722, %v5832, %v5834
      %v5836 = vrot.slane %v3556, 2
      %v5837 = vsel %vm5722, %v5834, %v5836
      %v5838 = vrot.slane %v3557, 2
      %v5839 = vsel %vm5722, %v5836, %v5838
      %v5840 = vrot.slane %v3558, 2
      %v5841 = vsel %vm5722, %v5838, %v5840
      %v5842 = vrot.slane %v3559, 2
      %v5843 = vsel %vm5722, %v5840, %v5842
      %v5844 = vrot.slane %v3560, 2
      %v5845 = vsel %vm5722, %v5842, %v5844
      %v5846 = vrot.slane %v3561, 2
      %v5847 = vsel %vm5722, %v5844, %v5846
      %v5848 = vrot.slane %v3562, 2
      %v5849 = vsel %vm5722, %v5846, %v5848
      %v5850 = vrot.slane %v3563, 2
      %v5851 = vsel %vm5722, %v5848, %v5850
      %v5852 = vrot.slane %v3564, 2
      %v5853 = vsel %vm5722, %v5850, %v5852
      %v5854 = vrot.slane %v3565, 2
      %v5855 = vsel %vm5722, %v5852, %v5854
      %v5856 = vrot.slane %v3566, 2
      %v5857 = vsel %vm5722, %v5854, %v5856
      %v5858 = vrot.slane %v4402, 2
      %v5859 = vsel %vm5722, %v5856, %v5858
      %v5861 = vsel %vm1204, %v5725, 0
      %v5864 = vsel %vm1204, %v5727, 0
      %v5867 = vsel %vm1204, %v5729, 0
      %v5870 = vsel %vm1204, %v5731, 0
      %v5873 = vsel %vm1204, %v5733, 0
      %v5876 = vsel %vm1204, %v5735, 0
      %v5879 = vsel %vm1204, %v5737, 0
      %v5882 = vsel %vm1204, %v5739, 0
      %v5885 = vsel %vm1204, %v5741, 0
      %v5888 = vsel %vm1204, %v5743, 0
      %v5891 = vsel %vm1204, %v5745, 0
      %v5894 = vsel %vm1204, %v5747, 0
      %v5897 = vsel %vm1204, %v5749, 0
      %v5900 = vsel %vm1204, %v5751, 0
      %v5903 = vsel %vm1204, %v5753, 0
      %v5906 = vsel %vm1204, %v5755, 0
      %v5909 = vsel %vm1204, %v5757, 0
      %v5912 = vsel %vm1204, %v5759, 0
      %v5915 = vsel %vm1204, %v5761, 0
      %v5918 = vsel %vm1204, %v5763, 0
      %v5921 = vsel %vm1204, %v5765, 0
      %v5924 = vsel %vm1204, %v5767, 0
      %v5927 = vsel %vm1204, %v5769, 0
      %v5930 = vsel %vm1204, %v5771, 0
      %v5933 = vsel %vm1204, %v5773, 0
      %v5936 = vsel %vm1204, %v5775, 0
      %v5939 = vsel %vm1204, %v5777, 0
      %v5942 = vsel %vm1204, %v5779, 0
      %v5945 = vsel %vm1204, %v5781, 0
      %v5948 = vsel %vm1204, %v5783, 0
      %v5951 = vsel %vm1204, %v5785, 0
      %v5954 = vsel %vm1204, %v5787, 0
      %v5957 = vsel %vm1204, %v5789, 0
      %v5960 = vsel %vm1204, %v5791, 0
      %v5963 = vsel %vm1204, %v5793, 0
      %v5966 = vsel %vm1204, %v5795, 0
      %v5969 = vsel %vm1204, %v5797, 0
      %v5972 = vsel %vm1204, %v5799, 0
      %v5975 = vsel %vm1204, %v5801, 0
      %v5978 = vsel %vm1204, %v5803, 0
      %v5981 = vsel %vm1204, %v5805, 0
      %v5984 = vsel %vm1204, %v5807, 0
      %v5987 = vsel %vm1204, %v5809, 0
      %v5990 = vsel %vm1204, %v5811, 0
      %v5993 = vsel %vm1204, %v5813, 0
      %v5996 = vsel %vm1204, %v5815, 0
      %v5999 = vsel %vm1204, %v5817, 0
      %v6002 = vsel %vm1204, %v5819, 0
      %v6005 = vsel %vm1204, %v5821, 0
      %v6008 = vsel %vm1204, %v5823, 0
      %v6011 = vsel %vm1204, %v5825, 0
      %v6014 = vsel %vm1204, %v5827, 0
      %v6017 = vsel %vm1204, %v5829, 0
      %v6020 = vsel %vm1204, %v5831, 0
      %v6023 = vsel %vm1204, %v5833, 0
      %v6026 = vsel %vm1204, %v5835, 0
      %v6029 = vsel %vm1204, %v5837, 0
      %v6032 = vsel %vm1204, %v5839, 0
      %v6035 = vsel %vm1204, %v5841, 0
      %v6038 = vsel %vm1204, %v5843, 0
      %v6041 = vsel %vm1204, %v5845, 0
      %v6044 = vsel %vm1204, %v5847, 0
      %v6047 = vsel %vm1204, %v5849, 0
      %v6050 = vsel %vm1204, %v5851, 0
      %v6053 = vsel %vm1204, %v5853, 0
      %v6056 = vsel %vm1204, %v5855, 0
      %v6059 = vsel %vm1204, %v5857, 0
      %v6062 = vsel %vm1204, %v5859, 0
      %v6065 = vsel %vm1409, %v5718, 0
      %6067 = vmatpush.bf16.msra.mxu0 0
      %6068 = vmatpush.bf16.msra.mxu0 0
      %6069 = vmatpush.bf16.msra.mxu0 0
      %6070 = vmatpush.bf16.msra.mxu0 0
      %6071 = vmatpush.bf16.msra.mxu0 0
      %6072 = vmatpush.bf16.msra.mxu0 0
      %6073 = vmatpush.bf16.msra.mxu0 0
      %6074 = vmatpush.bf16.msra.mxu0 %v6065
      %6075 = vmatmul.bf16.gmra.mxu0 %v5861
      %v6076 = vpop.f32.mrf.mxu0
      %v6077 = vadd.f32 0.0, %v6076
      %v6078 = vpop.f32.mrf.mxu0
      %v6079 = vadd.f32 0.0, %v6078
      %6080 = vmatmul.bf16.gmra.mxu0 %v5864
      %v6081 = vpop.f32.mrf.mxu0
      %v6082 = vadd.f32 0.0, %v6081
      %v6083 = vpop.f32.mrf.mxu0
      %v6084 = vadd.f32 0.0, %v6083
      %6085 = vmatmul.bf16.gmra.mxu0 %v5867
      %v6086 = vpop.f32.mrf.mxu0
      %v6087 = vadd.f32 0.0, %v6086
      %v6088 = vpop.f32.mrf.mxu0
      %v6089 = vadd.f32 0.0, %v6088
      %6090 = vmatmul.bf16.gmra.mxu0 %v5870
      %v6091 = vpop.f32.mrf.mxu0
      %v6092 = vadd.f32 0.0, %v6091
      %v6093 = vpop.f32.mrf.mxu0
      %v6094 = vadd.f32 0.0, %v6093
      %6095 = vmatmul.bf16.gmra.mxu0 %v5873
      %v6096 = vpop.f32.mrf.mxu0
      %v6097 = vadd.f32 0.0, %v6096
      %v6098 = vpop.f32.mrf.mxu0
      %v6099 = vadd.f32 0.0, %v6098
      %6100 = vmatmul.bf16.gmra.mxu0 %v5876
      %v6101 = vpop.f32.mrf.mxu0
      %v6102 = vadd.f32 0.0, %v6101
      %v6103 = vpop.f32.mrf.mxu0
      %v6104 = vadd.f32 0.0, %v6103
      %6105 = vmatmul.bf16.gmra.mxu0 %v5879
      %v6106 = vpop.f32.mrf.mxu0
      %v6107 = vadd.f32 0.0, %v6106
      %v6108 = vpop.f32.mrf.mxu0
      %v6109 = vadd.f32 0.0, %v6108
      %6110 = vmatmul.bf16.gmra.mxu0 %v5882
      %v6111 = vpop.f32.mrf.mxu0
      %v6112 = vadd.f32 0.0, %v6111
      %v6113 = vpop.f32.mrf.mxu0
      %v6114 = vadd.f32 0.0, %v6113
      %6115 = vmatmul.bf16.gmra.mxu0 %v5885
      %v6116 = vpop.f32.mrf.mxu0
      %v6117 = vadd.f32 0.0, %v6116
      %v6118 = vpop.f32.mrf.mxu0
      %v6119 = vadd.f32 0.0, %v6118
      %6120 = vmatmul.bf16.gmra.mxu0 %v5888
      %v6121 = vpop.f32.mrf.mxu0
      %v6122 = vadd.f32 0.0, %v6121
      %v6123 = vpop.f32.mrf.mxu0
      %v6124 = vadd.f32 0.0, %v6123
      %6125 = vmatmul.bf16.gmra.mxu0 %v5891
      %v6126 = vpop.f32.mrf.mxu0
      %v6127 = vadd.f32 0.0, %v6126
      %v6128 = vpop.f32.mrf.mxu0
      %v6129 = vadd.f32 0.0, %v6128
      %6130 = vmatmul.bf16.gmra.mxu0 %v5894
      %v6131 = vpop.f32.mrf.mxu0
      %v6132 = vadd.f32 0.0, %v6131
      %v6133 = vpop.f32.mrf.mxu0
      %v6134 = vadd.f32 0.0, %v6133
      %6135 = vmatmul.bf16.gmra.mxu0 %v5897
      %v6136 = vpop.f32.mrf.mxu0
      %v6137 = vadd.f32 0.0, %v6136
      %v6138 = vpop.f32.mrf.mxu0
      %v6139 = vadd.f32 0.0, %v6138
      %6140 = vmatmul.bf16.gmra.mxu0 %v5900
      %v6141 = vpop.f32.mrf.mxu0
      %v6142 = vadd.f32 0.0, %v6141
      %v6143 = vpop.f32.mrf.mxu0
      %v6144 = vadd.f32 0.0, %v6143
      %6145 = vmatmul.bf16.gmra.mxu0 %v5903
      %v6146 = vpop.f32.mrf.mxu0
      %v6147 = vadd.f32 0.0, %v6146
      %v6148 = vpop.f32.mrf.mxu0
      %v6149 = vadd.f32 0.0, %v6148
      %6150 = vmatmul.bf16.gmra.mxu0 %v5906
      %v6151 = vpop.f32.mrf.mxu0
      %v6152 = vadd.f32 0.0, %v6151
      %v6153 = vpop.f32.mrf.mxu0
      %v6154 = vadd.f32 0.0, %v6153
      %6155 = vmatmul.bf16.gmra.mxu0 %v5909
      %v6156 = vpop.f32.mrf.mxu0
      %v6157 = vadd.f32 0.0, %v6156
      %v6158 = vpop.f32.mrf.mxu0
      %v6159 = vadd.f32 0.0, %v6158
      %6160 = vmatmul.bf16.gmra.mxu0 %v5912
      %v6161 = vpop.f32.mrf.mxu0
      %v6162 = vadd.f32 0.0, %v6161
      %v6163 = vpop.f32.mrf.mxu0
      %v6164 = vadd.f32 0.0, %v6163
      %6165 = vmatmul.bf16.gmra.mxu0 %v5915
      %v6166 = vpop.f32.mrf.mxu0
      %v6167 = vadd.f32 0.0, %v6166
      %v6168 = vpop.f32.mrf.mxu0
      %v6169 = vadd.f32 0.0, %v6168
      %6170 = vmatmul.bf16.gmra.mxu0 %v5918
      %v6171 = vpop.f32.mrf.mxu0
      %v6172 = vadd.f32 0.0, %v6171
      %v6173 = vpop.f32.mrf.mxu0
      %v6174 = vadd.f32 0.0, %v6173
      %6175 = vmatmul.bf16.gmra.mxu0 %v5921
      %v6176 = vpop.f32.mrf.mxu0
      %v6177 = vadd.f32 0.0, %v6176
      %v6178 = vpop.f32.mrf.mxu0
      %v6179 = vadd.f32 0.0, %v6178
      %6180 = vmatmul.bf16.gmra.mxu0 %v5924
      %v6181 = vpop.f32.mrf.mxu0
      %v6182 = vadd.f32 0.0, %v6181
      %v6183 = vpop.f32.mrf.mxu0
      %v6184 = vadd.f32 0.0, %v6183
      %6185 = vmatmul.bf16.gmra.mxu0 %v5927
      %v6186 = vpop.f32.mrf.mxu0
      %v6187 = vadd.f32 0.0, %v6186
      %v6188 = vpop.f32.mrf.mxu0
      %v6189 = vadd.f32 0.0, %v6188
      %6190 = vmatmul.bf16.gmra.mxu0 %v5930
      %v6191 = vpop.f32.mrf.mxu0
      %v6192 = vadd.f32 0.0, %v6191
      %v6193 = vpop.f32.mrf.mxu0
      %v6194 = vadd.f32 0.0, %v6193
      %6195 = vmatmul.bf16.gmra.mxu0 %v5933
      %v6196 = vpop.f32.mrf.mxu0
      %v6197 = vadd.f32 0.0, %v6196
      %v6198 = vpop.f32.mrf.mxu0
      %v6199 = vadd.f32 0.0, %v6198
      %6200 = vmatmul.bf16.gmra.mxu0 %v5936
      %v6201 = vpop.f32.mrf.mxu0
      %v6202 = vadd.f32 0.0, %v6201
      %v6203 = vpop.f32.mrf.mxu0
      %v6204 = vadd.f32 0.0, %v6203
      %6205 = vmatmul.bf16.gmra.mxu0 %v5939
      %v6206 = vpop.f32.mrf.mxu0
      %v6207 = vadd.f32 0.0, %v6206
      %v6208 = vpop.f32.mrf.mxu0
      %v6209 = vadd.f32 0.0, %v6208
      %6210 = vmatmul.bf16.gmra.mxu0 %v5942
      %v6211 = vpop.f32.mrf.mxu0
      %v6212 = vadd.f32 0.0, %v6211
      %v6213 = vpop.f32.mrf.mxu0
      %v6214 = vadd.f32 0.0, %v6213
      %6215 = vmatmul.bf16.gmra.mxu0 %v5945
      %v6216 = vpop.f32.mrf.mxu0
      %v6217 = vadd.f32 0.0, %v6216
      %v6218 = vpop.f32.mrf.mxu0
      %v6219 = vadd.f32 0.0, %v6218
      %6220 = vmatmul.bf16.gmra.mxu0 %v5948
      %v6221 = vpop.f32.mrf.mxu0
      %v6222 = vadd.f32 0.0, %v6221
      %v6223 = vpop.f32.mrf.mxu0
      %v6224 = vadd.f32 0.0, %v6223
      %6225 = vmatmul.bf16.gmra.mxu0 %v5951
      %v6226 = vpop.f32.mrf.mxu0
      %v6227 = vadd.f32 0.0, %v6226
      %v6228 = vpop.f32.mrf.mxu0
      %v6229 = vadd.f32 0.0, %v6228
      %6230 = vmatmul.bf16.gmra.mxu0 %v5954
      %v6231 = vpop.f32.mrf.mxu0
      %v6232 = vadd.f32 0.0, %v6231
      %v6233 = vpop.f32.mrf.mxu0
      %v6234 = vadd.f32 0.0, %v6233
      %6235 = vmatmul.bf16.gmra.mxu0 %v5957
      %v6236 = vpop.f32.mrf.mxu0
      %v6237 = vadd.f32 0.0, %v6236
      %v6238 = vpop.f32.mrf.mxu0
      %v6239 = vadd.f32 0.0, %v6238
      %6240 = vmatmul.bf16.gmra.mxu0 %v5960
      %v6241 = vpop.f32.mrf.mxu0
      %v6242 = vadd.f32 0.0, %v6241
      %v6243 = vpop.f32.mrf.mxu0
      %v6244 = vadd.f32 0.0, %v6243
      %6245 = vmatmul.bf16.gmra.mxu0 %v5963
      %v6246 = vpop.f32.mrf.mxu0
      %v6247 = vadd.f32 0.0, %v6246
      %v6248 = vpop.f32.mrf.mxu0
      %v6249 = vadd.f32 0.0, %v6248
      %6250 = vmatmul.bf16.gmra.mxu0 %v5966
      %v6251 = vpop.f32.mrf.mxu0
      %v6252 = vadd.f32 0.0, %v6251
      %v6253 = vpop.f32.mrf.mxu0
      %v6254 = vadd.f32 0.0, %v6253
      %6255 = vmatmul.bf16.gmra.mxu0 %v5969
      %v6256 = vpop.f32.mrf.mxu0
      %v6257 = vadd.f32 0.0, %v6256
      %v6258 = vpop.f32.mrf.mxu0
      %v6259 = vadd.f32 0.0, %v6258
      %6260 = vmatmul.bf16.gmra.mxu0 %v5972
      %v6261 = vpop.f32.mrf.mxu0
      %v6262 = vadd.f32 0.0, %v6261
      %v6263 = vpop.f32.mrf.mxu0
      %v6264 = vadd.f32 0.0, %v6263
      %6265 = vmatmul.bf16.gmra.mxu0 %v5975
      %v6266 = vpop.f32.mrf.mxu0
      %v6267 = vadd.f32 0.0, %v6266
      %v6268 = vpop.f32.mrf.mxu0
      %v6269 = vadd.f32 0.0, %v6268
      %6270 = vmatmul.bf16.gmra.mxu0 %v5978
      %v6271 = vpop.f32.mrf.mxu0
      %v6272 = vadd.f32 0.0, %v6271
      %v6273 = vpop.f32.mrf.mxu0
      %v6274 = vadd.f32 0.0, %v6273
      %6275 = vmatmul.bf16.gmra.mxu0 %v5981
      %v6276 = vpop.f32.mrf.mxu0
      %v6277 = vadd.f32 0.0, %v6276
      %v6278 = vpop.f32.mrf.mxu0
      %v6279 = vadd.f32 0.0, %v6278
      %6280 = vmatmul.bf16.gmra.mxu0 %v5984
      %v6281 = vpop.f32.mrf.mxu0
      %v6282 = vadd.f32 0.0, %v6281
      %v6283 = vpop.f32.mrf.mxu0
      %v6284 = vadd.f32 0.0, %v6283
      %6285 = vmatmul.bf16.gmra.mxu0 %v5987
      %v6286 = vpop.f32.mrf.mxu0
      %v6287 = vadd.f32 0.0, %v6286
      %v6288 = vpop.f32.mrf.mxu0
      %v6289 = vadd.f32 0.0, %v6288
      %6290 = vmatmul.bf16.gmra.mxu0 %v5990
      %v6291 = vpop.f32.mrf.mxu0
      %v6292 = vadd.f32 0.0, %v6291
      %v6293 = vpop.f32.mrf.mxu0
      %v6294 = vadd.f32 0.0, %v6293
      %6295 = vmatmul.bf16.gmra.mxu0 %v5993
      %v6296 = vpop.f32.mrf.mxu0
      %v6297 = vadd.f32 0.0, %v6296
      %v6298 = vpop.f32.mrf.mxu0
      %v6299 = vadd.f32 0.0, %v6298
      %6300 = vmatmul.bf16.gmra.mxu0 %v5996
      %v6301 = vpop.f32.mrf.mxu0
      %v6302 = vadd.f32 0.0, %v6301
      %v6303 = vpop.f32.mrf.mxu0
      %v6304 = vadd.f32 0.0, %v6303
      %6305 = vmatmul.bf16.gmra.mxu0 %v5999
      %v6306 = vpop.f32.mrf.mxu0
      %v6307 = vadd.f32 0.0, %v6306
      %v6308 = vpop.f32.mrf.mxu0
      %v6309 = vadd.f32 0.0, %v6308
      %6310 = vmatmul.bf16.gmra.mxu0 %v6002
      %v6311 = vpop.f32.mrf.mxu0
      %v6312 = vadd.f32 0.0, %v6311
      %v6313 = vpop.f32.mrf.mxu0
      %v6314 = vadd.f32 0.0, %v6313
      %6315 = vmatmul.bf16.gmra.mxu0 %v6005
      %v6316 = vpop.f32.mrf.mxu0
      %v6317 = vadd.f32 0.0, %v6316
      %v6318 = vpop.f32.mrf.mxu0
      %v6319 = vadd.f32 0.0, %v6318
      %6320 = vmatmul.bf16.gmra.mxu0 %v6008
      %v6321 = vpop.f32.mrf.mxu0
      %v6322 = vadd.f32 0.0, %v6321
      %v6323 = vpop.f32.mrf.mxu0
      %v6324 = vadd.f32 0.0, %v6323
      %6325 = vmatmul.bf16.gmra.mxu0 %v6011
      %v6326 = vpop.f32.mrf.mxu0
      %v6327 = vadd.f32 0.0, %v6326
      %v6328 = vpop.f32.mrf.mxu0
      %v6329 = vadd.f32 0.0, %v6328
      %6330 = vmatmul.bf16.gmra.mxu0 %v6014
      %v6331 = vpop.f32.mrf.mxu0
      %v6332 = vadd.f32 0.0, %v6331
      %v6333 = vpop.f32.mrf.mxu0
      %v6334 = vadd.f32 0.0, %v6333
      %6335 = vmatmul.bf16.gmra.mxu0 %v6017
      %v6336 = vpop.f32.mrf.mxu0
      %v6337 = vadd.f32 0.0, %v6336
      %v6338 = vpop.f32.mrf.mxu0
      %v6339 = vadd.f32 0.0, %v6338
      %6340 = vmatmul.bf16.gmra.mxu0 %v6020
      %v6341 = vpop.f32.mrf.mxu0
      %v6342 = vadd.f32 0.0, %v6341
      %v6343 = vpop.f32.mrf.mxu0
      %v6344 = vadd.f32 0.0, %v6343
      %6345 = vmatmul.bf16.gmra.mxu0 %v6023
      %v6346 = vpop.f32.mrf.mxu0
      %v6347 = vadd.f32 0.0, %v6346
      %v6348 = vpop.f32.mrf.mxu0
      %v6349 = vadd.f32 0.0, %v6348
      %6350 = vmatmul.bf16.gmra.mxu0 %v6026
      %v6351 = vpop.f32.mrf.mxu0
      %v6352 = vadd.f32 0.0, %v6351
      %v6353 = vpop.f32.mrf.mxu0
      %v6354 = vadd.f32 0.0, %v6353
      %6355 = vmatmul.bf16.gmra.mxu0 %v6029
      %v6356 = vpop.f32.mrf.mxu0
      %v6357 = vadd.f32 0.0, %v6356
      %v6358 = vpop.f32.mrf.mxu0
      %v6359 = vadd.f32 0.0, %v6358
      %6360 = vmatmul.bf16.gmra.mxu0 %v6032
      %v6361 = vpop.f32.mrf.mxu0
      %v6362 = vadd.f32 0.0, %v6361
      %v6363 = vpop.f32.mrf.mxu0
      %v6364 = vadd.f32 0.0, %v6363
      %6365 = vmatmul.bf16.gmra.mxu0 %v6035
      %v6366 = vpop.f32.mrf.mxu0
      %v6367 = vadd.f32 0.0, %v6366
      %v6368 = vpop.f32.mrf.mxu0
      %v6369 = vadd.f32 0.0, %v6368
      %6370 = vmatmul.bf16.gmra.mxu0 %v6038
      %v6371 = vpop.f32.mrf.mxu0
      %v6372 = vadd.f32 0.0, %v6371
      %v6373 = vpop.f32.mrf.mxu0
      %v6374 = vadd.f32 0.0, %v6373
      %6375 = vmatmul.bf16.gmra.mxu0 %v6041
      %v6376 = vpop.f32.mrf.mxu0
      %v6377 = vadd.f32 0.0, %v6376
      %v6378 = vpop.f32.mrf.mxu0
      %v6379 = vadd.f32 0.0, %v6378
      %6380 = vmatmul.bf16.gmra.mxu0 %v6044
      %v6381 = vpop.f32.mrf.mxu0
      %v6382 = vadd.f32 0.0, %v6381
      %v6383 = vpop.f32.mrf.mxu0
      %v6384 = vadd.f32 0.0, %v6383
      %6385 = vmatmul.bf16.gmra.mxu0 %v6047
      %v6386 = vpop.f32.mrf.mxu0
      %v6387 = vadd.f32 0.0, %v6386
      %v6388 = vpop.f32.mrf.mxu0
      %v6389 = vadd.f32 0.0, %v6388
      %6390 = vmatmul.bf16.gmra.mxu0 %v6050
      %v6391 = vpop.f32.mrf.mxu0
      %v6392 = vadd.f32 0.0, %v6391
      %v6393 = vpop.f32.mrf.mxu0
      %v6394 = vadd.f32 0.0, %v6393
      %6395 = vmatmul.bf16.gmra.mxu0 %v6053
      %v6396 = vpop.f32.mrf.mxu0
      %v6397 = vadd.f32 0.0, %v6396
      %v6398 = vpop.f32.mrf.mxu0
      %v6399 = vadd.f32 0.0, %v6398
      %6400 = vmatmul.bf16.gmra.mxu0 %v6056
      %v6401 = vpop.f32.mrf.mxu0
      %v6402 = vadd.f32 0.0, %v6401
      %v6403 = vpop.f32.mrf.mxu0
      %v6404 = vadd.f32 0.0, %v6403
      %6405 = vmatmul.bf16.gmra.mxu0 %v6059
      %v6406 = vpop.f32.mrf.mxu0
      %v6407 = vadd.f32 0.0, %v6406
      %v6408 = vpop.f32.mrf.mxu0
      %v6409 = vadd.f32 0.0, %v6408
      %6410 = vmatmul.bf16.gmra.mxu0 %v6062
      %v6411 = vpop.f32.mrf.mxu0
      %v6412 = vadd.f32 0.0, %v6411
      %v6413 = vpop.f32.mrf.mxu0
      %v6414 = vadd.f32 0.0, %v6413
      %6415 = vdwg.mxu0
      %v6416 = vadd.f32 %v5580, %v6077
      %v6417 = vadd.f32 %v5581, %v6079
      %v6418 = vadd.f32 %v5582, %v6082
      %v6419 = vadd.f32 %v5583, %v6084
      %v6420 = vadd.f32 %v5584, %v6087
      %v6421 = vadd.f32 %v5585, %v6089
      %v6422 = vadd.f32 %v5586, %v6092
      %v6423 = vadd.f32 %v5587, %v6094
      %v6424 = vadd.f32 %v5588, %v6097
      %v6425 = vadd.f32 %v5589, %v6099
      %v6426 = vadd.f32 %v5590, %v6102
      %v6427 = vadd.f32 %v5591, %v6104
      %v6428 = vadd.f32 %v5592, %v6107
      %v6429 = vadd.f32 %v5593, %v6109
      %v6430 = vadd.f32 %v5594, %v6112
      %v6431 = vadd.f32 %v5595, %v6114
      %v6432 = vadd.f32 %v5596, %v6117
      %v6433 = vadd.f32 %v5597, %v6119
      %v6434 = vadd.f32 %v5598, %v6122
      %v6435 = vadd.f32 %v5599, %v6124
      %v6436 = vadd.f32 %v5600, %v6127
      %v6437 = vadd.f32 %v5601, %v6129
      %v6438 = vadd.f32 %v5602, %v6132
      %v6439 = vadd.f32 %v5603, %v6134
      %v6440 = vadd.f32 %v5604, %v6137
      %v6441 = vadd.f32 %v5605, %v6139
      %v6442 = vadd.f32 %v5606, %v6142
      %v6443 = vadd.f32 %v5607, %v6144
      %v6444 = vadd.f32 %v5608, %v6147
      %v6445 = vadd.f32 %v5609, %v6149
      %v6446 = vadd.f32 %v5610, %v6152
      %v6447 = vadd.f32 %v5611, %v6154
      %v6448 = vadd.f32 %v5612, %v6157
      %v6449 = vadd.f32 %v5613, %v6159
      %v6450 = vadd.f32 %v5614, %v6162
      %v6451 = vadd.f32 %v5615, %v6164
      %v6452 = vadd.f32 %v5616, %v6167
      %v6453 = vadd.f32 %v5617, %v6169
      %v6454 = vadd.f32 %v5618, %v6172
      %v6455 = vadd.f32 %v5619, %v6174
      %v6456 = vadd.f32 %v5620, %v6177
      %v6457 = vadd.f32 %v5621, %v6179
      %v6458 = vadd.f32 %v5622, %v6182
      %v6459 = vadd.f32 %v5623, %v6184
      %v6460 = vadd.f32 %v5624, %v6187
      %v6461 = vadd.f32 %v5625, %v6189
      %v6462 = vadd.f32 %v5626, %v6192
      %v6463 = vadd.f32 %v5627, %v6194
      %v6464 = vadd.f32 %v5628, %v6197
      %v6465 = vadd.f32 %v5629, %v6199
      %v6466 = vadd.f32 %v5630, %v6202
      %v6467 = vadd.f32 %v5631, %v6204
      %v6468 = vadd.f32 %v5632, %v6207
      %v6469 = vadd.f32 %v5633, %v6209
      %v6470 = vadd.f32 %v5634, %v6212
      %v6471 = vadd.f32 %v5635, %v6214
      %v6472 = vadd.f32 %v5636, %v6217
      %v6473 = vadd.f32 %v5637, %v6219
      %v6474 = vadd.f32 %v5638, %v6222
      %v6475 = vadd.f32 %v5639, %v6224
      %v6476 = vadd.f32 %v5640, %v6227
      %v6477 = vadd.f32 %v5641, %v6229
      %v6478 = vadd.f32 %v5642, %v6232
      %v6479 = vadd.f32 %v5643, %v6234
      %v6480 = vadd.f32 %v5644, %v6237
      %v6481 = vadd.f32 %v5645, %v6239
      %v6482 = vadd.f32 %v5646, %v6242
      %v6483 = vadd.f32 %v5647, %v6244
      %v6484 = vadd.f32 %v5648, %v6247
      %v6485 = vadd.f32 %v5649, %v6249
      %v6486 = vadd.f32 %v5650, %v6252
      %v6487 = vadd.f32 %v5651, %v6254
      %v6488 = vadd.f32 %v5652, %v6257
      %v6489 = vadd.f32 %v5653, %v6259
      %v6490 = vadd.f32 %v5654, %v6262
      %v6491 = vadd.f32 %v5655, %v6264
      %v6492 = vadd.f32 %v5656, %v6267
      %v6493 = vadd.f32 %v5657, %v6269
      %v6494 = vadd.f32 %v5658, %v6272
      %v6495 = vadd.f32 %v5659, %v6274
      %v6496 = vadd.f32 %v5660, %v6277
      %v6497 = vadd.f32 %v5661, %v6279
      %v6498 = vadd.f32 %v5662, %v6282
      %v6499 = vadd.f32 %v5663, %v6284
      %v6500 = vadd.f32 %v5664, %v6287
      %v6501 = vadd.f32 %v5665, %v6289
      %v6502 = vadd.f32 %v5666, %v6292
      %v6503 = vadd.f32 %v5667, %v6294
      %v6504 = vadd.f32 %v5668, %v6297
      %v6505 = vadd.f32 %v5669, %v6299
      %v6506 = vadd.f32 %v5670, %v6302
      %v6507 = vadd.f32 %v5671, %v6304
      %v6508 = vadd.f32 %v5672, %v6307
      %v6509 = vadd.f32 %v5673, %v6309
      %v6510 = vadd.f32 %v5674, %v6312
      %v6511 = vadd.f32 %v5675, %v6314
      %v6512 = vadd.f32 %v5676, %v6317
      %v6513 = vadd.f32 %v5677, %v6319
      %v6514 = vadd.f32 %v5678, %v6322
      %v6515 = vadd.f32 %v5679, %v6324
      %v6516 = vadd.f32 %v5680, %v6327
      %v6517 = vadd.f32 %v5681, %v6329
      %v6518 = vadd.f32 %v5682, %v6332
      %v6519 = vadd.f32 %v5683, %v6334
      %v6520 = vadd.f32 %v5684, %v6337
      %v6521 = vadd.f32 %v5685, %v6339
      %v6522 = vadd.f32 %v5686, %v6342
      %v6523 = vadd.f32 %v5687, %v6344
      %v6524 = vadd.f32 %v5688, %v6347
      %v6525 = vadd.f32 %v5689, %v6349
      %v6526 = vadd.f32 %v5690, %v6352
      %v6527 = vadd.f32 %v5691, %v6354
      %v6528 = vadd.f32 %v5692, %v6357
      %v6529 = vadd.f32 %v5693, %v6359
      %v6530 = vadd.f32 %v5694, %v6362
      %v6531 = vadd.f32 %v5695, %v6364
      %v6532 = vadd.f32 %v5696, %v6367
      %v6533 = vadd.f32 %v5697, %v6369
      %v6534 = vadd.f32 %v5698, %v6372
      %v6535 = vadd.f32 %v5699, %v6374
      %v6536 = vadd.f32 %v5700, %v6377
      %v6537 = vadd.f32 %v5701, %v6379
      %v6538 = vadd.f32 %v5702, %v6382
      %v6539 = vadd.f32 %v5703, %v6384
      %v6540 = vadd.f32 %v5704, %v6387
      %v6541 = vadd.f32 %v5705, %v6389
      %v6542 = vadd.f32 %v5706, %v6392
      %v6543 = vadd.f32 %v5707, %v6394
      %v6544 = vadd.f32 %v5708, %v6397
      %v6545 = vadd.f32 %v5709, %v6399
      %v6546 = vadd.f32 %v5710, %v6402
      %v6547 = vadd.f32 %v5711, %v6404
      %v6548 = vadd.f32 %v5712, %v6407
      %v6549 = vadd.f32 %v5713, %v6409
      %v6550 = vadd.f32 %v5714, %v6412
      %v6551 = vadd.f32 %v5715, %v6414
      %v6552 = vld [vmem:[%s165 + $0x20] sm:$0xc]
      %v6553 = vld [vmem:[%s165 + $0x24] sm:$0xf]
      %v6554 = vld [vmem:[%s165 + $0x28] sm:$0xf]
      %v6555 = vld [vmem:[%s165 + $0x2c] sm:$0xf]
      %v6556 = vld [vmem:[%s165 + $0x30] sm:$0xf]
      %v6557 = vld [vmem:[%s165 + $0x34] sm:$0xf]
      %v6558 = vld [vmem:[%s165 + $0x38] sm:$0xf]
      %v6559 = vld [vmem:[%s165 + $0x3c] sm:$0xf]
      %v6560 = vld [vmem:[%s165 + $0x40] sm:$0xf]
      %v6561 = vld [vmem:[%s165 + $0x44] sm:$0xf]
      %v6562 = vld [vmem:[%s165 + $0x48] sm:$0xf]
      %v6563 = vld [vmem:[%s165 + $0x4c] sm:$0xf]
      %v6564 = vld [vmem:[%s165 + $0x50] sm:$0xf]
      %v6565 = vld [vmem:[%s165 + $0x54] sm:$0xf]
      %v6566 = vld [vmem:[%s165 + $0x58] sm:$0xf]
      %v6567 = vld [vmem:[%s165 + $0x5c] sm:$0xf]
      %v6568 = vld [vmem:[%s165 + $0x60] sm:$0xf]
      %v6569 = vld [vmem:[%s165 + $0x64] sm:$0xf]
      %v6570 = vld [vmem:[%s165 + $0x68] sm:$0xf]
      %v6571 = vld [vmem:[%s165 + $0x6c] sm:$0xf]
      %v6572 = vld [vmem:[%s165 + $0x70] sm:$0xf]
      %v6573 = vld [vmem:[%s165 + $0x74] sm:$0xf]
      %v6574 = vld [vmem:[%s165 + $0x78] sm:$0xf]
      %v6575 = vld [vmem:[%s165 + $0x7c] sm:$0xf]
      %v6576 = vld [vmem:[%s165 + $0x80] sm:$0xf]
      %v6577 = vld [vmem:[%s165 + $0x84] sm:$0xf]
      %v6578 = vld [vmem:[%s165 + $0x88] sm:$0xf]
      %v6579 = vld [vmem:[%s165 + $0x8c] sm:$0xf]
      %v6580 = vld [vmem:[%s165 + $0x90] sm:$0xf]
      %v6581 = vld [vmem:[%s165 + $0x94] sm:$0xf]
      %v6582 = vld [vmem:[%s165 + $0x98] sm:$0xf]
      %v6583 = vld [vmem:[%s165 + $0x9c] sm:$0xf]
      %v6584 = vld [vmem:[%s165 + $0xa0] sm:$0xf]
      %v6585 = vld [vmem:[%s165 + $0xa4] sm:$0xf]
      %v6586 = vld [vmem:[%s165 + $0xa8] sm:$0xf]
      %v6587 = vld [vmem:[%s165 + $0xac] sm:$0xf]
      %v6588 = vld [vmem:[%s165 + $0xb0] sm:$0xf]
      %v6589 = vld [vmem:[%s165 + $0xb4] sm:$0xf]
      %v6590 = vld [vmem:[%s165 + $0xb8] sm:$0xf]
      %v6591 = vld [vmem:[%s165 + $0xbc] sm:$0xf]
      %v6592 = vld [vmem:[%s165 + $0xc0] sm:$0xf]
      %v6593 = vld [vmem:[%s165 + $0xc4] sm:$0xf]
      %v6594 = vld [vmem:[%s165 + $0xc8] sm:$0xf]
      %v6595 = vld [vmem:[%s165 + $0xcc] sm:$0xf]
      %v6596 = vld [vmem:[%s165 + $0xd0] sm:$0xf]
      %v6597 = vld [vmem:[%s165 + $0xd4] sm:$0xf]
      %v6598 = vld [vmem:[%s165 + $0xd8] sm:$0xf]
      %v6599 = vld [vmem:[%s165 + $0xdc] sm:$0xf]
      %v6600 = vld [vmem:[%s165 + $0xe0] sm:$0xf]
      %v6601 = vld [vmem:[%s165 + $0xe4] sm:$0xf]
      %v6602 = vld [vmem:[%s165 + $0xe8] sm:$0xf]
      %v6603 = vld [vmem:[%s165 + $0xec] sm:$0xf]
      %v6604 = vld [vmem:[%s165 + $0xf0] sm:$0xf]
      %v6605 = vld [vmem:[%s165 + $0xf4] sm:$0xf]
      %v6606 = vld [vmem:[%s165 + $0xf8] sm:$0xf]
      %v6607 = vld [vmem:[%s165 + $0xfc] sm:$0xf]
      %v6608 = vld [vmem:[%s165 + $0x100] sm:$0xf]
      %v6609 = vld [vmem:[%s165 + $0x104] sm:$0xf]
      %v6610 = vld [vmem:[%s165 + $0x108] sm:$0xf]
      %v6611 = vld [vmem:[%s165 + $0x10c] sm:$0xf]
      %v6612 = vld [vmem:[%s165 + $0x110] sm:$0xf]
      %v6613 = vld [vmem:[%s165 + $0x114] sm:$0xf]
      %v6614 = vld [vmem:[%s165 + $0x118] sm:$0xf]
      %v6615 = vld [vmem:[%s165 + $0x11c] sm:$0xf]
      %v6616 = vld [vmem:[%s165 + $0x120] sm:$0xf]
      %v6617 = vld [vmem:[%s165 + $0x124] sm:$0xf]
      %v6618 = vld [vmem:[%s165 + $0x128] sm:$0xf]
      %v6619 = vld [vmem:[%s165 + $0x12c] sm:$0xf]
      %v6620 = vld [vmem:[%s165 + $0x130] sm:$0xf]
      %v6621 = vld [vmem:[%s165 + $0x134] sm:$0xf]
      %v6622 = vld [vmem:[%s165 + $0x138] sm:$0xf]
      %v6623 = vld [vmem:[%s165 + $0x13c] sm:$0xf]
      %v6624 = vld [vmem:[%s165 + $0x140] sm:$0xf]
      %v6625 = vld [vmem:[%s165 + $0x144] sm:$0xf]
      %v6626 = vld [vmem:[%s165 + $0x148] sm:$0xf]
      %v6627 = vld [vmem:[%s165 + $0x14c] sm:$0xf]
      %v6628 = vld [vmem:[%s165 + $0x150] sm:$0xf]
      %v6629 = vld [vmem:[%s165 + $0x154] sm:$0xf]
      %v6630 = vld [vmem:[%s165 + $0x158] sm:$0xf]
      %v6631 = vld [vmem:[%s165 + $0x15c] sm:$0xf]
      %v6632 = vld [vmem:[%s165 + $0x160] sm:$0xf]
      %v6633 = vld [vmem:[%s165 + $0x164] sm:$0xf]
      %v6634 = vld [vmem:[%s165 + $0x168] sm:$0xf]
      %v6635 = vld [vmem:[%s165 + $0x16c] sm:$0xf]
      %v6636 = vld [vmem:[%s165 + $0x170] sm:$0xf]
      %v6637 = vld [vmem:[%s165 + $0x174] sm:$0xf]
      %v6638 = vld [vmem:[%s165 + $0x178] sm:$0xf]
      %v6639 = vld [vmem:[%s165 + $0x17c] sm:$0xf]
      %v6640 = vld [vmem:[%s165 + $0x180] sm:$0xf]
      %v6641 = vld [vmem:[%s165 + $0x184] sm:$0xf]
      %v6642 = vld [vmem:[%s165 + $0x188] sm:$0xf]
      %v6643 = vld [vmem:[%s165 + $0x18c] sm:$0xf]
      %v6644 = vld [vmem:[%s165 + $0x190] sm:$0xf]
      %v6645 = vld [vmem:[%s165 + $0x194] sm:$0xf]
      %v6646 = vld [vmem:[%s165 + $0x198] sm:$0xf]
      %v6647 = vld [vmem:[%s165 + $0x19c] sm:$0xf]
      %v6648 = vld [vmem:[%s165 + $0x1a0] sm:$0xf]
      %v6649 = vld [vmem:[%s165 + $0x1a4] sm:$0xf]
      %v6650 = vld [vmem:[%s165 + $0x1a8] sm:$0xf]
      %v6651 = vld [vmem:[%s165 + $0x1ac] sm:$0xf]
      %v6652 = vld [vmem:[%s165 + $0x1b0] sm:$0xf]
      %v6653 = vld [vmem:[%s165 + $0x1b4] sm:$0xf]
      %v6654 = vld [vmem:[%s165 + $0x1b8] sm:$0xf]
      %v6655 = vld [vmem:[%s165 + $0x1bc] sm:$0xf]
      %v6656 = vld [vmem:[%s165 + $0x1c0] sm:$0xf]
      %v6657 = vld [vmem:[%s165 + $0x1c4] sm:$0xf]
      %v6658 = vld [vmem:[%s165 + $0x1c8] sm:$0xf]
      %v6659 = vld [vmem:[%s165 + $0x1cc] sm:$0xf]
      %v6660 = vld [vmem:[%s165 + $0x1d0] sm:$0xf]
      %v6661 = vld [vmem:[%s165 + $0x1d4] sm:$0xf]
      %v6662 = vld [vmem:[%s165 + $0x1d8] sm:$0xf]
      %v6663 = vld [vmem:[%s165 + $0x1dc] sm:$0xf]
      %v6664 = vld [vmem:[%s165 + $0x1e0] sm:$0xf]
      %v6665 = vld [vmem:[%s165 + $0x1e4] sm:$0xf]
      %v6666 = vld [vmem:[%s165 + $0x1e8] sm:$0xf]
      %v6667 = vld [vmem:[%s165 + $0x1ec] sm:$0xf]
      %v6668 = vld [vmem:[%s165 + $0x1f0] sm:$0xf]
      %v6669 = vld [vmem:[%s165 + $0x1f4] sm:$0xf]
      %v6670 = vld [vmem:[%s165 + $0x1f8] sm:$0xf]
      %v6671 = vld [vmem:[%s165 + $0x1fc] sm:$0xf]
      %v6672 = vld [vmem:[%s165 + $0x200] sm:$0xf]
      %v6673 = vld [vmem:[%s165 + $0x204] sm:$0xf]
      %v6674 = vld [vmem:[%s165 + $0x208] sm:$0xf]
      %v6675 = vld [vmem:[%s165 + $0x20c] sm:$0xf]
      %v6676 = vld [vmem:[%s165 + $0x210] sm:$0xf]
      %v6677 = vld [vmem:[%s165 + $0x214] sm:$0xf]
      %v6678 = vld [vmem:[%s165 + $0x218] sm:$0xf]
      %v6679 = vld [vmem:[%s165 + $0x21c] sm:$0xf]
      %v6680 = vld [vmem:[%s165 + $0x220] sm:$0xf]
      %v6681 = vld [vmem:[%s165 + $0x224] sm:$0xf]
      %v6682 = vld [vmem:[%s165 + $0x228] sm:$0xf]
      %v6683 = vld [vmem:[%s165 + $0x22c] sm:$0xf]
      %v6684 = vld [vmem:[%s165 + $0x230] sm:$0xf]
      %v6685 = vld [vmem:[%s165 + $0x234] sm:$0xf]
      %v6686 = vld [vmem:[%s165 + $0x238] sm:$0xf]
      %v6687 = vld [vmem:[%s165 + $0x23c] sm:$0xf]
      %v6688 = vld [vmem:[%s165 + $0x240] sm:$0x3]
      %s6689 = scalar_lea.vmem %s1, 24
      %v6690 = vld [vmem:[%s6689] sm:$0xf]
      %v6828 = vunpack.c.l.b16 %v6552
      %v6829 = vunpack.c.l.b16 %v6553
      %v6830 = vunpack.c.l.b16 %v6554
      %v6831 = vunpack.c.l.b16 %v6555
      %v6832 = vunpack.c.l.b16 %v6556
      %v6833 = vunpack.c.l.b16 %v6557
      %v6834 = vunpack.c.l.b16 %v6558
      %v6835 = vunpack.c.l.b16 %v6559
      %v6836 = vunpack.c.l.b16 %v6560
      %v6837 = vunpack.c.l.b16 %v6561
      %v6838 = vunpack.c.l.b16 %v6562
      %v6839 = vunpack.c.l.b16 %v6563
      %v6840 = vunpack.c.l.b16 %v6564
      %v6841 = vunpack.c.l.b16 %v6565
      %v6842 = vunpack.c.l.b16 %v6566
      %v6843 = vunpack.c.l.b16 %v6567
      %v6844 = vunpack.c.l.b16 %v6568
      %v6845 = vunpack.c.l.b16 %v6569
      %v6846 = vunpack.c.l.b16 %v6570
      %v6847 = vunpack.c.l.b16 %v6571
      %v6848 = vunpack.c.l.b16 %v6572
      %v6849 = vunpack.c.l.b16 %v6573
      %v6850 = vunpack.c.l.b16 %v6574
      %v6851 = vunpack.c.l.b16 %v6575
      %v6852 = vunpack.c.l.b16 %v6576
      %v6853 = vunpack.c.l.b16 %v6577
      %v6854 = vunpack.c.l.b16 %v6578
      %v6855 = vunpack.c.l.b16 %v6579
      %v6856 = vunpack.c.l.b16 %v6580
      %v6857 = vunpack.c.l.b16 %v6581
      %v6858 = vunpack.c.l.b16 %v6582
      %v6859 = vunpack.c.l.b16 %v6583
      %v6860 = vunpack.c.l.b16 %v6584
      %v6861 = vunpack.c.l.b16 %v6585
      %v6862 = vunpack.c.l.b16 %v6586
      %v6863 = vunpack.c.l.b16 %v6587
      %v6864 = vunpack.c.l.b16 %v6588
      %v6865 = vunpack.c.l.b16 %v6589
      %v6866 = vunpack.c.l.b16 %v6590
      %v6867 = vunpack.c.l.b16 %v6591
      %v6868 = vunpack.c.l.b16 %v6592
      %v6869 = vunpack.c.l.b16 %v6593
      %v6870 = vunpack.c.l.b16 %v6594
      %v6871 = vunpack.c.l.b16 %v6595
      %v6872 = vunpack.c.l.b16 %v6596
      %v6873 = vunpack.c.l.b16 %v6597
      %v6874 = vunpack.c.l.b16 %v6598
      %v6875 = vunpack.c.l.b16 %v6599
      %v6876 = vunpack.c.l.b16 %v6600
      %v6877 = vunpack.c.l.b16 %v6601
      %v6878 = vunpack.c.l.b16 %v6602
      %v6879 = vunpack.c.l.b16 %v6603
      %v6880 = vunpack.c.l.b16 %v6604
      %v6881 = vunpack.c.l.b16 %v6605
      %v6882 = vunpack.c.l.b16 %v6606
      %v6883 = vunpack.c.l.b16 %v6607
      %v6884 = vunpack.c.l.b16 %v6608
      %v6885 = vunpack.c.l.b16 %v6609
      %v6886 = vunpack.c.l.b16 %v6610
      %v6887 = vunpack.c.l.b16 %v6611
      %v6888 = vunpack.c.l.b16 %v6612
      %v6889 = vunpack.c.l.b16 %v6613
      %v6890 = vunpack.c.l.b16 %v6614
      %v6891 = vunpack.c.l.b16 %v6615
      %v6892 = vunpack.c.l.b16 %v6616
      %v6893 = vunpack.c.l.b16 %v6617
      %v6894 = vunpack.c.l.b16 %v6618
      %v6895 = vunpack.c.l.b16 %v6619
      %v6896 = vunpack.c.l.b16 %v6620
      %v6897 = vunpack.c.l.b16 %v6621
      %v6898 = vunpack.c.l.b16 %v6622
      %v6899 = vunpack.c.l.b16 %v6623
      %v6900 = vunpack.c.l.b16 %v6624
      %v6901 = vunpack.c.l.b16 %v6625
      %v6902 = vunpack.c.l.b16 %v6626
      %v6903 = vunpack.c.l.b16 %v6627
      %v6904 = vunpack.c.l.b16 %v6628
      %v6905 = vunpack.c.l.b16 %v6629
      %v6906 = vunpack.c.l.b16 %v6630
      %v6907 = vunpack.c.l.b16 %v6631
      %v6908 = vunpack.c.l.b16 %v6632
      %v6909 = vunpack.c.l.b16 %v6633
      %v6910 = vunpack.c.l.b16 %v6634
      %v6911 = vunpack.c.l.b16 %v6635
      %v6912 = vunpack.c.l.b16 %v6636
      %v6913 = vunpack.c.l.b16 %v6637
      %v6914 = vunpack.c.l.b16 %v6638
      %v6915 = vunpack.c.l.b16 %v6639
      %v6916 = vunpack.c.l.b16 %v6640
      %v6917 = vunpack.c.l.b16 %v6641
      %v6918 = vunpack.c.l.b16 %v6642
      %v6919 = vunpack.c.l.b16 %v6643
      %v6920 = vunpack.c.l.b16 %v6644
      %v6921 = vunpack.c.l.b16 %v6645
      %v6922 = vunpack.c.l.b16 %v6646
      %v6923 = vunpack.c.l.b16 %v6647
      %v6924 = vunpack.c.l.b16 %v6648
      %v6925 = vunpack.c.l.b16 %v6649
      %v6926 = vunpack.c.l.b16 %v6650
      %v6927 = vunpack.c.l.b16 %v6651
      %v6928 = vunpack.c.l.b16 %v6652
      %v6929 = vunpack.c.l.b16 %v6653
      %v6930 = vunpack.c.l.b16 %v6654
      %v6931 = vunpack.c.l.b16 %v6655
      %v6932 = vunpack.c.l.b16 %v6656
      %v6933 = vunpack.c.l.b16 %v6657
      %v6934 = vunpack.c.l.b16 %v6658
      %v6935 = vunpack.c.l.b16 %v6659
      %v6936 = vunpack.c.l.b16 %v6660
      %v6937 = vunpack.c.l.b16 %v6661
      %v6938 = vunpack.c.l.b16 %v6662
      %v6939 = vunpack.c.l.b16 %v6663
      %v6940 = vunpack.c.l.b16 %v6664
      %v6941 = vunpack.c.l.b16 %v6665
      %v6942 = vunpack.c.l.b16 %v6666
      %v6943 = vunpack.c.l.b16 %v6667
      %v6944 = vunpack.c.l.b16 %v6668
      %v6945 = vunpack.c.l.b16 %v6669
      %v6946 = vunpack.c.l.b16 %v6670
      %v6947 = vunpack.c.l.b16 %v6671
      %v6948 = vunpack.c.l.b16 %v6672
      %v6949 = vunpack.c.l.b16 %v6673
      %v6950 = vunpack.c.l.b16 %v6674
      %v6951 = vunpack.c.l.b16 %v6675
      %v6952 = vunpack.c.l.b16 %v6676
      %v6953 = vunpack.c.l.b16 %v6677
      %v6954 = vunpack.c.l.b16 %v6678
      %v6955 = vunpack.c.l.b16 %v6679
      %v6956 = vunpack.c.l.b16 %v6680
      %v6957 = vunpack.c.l.b16 %v6681
      %v6958 = vunpack.c.l.b16 %v6682
      %v6959 = vunpack.c.l.b16 %v6683
      %v6960 = vunpack.c.l.b16 %v6684
      %v6961 = vunpack.c.l.b16 %v6685
      %v6962 = vunpack.c.l.b16 %v6686
      %v6963 = vunpack.c.l.b16 %v6687
      %v6964 = vunpack.c.l.b16 %v6688
      %v6965 = vpack.c.b16 %v6829, %v6828
      %v6966 = vpack.c.b16 %v6831, %v6830
      %v6967 = vpack.c.b16 %v6833, %v6832
      %v6968 = vpack.c.b16 %v6835, %v6834
      %v6969 = vpack.c.b16 %v6837, %v6836
      %v6970 = vpack.c.b16 %v6839, %v6838
      %v6971 = vpack.c.b16 %v6841, %v6840
      %v6972 = vpack.c.b16 %v6843, %v6842
      %v6973 = vpack.c.b16 %v6845, %v6844
      %v6974 = vpack.c.b16 %v6847, %v6846
      %v6975 = vpack.c.b16 %v6849, %v6848
      %v6976 = vpack.c.b16 %v6851, %v6850
      %v6977 = vpack.c.b16 %v6853, %v6852
      %v6978 = vpack.c.b16 %v6855, %v6854
      %v6979 = vpack.c.b16 %v6857, %v6856
      %v6980 = vpack.c.b16 %v6859, %v6858
      %v6981 = vpack.c.b16 %v6861, %v6860
      %v6982 = vpack.c.b16 %v6863, %v6862
      %v6983 = vpack.c.b16 %v6865, %v6864
      %v6984 = vpack.c.b16 %v6867, %v6866
      %v6985 = vpack.c.b16 %v6869, %v6868
      %v6986 = vpack.c.b16 %v6871, %v6870
      %v6987 = vpack.c.b16 %v6873, %v6872
      %v6988 = vpack.c.b16 %v6875, %v6874
      %v6989 = vpack.c.b16 %v6877, %v6876
      %v6990 = vpack.c.b16 %v6879, %v6878
      %v6991 = vpack.c.b16 %v6881, %v6880
      %v6992 = vpack.c.b16 %v6883, %v6882
      %v6993 = vpack.c.b16 %v6885, %v6884
      %v6994 = vpack.c.b16 %v6887, %v6886
      %v6995 = vpack.c.b16 %v6889, %v6888
      %v6996 = vpack.c.b16 %v6891, %v6890
      %v6997 = vpack.c.b16 %v6893, %v6892
      %v6998 = vpack.c.b16 %v6895, %v6894
      %v6999 = vpack.c.b16 %v6897, %v6896
      %v7000 = vpack.c.b16 %v6899, %v6898
      %v7001 = vpack.c.b16 %v6901, %v6900
      %v7002 = vpack.c.b16 %v6903, %v6902
      %v7003 = vpack.c.b16 %v6905, %v6904
      %v7004 = vpack.c.b16 %v6907, %v6906
      %v7005 = vpack.c.b16 %v6909, %v6908
      %v7006 = vpack.c.b16 %v6911, %v6910
      %v7007 = vpack.c.b16 %v6913, %v6912
      %v7008 = vpack.c.b16 %v6915, %v6914
      %v7009 = vpack.c.b16 %v6917, %v6916
      %v7010 = vpack.c.b16 %v6919, %v6918
      %v7011 = vpack.c.b16 %v6921, %v6920
      %v7012 = vpack.c.b16 %v6923, %v6922
      %v7013 = vpack.c.b16 %v6925, %v6924
      %v7014 = vpack.c.b16 %v6927, %v6926
      %v7015 = vpack.c.b16 %v6929, %v6928
      %v7016 = vpack.c.b16 %v6931, %v6930
      %v7017 = vpack.c.b16 %v6933, %v6932
      %v7018 = vpack.c.b16 %v6935, %v6934
      %v7019 = vpack.c.b16 %v6937, %v6936
      %v7020 = vpack.c.b16 %v6939, %v6938
      %v7021 = vpack.c.b16 %v6941, %v6940
      %v7022 = vpack.c.b16 %v6943, %v6942
      %v7023 = vpack.c.b16 %v6945, %v6944
      %v7024 = vpack.c.b16 %v6947, %v6946
      %v7025 = vpack.c.b16 %v6949, %v6948
      %v7026 = vpack.c.b16 %v6951, %v6950
      %v7027 = vpack.c.b16 %v6953, %v6952
      %v7028 = vpack.c.b16 %v6955, %v6954
      %v7029 = vpack.c.b16 %v6957, %v6956
      %v7030 = vpack.c.b16 %v6959, %v6958
      %v7031 = vpack.c.b16 %v6961, %v6960
      %v7032 = vpack.c.b16 %v6963, %v6962
      %v7033 = vpack.c.b16 %v6964, %v6964
      %v7034 = vrot.slane %v6965, 2
      %v7035 = vrot.slane %v6966, 2
      %v7036 = vsel %vm5722, %v7034, %v7035
      %v7037 = vrot.slane %v6967, 2
      %v7038 = vsel %vm5722, %v7035, %v7037
      %v7039 = vrot.slane %v6968, 2
      %v7040 = vsel %vm5722, %v7037, %v7039
      %v7041 = vrot.slane %v6969, 2
      %v7042 = vsel %vm5722, %v7039, %v7041
      %v7043 = vrot.slane %v6970, 2
      %v7044 = vsel %vm5722, %v7041, %v7043
      %v7045 = vrot.slane %v6971, 2
      %v7046 = vsel %vm5722, %v7043, %v7045
      %v7047 = vrot.slane %v6972, 2
      %v7048 = vsel %vm5722, %v7045, %v7047
      %v7049 = vrot.slane %v6973, 2
      %v7050 = vsel %vm5722, %v7047, %v7049
      %v7051 = vrot.slane %v6974, 2
      %v7052 = vsel %vm5722, %v7049, %v7051
      %v7053 = vrot.slane %v6975, 2
      %v7054 = vsel %vm5722, %v7051, %v7053
      %v7055 = vrot.slane %v6976, 2
      %v7056 = vsel %vm5722, %v7053, %v7055
      %v7057 = vrot.slane %v6977, 2
      %v7058 = vsel %vm5722, %v7055, %v7057
      %v7059 = vrot.slane %v6978, 2
      %v7060 = vsel %vm5722, %v7057, %v7059
      %v7061 = vrot.slane %v6979, 2
      %v7062 = vsel %vm5722, %v7059, %v7061
      %v7063 = vrot.slane %v6980, 2
      %v7064 = vsel %vm5722, %v7061, %v7063
      %v7065 = vrot.slane %v6981, 2
      %v7066 = vsel %vm5722, %v7063, %v7065
      %v7067 = vrot.slane %v6982, 2
      %v7068 = vsel %vm5722, %v7065, %v7067
      %v7069 = vrot.slane %v6983, 2
      %v7070 = vsel %vm5722, %v7067, %v7069
      %v7071 = vrot.slane %v6984, 2
      %v7072 = vsel %vm5722, %v7069, %v7071
      %v7073 = vrot.slane %v6985, 2
      %v7074 = vsel %vm5722, %v7071, %v7073
      %v7075 = vrot.slane %v6986, 2
      %v7076 = vsel %vm5722, %v7073, %v7075
      %v7077 = vrot.slane %v6987, 2
      %v7078 = vsel %vm5722, %v7075, %v7077
      %v7079 = vrot.slane %v6988, 2
      %v7080 = vsel %vm5722, %v7077, %v7079
      %v7081 = vrot.slane %v6989, 2
      %v7082 = vsel %vm5722, %v7079, %v7081
      %v7083 = vrot.slane %v6990, 2
      %v7084 = vsel %vm5722, %v7081, %v7083
      %v7085 = vrot.slane %v6991, 2
      %v7086 = vsel %vm5722, %v7083, %v7085
      %v7087 = vrot.slane %v6992, 2
      %v7088 = vsel %vm5722, %v7085, %v7087
      %v7089 = vrot.slane %v6993, 2
      %v7090 = vsel %vm5722, %v7087, %v7089
      %v7091 = vrot.slane %v6994, 2
      %v7092 = vsel %vm5722, %v7089, %v7091
      %v7093 = vrot.slane %v6995, 2
      %v7094 = vsel %vm5722, %v7091, %v7093
      %v7095 = vrot.slane %v6996, 2
      %v7096 = vsel %vm5722, %v7093, %v7095
      %v7097 = vrot.slane %v6997, 2
      %v7098 = vsel %vm5722, %v7095, %v7097
      %v7099 = vrot.slane %v6998, 2
      %v7100 = vsel %vm5722, %v7097, %v7099
      %v7101 = vrot.slane %v6999, 2
      %v7102 = vsel %vm5722, %v7099, %v7101
      %v7103 = vrot.slane %v7000, 2
      %v7104 = vsel %vm5722, %v7101, %v7103
      %v7105 = vrot.slane %v7001, 2
      %v7106 = vsel %vm5722, %v7103, %v7105
      %v7107 = vrot.slane %v7002, 2
      %v7108 = vsel %vm5722, %v7105, %v7107
      %v7109 = vrot.slane %v7003, 2
      %v7110 = vsel %vm5722, %v7107, %v7109
      %v7111 = vrot.slane %v7004, 2
      %v7112 = vsel %vm5722, %v7109, %v7111
      %v7113 = vrot.slane %v7005, 2
      %v7114 = vsel %vm5722, %v7111, %v7113
      %v7115 = vrot.slane %v7006, 2
      %v7116 = vsel %vm5722, %v7113, %v7115
      %v7117 = vrot.slane %v7007, 2
      %v7118 = vsel %vm5722, %v7115, %v7117
      %v7119 = vrot.slane %v7008, 2
      %v7120 = vsel %vm5722, %v7117, %v7119
      %v7121 = vrot.slane %v7009, 2
      %v7122 = vsel %vm5722, %v7119, %v7121
      %v7123 = vrot.slane %v7010, 2
      %v7124 = vsel %vm5722, %v7121, %v7123
      %v7125 = vrot.slane %v7011, 2
      %v7126 = vsel %vm5722, %v7123, %v7125
      %v7127 = vrot.slane %v7012, 2
      %v7128 = vsel %vm5722, %v7125, %v7127
      %v7129 = vrot.slane %v7013, 2
      %v7130 = vsel %vm5722, %v7127, %v7129
      %v7131 = vrot.slane %v7014, 2
      %v7132 = vsel %vm5722, %v7129, %v7131
      %v7133 = vrot.slane %v7015, 2
      %v7134 = vsel %vm5722, %v7131, %v7133
      %v7135 = vrot.slane %v7016, 2
      %v7136 = vsel %vm5722, %v7133, %v7135
      %v7137 = vrot.slane %v7017, 2
      %v7138 = vsel %vm5722, %v7135, %v7137
      %v7139 = vrot.slane %v7018, 2
      %v7140 = vsel %vm5722, %v7137, %v7139
      %v7141 = vrot.slane %v7019, 2
      %v7142 = vsel %vm5722, %v7139, %v7141
      %v7143 = vrot.slane %v7020, 2
      %v7144 = vsel %vm5722, %v7141, %v7143
      %v7145 = vrot.slane %v7021, 2
      %v7146 = vsel %vm5722, %v7143, %v7145
      %v7147 = vrot.slane %v7022, 2
      %v7148 = vsel %vm5722, %v7145, %v7147
      %v7149 = vrot.slane %v7023, 2
      %v7150 = vsel %vm5722, %v7147, %v7149
      %v7151 = vrot.slane %v7024, 2
      %v7152 = vsel %vm5722, %v7149, %v7151
      %v7153 = vrot.slane %v7025, 2
      %v7154 = vsel %vm5722, %v7151, %v7153
      %v7155 = vrot.slane %v7026, 2
      %v7156 = vsel %vm5722, %v7153, %v7155
      %v7157 = vrot.slane %v7027, 2
      %v7158 = vsel %vm5722, %v7155, %v7157
      %v7159 = vrot.slane %v7028, 2
      %v7160 = vsel %vm5722, %v7157, %v7159
      %v7161 = vrot.slane %v7029, 2
      %v7162 = vsel %vm5722, %v7159, %v7161
      %v7163 = vrot.slane %v7030, 2
      %v7164 = vsel %vm5722, %v7161, %v7163
      %v7165 = vrot.slane %v7031, 2
      %v7166 = vsel %vm5722, %v7163, %v7165
      %v7167 = vrot.slane %v7032, 2
      %v7168 = vsel %vm5722, %v7165, %v7167
      %v7169 = vrot.slane %v7033, 2
      %v7170 = vsel %vm5722, %v7167, %v7169
      %v7172 = vsel %vm1204, %v7036, 0
      %v7175 = vsel %vm1204, %v7038, 0
      %v7178 = vsel %vm1204, %v7040, 0
      %v7181 = vsel %vm1204, %v7042, 0
      %v7184 = vsel %vm1204, %v7044, 0
      %v7187 = vsel %vm1204, %v7046, 0
      %v7190 = vsel %vm1204, %v7048, 0
      %v7193 = vsel %vm1204, %v7050, 0
      %v7196 = vsel %vm1204, %v7052, 0
      %v7199 = vsel %vm1204, %v7054, 0
      %v7202 = vsel %vm1204, %v7056, 0
      %v7205 = vsel %vm1204, %v7058, 0
      %v7208 = vsel %vm1204, %v7060, 0
      %v7211 = vsel %vm1204, %v7062, 0
      %v7214 = vsel %vm1204, %v7064, 0
      %v7217 = vsel %vm1204, %v7066, 0
      %v7220 = vsel %vm1204, %v7068, 0
      %v7223 = vsel %vm1204, %v7070, 0
      %v7226 = vsel %vm1204, %v7072, 0
      %v7229 = vsel %vm1204, %v7074, 0
      %v7232 = vsel %vm1204, %v7076, 0
      %v7235 = vsel %vm1204, %v7078, 0
      %v7238 = vsel %vm1204, %v7080, 0
      %v7241 = vsel %vm1204, %v7082, 0
      %v7244 = vsel %vm1204, %v7084, 0
      %v7247 = vsel %vm1204, %v7086, 0
      %v7250 = vsel %vm1204, %v7088, 0
      %v7253 = vsel %vm1204, %v7090, 0
      %v7256 = vsel %vm1204, %v7092, 0
      %v7259 = vsel %vm1204, %v7094, 0
      %v7262 = vsel %vm1204, %v7096, 0
      %v7265 = vsel %vm1204, %v7098, 0
      %v7268 = vsel %vm1204, %v7100, 0
      %v7271 = vsel %vm1204, %v7102, 0
      %v7274 = vsel %vm1204, %v7104, 0
      %v7277 = vsel %vm1204, %v7106, 0
      %v7280 = vsel %vm1204, %v7108, 0
      %v7283 = vsel %vm1204, %v7110, 0
      %v7286 = vsel %vm1204, %v7112, 0
      %v7289 = vsel %vm1204, %v7114, 0
      %v7292 = vsel %vm1204, %v7116, 0
      %v7295 = vsel %vm1204, %v7118, 0
      %v7298 = vsel %vm1204, %v7120, 0
      %v7301 = vsel %vm1204, %v7122, 0
      %v7304 = vsel %vm1204, %v7124, 0
      %v7307 = vsel %vm1204, %v7126, 0
      %v7310 = vsel %vm1204, %v7128, 0
      %v7313 = vsel %vm1204, %v7130, 0
      %v7316 = vsel %vm1204, %v7132, 0
      %v7319 = vsel %vm1204, %v7134, 0
      %v7322 = vsel %vm1204, %v7136, 0
      %v7325 = vsel %vm1204, %v7138, 0
      %v7328 = vsel %vm1204, %v7140, 0
      %v7331 = vsel %vm1204, %v7142, 0
      %v7334 = vsel %vm1204, %v7144, 0
      %v7337 = vsel %vm1204, %v7146, 0
      %v7340 = vsel %vm1204, %v7148, 0
      %v7343 = vsel %vm1204, %v7150, 0
      %v7346 = vsel %vm1204, %v7152, 0
      %v7349 = vsel %vm1204, %v7154, 0
      %v7352 = vsel %vm1204, %v7156, 0
      %v7355 = vsel %vm1204, %v7158, 0
      %v7358 = vsel %vm1204, %v7160, 0
      %v7361 = vsel %vm1204, %v7162, 0
      %v7364 = vsel %vm1204, %v7164, 0
      %v7367 = vsel %vm1204, %v7166, 0
      %v7370 = vsel %vm1204, %v7168, 0
      %v7373 = vsel %vm1204, %v7170, 0
      %v7376 = vsel %vm1409, %v6690, 0
      %7378 = vmatpush.bf16.msra.mxu0 0
      %7379 = vmatpush.bf16.msra.mxu0 0
      %7380 = vmatpush.bf16.msra.mxu0 0
      %7381 = vmatpush.bf16.msra.mxu0 0
      %7382 = vmatpush.bf16.msra.mxu0 0
      %7383 = vmatpush.bf16.msra.mxu0 0
      %7384 = vmatpush.bf16.msra.mxu0 0
      %7385 = vmatpush.bf16.msra.mxu0 %v7376
      %7386 = vmatmul.bf16.gmra.mxu0 %v7172
      %v7387 = vpop.f32.mrf.mxu0
      %v7388 = vadd.f32 0.0, %v7387
      %v7389 = vpop.f32.mrf.mxu0
      %v7390 = vadd.f32 0.0, %v7389
      %7391 = vmatmul.bf16.gmra.mxu0 %v7175
      %v7392 = vpop.f32.mrf.mxu0
      %v7393 = vadd.f32 0.0, %v7392
      %v7394 = vpop.f32.mrf.mxu0
      %v7395 = vadd.f32 0.0, %v7394
      %7396 = vmatmul.bf16.gmra.mxu0 %v7178
      %v7397 = vpop.f32.mrf.mxu0
      %v7398 = vadd.f32 0.0, %v7397
      %v7399 = vpop.f32.mrf.mxu0
      %v7400 = vadd.f32 0.0, %v7399
      %7401 = vmatmul.bf16.gmra.mxu0 %v7181
      %v7402 = vpop.f32.mrf.mxu0
      %v7403 = vadd.f32 0.0, %v7402
      %v7404 = vpop.f32.mrf.mxu0
      %v7405 = vadd.f32 0.0, %v7404
      %7406 = vmatmul.bf16.gmra.mxu0 %v7184
      %v7407 = vpop.f32.mrf.mxu0
      %v7408 = vadd.f32 0.0, %v7407
      %v7409 = vpop.f32.mrf.mxu0
      %v7410 = vadd.f32 0.0, %v7409
      %7411 = vmatmul.bf16.gmra.mxu0 %v7187
      %v7412 = vpop.f32.mrf.mxu0
      %v7413 = vadd.f32 0.0, %v7412
      %v7414 = vpop.f32.mrf.mxu0
      %v7415 = vadd.f32 0.0, %v7414
      %7416 = vmatmul.bf16.gmra.mxu0 %v7190
      %v7417 = vpop.f32.mrf.mxu0
      %v7418 = vadd.f32 0.0, %v7417
      %v7419 = vpop.f32.mrf.mxu0
      %v7420 = vadd.f32 0.0, %v7419
      %7421 = vmatmul.bf16.gmra.mxu0 %v7193
      %v7422 = vpop.f32.mrf.mxu0
      %v7423 = vadd.f32 0.0, %v7422
      %v7424 = vpop.f32.mrf.mxu0
      %v7425 = vadd.f32 0.0, %v7424
      %7426 = vmatmul.bf16.gmra.mxu0 %v7196
      %v7427 = vpop.f32.mrf.mxu0
      %v7428 = vadd.f32 0.0, %v7427
      %v7429 = vpop.f32.mrf.mxu0
      %v7430 = vadd.f32 0.0, %v7429
      %7431 = vmatmul.bf16.gmra.mxu0 %v7199
      %v7432 = vpop.f32.mrf.mxu0
      %v7433 = vadd.f32 0.0, %v7432
      %v7434 = vpop.f32.mrf.mxu0
      %v7435 = vadd.f32 0.0, %v7434
      %7436 = vmatmul.bf16.gmra.mxu0 %v7202
      %v7437 = vpop.f32.mrf.mxu0
      %v7438 = vadd.f32 0.0, %v7437
      %v7439 = vpop.f32.mrf.mxu0
      %v7440 = vadd.f32 0.0, %v7439
      %7441 = vmatmul.bf16.gmra.mxu0 %v7205
      %v7442 = vpop.f32.mrf.mxu0
      %v7443 = vadd.f32 0.0, %v7442
      %v7444 = vpop.f32.mrf.mxu0
      %v7445 = vadd.f32 0.0, %v7444
      %7446 = vmatmul.bf16.gmra.mxu0 %v7208
      %v7447 = vpop.f32.mrf.mxu0
      %v7448 = vadd.f32 0.0, %v7447
      %v7449 = vpop.f32.mrf.mxu0
      %v7450 = vadd.f32 0.0, %v7449
      %7451 = vmatmul.bf16.gmra.mxu0 %v7211
      %v7452 = vpop.f32.mrf.mxu0
      %v7453 = vadd.f32 0.0, %v7452
      %v7454 = vpop.f32.mrf.mxu0
      %v7455 = vadd.f32 0.0, %v7454
      %7456 = vmatmul.bf16.gmra.mxu0 %v7214
      %v7457 = vpop.f32.mrf.mxu0
      %v7458 = vadd.f32 0.0, %v7457
      %v7459 = vpop.f32.mrf.mxu0
      %v7460 = vadd.f32 0.0, %v7459
      %7461 = vmatmul.bf16.gmra.mxu0 %v7217
      %v7462 = vpop.f32.mrf.mxu0
      %v7463 = vadd.f32 0.0, %v7462
      %v7464 = vpop.f32.mrf.mxu0
      %v7465 = vadd.f32 0.0, %v7464
      %7466 = vmatmul.bf16.gmra.mxu0 %v7220
      %v7467 = vpop.f32.mrf.mxu0
      %v7468 = vadd.f32 0.0, %v7467
      %v7469 = vpop.f32.mrf.mxu0
      %v7470 = vadd.f32 0.0, %v7469
      %7471 = vmatmul.bf16.gmra.mxu0 %v7223
      %v7472 = vpop.f32.mrf.mxu0
      %v7473 = vadd.f32 0.0, %v7472
      %v7474 = vpop.f32.mrf.mxu0
      %v7475 = vadd.f32 0.0, %v7474
      %7476 = vmatmul.bf16.gmra.mxu0 %v7226
      %v7477 = vpop.f32.mrf.mxu0
      %v7478 = vadd.f32 0.0, %v7477
      %v7479 = vpop.f32.mrf.mxu0
      %v7480 = vadd.f32 0.0, %v7479
      %7481 = vmatmul.bf16.gmra.mxu0 %v7229
      %v7482 = vpop.f32.mrf.mxu0
      %v7483 = vadd.f32 0.0, %v7482
      %v7484 = vpop.f32.mrf.mxu0
      %v7485 = vadd.f32 0.0, %v7484
      %7486 = vmatmul.bf16.gmra.mxu0 %v7232
      %v7487 = vpop.f32.mrf.mxu0
      %v7488 = vadd.f32 0.0, %v7487
      %v7489 = vpop.f32.mrf.mxu0
      %v7490 = vadd.f32 0.0, %v7489
      %7491 = vmatmul.bf16.gmra.mxu0 %v7235
      %v7492 = vpop.f32.mrf.mxu0
      %v7493 = vadd.f32 0.0, %v7492
      %v7494 = vpop.f32.mrf.mxu0
      %v7495 = vadd.f32 0.0, %v7494
      %7496 = vmatmul.bf16.gmra.mxu0 %v7238
      %v7497 = vpop.f32.mrf.mxu0
      %v7498 = vadd.f32 0.0, %v7497
      %v7499 = vpop.f32.mrf.mxu0
      %v7500 = vadd.f32 0.0, %v7499
      %7501 = vmatmul.bf16.gmra.mxu0 %v7241
      %v7502 = vpop.f32.mrf.mxu0
      %v7503 = vadd.f32 0.0, %v7502
      %v7504 = vpop.f32.mrf.mxu0
      %v7505 = vadd.f32 0.0, %v7504
      %7506 = vmatmul.bf16.gmra.mxu0 %v7244
      %v7507 = vpop.f32.mrf.mxu0
      %v7508 = vadd.f32 0.0, %v7507
      %v7509 = vpop.f32.mrf.mxu0
      %v7510 = vadd.f32 0.0, %v7509
      %7511 = vmatmul.bf16.gmra.mxu0 %v7247
      %v7512 = vpop.f32.mrf.mxu0
      %v7513 = vadd.f32 0.0, %v7512
      %v7514 = vpop.f32.mrf.mxu0
      %v7515 = vadd.f32 0.0, %v7514
      %7516 = vmatmul.bf16.gmra.mxu0 %v7250
      %v7517 = vpop.f32.mrf.mxu0
      %v7518 = vadd.f32 0.0, %v7517
      %v7519 = vpop.f32.mrf.mxu0
      %v7520 = vadd.f32 0.0, %v7519
      %7521 = vmatmul.bf16.gmra.mxu0 %v7253
      %v7522 = vpop.f32.mrf.mxu0
      %v7523 = vadd.f32 0.0, %v7522
      %v7524 = vpop.f32.mrf.mxu0
      %v7525 = vadd.f32 0.0, %v7524
      %7526 = vmatmul.bf16.gmra.mxu0 %v7256
      %v7527 = vpop.f32.mrf.mxu0
      %v7528 = vadd.f32 0.0, %v7527
      %v7529 = vpop.f32.mrf.mxu0
      %v7530 = vadd.f32 0.0, %v7529
      %7531 = vmatmul.bf16.gmra.mxu0 %v7259
      %v7532 = vpop.f32.mrf.mxu0
      %v7533 = vadd.f32 0.0, %v7532
      %v7534 = vpop.f32.mrf.mxu0
      %v7535 = vadd.f32 0.0, %v7534
      %7536 = vmatmul.bf16.gmra.mxu0 %v7262
      %v7537 = vpop.f32.mrf.mxu0
      %v7538 = vadd.f32 0.0, %v7537
      %v7539 = vpop.f32.mrf.mxu0
      %v7540 = vadd.f32 0.0, %v7539
      %7541 = vmatmul.bf16.gmra.mxu0 %v7265
      %v7542 = vpop.f32.mrf.mxu0
      %v7543 = vadd.f32 0.0, %v7542
      %v7544 = vpop.f32.mrf.mxu0
      %v7545 = vadd.f32 0.0, %v7544
      %7546 = vmatmul.bf16.gmra.mxu0 %v7268
      %v7547 = vpop.f32.mrf.mxu0
      %v7548 = vadd.f32 0.0, %v7547
      %v7549 = vpop.f32.mrf.mxu0
      %v7550 = vadd.f32 0.0, %v7549
      %7551 = vmatmul.bf16.gmra.mxu0 %v7271
      %v7552 = vpop.f32.mrf.mxu0
      %v7553 = vadd.f32 0.0, %v7552
      %v7554 = vpop.f32.mrf.mxu0
      %v7555 = vadd.f32 0.0, %v7554
      %7556 = vmatmul.bf16.gmra.mxu0 %v7274
      %v7557 = vpop.f32.mrf.mxu0
      %v7558 = vadd.f32 0.0, %v7557
      %v7559 = vpop.f32.mrf.mxu0
      %v7560 = vadd.f32 0.0, %v7559
      %7561 = vmatmul.bf16.gmra.mxu0 %v7277
      %v7562 = vpop.f32.mrf.mxu0
      %v7563 = vadd.f32 0.0, %v7562
      %v7564 = vpop.f32.mrf.mxu0
      %v7565 = vadd.f32 0.0, %v7564
      %7566 = vmatmul.bf16.gmra.mxu0 %v7280
      %v7567 = vpop.f32.mrf.mxu0
      %v7568 = vadd.f32 0.0, %v7567
      %v7569 = vpop.f32.mrf.mxu0
      %v7570 = vadd.f32 0.0, %v7569
      %7571 = vmatmul.bf16.gmra.mxu0 %v7283
      %v7572 = vpop.f32.mrf.mxu0
      %v7573 = vadd.f32 0.0, %v7572
      %v7574 = vpop.f32.mrf.mxu0
      %v7575 = vadd.f32 0.0, %v7574
      %7576 = vmatmul.bf16.gmra.mxu0 %v7286
      %v7577 = vpop.f32.mrf.mxu0
      %v7578 = vadd.f32 0.0, %v7577
      %v7579 = vpop.f32.mrf.mxu0
      %v7580 = vadd.f32 0.0, %v7579
      %7581 = vmatmul.bf16.gmra.mxu0 %v7289
      %v7582 = vpop.f32.mrf.mxu0
      %v7583 = vadd.f32 0.0, %v7582
      %v7584 = vpop.f32.mrf.mxu0
      %v7585 = vadd.f32 0.0, %v7584
      %7586 = vmatmul.bf16.gmra.mxu0 %v7292
      %v7587 = vpop.f32.mrf.mxu0
      %v7588 = vadd.f32 0.0, %v7587
      %v7589 = vpop.f32.mrf.mxu0
      %v7590 = vadd.f32 0.0, %v7589
      %7591 = vmatmul.bf16.gmra.mxu0 %v7295
      %v7592 = vpop.f32.mrf.mxu0
      %v7593 = vadd.f32 0.0, %v7592
      %v7594 = vpop.f32.mrf.mxu0
      %v7595 = vadd.f32 0.0, %v7594
      %7596 = vmatmul.bf16.gmra.mxu0 %v7298
      %v7597 = vpop.f32.mrf.mxu0
      %v7598 = vadd.f32 0.0, %v7597
      %v7599 = vpop.f32.mrf.mxu0
      %v7600 = vadd.f32 0.0, %v7599
      %7601 = vmatmul.bf16.gmra.mxu0 %v7301
      %v7602 = vpop.f32.mrf.mxu0
      %v7603 = vadd.f32 0.0, %v7602
      %v7604 = vpop.f32.mrf.mxu0
      %v7605 = vadd.f32 0.0, %v7604
      %7606 = vmatmul.bf16.gmra.mxu0 %v7304
      %v7607 = vpop.f32.mrf.mxu0
      %v7608 = vadd.f32 0.0, %v7607
      %v7609 = vpop.f32.mrf.mxu0
      %v7610 = vadd.f32 0.0, %v7609
      %7611 = vmatmul.bf16.gmra.mxu0 %v7307
      %v7612 = vpop.f32.mrf.mxu0
      %v7613 = vadd.f32 0.0, %v7612
      %v7614 = vpop.f32.mrf.mxu0
      %v7615 = vadd.f32 0.0, %v7614
      %7616 = vmatmul.bf16.gmra.mxu0 %v7310
      %v7617 = vpop.f32.mrf.mxu0
      %v7618 = vadd.f32 0.0, %v7617
      %v7619 = vpop.f32.mrf.mxu0
      %v7620 = vadd.f32 0.0, %v7619
      %7621 = vmatmul.bf16.gmra.mxu0 %v7313
      %v7622 = vpop.f32.mrf.mxu0
      %v7623 = vadd.f32 0.0, %v7622
      %v7624 = vpop.f32.mrf.mxu0
      %v7625 = vadd.f32 0.0, %v7624
      %7626 = vmatmul.bf16.gmra.mxu0 %v7316
      %v7627 = vpop.f32.mrf.mxu0
      %v7628 = vadd.f32 0.0, %v7627
      %v7629 = vpop.f32.mrf.mxu0
      %v7630 = vadd.f32 0.0, %v7629
      %7631 = vmatmul.bf16.gmra.mxu0 %v7319
      %v7632 = vpop.f32.mrf.mxu0
      %v7633 = vadd.f32 0.0, %v7632
      %v7634 = vpop.f32.mrf.mxu0
      %v7635 = vadd.f32 0.0, %v7634
      %7636 = vmatmul.bf16.gmra.mxu0 %v7322
      %v7637 = vpop.f32.mrf.mxu0
      %v7638 = vadd.f32 0.0, %v7637
      %v7639 = vpop.f32.mrf.mxu0
      %v7640 = vadd.f32 0.0, %v7639
      %7641 = vmatmul.bf16.gmra.mxu0 %v7325
      %v7642 = vpop.f32.mrf.mxu0
      %v7643 = vadd.f32 0.0, %v7642
      %v7644 = vpop.f32.mrf.mxu0
      %v7645 = vadd.f32 0.0, %v7644
      %7646 = vmatmul.bf16.gmra.mxu0 %v7328
      %v7647 = vpop.f32.mrf.mxu0
      %v7648 = vadd.f32 0.0, %v7647
      %v7649 = vpop.f32.mrf.mxu0
      %v7650 = vadd.f32 0.0, %v7649
      %7651 = vmatmul.bf16.gmra.mxu0 %v7331
      %v7652 = vpop.f32.mrf.mxu0
      %v7653 = vadd.f32 0.0, %v7652
      %v7654 = vpop.f32.mrf.mxu0
      %v7655 = vadd.f32 0.0, %v7654
      %7656 = vmatmul.bf16.gmra.mxu0 %v7334
      %v7657 = vpop.f32.mrf.mxu0
      %v7658 = vadd.f32 0.0, %v7657
      %v7659 = vpop.f32.mrf.mxu0
      %v7660 = vadd.f32 0.0, %v7659
      %7661 = vmatmul.bf16.gmra.mxu0 %v7337
      %v7662 = vpop.f32.mrf.mxu0
      %v7663 = vadd.f32 0.0, %v7662
      %v7664 = vpop.f32.mrf.mxu0
      %v7665 = vadd.f32 0.0, %v7664
      %7666 = vmatmul.bf16.gmra.mxu0 %v7340
      %v7667 = vpop.f32.mrf.mxu0
      %v7668 = vadd.f32 0.0, %v7667
      %v7669 = vpop.f32.mrf.mxu0
      %v7670 = vadd.f32 0.0, %v7669
      %7671 = vmatmul.bf16.gmra.mxu0 %v7343
      %v7672 = vpop.f32.mrf.mxu0
      %v7673 = vadd.f32 0.0, %v7672
      %v7674 = vpop.f32.mrf.mxu0
      %v7675 = vadd.f32 0.0, %v7674
      %7676 = vmatmul.bf16.gmra.mxu0 %v7346
      %v7677 = vpop.f32.mrf.mxu0
      %v7678 = vadd.f32 0.0, %v7677
      %v7679 = vpop.f32.mrf.mxu0
      %v7680 = vadd.f32 0.0, %v7679
      %7681 = vmatmul.bf16.gmra.mxu0 %v7349
      %v7682 = vpop.f32.mrf.mxu0
      %v7683 = vadd.f32 0.0, %v7682
      %v7684 = vpop.f32.mrf.mxu0
      %v7685 = vadd.f32 0.0, %v7684
      %7686 = vmatmul.bf16.gmra.mxu0 %v7352
      %v7687 = vpop.f32.mrf.mxu0
      %v7688 = vadd.f32 0.0, %v7687
      %v7689 = vpop.f32.mrf.mxu0
      %v7690 = vadd.f32 0.0, %v7689
      %7691 = vmatmul.bf16.gmra.mxu0 %v7355
      %v7692 = vpop.f32.mrf.mxu0
      %v7693 = vadd.f32 0.0, %v7692
      %v7694 = vpop.f32.mrf.mxu0
      %v7695 = vadd.f32 0.0, %v7694
      %7696 = vmatmul.bf16.gmra.mxu0 %v7358
      %v7697 = vpop.f32.mrf.mxu0
      %v7698 = vadd.f32 0.0, %v7697
      %v7699 = vpop.f32.mrf.mxu0
      %v7700 = vadd.f32 0.0, %v7699
      %7701 = vmatmul.bf16.gmra.mxu0 %v7361
      %v7702 = vpop.f32.mrf.mxu0
      %v7703 = vadd.f32 0.0, %v7702
      %v7704 = vpop.f32.mrf.mxu0
      %v7705 = vadd.f32 0.0, %v7704
      %7706 = vmatmul.bf16.gmra.mxu0 %v7364
      %v7707 = vpop.f32.mrf.mxu0
      %v7708 = vadd.f32 0.0, %v7707
      %v7709 = vpop.f32.mrf.mxu0
      %v7710 = vadd.f32 0.0, %v7709
      %7711 = vmatmul.bf16.gmra.mxu0 %v7367
      %v7712 = vpop.f32.mrf.mxu0
      %v7713 = vadd.f32 0.0, %v7712
      %v7714 = vpop.f32.mrf.mxu0
      %v7715 = vadd.f32 0.0, %v7714
      %7716 = vmatmul.bf16.gmra.mxu0 %v7370
      %v7717 = vpop.f32.mrf.mxu0
      %v7718 = vadd.f32 0.0, %v7717
      %v7719 = vpop.f32.mrf.mxu0
      %v7720 = vadd.f32 0.0, %v7719
      %7721 = vmatmul.bf16.gmra.mxu0 %v7373
      %v7722 = vpop.f32.mrf.mxu0
      %v7723 = vadd.f32 0.0, %v7722
      %v7724 = vpop.f32.mrf.mxu0
      %v7725 = vadd.f32 0.0, %v7724
      %7726 = vdwg.mxu0
      %v7727 = vadd.f32 %v6416, %v7388
      %v7728 = vadd.f32 %v6417, %v7390
      %v7729 = vadd.f32 %v6418, %v7393
      %v7730 = vadd.f32 %v6419, %v7395
      %v7731 = vadd.f32 %v6420, %v7398
      %v7732 = vadd.f32 %v6421, %v7400
      %v7733 = vadd.f32 %v6422, %v7403
      %v7734 = vadd.f32 %v6423, %v7405
      %v7735 = vadd.f32 %v6424, %v7408
      %v7736 = vadd.f32 %v6425, %v7410
      %v7737 = vadd.f32 %v6426, %v7413
      %v7738 = vadd.f32 %v6427, %v7415
      %v7739 = vadd.f32 %v6428, %v7418
      %v7740 = vadd.f32 %v6429, %v7420
      %v7741 = vadd.f32 %v6430, %v7423
      %v7742 = vadd.f32 %v6431, %v7425
      %v7743 = vadd.f32 %v6432, %v7428
      %v7744 = vadd.f32 %v6433, %v7430
      %v7745 = vadd.f32 %v6434, %v7433
      %v7746 = vadd.f32 %v6435, %v7435
      %v7747 = vadd.f32 %v6436, %v7438
      %v7748 = vadd.f32 %v6437, %v7440
      %v7749 = vadd.f32 %v6438, %v7443
      %v7750 = vadd.f32 %v6439, %v7445
      %v7751 = vadd.f32 %v6440, %v7448
      %v7752 = vadd.f32 %v6441, %v7450
      %v7753 = vadd.f32 %v6442, %v7453
      %v7754 = vadd.f32 %v6443, %v7455
      %v7755 = vadd.f32 %v6444, %v7458
      %v7756 = vadd.f32 %v6445, %v7460
      %v7757 = vadd.f32 %v6446, %v7463
      %v7758 = vadd.f32 %v6447, %v7465
      %v7759 = vadd.f32 %v6448, %v7468
      %v7760 = vadd.f32 %v6449, %v7470
      %v7761 = vadd.f32 %v6450, %v7473
      %v7762 = vadd.f32 %v6451, %v7475
      %v7763 = vadd.f32 %v6452, %v7478
      %v7764 = vadd.f32 %v6453, %v7480
      %v7765 = vadd.f32 %v6454, %v7483
      %v7766 = vadd.f32 %v6455, %v7485
      %v7767 = vadd.f32 %v6456, %v7488
      %v7768 = vadd.f32 %v6457, %v7490
      %v7769 = vadd.f32 %v6458, %v7493
      %v7770 = vadd.f32 %v6459, %v7495
      %v7771 = vadd.f32 %v6460, %v7498
      %v7772 = vadd.f32 %v6461, %v7500
      %v7773 = vadd.f32 %v6462, %v7503
      %v7774 = vadd.f32 %v6463, %v7505
      %v7775 = vadd.f32 %v6464, %v7508
      %v7776 = vadd.f32 %v6465, %v7510
      %v7777 = vadd.f32 %v6466, %v7513
      %v7778 = vadd.f32 %v6467, %v7515
      %v7779 = vadd.f32 %v6468, %v7518
      %v7780 = vadd.f32 %v6469, %v7520
      %v7781 = vadd.f32 %v6470, %v7523
      %v7782 = vadd.f32 %v6471, %v7525
      %v7783 = vadd.f32 %v6472, %v7528
      %v7784 = vadd.f32 %v6473, %v7530
      %v7785 = vadd.f32 %v6474, %v7533
      %v7786 = vadd.f32 %v6475, %v7535
      %v7787 = vadd.f32 %v6476, %v7538
      %v7788 = vadd.f32 %v6477, %v7540
      %v7789 = vadd.f32 %v6478, %v7543
      %v7790 = vadd.f32 %v6479, %v7545
      %v7791 = vadd.f32 %v6480, %v7548
      %v7792 = vadd.f32 %v6481, %v7550
      %v7793 = vadd.f32 %v6482, %v7553
      %v7794 = vadd.f32 %v6483, %v7555
      %v7795 = vadd.f32 %v6484, %v7558
      %v7796 = vadd.f32 %v6485, %v7560
      %v7797 = vadd.f32 %v6486, %v7563
      %v7798 = vadd.f32 %v6487, %v7565
      %v7799 = vadd.f32 %v6488, %v7568
      %v7800 = vadd.f32 %v6489, %v7570
      %v7801 = vadd.f32 %v6490, %v7573
      %v7802 = vadd.f32 %v6491, %v7575
      %v7803 = vadd.f32 %v6492, %v7578
      %v7804 = vadd.f32 %v6493, %v7580
      %v7805 = vadd.f32 %v6494, %v7583
      %v7806 = vadd.f32 %v6495, %v7585
      %v7807 = vadd.f32 %v6496, %v7588
      %v7808 = vadd.f32 %v6497, %v7590
      %v7809 = vadd.f32 %v6498, %v7593
      %v7810 = vadd.f32 %v6499, %v7595
      %v7811 = vadd.f32 %v6500, %v7598
      %v7812 = vadd.f32 %v6501, %v7600
      %v7813 = vadd.f32 %v6502, %v7603
      %v7814 = vadd.f32 %v6503, %v7605
      %v7815 = vadd.f32 %v6504, %v7608
      %v7816 = vadd.f32 %v6505, %v7610
      %v7817 = vadd.f32 %v6506, %v7613
      %v7818 = vadd.f32 %v6507, %v7615
      %v7819 = vadd.f32 %v6508, %v7618
      %v7820 = vadd.f32 %v6509, %v7620
      %v7821 = vadd.f32 %v6510, %v7623
      %v7822 = vadd.f32 %v6511, %v7625
      %v7823 = vadd.f32 %v6512, %v7628
      %v7824 = vadd.f32 %v6513, %v7630
      %v7825 = vadd.f32 %v6514, %v7633
      %v7826 = vadd.f32 %v6515, %v7635
      %v7827 = vadd.f32 %v6516, %v7638
      %v7828 = vadd.f32 %v6517, %v7640
      %v7829 = vadd.f32 %v6518, %v7643
      %v7830 = vadd.f32 %v6519, %v7645
      %v7831 = vadd.f32 %v6520, %v7648
      %v7832 = vadd.f32 %v6521, %v7650
      %v7833 = vadd.f32 %v6522, %v7653
      %v7834 = vadd.f32 %v6523, %v7655
      %v7835 = vadd.f32 %v6524, %v7658
      %v7836 = vadd.f32 %v6525, %v7660
      %v7837 = vadd.f32 %v6526, %v7663
      %v7838 = vadd.f32 %v6527, %v7665
      %v7839 = vadd.f32 %v6528, %v7668
      %v7840 = vadd.f32 %v6529, %v7670
      %v7841 = vadd.f32 %v6530, %v7673
      %v7842 = vadd.f32 %v6531, %v7675
      %v7843 = vadd.f32 %v6532, %v7678
      %v7844 = vadd.f32 %v6533, %v7680
      %v7845 = vadd.f32 %v6534, %v7683
      %v7846 = vadd.f32 %v6535, %v7685
      %v7847 = vadd.f32 %v6536, %v7688
      %v7848 = vadd.f32 %v6537, %v7690
      %v7849 = vadd.f32 %v6538, %v7693
      %v7850 = vadd.f32 %v6539, %v7695
      %v7851 = vadd.f32 %v6540, %v7698
      %v7852 = vadd.f32 %v6541, %v7700
      %v7853 = vadd.f32 %v6542, %v7703
      %v7854 = vadd.f32 %v6543, %v7705
      %v7855 = vadd.f32 %v6544, %v7708
      %v7856 = vadd.f32 %v6545, %v7710
      %v7857 = vadd.f32 %v6546, %v7713
      %v7858 = vadd.f32 %v6547, %v7715
      %v7859 = vadd.f32 %v6548, %v7718
      %v7860 = vadd.f32 %v6549, %v7720
      %v7861 = vadd.f32 %v6550, %v7723
      %v7862 = vadd.f32 %v6551, %v7725
      %v7863 = vld [vmem:[%s165 + $0x240] sm:$0x7]
      %s7864 = scalar_lea.vmem %s1, 28
      %v7865 = vld [vmem:[%s7864] sm:$0xf]
      %v7867 = vunpack.c.l.b16 %v7863
      %v7868 = vpack.c.b16 %v7867, %v7867
      %vm7869 = vsmask.f32 5376
      %v7871 = vshrl.u32 %v6965, 16
      %v7873 = vrot.slane %v7871, 2
      %v7874 = vshll.u32 %v6965, 16
      %v7876 = vrot.slane %v7874, 3
      %v7877 = vor.u32 %v7873, %v7876
      %v7879 = vshrl.u32 %v6966, 16
      %v7881 = vrot.slane %v7879, 2
      %v7882 = vshll.u32 %v6966, 16
      %v7884 = vrot.slane %v7882, 3
      %v7885 = vor.u32 %v7881, %v7884
      %v7886 = vsel %vm7869, %v7877, %v7885
      %v7888 = vshrl.u32 %v6967, 16
      %v7890 = vrot.slane %v7888, 2
      %v7891 = vshll.u32 %v6967, 16
      %v7893 = vrot.slane %v7891, 3
      %v7894 = vor.u32 %v7890, %v7893
      %v7895 = vsel %vm7869, %v7885, %v7894
      %v7897 = vshrl.u32 %v6968, 16
      %v7899 = vrot.slane %v7897, 2
      %v7900 = vshll.u32 %v6968, 16
      %v7902 = vrot.slane %v7900, 3
      %v7903 = vor.u32 %v7899, %v7902
      %v7904 = vsel %vm7869, %v7894, %v7903
      %v7906 = vshrl.u32 %v6969, 16
      %v7908 = vrot.slane %v7906, 2
      %v7909 = vshll.u32 %v6969, 16
      %v7911 = vrot.slane %v7909, 3
      %v7912 = vor.u32 %v7908, %v7911
      %v7913 = vsel %vm7869, %v7903, %v7912
      %v7915 = vshrl.u32 %v6970, 16
      %v7917 = vrot.slane %v7915, 2
      %v7918 = vshll.u32 %v6970, 16
      %v7920 = vrot.slane %v7918, 3
      %v7921 = vor.u32 %v7917, %v7920
      %v7922 = vsel %vm7869, %v7912, %v7921
      %v7924 = vshrl.u32 %v6971, 16
      %v7926 = vrot.slane %v7924, 2
      %v7927 = vshll.u32 %v6971, 16
      %v7929 = vrot.slane %v7927, 3
      %v7930 = vor.u32 %v7926, %v7929
      %v7931 = vsel %vm7869, %v7921, %v7930
      %v7933 = vshrl.u32 %v6972, 16
      %v7935 = vrot.slane %v7933, 2
      %v7936 = vshll.u32 %v6972, 16
      %v7938 = vrot.slane %v7936, 3
      %v7939 = vor.u32 %v7935, %v7938
      %v7940 = vsel %vm7869, %v7930, %v7939
      %v7942 = vshrl.u32 %v6973, 16
      %v7944 = vrot.slane %v7942, 2
      %v7945 = vshll.u32 %v6973, 16
      %v7947 = vrot.slane %v7945, 3
      %v7948 = vor.u32 %v7944, %v7947
      %v7949 = vsel %vm7869, %v7939, %v7948
      %v7951 = vshrl.u32 %v6974, 16
      %v7953 = vrot.slane %v7951, 2
      %v7954 = vshll.u32 %v6974, 16
      %v7956 = vrot.slane %v7954, 3
      %v7957 = vor.u32 %v7953, %v7956
      %v7958 = vsel %vm7869, %v7948, %v7957
      %v7960 = vshrl.u32 %v6975, 16
      %v7962 = vrot.slane %v7960, 2
      %v7963 = vshll.u32 %v6975, 16
      %v7965 = vrot.slane %v7963, 3
      %v7966 = vor.u32 %v7962, %v7965
      %v7967 = vsel %vm7869, %v7957, %v7966
      %v7969 = vshrl.u32 %v6976, 16
      %v7971 = vrot.slane %v7969, 2
      %v7972 = vshll.u32 %v6976, 16
      %v7974 = vrot.slane %v7972, 3
      %v7975 = vor.u32 %v7971, %v7974
      %v7976 = vsel %vm7869, %v7966, %v7975
      %v7978 = vshrl.u32 %v6977, 16
      %v7980 = vrot.slane %v7978, 2
      %v7981 = vshll.u32 %v6977, 16
      %v7983 = vrot.slane %v7981, 3
      %v7984 = vor.u32 %v7980, %v7983
      %v7985 = vsel %vm7869, %v7975, %v7984
      %v7987 = vshrl.u32 %v6978, 16
      %v7989 = vrot.slane %v7987, 2
      %v7990 = vshll.u32 %v6978, 16
      %v7992 = vrot.slane %v7990, 3
      %v7993 = vor.u32 %v7989, %v7992
      %v7994 = vsel %vm7869, %v7984, %v7993
      %v7996 = vshrl.u32 %v6979, 16
      %v7998 = vrot.slane %v7996, 2
      %v7999 = vshll.u32 %v6979, 16
      %v8001 = vrot.slane %v7999, 3
      %v8002 = vor.u32 %v7998, %v8001
      %v8003 = vsel %vm7869, %v7993, %v8002
      %v8005 = vshrl.u32 %v6980, 16
      %v8007 = vrot.slane %v8005, 2
      %v8008 = vshll.u32 %v6980, 16
      %v8010 = vrot.slane %v8008, 3
      %v8011 = vor.u32 %v8007, %v8010
      %v8012 = vsel %vm7869, %v8002, %v8011
      %v8014 = vshrl.u32 %v6981, 16
      %v8016 = vrot.slane %v8014, 2
      %v8017 = vshll.u32 %v6981, 16
      %v8019 = vrot.slane %v8017, 3
      %v8020 = vor.u32 %v8016, %v8019
      %v8021 = vsel %vm7869, %v8011, %v8020
      %v8023 = vshrl.u32 %v6982, 16
      %v8025 = vrot.slane %v8023, 2
      %v8026 = vshll.u32 %v6982, 16
      %v8028 = vrot.slane %v8026, 3
      %v8029 = vor.u32 %v8025, %v8028
      %v8030 = vsel %vm7869, %v8020, %v8029
      %v8032 = vshrl.u32 %v6983, 16
      %v8034 = vrot.slane %v8032, 2
      %v8035 = vshll.u32 %v6983, 16
      %v8037 = vrot.slane %v8035, 3
      %v8038 = vor.u32 %v8034, %v8037
      %v8039 = vsel %vm7869, %v8029, %v8038
      %v8041 = vshrl.u32 %v6984, 16
      %v8043 = vrot.slane %v8041, 2
      %v8044 = vshll.u32 %v6984, 16
      %v8046 = vrot.slane %v8044, 3
      %v8047 = vor.u32 %v8043, %v8046
      %v8048 = vsel %vm7869, %v8038, %v8047
      %v8050 = vshrl.u32 %v6985, 16
      %v8052 = vrot.slane %v8050, 2
      %v8053 = vshll.u32 %v6985, 16
      %v8055 = vrot.slane %v8053, 3
      %v8056 = vor.u32 %v8052, %v8055
      %v8057 = vsel %vm7869, %v8047, %v8056
      %v8059 = vshrl.u32 %v6986, 16
      %v8061 = vrot.slane %v8059, 2
      %v8062 = vshll.u32 %v6986, 16
      %v8064 = vrot.slane %v8062, 3
      %v8065 = vor.u32 %v8061, %v8064
      %v8066 = vsel %vm7869, %v8056, %v8065
      %v8068 = vshrl.u32 %v6987, 16
      %v8070 = vrot.slane %v8068, 2
      %v8071 = vshll.u32 %v6987, 16
      %v8073 = vrot.slane %v8071, 3
      %v8074 = vor.u32 %v8070, %v8073
      %v8075 = vsel %vm7869, %v8065, %v8074
      %v8077 = vshrl.u32 %v6988, 16
      %v8079 = vrot.slane %v8077, 2
      %v8080 = vshll.u32 %v6988, 16
      %v8082 = vrot.slane %v8080, 3
      %v8083 = vor.u32 %v8079, %v8082
      %v8084 = vsel %vm7869, %v8074, %v8083
      %v8086 = vshrl.u32 %v6989, 16
      %v8088 = vrot.slane %v8086, 2
      %v8089 = vshll.u32 %v6989, 16
      %v8091 = vrot.slane %v8089, 3
      %v8092 = vor.u32 %v8088, %v8091
      %v8093 = vsel %vm7869, %v8083, %v8092
      %v8095 = vshrl.u32 %v6990, 16
      %v8097 = vrot.slane %v8095, 2
      %v8098 = vshll.u32 %v6990, 16
      %v8100 = vrot.slane %v8098, 3
      %v8101 = vor.u32 %v8097, %v8100
      %v8102 = vsel %vm7869, %v8092, %v8101
      %v8104 = vshrl.u32 %v6991, 16
      %v8106 = vrot.slane %v8104, 2
      %v8107 = vshll.u32 %v6991, 16
      %v8109 = vrot.slane %v8107, 3
      %v8110 = vor.u32 %v8106, %v8109
      %v8111 = vsel %vm7869, %v8101, %v8110
      %v8113 = vshrl.u32 %v6992, 16
      %v8115 = vrot.slane %v8113, 2
      %v8116 = vshll.u32 %v6992, 16
      %v8118 = vrot.slane %v8116, 3
      %v8119 = vor.u32 %v8115, %v8118
      %v8120 = vsel %vm7869, %v8110, %v8119
      %v8122 = vshrl.u32 %v6993, 16
      %v8124 = vrot.slane %v8122, 2
      %v8125 = vshll.u32 %v6993, 16
      %v8127 = vrot.slane %v8125, 3
      %v8128 = vor.u32 %v8124, %v8127
      %v8129 = vsel %vm7869, %v8119, %v8128
      %v8131 = vshrl.u32 %v6994, 16
      %v8133 = vrot.slane %v8131, 2
      %v8134 = vshll.u32 %v6994, 16
      %v8136 = vrot.slane %v8134, 3
      %v8137 = vor.u32 %v8133, %v8136
      %v8138 = vsel %vm7869, %v8128, %v8137
      %v8140 = vshrl.u32 %v6995, 16
      %v8142 = vrot.slane %v8140, 2
      %v8143 = vshll.u32 %v6995, 16
      %v8145 = vrot.slane %v8143, 3
      %v8146 = vor.u32 %v8142, %v8145
      %v8147 = vsel %vm7869, %v8137, %v8146
      %v8149 = vshrl.u32 %v6996, 16
      %v8151 = vrot.slane %v8149, 2
      %v8152 = vshll.u32 %v6996, 16
      %v8154 = vrot.slane %v8152, 3
      %v8155 = vor.u32 %v8151, %v8154
      %v8156 = vsel %vm7869, %v8146, %v8155
      %v8158 = vshrl.u32 %v6997, 16
      %v8160 = vrot.slane %v8158, 2
      %v8161 = vshll.u32 %v6997, 16
      %v8163 = vrot.slane %v8161, 3
      %v8164 = vor.u32 %v8160, %v8163
      %v8165 = vsel %vm7869, %v8155, %v8164
      %v8167 = vshrl.u32 %v6998, 16
      %v8169 = vrot.slane %v8167, 2
      %v8170 = vshll.u32 %v6998, 16
      %v8172 = vrot.slane %v8170, 3
      %v8173 = vor.u32 %v8169, %v8172
      %v8174 = vsel %vm7869, %v8164, %v8173
      %v8176 = vshrl.u32 %v6999, 16
      %v8178 = vrot.slane %v8176, 2
      %v8179 = vshll.u32 %v6999, 16
      %v8181 = vrot.slane %v8179, 3
      %v8182 = vor.u32 %v8178, %v8181
      %v8183 = vsel %vm7869, %v8173, %v8182
      %v8185 = vshrl.u32 %v7000, 16
      %v8187 = vrot.slane %v8185, 2
      %v8188 = vshll.u32 %v7000, 16
      %v8190 = vrot.slane %v8188, 3
      %v8191 = vor.u32 %v8187, %v8190
      %v8192 = vsel %vm7869, %v8182, %v8191
      %v8194 = vshrl.u32 %v7001, 16
      %v8196 = vrot.slane %v8194, 2
      %v8197 = vshll.u32 %v7001, 16
      %v8199 = vrot.slane %v8197, 3
      %v8200 = vor.u32 %v8196, %v8199
      %v8201 = vsel %vm7869, %v8191, %v8200
      %v8203 = vshrl.u32 %v7002, 16
      %v8205 = vrot.slane %v8203, 2
      %v8206 = vshll.u32 %v7002, 16
      %v8208 = vrot.slane %v8206, 3
      %v8209 = vor.u32 %v8205, %v8208
      %v8210 = vsel %vm7869, %v8200, %v8209
      %v8212 = vshrl.u32 %v7003, 16
      %v8214 = vrot.slane %v8212, 2
      %v8215 = vshll.u32 %v7003, 16
      %v8217 = vrot.slane %v8215, 3
      %v8218 = vor.u32 %v8214, %v8217
      %v8219 = vsel %vm7869, %v8209, %v8218
      %v8221 = vshrl.u32 %v7004, 16
      %v8223 = vrot.slane %v8221, 2
      %v8224 = vshll.u32 %v7004, 16
      %v8226 = vrot.slane %v8224, 3
      %v8227 = vor.u32 %v8223, %v8226
      %v8228 = vsel %vm7869, %v8218, %v8227
      %v8230 = vshrl.u32 %v7005, 16
      %v8232 = vrot.slane %v8230, 2
      %v8233 = vshll.u32 %v7005, 16
      %v8235 = vrot.slane %v8233, 3
      %v8236 = vor.u32 %v8232, %v8235
      %v8237 = vsel %vm7869, %v8227, %v8236
      %v8239 = vshrl.u32 %v7006, 16
      %v8241 = vrot.slane %v8239, 2
      %v8242 = vshll.u32 %v7006, 16
      %v8244 = vrot.slane %v8242, 3
      %v8245 = vor.u32 %v8241, %v8244
      %v8246 = vsel %vm7869, %v8236, %v8245
      %v8248 = vshrl.u32 %v7007, 16
      %v8250 = vrot.slane %v8248, 2
      %v8251 = vshll.u32 %v7007, 16
      %v8253 = vrot.slane %v8251, 3
      %v8254 = vor.u32 %v8250, %v8253
      %v8255 = vsel %vm7869, %v8245, %v8254
      %v8257 = vshrl.u32 %v7008, 16
      %v8259 = vrot.slane %v8257, 2
      %v8260 = vshll.u32 %v7008, 16
      %v8262 = vrot.slane %v8260, 3
      %v8263 = vor.u32 %v8259, %v8262
      %v8264 = vsel %vm7869, %v8254, %v8263
      %v8266 = vshrl.u32 %v7009, 16
      %v8268 = vrot.slane %v8266, 2
      %v8269 = vshll.u32 %v7009, 16
      %v8271 = vrot.slane %v8269, 3
      %v8272 = vor.u32 %v8268, %v8271
      %v8273 = vsel %vm7869, %v8263, %v8272
      %v8275 = vshrl.u32 %v7010, 16
      %v8277 = vrot.slane %v8275, 2
      %v8278 = vshll.u32 %v7010, 16
      %v8280 = vrot.slane %v8278, 3
      %v8281 = vor.u32 %v8277, %v8280
      %v8282 = vsel %vm7869, %v8272, %v8281
      %v8284 = vshrl.u32 %v7011, 16
      %v8286 = vrot.slane %v8284, 2
      %v8287 = vshll.u32 %v7011, 16
      %v8289 = vrot.slane %v8287, 3
      %v8290 = vor.u32 %v8286, %v8289
      %v8291 = vsel %vm7869, %v8281, %v8290
      %v8293 = vshrl.u32 %v7012, 16
      %v8295 = vrot.slane %v8293, 2
      %v8296 = vshll.u32 %v7012, 16
      %v8298 = vrot.slane %v8296, 3
      %v8299 = vor.u32 %v8295, %v8298
      %v8300 = vsel %vm7869, %v8290, %v8299
      %v8302 = vshrl.u32 %v7013, 16
      %v8304 = vrot.slane %v8302, 2
      %v8305 = vshll.u32 %v7013, 16
      %v8307 = vrot.slane %v8305, 3
      %v8308 = vor.u32 %v8304, %v8307
      %v8309 = vsel %vm7869, %v8299, %v8308
      %v8311 = vshrl.u32 %v7014, 16
      %v8313 = vrot.slane %v8311, 2
      %v8314 = vshll.u32 %v7014, 16
      %v8316 = vrot.slane %v8314, 3
      %v8317 = vor.u32 %v8313, %v8316
      %v8318 = vsel %vm7869, %v8308, %v8317
      %v8320 = vshrl.u32 %v7015, 16
      %v8322 = vrot.slane %v8320, 2
      %v8323 = vshll.u32 %v7015, 16
      %v8325 = vrot.slane %v8323, 3
      %v8326 = vor.u32 %v8322, %v8325
      %v8327 = vsel %vm7869, %v8317, %v8326
      %v8329 = vshrl.u32 %v7016, 16
      %v8331 = vrot.slane %v8329, 2
      %v8332 = vshll.u32 %v7016, 16
      %v8334 = vrot.slane %v8332, 3
      %v8335 = vor.u32 %v8331, %v8334
      %v8336 = vsel %vm7869, %v8326, %v8335
      %v8338 = vshrl.u32 %v7017, 16
      %v8340 = vrot.slane %v8338, 2
      %v8341 = vshll.u32 %v7017, 16
      %v8343 = vrot.slane %v8341, 3
      %v8344 = vor.u32 %v8340, %v8343
      %v8345 = vsel %vm7869, %v8335, %v8344
      %v8347 = vshrl.u32 %v7018, 16
      %v8349 = vrot.slane %v8347, 2
      %v8350 = vshll.u32 %v7018, 16
      %v8352 = vrot.slane %v8350, 3
      %v8353 = vor.u32 %v8349, %v8352
      %v8354 = vsel %vm7869, %v8344, %v8353
      %v8356 = vshrl.u32 %v7019, 16
      %v8358 = vrot.slane %v8356, 2
      %v8359 = vshll.u32 %v7019, 16
      %v8361 = vrot.slane %v8359, 3
      %v8362 = vor.u32 %v8358, %v8361
      %v8363 = vsel %vm7869, %v8353, %v8362
      %v8365 = vshrl.u32 %v7020, 16
      %v8367 = vrot.slane %v8365, 2
      %v8368 = vshll.u32 %v7020, 16
      %v8370 = vrot.slane %v8368, 3
      %v8371 = vor.u32 %v8367, %v8370
      %v8372 = vsel %vm7869, %v8362, %v8371
      %v8374 = vshrl.u32 %v7021, 16
      %v8376 = vrot.slane %v8374, 2
      %v8377 = vshll.u32 %v7021, 16
      %v8379 = vrot.slane %v8377, 3
      %v8380 = vor.u32 %v8376, %v8379
      %v8381 = vsel %vm7869, %v8371, %v8380
      %v8383 = vshrl.u32 %v7022, 16
      %v8385 = vrot.slane %v8383, 2
      %v8386 = vshll.u32 %v7022, 16
      %v8388 = vrot.slane %v8386, 3
      %v8389 = vor.u32 %v8385, %v8388
      %v8390 = vsel %vm7869, %v8380, %v8389
      %v8392 = vshrl.u32 %v7023, 16
      %v8394 = vrot.slane %v8392, 2
      %v8395 = vshll.u32 %v7023, 16
      %v8397 = vrot.slane %v8395, 3
      %v8398 = vor.u32 %v8394, %v8397
      %v8399 = vsel %vm7869, %v8389, %v8398
      %v8401 = vshrl.u32 %v7024, 16
      %v8403 = vrot.slane %v8401, 2
      %v8404 = vshll.u32 %v7024, 16
      %v8406 = vrot.slane %v8404, 3
      %v8407 = vor.u32 %v8403, %v8406
      %v8408 = vsel %vm7869, %v8398, %v8407
      %v8410 = vshrl.u32 %v7025, 16
      %v8412 = vrot.slane %v8410, 2
      %v8413 = vshll.u32 %v7025, 16
      %v8415 = vrot.slane %v8413, 3
      %v8416 = vor.u32 %v8412, %v8415
      %v8417 = vsel %vm7869, %v8407, %v8416
      %v8419 = vshrl.u32 %v7026, 16
      %v8421 = vrot.slane %v8419, 2
      %v8422 = vshll.u32 %v7026, 16
      %v8424 = vrot.slane %v8422, 3
      %v8425 = vor.u32 %v8421, %v8424
      %v8426 = vsel %vm7869, %v8416, %v8425
      %v8428 = vshrl.u32 %v7027, 16
      %v8430 = vrot.slane %v8428, 2
      %v8431 = vshll.u32 %v7027, 16
      %v8433 = vrot.slane %v8431, 3
      %v8434 = vor.u32 %v8430, %v8433
      %v8435 = vsel %vm7869, %v8425, %v8434
      %v8437 = vshrl.u32 %v7028, 16
      %v8439 = vrot.slane %v8437, 2
      %v8440 = vshll.u32 %v7028, 16
      %v8442 = vrot.slane %v8440, 3
      %v8443 = vor.u32 %v8439, %v8442
      %v8444 = vsel %vm7869, %v8434, %v8443
      %v8446 = vshrl.u32 %v7029, 16
      %v8448 = vrot.slane %v8446, 2
      %v8449 = vshll.u32 %v7029, 16
      %v8451 = vrot.slane %v8449, 3
      %v8452 = vor.u32 %v8448, %v8451
      %v8453 = vsel %vm7869, %v8443, %v8452
      %v8455 = vshrl.u32 %v7030, 16
      %v8457 = vrot.slane %v8455, 2
      %v8458 = vshll.u32 %v7030, 16
      %v8460 = vrot.slane %v8458, 3
      %v8461 = vor.u32 %v8457, %v8460
      %v8462 = vsel %vm7869, %v8452, %v8461
      %v8464 = vshrl.u32 %v7031, 16
      %v8466 = vrot.slane %v8464, 2
      %v8467 = vshll.u32 %v7031, 16
      %v8469 = vrot.slane %v8467, 3
      %v8470 = vor.u32 %v8466, %v8469
      %v8471 = vsel %vm7869, %v8461, %v8470
      %v8473 = vshrl.u32 %v7032, 16
      %v8475 = vrot.slane %v8473, 2
      %v8476 = vshll.u32 %v7032, 16
      %v8478 = vrot.slane %v8476, 3
      %v8479 = vor.u32 %v8475, %v8478
      %v8480 = vsel %vm7869, %v8470, %v8479
      %v8482 = vshrl.u32 %v7868, 16
      %v8484 = vrot.slane %v8482, 2
      %v8485 = vshll.u32 %v7868, 16
      %v8487 = vrot.slane %v8485, 3
      %v8488 = vor.u32 %v8484, %v8487
      %v8489 = vsel %vm7869, %v8479, %v8488
      %v8491 = vsel %vm1204, %v7886, 0
      %v8494 = vsel %vm1204, %v7895, 0
      %v8497 = vsel %vm1204, %v7904, 0
      %v8500 = vsel %vm1204, %v7913, 0
      %v8503 = vsel %vm1204, %v7922, 0
      %v8506 = vsel %vm1204, %v7931, 0
      %v8509 = vsel %vm1204, %v7940, 0
      %v8512 = vsel %vm1204, %v7949, 0
      %v8515 = vsel %vm1204, %v7958, 0
      %v8518 = vsel %vm1204, %v7967, 0
      %v8521 = vsel %vm1204, %v7976, 0
      %v8524 = vsel %vm1204, %v7985, 0
      %v8527 = vsel %vm1204, %v7994, 0
      %v8530 = vsel %vm1204, %v8003, 0
      %v8533 = vsel %vm1204, %v8012, 0
      %v8536 = vsel %vm1204, %v8021, 0
      %v8539 = vsel %vm1204, %v8030, 0
      %v8542 = vsel %vm1204, %v8039, 0
      %v8545 = vsel %vm1204, %v8048, 0
      %v8548 = vsel %vm1204, %v8057, 0
      %v8551 = vsel %vm1204, %v8066, 0
      %v8554 = vsel %vm1204, %v8075, 0
      %v8557 = vsel %vm1204, %v8084, 0
      %v8560 = vsel %vm1204, %v8093, 0
      %v8563 = vsel %vm1204, %v8102, 0
      %v8566 = vsel %vm1204, %v8111, 0
      %v8569 = vsel %vm1204, %v8120, 0
      %v8572 = vsel %vm1204, %v8129, 0
      %v8575 = vsel %vm1204, %v8138, 0
      %v8578 = vsel %vm1204, %v8147, 0
      %v8581 = vsel %vm1204, %v8156, 0
      %v8584 = vsel %vm1204, %v8165, 0
      %v8587 = vsel %vm1204, %v8174, 0
      %v8590 = vsel %vm1204, %v8183, 0
      %v8593 = vsel %vm1204, %v8192, 0
      %v8596 = vsel %vm1204, %v8201, 0
      %v8599 = vsel %vm1204, %v8210, 0
      %v8602 = vsel %vm1204, %v8219, 0
      %v8605 = vsel %vm1204, %v8228, 0
      %v8608 = vsel %vm1204, %v8237, 0
      %v8611 = vsel %vm1204, %v8246, 0
      %v8614 = vsel %vm1204, %v8255, 0
      %v8617 = vsel %vm1204, %v8264, 0
      %v8620 = vsel %vm1204, %v8273, 0
      %v8623 = vsel %vm1204, %v8282, 0
      %v8626 = vsel %vm1204, %v8291, 0
      %v8629 = vsel %vm1204, %v8300, 0
      %v8632 = vsel %vm1204, %v8309, 0
      %v8635 = vsel %vm1204, %v8318, 0
      %v8638 = vsel %vm1204, %v8327, 0
      %v8641 = vsel %vm1204, %v8336, 0
      %v8644 = vsel %vm1204, %v8345, 0
      %v8647 = vsel %vm1204, %v8354, 0
      %v8650 = vsel %vm1204, %v8363, 0
      %v8653 = vsel %vm1204, %v8372, 0
      %v8656 = vsel %vm1204, %v8381, 0
      %v8659 = vsel %vm1204, %v8390, 0
      %v8662 = vsel %vm1204, %v8399, 0
      %v8665 = vsel %vm1204, %v8408, 0
      %v8668 = vsel %vm1204, %v8417, 0
      %v8671 = vsel %vm1204, %v8426, 0
      %v8674 = vsel %vm1204, %v8435, 0
      %v8677 = vsel %vm1204, %v8444, 0
      %v8680 = vsel %vm1204, %v8453, 0
      %v8683 = vsel %vm1204, %v8462, 0
      %v8686 = vsel %vm1204, %v8471, 0
      %v8689 = vsel %vm1204, %v8480, 0
      %v8692 = vsel %vm1204, %v8489, 0
      %v8695 = vsel %vm1409, %v7865, 0
      %8697 = vmatpush.bf16.msra.mxu0 0
      %8698 = vmatpush.bf16.msra.mxu0 0
      %8699 = vmatpush.bf16.msra.mxu0 0
      %8700 = vmatpush.bf16.msra.mxu0 0
      %8701 = vmatpush.bf16.msra.mxu0 0
      %8702 = vmatpush.bf16.msra.mxu0 0
      %8703 = vmatpush.bf16.msra.mxu0 0
      %8704 = vmatpush.bf16.msra.mxu0 %v8695
      %8705 = vmatmul.bf16.gmra.mxu0 %v8491
      %v8706 = vpop.f32.mrf.mxu0
      %v8707 = vadd.f32 0.0, %v8706
      %v8708 = vpop.f32.mrf.mxu0
      %v8709 = vadd.f32 0.0, %v8708
      %8710 = vmatmul.bf16.gmra.mxu0 %v8494
      %v8711 = vpop.f32.mrf.mxu0
      %v8712 = vadd.f32 0.0, %v8711
      %v8713 = vpop.f32.mrf.mxu0
      %v8714 = vadd.f32 0.0, %v8713
      %8715 = vmatmul.bf16.gmra.mxu0 %v8497
      %v8716 = vpop.f32.mrf.mxu0
      %v8717 = vadd.f32 0.0, %v8716
      %v8718 = vpop.f32.mrf.mxu0
      %v8719 = vadd.f32 0.0, %v8718
      %8720 = vmatmul.bf16.gmra.mxu0 %v8500
      %v8721 = vpop.f32.mrf.mxu0
      %v8722 = vadd.f32 0.0, %v8721
      %v8723 = vpop.f32.mrf.mxu0
      %v8724 = vadd.f32 0.0, %v8723
      %8725 = vmatmul.bf16.gmra.mxu0 %v8503
      %v8726 = vpop.f32.mrf.mxu0
      %v8727 = vadd.f32 0.0, %v8726
      %v8728 = vpop.f32.mrf.mxu0
      %v8729 = vadd.f32 0.0, %v8728
      %8730 = vmatmul.bf16.gmra.mxu0 %v8506
      %v8731 = vpop.f32.mrf.mxu0
      %v8732 = vadd.f32 0.0, %v8731
      %v8733 = vpop.f32.mrf.mxu0
      %v8734 = vadd.f32 0.0, %v8733
      %8735 = vmatmul.bf16.gmra.mxu0 %v8509
      %v8736 = vpop.f32.mrf.mxu0
      %v8737 = vadd.f32 0.0, %v8736
      %v8738 = vpop.f32.mrf.mxu0
      %v8739 = vadd.f32 0.0, %v8738
      %8740 = vmatmul.bf16.gmra.mxu0 %v8512
      %v8741 = vpop.f32.mrf.mxu0
      %v8742 = vadd.f32 0.0, %v8741
      %v8743 = vpop.f32.mrf.mxu0
      %v8744 = vadd.f32 0.0, %v8743
      %8745 = vmatmul.bf16.gmra.mxu0 %v8515
      %v8746 = vpop.f32.mrf.mxu0
      %v8747 = vadd.f32 0.0, %v8746
      %v8748 = vpop.f32.mrf.mxu0
      %v8749 = vadd.f32 0.0, %v8748
      %8750 = vmatmul.bf16.gmra.mxu0 %v8518
      %v8751 = vpop.f32.mrf.mxu0
      %v8752 = vadd.f32 0.0, %v8751
      %v8753 = vpop.f32.mrf.mxu0
      %v8754 = vadd.f32 0.0, %v8753
      %8755 = vmatmul.bf16.gmra.mxu0 %v8521
      %v8756 = vpop.f32.mrf.mxu0
      %v8757 = vadd.f32 0.0, %v8756
      %v8758 = vpop.f32.mrf.mxu0
      %v8759 = vadd.f32 0.0, %v8758
      %8760 = vmatmul.bf16.gmra.mxu0 %v8524
      %v8761 = vpop.f32.mrf.mxu0
      %v8762 = vadd.f32 0.0, %v8761
      %v8763 = vpop.f32.mrf.mxu0
      %v8764 = vadd.f32 0.0, %v8763
      %8765 = vmatmul.bf16.gmra.mxu0 %v8527
      %v8766 = vpop.f32.mrf.mxu0
      %v8767 = vadd.f32 0.0, %v8766
      %v8768 = vpop.f32.mrf.mxu0
      %v8769 = vadd.f32 0.0, %v8768
      %8770 = vmatmul.bf16.gmra.mxu0 %v8530
      %v8771 = vpop.f32.mrf.mxu0
      %v8772 = vadd.f32 0.0, %v8771
      %v8773 = vpop.f32.mrf.mxu0
      %v8774 = vadd.f32 0.0, %v8773
      %8775 = vmatmul.bf16.gmra.mxu0 %v8533
      %v8776 = vpop.f32.mrf.mxu0
      %v8777 = vadd.f32 0.0, %v8776
      %v8778 = vpop.f32.mrf.mxu0
      %v8779 = vadd.f32 0.0, %v8778
      %8780 = vmatmul.bf16.gmra.mxu0 %v8536
      %v8781 = vpop.f32.mrf.mxu0
      %v8782 = vadd.f32 0.0, %v8781
      %v8783 = vpop.f32.mrf.mxu0
      %v8784 = vadd.f32 0.0, %v8783
      %8785 = vmatmul.bf16.gmra.mxu0 %v8539
      %v8786 = vpop.f32.mrf.mxu0
      %v8787 = vadd.f32 0.0, %v8786
      %v8788 = vpop.f32.mrf.mxu0
      %v8789 = vadd.f32 0.0, %v8788
      %8790 = vmatmul.bf16.gmra.mxu0 %v8542
      %v8791 = vpop.f32.mrf.mxu0
      %v8792 = vadd.f32 0.0, %v8791
      %v8793 = vpop.f32.mrf.mxu0
      %v8794 = vadd.f32 0.0, %v8793
      %8795 = vmatmul.bf16.gmra.mxu0 %v8545
      %v8796 = vpop.f32.mrf.mxu0
      %v8797 = vadd.f32 0.0, %v8796
      %v8798 = vpop.f32.mrf.mxu0
      %v8799 = vadd.f32 0.0, %v8798
      %8800 = vmatmul.bf16.gmra.mxu0 %v8548
      %v8801 = vpop.f32.mrf.mxu0
      %v8802 = vadd.f32 0.0, %v8801
      %v8803 = vpop.f32.mrf.mxu0
      %v8804 = vadd.f32 0.0, %v8803
      %8805 = vmatmul.bf16.gmra.mxu0 %v8551
      %v8806 = vpop.f32.mrf.mxu0
      %v8807 = vadd.f32 0.0, %v8806
      %v8808 = vpop.f32.mrf.mxu0
      %v8809 = vadd.f32 0.0, %v8808
      %8810 = vmatmul.bf16.gmra.mxu0 %v8554
      %v8811 = vpop.f32.mrf.mxu0
      %v8812 = vadd.f32 0.0, %v8811
      %v8813 = vpop.f32.mrf.mxu0
      %v8814 = vadd.f32 0.0, %v8813
      %8815 = vmatmul.bf16.gmra.mxu0 %v8557
      %v8816 = vpop.f32.mrf.mxu0
      %v8817 = vadd.f32 0.0, %v8816
      %v8818 = vpop.f32.mrf.mxu0
      %v8819 = vadd.f32 0.0, %v8818
      %8820 = vmatmul.bf16.gmra.mxu0 %v8560
      %v8821 = vpop.f32.mrf.mxu0
      %v8822 = vadd.f32 0.0, %v8821
      %v8823 = vpop.f32.mrf.mxu0
      %v8824 = vadd.f32 0.0, %v8823
      %8825 = vmatmul.bf16.gmra.mxu0 %v8563
      %v8826 = vpop.f32.mrf.mxu0
      %v8827 = vadd.f32 0.0, %v8826
      %v8828 = vpop.f32.mrf.mxu0
      %v8829 = vadd.f32 0.0, %v8828
      %8830 = vmatmul.bf16.gmra.mxu0 %v8566
      %v8831 = vpop.f32.mrf.mxu0
      %v8832 = vadd.f32 0.0, %v8831
      %v8833 = vpop.f32.mrf.mxu0
      %v8834 = vadd.f32 0.0, %v8833
      %8835 = vmatmul.bf16.gmra.mxu0 %v8569
      %v8836 = vpop.f32.mrf.mxu0
      %v8837 = vadd.f32 0.0, %v8836
      %v8838 = vpop.f32.mrf.mxu0
      %v8839 = vadd.f32 0.0, %v8838
      %8840 = vmatmul.bf16.gmra.mxu0 %v8572
      %v8841 = vpop.f32.mrf.mxu0
      %v8842 = vadd.f32 0.0, %v8841
      %v8843 = vpop.f32.mrf.mxu0
      %v8844 = vadd.f32 0.0, %v8843
      %8845 = vmatmul.bf16.gmra.mxu0 %v8575
      %v8846 = vpop.f32.mrf.mxu0
      %v8847 = vadd.f32 0.0, %v8846
      %v8848 = vpop.f32.mrf.mxu0
      %v8849 = vadd.f32 0.0, %v8848
      %8850 = vmatmul.bf16.gmra.mxu0 %v8578
      %v8851 = vpop.f32.mrf.mxu0
      %v8852 = vadd.f32 0.0, %v8851
      %v8853 = vpop.f32.mrf.mxu0
      %v8854 = vadd.f32 0.0, %v8853
      %8855 = vmatmul.bf16.gmra.mxu0 %v8581
      %v8856 = vpop.f32.mrf.mxu0
      %v8857 = vadd.f32 0.0, %v8856
      %v8858 = vpop.f32.mrf.mxu0
      %v8859 = vadd.f32 0.0, %v8858
      %8860 = vmatmul.bf16.gmra.mxu0 %v8584
      %v8861 = vpop.f32.mrf.mxu0
      %v8862 = vadd.f32 0.0, %v8861
      %v8863 = vpop.f32.mrf.mxu0
      %v8864 = vadd.f32 0.0, %v8863
      %8865 = vmatmul.bf16.gmra.mxu0 %v8587
      %v8866 = vpop.f32.mrf.mxu0
      %v8867 = vadd.f32 0.0, %v8866
      %v8868 = vpop.f32.mrf.mxu0
      %v8869 = vadd.f32 0.0, %v8868
      %8870 = vmatmul.bf16.gmra.mxu0 %v8590
      %v8871 = vpop.f32.mrf.mxu0
      %v8872 = vadd.f32 0.0, %v8871
      %v8873 = vpop.f32.mrf.mxu0
      %v8874 = vadd.f32 0.0, %v8873
      %8875 = vmatmul.bf16.gmra.mxu0 %v8593
      %v8876 = vpop.f32.mrf.mxu0
      %v8877 = vadd.f32 0.0, %v8876
      %v8878 = vpop.f32.mrf.mxu0
      %v8879 = vadd.f32 0.0, %v8878
      %8880 = vmatmul.bf16.gmra.mxu0 %v8596
      %v8881 = vpop.f32.mrf.mxu0
      %v8882 = vadd.f32 0.0, %v8881
      %v8883 = vpop.f32.mrf.mxu0
      %v8884 = vadd.f32 0.0, %v8883
      %8885 = vmatmul.bf16.gmra.mxu0 %v8599
      %v8886 = vpop.f32.mrf.mxu0
      %v8887 = vadd.f32 0.0, %v8886
      %v8888 = vpop.f32.mrf.mxu0
      %v8889 = vadd.f32 0.0, %v8888
      %8890 = vmatmul.bf16.gmra.mxu0 %v8602
      %v8891 = vpop.f32.mrf.mxu0
      %v8892 = vadd.f32 0.0, %v8891
      %v8893 = vpop.f32.mrf.mxu0
      %v8894 = vadd.f32 0.0, %v8893
      %8895 = vmatmul.bf16.gmra.mxu0 %v8605
      %v8896 = vpop.f32.mrf.mxu0
      %v8897 = vadd.f32 0.0, %v8896
      %v8898 = vpop.f32.mrf.mxu0
      %v8899 = vadd.f32 0.0, %v8898
      %8900 = vmatmul.bf16.gmra.mxu0 %v8608
      %v8901 = vpop.f32.mrf.mxu0
      %v8902 = vadd.f32 0.0, %v8901
      %v8903 = vpop.f32.mrf.mxu0
      %v8904 = vadd.f32 0.0, %v8903
      %8905 = vmatmul.bf16.gmra.mxu0 %v8611
      %v8906 = vpop.f32.mrf.mxu0
      %v8907 = vadd.f32 0.0, %v8906
      %v8908 = vpop.f32.mrf.mxu0
      %v8909 = vadd.f32 0.0, %v8908
      %8910 = vmatmul.bf16.gmra.mxu0 %v8614
      %v8911 = vpop.f32.mrf.mxu0
      %v8912 = vadd.f32 0.0, %v8911
      %v8913 = vpop.f32.mrf.mxu0
      %v8914 = vadd.f32 0.0, %v8913
      %8915 = vmatmul.bf16.gmra.mxu0 %v8617
      %v8916 = vpop.f32.mrf.mxu0
      %v8917 = vadd.f32 0.0, %v8916
      %v8918 = vpop.f32.mrf.mxu0
      %v8919 = vadd.f32 0.0, %v8918
      %8920 = vmatmul.bf16.gmra.mxu0 %v8620
      %v8921 = vpop.f32.mrf.mxu0
      %v8922 = vadd.f32 0.0, %v8921
      %v8923 = vpop.f32.mrf.mxu0
      %v8924 = vadd.f32 0.0, %v8923
      %8925 = vmatmul.bf16.gmra.mxu0 %v8623
      %v8926 = vpop.f32.mrf.mxu0
      %v8927 = vadd.f32 0.0, %v8926
      %v8928 = vpop.f32.mrf.mxu0
      %v8929 = vadd.f32 0.0, %v8928
      %8930 = vmatmul.bf16.gmra.mxu0 %v8626
      %v8931 = vpop.f32.mrf.mxu0
      %v8932 = vadd.f32 0.0, %v8931
      %v8933 = vpop.f32.mrf.mxu0
      %v8934 = vadd.f32 0.0, %v8933
      %8935 = vmatmul.bf16.gmra.mxu0 %v8629
      %v8936 = vpop.f32.mrf.mxu0
      %v8937 = vadd.f32 0.0, %v8936
      %v8938 = vpop.f32.mrf.mxu0
      %v8939 = vadd.f32 0.0, %v8938
      %8940 = vmatmul.bf16.gmra.mxu0 %v8632
      %v8941 = vpop.f32.mrf.mxu0
      %v8942 = vadd.f32 0.0, %v8941
      %v8943 = vpop.f32.mrf.mxu0
      %v8944 = vadd.f32 0.0, %v8943
      %8945 = vmatmul.bf16.gmra.mxu0 %v8635
      %v8946 = vpop.f32.mrf.mxu0
      %v8947 = vadd.f32 0.0, %v8946
      %v8948 = vpop.f32.mrf.mxu0
      %v8949 = vadd.f32 0.0, %v8948
      %8950 = vmatmul.bf16.gmra.mxu0 %v8638
      %v8951 = vpop.f32.mrf.mxu0
      %v8952 = vadd.f32 0.0, %v8951
      %v8953 = vpop.f32.mrf.mxu0
      %v8954 = vadd.f32 0.0, %v8953
      %8955 = vmatmul.bf16.gmra.mxu0 %v8641
      %v8956 = vpop.f32.mrf.mxu0
      %v8957 = vadd.f32 0.0, %v8956
      %v8958 = vpop.f32.mrf.mxu0
      %v8959 = vadd.f32 0.0, %v8958
      %8960 = vmatmul.bf16.gmra.mxu0 %v8644
      %v8961 = vpop.f32.mrf.mxu0
      %v8962 = vadd.f32 0.0, %v8961
      %v8963 = vpop.f32.mrf.mxu0
      %v8964 = vadd.f32 0.0, %v8963
      %8965 = vmatmul.bf16.gmra.mxu0 %v8647
      %v8966 = vpop.f32.mrf.mxu0
      %v8967 = vadd.f32 0.0, %v8966
      %v8968 = vpop.f32.mrf.mxu0
      %v8969 = vadd.f32 0.0, %v8968
      %8970 = vmatmul.bf16.gmra.mxu0 %v8650
      %v8971 = vpop.f32.mrf.mxu0
      %v8972 = vadd.f32 0.0, %v8971
      %v8973 = vpop.f32.mrf.mxu0
      %v8974 = vadd.f32 0.0, %v8973
      %8975 = vmatmul.bf16.gmra.mxu0 %v8653
      %v8976 = vpop.f32.mrf.mxu0
      %v8977 = vadd.f32 0.0, %v8976
      %v8978 = vpop.f32.mrf.mxu0
      %v8979 = vadd.f32 0.0, %v8978
      %8980 = vmatmul.bf16.gmra.mxu0 %v8656
      %v8981 = vpop.f32.mrf.mxu0
      %v8982 = vadd.f32 0.0, %v8981
      %v8983 = vpop.f32.mrf.mxu0
      %v8984 = vadd.f32 0.0, %v8983
      %8985 = vmatmul.bf16.gmra.mxu0 %v8659
      %v8986 = vpop.f32.mrf.mxu0
      %v8987 = vadd.f32 0.0, %v8986
      %v8988 = vpop.f32.mrf.mxu0
      %v8989 = vadd.f32 0.0, %v8988
      %8990 = vmatmul.bf16.gmra.mxu0 %v8662
      %v8991 = vpop.f32.mrf.mxu0
      %v8992 = vadd.f32 0.0, %v8991
      %v8993 = vpop.f32.mrf.mxu0
      %v8994 = vadd.f32 0.0, %v8993
      %8995 = vmatmul.bf16.gmra.mxu0 %v8665
      %v8996 = vpop.f32.mrf.mxu0
      %v8997 = vadd.f32 0.0, %v8996
      %v8998 = vpop.f32.mrf.mxu0
      %v8999 = vadd.f32 0.0, %v8998
      %9000 = vmatmul.bf16.gmra.mxu0 %v8668
      %v9001 = vpop.f32.mrf.mxu0
      %v9002 = vadd.f32 0.0, %v9001
      %v9003 = vpop.f32.mrf.mxu0
      %v9004 = vadd.f32 0.0, %v9003
      %9005 = vmatmul.bf16.gmra.mxu0 %v8671
      %v9006 = vpop.f32.mrf.mxu0
      %v9007 = vadd.f32 0.0, %v9006
      %v9008 = vpop.f32.mrf.mxu0
      %v9009 = vadd.f32 0.0, %v9008
      %9010 = vmatmul.bf16.gmra.mxu0 %v8674
      %v9011 = vpop.f32.mrf.mxu0
      %v9012 = vadd.f32 0.0, %v9011
      %v9013 = vpop.f32.mrf.mxu0
      %v9014 = vadd.f32 0.0, %v9013
      %9015 = vmatmul.bf16.gmra.mxu0 %v8677
      %v9016 = vpop.f32.mrf.mxu0
      %v9017 = vadd.f32 0.0, %v9016
      %v9018 = vpop.f32.mrf.mxu0
      %v9019 = vadd.f32 0.0, %v9018
      %9020 = vmatmul.bf16.gmra.mxu0 %v8680
      %v9021 = vpop.f32.mrf.mxu0
      %v9022 = vadd.f32 0.0, %v9021
      %v9023 = vpop.f32.mrf.mxu0
      %v9024 = vadd.f32 0.0, %v9023
      %9025 = vmatmul.bf16.gmra.mxu0 %v8683
      %v9026 = vpop.f32.mrf.mxu0
      %v9027 = vadd.f32 0.0, %v9026
      %v9028 = vpop.f32.mrf.mxu0
      %v9029 = vadd.f32 0.0, %v9028
      %9030 = vmatmul.bf16.gmra.mxu0 %v8686
      %v9031 = vpop.f32.mrf.mxu0
      %v9032 = vadd.f32 0.0, %v9031
      %v9033 = vpop.f32.mrf.mxu0
      %v9034 = vadd.f32 0.0, %v9033
      %9035 = vmatmul.bf16.gmra.mxu0 %v8689
      %v9036 = vpop.f32.mrf.mxu0
      %v9037 = vadd.f32 0.0, %v9036
      %v9038 = vpop.f32.mrf.mxu0
      %v9039 = vadd.f32 0.0, %v9038
      %9040 = vmatmul.bf16.gmra.mxu0 %v8692
      %v9041 = vpop.f32.mrf.mxu0
      %v9042 = vadd.f32 0.0, %v9041
      %v9043 = vpop.f32.mrf.mxu0
      %v9044 = vadd.f32 0.0, %v9043
      %9045 = vdwg.mxu0
      %v9046 = vadd.f32 %v7727, %v8707
      %v9047 = vadd.f32 %v7728, %v8709
      %v9048 = vadd.f32 %v7729, %v8712
      %v9049 = vadd.f32 %v7730, %v8714
      %v9050 = vadd.f32 %v7731, %v8717
      %v9051 = vadd.f32 %v7732, %v8719
      %v9052 = vadd.f32 %v7733, %v8722
      %v9053 = vadd.f32 %v7734, %v8724
      %v9054 = vadd.f32 %v7735, %v8727
      %v9055 = vadd.f32 %v7736, %v8729
      %v9056 = vadd.f32 %v7737, %v8732
      %v9057 = vadd.f32 %v7738, %v8734
      %v9058 = vadd.f32 %v7739, %v8737
      %v9059 = vadd.f32 %v7740, %v8739
      %v9060 = vadd.f32 %v7741, %v8742
      %v9061 = vadd.f32 %v7742, %v8744
      %v9062 = vadd.f32 %v7743, %v8747
      %v9063 = vadd.f32 %v7744, %v8749
      %v9064 = vadd.f32 %v7745, %v8752
      %v9065 = vadd.f32 %v7746, %v8754
      %v9066 = vadd.f32 %v7747, %v8757
      %v9067 = vadd.f32 %v7748, %v8759
      %v9068 = vadd.f32 %v7749, %v8762
      %v9069 = vadd.f32 %v7750, %v8764
      %v9070 = vadd.f32 %v7751, %v8767
      %v9071 = vadd.f32 %v7752, %v8769
      %v9072 = vadd.f32 %v7753, %v8772
      %v9073 = vadd.f32 %v7754, %v8774
      %v9074 = vadd.f32 %v7755, %v8777
      %v9075 = vadd.f32 %v7756, %v8779
      %v9076 = vadd.f32 %v7757, %v8782
      %v9077 = vadd.f32 %v7758, %v8784
      %v9078 = vadd.f32 %v7759, %v8787
      %v9079 = vadd.f32 %v7760, %v8789
      %v9080 = vadd.f32 %v7761, %v8792
      %v9081 = vadd.f32 %v7762, %v8794
      %v9082 = vadd.f32 %v7763, %v8797
      %v9083 = vadd.f32 %v7764, %v8799
      %v9084 = vadd.f32 %v7765, %v8802
      %v9085 = vadd.f32 %v7766, %v8804
      %v9086 = vadd.f32 %v7767, %v8807
      %v9087 = vadd.f32 %v7768, %v8809
      %v9088 = vadd.f32 %v7769, %v8812
      %v9089 = vadd.f32 %v7770, %v8814
      %v9090 = vadd.f32 %v7771, %v8817
      %v9091 = vadd.f32 %v7772, %v8819
      %v9092 = vadd.f32 %v7773, %v8822
      %v9093 = vadd.f32 %v7774, %v8824
      %v9094 = vadd.f32 %v7775, %v8827
      %v9095 = vadd.f32 %v7776, %v8829
      %v9096 = vadd.f32 %v7777, %v8832
      %v9097 = vadd.f32 %v7778, %v8834
      %v9098 = vadd.f32 %v7779, %v8837
      %v9099 = vadd.f32 %v7780, %v8839
      %v9100 = vadd.f32 %v7781, %v8842
      %v9101 = vadd.f32 %v7782, %v8844
      %v9102 = vadd.f32 %v7783, %v8847
      %v9103 = vadd.f32 %v7784, %v8849
      %v9104 = vadd.f32 %v7785, %v8852
      %v9105 = vadd.f32 %v7786, %v8854
      %v9106 = vadd.f32 %v7787, %v8857
      %v9107 = vadd.f32 %v7788, %v8859
      %v9108 = vadd.f32 %v7789, %v8862
      %v9109 = vadd.f32 %v7790, %v8864
      %v9110 = vadd.f32 %v7791, %v8867
      %v9111 = vadd.f32 %v7792, %v8869
      %v9112 = vadd.f32 %v7793, %v8872
      %v9113 = vadd.f32 %v7794, %v8874
      %v9114 = vadd.f32 %v7795, %v8877
      %v9115 = vadd.f32 %v7796, %v8879
      %v9116 = vadd.f32 %v7797, %v8882
      %v9117 = vadd.f32 %v7798, %v8884
      %v9118 = vadd.f32 %v7799, %v8887
      %v9119 = vadd.f32 %v7800, %v8889
      %v9120 = vadd.f32 %v7801, %v8892
      %v9121 = vadd.f32 %v7802, %v8894
      %v9122 = vadd.f32 %v7803, %v8897
      %v9123 = vadd.f32 %v7804, %v8899
      %v9124 = vadd.f32 %v7805, %v8902
      %v9125 = vadd.f32 %v7806, %v8904
      %v9126 = vadd.f32 %v7807, %v8907
      %v9127 = vadd.f32 %v7808, %v8909
      %v9128 = vadd.f32 %v7809, %v8912
      %v9129 = vadd.f32 %v7810, %v8914
      %v9130 = vadd.f32 %v7811, %v8917
      %v9131 = vadd.f32 %v7812, %v8919
      %v9132 = vadd.f32 %v7813, %v8922
      %v9133 = vadd.f32 %v7814, %v8924
      %v9134 = vadd.f32 %v7815, %v8927
      %v9135 = vadd.f32 %v7816, %v8929
      %v9136 = vadd.f32 %v7817, %v8932
      %v9137 = vadd.f32 %v7818, %v8934
      %v9138 = vadd.f32 %v7819, %v8937
      %v9139 = vadd.f32 %v7820, %v8939
      %v9140 = vadd.f32 %v7821, %v8942
      %v9141 = vadd.f32 %v7822, %v8944
      %v9142 = vadd.f32 %v7823, %v8947
      %v9143 = vadd.f32 %v7824, %v8949
      %v9144 = vadd.f32 %v7825, %v8952
      %v9145 = vadd.f32 %v7826, %v8954
      %v9146 = vadd.f32 %v7827, %v8957
      %v9147 = vadd.f32 %v7828, %v8959
      %v9148 = vadd.f32 %v7829, %v8962
      %v9149 = vadd.f32 %v7830, %v8964
      %v9150 = vadd.f32 %v7831, %v8967
      %v9151 = vadd.f32 %v7832, %v8969
      %v9152 = vadd.f32 %v7833, %v8972
      %v9153 = vadd.f32 %v7834, %v8974
      %v9154 = vadd.f32 %v7835, %v8977
      %v9155 = vadd.f32 %v7836, %v8979
      %v9156 = vadd.f32 %v7837, %v8982
      %v9157 = vadd.f32 %v7838, %v8984
      %v9158 = vadd.f32 %v7839, %v8987
      %v9159 = vadd.f32 %v7840, %v8989
      %v9160 = vadd.f32 %v7841, %v8992
      %v9161 = vadd.f32 %v7842, %v8994
      %v9162 = vadd.f32 %v7843, %v8997
      %v9163 = vadd.f32 %v7844, %v8999
      %v9164 = vadd.f32 %v7845, %v9002
      %v9165 = vadd.f32 %v7846, %v9004
      %v9166 = vadd.f32 %v7847, %v9007
      %v9167 = vadd.f32 %v7848, %v9009
      %v9168 = vadd.f32 %v7849, %v9012
      %v9169 = vadd.f32 %v7850, %v9014
      %v9170 = vadd.f32 %v7851, %v9017
      %v9171 = vadd.f32 %v7852, %v9019
      %v9172 = vadd.f32 %v7853, %v9022
      %v9173 = vadd.f32 %v7854, %v9024
      %v9174 = vadd.f32 %v7855, %v9027
      %v9175 = vadd.f32 %v7856, %v9029
      %v9176 = vadd.f32 %v7857, %v9032
      %v9177 = vadd.f32 %v7858, %v9034
      %v9178 = vadd.f32 %v7859, %v9037
      %v9179 = vadd.f32 %v7860, %v9039
      %v9180 = vadd.f32 %v7861, %v9042
      %v9181 = vadd.f32 %v7862, %v9044
      %v9182 = vld [vmem:[%s165 + $0x20] sm:$0x8]
      %s9183 = scalar_lea.vmem %s1, 32
      %v9184 = vld [vmem:[%s9183] sm:$0xf]
      %v9186 = vunpack.c.l.b16 %v9182
      %v9187 = vpack.c.b16 %v6829, %v9186
      %vm9188 = vcmask 1044480
      %v9189 = vrot.slane %v9187, 3
      %v9190 = vrot.slane %v6966, 3
      %v9191 = vsel %vm9188, %v9189, %v9190
      %v9192 = vrot.slane %v6967, 3
      %v9193 = vsel %vm9188, %v9190, %v9192
      %v9194 = vrot.slane %v6968, 3
      %v9195 = vsel %vm9188, %v9192, %v9194
      %v9196 = vrot.slane %v6969, 3
      %v9197 = vsel %vm9188, %v9194, %v9196
      %v9198 = vrot.slane %v6970, 3
      %v9199 = vsel %vm9188, %v9196, %v9198
      %v9200 = vrot.slane %v6971, 3
      %v9201 = vsel %vm9188, %v9198, %v9200
      %v9202 = vrot.slane %v6972, 3
      %v9203 = vsel %vm9188, %v9200, %v9202
      %v9204 = vrot.slane %v6973, 3
      %v9205 = vsel %vm9188, %v9202, %v9204
      %v9206 = vrot.slane %v6974, 3
      %v9207 = vsel %vm9188, %v9204, %v9206
      %v9208 = vrot.slane %v6975, 3
      %v9209 = vsel %vm9188, %v9206, %v9208
      %v9210 = vrot.slane %v6976, 3
      %v9211 = vsel %vm9188, %v9208, %v9210
      %v9212 = vrot.slane %v6977, 3
      %v9213 = vsel %vm9188, %v9210, %v9212
      %v9214 = vrot.slane %v6978, 3
      %v9215 = vsel %vm9188, %v9212, %v9214
      %v9216 = vrot.slane %v6979, 3
      %v9217 = vsel %vm9188, %v9214, %v9216
      %v9218 = vrot.slane %v6980, 3
      %v9219 = vsel %vm9188, %v9216, %v9218
      %v9220 = vrot.slane %v6981, 3
      %v9221 = vsel %vm9188, %v9218, %v9220
      %v9222 = vrot.slane %v6982, 3
      %v9223 = vsel %vm9188, %v9220, %v9222
      %v9224 = vrot.slane %v6983, 3
      %v9225 = vsel %vm9188, %v9222, %v9224
      %v9226 = vrot.slane %v6984, 3
      %v9227 = vsel %vm9188, %v9224, %v9226
      %v9228 = vrot.slane %v6985, 3
      %v9229 = vsel %vm9188, %v9226, %v9228
      %v9230 = vrot.slane %v6986, 3
      %v9231 = vsel %vm9188, %v9228, %v9230
      %v9232 = vrot.slane %v6987, 3
      %v9233 = vsel %vm9188, %v9230, %v9232
      %v9234 = vrot.slane %v6988, 3
      %v9235 = vsel %vm9188, %v9232, %v9234
      %v9236 = vrot.slane %v6989, 3
      %v9237 = vsel %vm9188, %v9234, %v9236
      %v9238 = vrot.slane %v6990, 3
      %v9239 = vsel %vm9188, %v9236, %v9238
      %v9240 = vrot.slane %v6991, 3
      %v9241 = vsel %vm9188, %v9238, %v9240
      %v9242 = vrot.slane %v6992, 3
      %v9243 = vsel %vm9188, %v9240, %v9242
      %v9244 = vrot.slane %v6993, 3
      %v9245 = vsel %vm9188, %v9242, %v9244
      %v9246 = vrot.slane %v6994, 3
      %v9247 = vsel %vm9188, %v9244, %v9246
      %v9248 = vrot.slane %v6995, 3
      %v9249 = vsel %vm9188, %v9246, %v9248
      %v9250 = vrot.slane %v6996, 3
      %v9251 = vsel %vm9188, %v9248, %v9250
      %v9252 = vrot.slane %v6997, 3
      %v9253 = vsel %vm9188, %v9250, %v9252
      %v9254 = vrot.slane %v6998, 3
      %v9255 = vsel %vm9188, %v9252, %v9254
      %v9256 = vrot.slane %v6999, 3
      %v9257 = vsel %vm9188, %v9254, %v9256
      %v9258 = vrot.slane %v7000, 3
      %v9259 = vsel %vm9188, %v9256, %v9258
      %v9260 = vrot.slane %v7001, 3
      %v9261 = vsel %vm9188, %v9258, %v9260
      %v9262 = vrot.slane %v7002, 3
      %v9263 = vsel %vm9188, %v9260, %v9262
      %v9264 = vrot.slane %v7003, 3
      %v9265 = vsel %vm9188, %v9262, %v9264
      %v9266 = vrot.slane %v7004, 3
      %v9267 = vsel %vm9188, %v9264, %v9266
      %v9268 = vrot.slane %v7005, 3
      %v9269 = vsel %vm9188, %v9266, %v9268
      %v9270 = vrot.slane %v7006, 3
      %v9271 = vsel %vm9188, %v9268, %v9270
      %v9272 = vrot.slane %v7007, 3
      %v9273 = vsel %vm9188, %v9270, %v9272
      %v9274 = vrot.slane %v7008, 3
      %v9275 = vsel %vm9188, %v9272, %v9274
      %v9276 = vrot.slane %v7009, 3
      %v9277 = vsel %vm9188, %v9274, %v9276
      %v9278 = vrot.slane %v7010, 3
      %v9279 = vsel %vm9188, %v9276, %v9278
      %v9280 = vrot.slane %v7011, 3
      %v9281 = vsel %vm9188, %v9278, %v9280
      %v9282 = vrot.slane %v7012, 3
      %v9283 = vsel %vm9188, %v9280, %v9282
      %v9284 = vrot.slane %v7013, 3
      %v9285 = vsel %vm9188, %v9282, %v9284
      %v9286 = vrot.slane %v7014, 3
      %v9287 = vsel %vm9188, %v9284, %v9286
      %v9288 = vrot.slane %v7015, 3
      %v9289 = vsel %vm9188, %v9286, %v9288
      %v9290 = vrot.slane %v7016, 3
      %v9291 = vsel %vm9188, %v9288, %v9290
      %v9292 = vrot.slane %v7017, 3
      %v9293 = vsel %vm9188, %v9290, %v9292
      %v9294 = vrot.slane %v7018, 3
      %v9295 = vsel %vm9188, %v9292, %v9294
      %v9296 = vrot.slane %v7019, 3
      %v9297 = vsel %vm9188, %v9294, %v9296
      %v9298 = vrot.slane %v7020, 3
      %v9299 = vsel %vm9188, %v9296, %v9298
      %v9300 = vrot.slane %v7021, 3
      %v9301 = vsel %vm9188, %v9298, %v9300
      %v9302 = vrot.slane %v7022, 3
      %v9303 = vsel %vm9188, %v9300, %v9302
      %v9304 = vrot.slane %v7023, 3
      %v9305 = vsel %vm9188, %v9302, %v9304
      %v9306 = vrot.slane %v7024, 3
      %v9307 = vsel %vm9188, %v9304, %v9306
      %v9308 = vrot.slane %v7025, 3
      %v9309 = vsel %vm9188, %v9306, %v9308
      %v9310 = vrot.slane %v7026, 3
      %v9311 = vsel %vm9188, %v9308, %v9310
      %v9312 = vrot.slane %v7027, 3
      %v9313 = vsel %vm9188, %v9310, %v9312
      %v9314 = vrot.slane %v7028, 3
      %v9315 = vsel %vm9188, %v9312, %v9314
      %v9316 = vrot.slane %v7029, 3
      %v9317 = vsel %vm9188, %v9314, %v9316
      %v9318 = vrot.slane %v7030, 3
      %v9319 = vsel %vm9188, %v9316, %v9318
      %v9320 = vrot.slane %v7031, 3
      %v9321 = vsel %vm9188, %v9318, %v9320
      %v9322 = vrot.slane %v7032, 3
      %v9323 = vsel %vm9188, %v9320, %v9322
      %v9324 = vrot.slane %v7868, 3
      %v9325 = vsel %vm9188, %v9322, %v9324
      %v9327 = vsel %vm1204, %v9191, 0
      %v9330 = vsel %vm1204, %v9193, 0
      %v9333 = vsel %vm1204, %v9195, 0
      %v9336 = vsel %vm1204, %v9197, 0
      %v9339 = vsel %vm1204, %v9199, 0
      %v9342 = vsel %vm1204, %v9201, 0
      %v9345 = vsel %vm1204, %v9203, 0
      %v9348 = vsel %vm1204, %v9205, 0
      %v9351 = vsel %vm1204, %v9207, 0
      %v9354 = vsel %vm1204, %v9209, 0
      %v9357 = vsel %vm1204, %v9211, 0
      %v9360 = vsel %vm1204, %v9213, 0
      %v9363 = vsel %vm1204, %v9215, 0
      %v9366 = vsel %vm1204, %v9217, 0
      %v9369 = vsel %vm1204, %v9219, 0
      %v9372 = vsel %vm1204, %v9221, 0
      %v9375 = vsel %vm1204, %v9223, 0
      %v9378 = vsel %vm1204, %v9225, 0
      %v9381 = vsel %vm1204, %v9227, 0
      %v9384 = vsel %vm1204, %v9229, 0
      %v9387 = vsel %vm1204, %v9231, 0
      %v9390 = vsel %vm1204, %v9233, 0
      %v9393 = vsel %vm1204, %v9235, 0
      %v9396 = vsel %vm1204, %v9237, 0
      %v9399 = vsel %vm1204, %v9239, 0
      %v9402 = vsel %vm1204, %v9241, 0
      %v9405 = vsel %vm1204, %v9243, 0
      %v9408 = vsel %vm1204, %v9245, 0
      %v9411 = vsel %vm1204, %v9247, 0
      %v9414 = vsel %vm1204, %v9249, 0
      %v9417 = vsel %vm1204, %v9251, 0
      %v9420 = vsel %vm1204, %v9253, 0
      %v9423 = vsel %vm1204, %v9255, 0
      %v9426 = vsel %vm1204, %v9257, 0
      %v9429 = vsel %vm1204, %v9259, 0
      %v9432 = vsel %vm1204, %v9261, 0
      %v9435 = vsel %vm1204, %v9263, 0
      %v9438 = vsel %vm1204, %v9265, 0
      %v9441 = vsel %vm1204, %v9267, 0
      %v9444 = vsel %vm1204, %v9269, 0
      %v9447 = vsel %vm1204, %v9271, 0
      %v9450 = vsel %vm1204, %v9273, 0
      %v9453 = vsel %vm1204, %v9275, 0
      %v9456 = vsel %vm1204, %v9277, 0
      %v9459 = vsel %vm1204, %v9279, 0
      %v9462 = vsel %vm1204, %v9281, 0
      %v9465 = vsel %vm1204, %v9283, 0
      %v9468 = vsel %vm1204, %v9285, 0
      %v9471 = vsel %vm1204, %v9287, 0
      %v9474 = vsel %vm1204, %v9289, 0
      %v9477 = vsel %vm1204, %v9291, 0
      %v9480 = vsel %vm1204, %v9293, 0
      %v9483 = vsel %vm1204, %v9295, 0
      %v9486 = vsel %vm1204, %v9297, 0
      %v9489 = vsel %vm1204, %v9299, 0
      %v9492 = vsel %vm1204, %v9301, 0
      %v9495 = vsel %vm1204, %v9303, 0
      %v9498 = vsel %vm1204, %v9305, 0
      %v9501 = vsel %vm1204, %v9307, 0
      %v9504 = vsel %vm1204, %v9309, 0
      %v9507 = vsel %vm1204, %v9311, 0
      %v9510 = vsel %vm1204, %v9313, 0
      %v9513 = vsel %vm1204, %v9315, 0
      %v9516 = vsel %vm1204, %v9317, 0
      %v9519 = vsel %vm1204, %v9319, 0
      %v9522 = vsel %vm1204, %v9321, 0
      %v9525 = vsel %vm1204, %v9323, 0
      %v9528 = vsel %vm1204, %v9325, 0
      %v9531 = vsel %vm1409, %v9184, 0
      %9533 = vmatpush.bf16.msra.mxu0 0
      %9534 = vmatpush.bf16.msra.mxu0 0
      %9535 = vmatpush.bf16.msra.mxu0 0
      %9536 = vmatpush.bf16.msra.mxu0 0
      %9537 = vmatpush.bf16.msra.mxu0 0
      %9538 = vmatpush.bf16.msra.mxu0 0
      %9539 = vmatpush.bf16.msra.mxu0 0
      %9540 = vmatpush.bf16.msra.mxu0 %v9531
      %9541 = vmatmul.bf16.gmra.mxu0 %v9327
      %v9542 = vpop.f32.mrf.mxu0
      %v9543 = vadd.f32 0.0, %v9542
      %v9544 = vpop.f32.mrf.mxu0
      %v9545 = vadd.f32 0.0, %v9544
      %9546 = vmatmul.bf16.gmra.mxu0 %v9330
      %v9547 = vpop.f32.mrf.mxu0
      %v9548 = vadd.f32 0.0, %v9547
      %v9549 = vpop.f32.mrf.mxu0
      %v9550 = vadd.f32 0.0, %v9549
      %9551 = vmatmul.bf16.gmra.mxu0 %v9333
      %v9552 = vpop.f32.mrf.mxu0
      %v9553 = vadd.f32 0.0, %v9552
      %v9554 = vpop.f32.mrf.mxu0
      %v9555 = vadd.f32 0.0, %v9554
      %9556 = vmatmul.bf16.gmra.mxu0 %v9336
      %v9557 = vpop.f32.mrf.mxu0
      %v9558 = vadd.f32 0.0, %v9557
      %v9559 = vpop.f32.mrf.mxu0
      %v9560 = vadd.f32 0.0, %v9559
      %9561 = vmatmul.bf16.gmra.mxu0 %v9339
      %v9562 = vpop.f32.mrf.mxu0
      %v9563 = vadd.f32 0.0, %v9562
      %v9564 = vpop.f32.mrf.mxu0
      %v9565 = vadd.f32 0.0, %v9564
      %9566 = vmatmul.bf16.gmra.mxu0 %v9342
      %v9567 = vpop.f32.mrf.mxu0
      %v9568 = vadd.f32 0.0, %v9567
      %v9569 = vpop.f32.mrf.mxu0
      %v9570 = vadd.f32 0.0, %v9569
      %9571 = vmatmul.bf16.gmra.mxu0 %v9345
      %v9572 = vpop.f32.mrf.mxu0
      %v9573 = vadd.f32 0.0, %v9572
      %v9574 = vpop.f32.mrf.mxu0
      %v9575 = vadd.f32 0.0, %v9574
      %9576 = vmatmul.bf16.gmra.mxu0 %v9348
      %v9577 = vpop.f32.mrf.mxu0
      %v9578 = vadd.f32 0.0, %v9577
      %v9579 = vpop.f32.mrf.mxu0
      %v9580 = vadd.f32 0.0, %v9579
      %9581 = vmatmul.bf16.gmra.mxu0 %v9351
      %v9582 = vpop.f32.mrf.mxu0
      %v9583 = vadd.f32 0.0, %v9582
      %v9584 = vpop.f32.mrf.mxu0
      %v9585 = vadd.f32 0.0, %v9584
      %9586 = vmatmul.bf16.gmra.mxu0 %v9354
      %v9587 = vpop.f32.mrf.mxu0
      %v9588 = vadd.f32 0.0, %v9587
      %v9589 = vpop.f32.mrf.mxu0
      %v9590 = vadd.f32 0.0, %v9589
      %9591 = vmatmul.bf16.gmra.mxu0 %v9357
      %v9592 = vpop.f32.mrf.mxu0
      %v9593 = vadd.f32 0.0, %v9592
      %v9594 = vpop.f32.mrf.mxu0
      %v9595 = vadd.f32 0.0, %v9594
      %9596 = vmatmul.bf16.gmra.mxu0 %v9360
      %v9597 = vpop.f32.mrf.mxu0
      %v9598 = vadd.f32 0.0, %v9597
      %v9599 = vpop.f32.mrf.mxu0
      %v9600 = vadd.f32 0.0, %v9599
      %9601 = vmatmul.bf16.gmra.mxu0 %v9363
      %v9602 = vpop.f32.mrf.mxu0
      %v9603 = vadd.f32 0.0, %v9602
      %v9604 = vpop.f32.mrf.mxu0
      %v9605 = vadd.f32 0.0, %v9604
      %9606 = vmatmul.bf16.gmra.mxu0 %v9366
      %v9607 = vpop.f32.mrf.mxu0
      %v9608 = vadd.f32 0.0, %v9607
      %v9609 = vpop.f32.mrf.mxu0
      %v9610 = vadd.f32 0.0, %v9609
      %9611 = vmatmul.bf16.gmra.mxu0 %v9369
      %v9612 = vpop.f32.mrf.mxu0
      %v9613 = vadd.f32 0.0, %v9612
      %v9614 = vpop.f32.mrf.mxu0
      %v9615 = vadd.f32 0.0, %v9614
      %9616 = vmatmul.bf16.gmra.mxu0 %v9372
      %v9617 = vpop.f32.mrf.mxu0
      %v9618 = vadd.f32 0.0, %v9617
      %v9619 = vpop.f32.mrf.mxu0
      %v9620 = vadd.f32 0.0, %v9619
      %9621 = vmatmul.bf16.gmra.mxu0 %v9375
      %v9622 = vpop.f32.mrf.mxu0
      %v9623 = vadd.f32 0.0, %v9622
      %v9624 = vpop.f32.mrf.mxu0
      %v9625 = vadd.f32 0.0, %v9624
      %9626 = vmatmul.bf16.gmra.mxu0 %v9378
      %v9627 = vpop.f32.mrf.mxu0
      %v9628 = vadd.f32 0.0, %v9627
      %v9629 = vpop.f32.mrf.mxu0
      %v9630 = vadd.f32 0.0, %v9629
      %9631 = vmatmul.bf16.gmra.mxu0 %v9381
      %v9632 = vpop.f32.mrf.mxu0
      %v9633 = vadd.f32 0.0, %v9632
      %v9634 = vpop.f32.mrf.mxu0
      %v9635 = vadd.f32 0.0, %v9634
      %9636 = vmatmul.bf16.gmra.mxu0 %v9384
      %v9637 = vpop.f32.mrf.mxu0
      %v9638 = vadd.f32 0.0, %v9637
      %v9639 = vpop.f32.mrf.mxu0
      %v9640 = vadd.f32 0.0, %v9639
      %9641 = vmatmul.bf16.gmra.mxu0 %v9387
      %v9642 = vpop.f32.mrf.mxu0
      %v9643 = vadd.f32 0.0, %v9642
      %v9644 = vpop.f32.mrf.mxu0
      %v9645 = vadd.f32 0.0, %v9644
      %9646 = vmatmul.bf16.gmra.mxu0 %v9390
      %v9647 = vpop.f32.mrf.mxu0
      %v9648 = vadd.f32 0.0, %v9647
      %v9649 = vpop.f32.mrf.mxu0
      %v9650 = vadd.f32 0.0, %v9649
      %9651 = vmatmul.bf16.gmra.mxu0 %v9393
      %v9652 = vpop.f32.mrf.mxu0
      %v9653 = vadd.f32 0.0, %v9652
      %v9654 = vpop.f32.mrf.mxu0
      %v9655 = vadd.f32 0.0, %v9654
      %9656 = vmatmul.bf16.gmra.mxu0 %v9396
      %v9657 = vpop.f32.mrf.mxu0
      %v9658 = vadd.f32 0.0, %v9657
      %v9659 = vpop.f32.mrf.mxu0
      %v9660 = vadd.f32 0.0, %v9659
      %9661 = vmatmul.bf16.gmra.mxu0 %v9399
      %v9662 = vpop.f32.mrf.mxu0
      %v9663 = vadd.f32 0.0, %v9662
      %v9664 = vpop.f32.mrf.mxu0
      %v9665 = vadd.f32 0.0, %v9664
      %9666 = vmatmul.bf16.gmra.mxu0 %v9402
      %v9667 = vpop.f32.mrf.mxu0
      %v9668 = vadd.f32 0.0, %v9667
      %v9669 = vpop.f32.mrf.mxu0
      %v9670 = vadd.f32 0.0, %v9669
      %9671 = vmatmul.bf16.gmra.mxu0 %v9405
      %v9672 = vpop.f32.mrf.mxu0
      %v9673 = vadd.f32 0.0, %v9672
      %v9674 = vpop.f32.mrf.mxu0
      %v9675 = vadd.f32 0.0, %v9674
      %9676 = vmatmul.bf16.gmra.mxu0 %v9408
      %v9677 = vpop.f32.mrf.mxu0
      %v9678 = vadd.f32 0.0, %v9677
      %v9679 = vpop.f32.mrf.mxu0
      %v9680 = vadd.f32 0.0, %v9679
      %9681 = vmatmul.bf16.gmra.mxu0 %v9411
      %v9682 = vpop.f32.mrf.mxu0
      %v9683 = vadd.f32 0.0, %v9682
      %v9684 = vpop.f32.mrf.mxu0
      %v9685 = vadd.f32 0.0, %v9684
      %9686 = vmatmul.bf16.gmra.mxu0 %v9414
      %v9687 = vpop.f32.mrf.mxu0
      %v9688 = vadd.f32 0.0, %v9687
      %v9689 = vpop.f32.mrf.mxu0
      %v9690 = vadd.f32 0.0, %v9689
      %9691 = vmatmul.bf16.gmra.mxu0 %v9417
      %v9692 = vpop.f32.mrf.mxu0
      %v9693 = vadd.f32 0.0, %v9692
      %v9694 = vpop.f32.mrf.mxu0
      %v9695 = vadd.f32 0.0, %v9694
      %9696 = vmatmul.bf16.gmra.mxu0 %v9420
      %v9697 = vpop.f32.mrf.mxu0
      %v9698 = vadd.f32 0.0, %v9697
      %v9699 = vpop.f32.mrf.mxu0
      %v9700 = vadd.f32 0.0, %v9699
      %9701 = vmatmul.bf16.gmra.mxu0 %v9423
      %v9702 = vpop.f32.mrf.mxu0
      %v9703 = vadd.f32 0.0, %v9702
      %v9704 = vpop.f32.mrf.mxu0
      %v9705 = vadd.f32 0.0, %v9704
      %9706 = vmatmul.bf16.gmra.mxu0 %v9426
      %v9707 = vpop.f32.mrf.mxu0
      %v9708 = vadd.f32 0.0, %v9707
      %v9709 = vpop.f32.mrf.mxu0
      %v9710 = vadd.f32 0.0, %v9709
      %9711 = vmatmul.bf16.gmra.mxu0 %v9429
      %v9712 = vpop.f32.mrf.mxu0
      %v9713 = vadd.f32 0.0, %v9712
      %v9714 = vpop.f32.mrf.mxu0
      %v9715 = vadd.f32 0.0, %v9714
      %9716 = vmatmul.bf16.gmra.mxu0 %v9432
      %v9717 = vpop.f32.mrf.mxu0
      %v9718 = vadd.f32 0.0, %v9717
      %v9719 = vpop.f32.mrf.mxu0
      %v9720 = vadd.f32 0.0, %v9719
      %9721 = vmatmul.bf16.gmra.mxu0 %v9435
      %v9722 = vpop.f32.mrf.mxu0
      %v9723 = vadd.f32 0.0, %v9722
      %v9724 = vpop.f32.mrf.mxu0
      %v9725 = vadd.f32 0.0, %v9724
      %9726 = vmatmul.bf16.gmra.mxu0 %v9438
      %v9727 = vpop.f32.mrf.mxu0
      %v9728 = vadd.f32 0.0, %v9727
      %v9729 = vpop.f32.mrf.mxu0
      %v9730 = vadd.f32 0.0, %v9729
      %9731 = vmatmul.bf16.gmra.mxu0 %v9441
      %v9732 = vpop.f32.mrf.mxu0
      %v9733 = vadd.f32 0.0, %v9732
      %v9734 = vpop.f32.mrf.mxu0
      %v9735 = vadd.f32 0.0, %v9734
      %9736 = vmatmul.bf16.gmra.mxu0 %v9444
      %v9737 = vpop.f32.mrf.mxu0
      %v9738 = vadd.f32 0.0, %v9737
      %v9739 = vpop.f32.mrf.mxu0
      %v9740 = vadd.f32 0.0, %v9739
      %9741 = vmatmul.bf16.gmra.mxu0 %v9447
      %v9742 = vpop.f32.mrf.mxu0
      %v9743 = vadd.f32 0.0, %v9742
      %v9744 = vpop.f32.mrf.mxu0
      %v9745 = vadd.f32 0.0, %v9744
      %9746 = vmatmul.bf16.gmra.mxu0 %v9450
      %v9747 = vpop.f32.mrf.mxu0
      %v9748 = vadd.f32 0.0, %v9747
      %v9749 = vpop.f32.mrf.mxu0
      %v9750 = vadd.f32 0.0, %v9749
      %9751 = vmatmul.bf16.gmra.mxu0 %v9453
      %v9752 = vpop.f32.mrf.mxu0
      %v9753 = vadd.f32 0.0, %v9752
      %v9754 = vpop.f32.mrf.mxu0
      %v9755 = vadd.f32 0.0, %v9754
      %9756 = vmatmul.bf16.gmra.mxu0 %v9456
      %v9757 = vpop.f32.mrf.mxu0
      %v9758 = vadd.f32 0.0, %v9757
      %v9759 = vpop.f32.mrf.mxu0
      %v9760 = vadd.f32 0.0, %v9759
      %9761 = vmatmul.bf16.gmra.mxu0 %v9459
      %v9762 = vpop.f32.mrf.mxu0
      %v9763 = vadd.f32 0.0, %v9762
      %v9764 = vpop.f32.mrf.mxu0
      %v9765 = vadd.f32 0.0, %v9764
      %9766 = vmatmul.bf16.gmra.mxu0 %v9462
      %v9767 = vpop.f32.mrf.mxu0
      %v9768 = vadd.f32 0.0, %v9767
      %v9769 = vpop.f32.mrf.mxu0
      %v9770 = vadd.f32 0.0, %v9769
      %9771 = vmatmul.bf16.gmra.mxu0 %v9465
      %v9772 = vpop.f32.mrf.mxu0
      %v9773 = vadd.f32 0.0, %v9772
      %v9774 = vpop.f32.mrf.mxu0
      %v9775 = vadd.f32 0.0, %v9774
      %9776 = vmatmul.bf16.gmra.mxu0 %v9468
      %v9777 = vpop.f32.mrf.mxu0
      %v9778 = vadd.f32 0.0, %v9777
      %v9779 = vpop.f32.mrf.mxu0
      %v9780 = vadd.f32 0.0, %v9779
      %9781 = vmatmul.bf16.gmra.mxu0 %v9471
      %v9782 = vpop.f32.mrf.mxu0
      %v9783 = vadd.f32 0.0, %v9782
      %v9784 = vpop.f32.mrf.mxu0
      %v9785 = vadd.f32 0.0, %v9784
      %9786 = vmatmul.bf16.gmra.mxu0 %v9474
      %v9787 = vpop.f32.mrf.mxu0
      %v9788 = vadd.f32 0.0, %v9787
      %v9789 = vpop.f32.mrf.mxu0
      %v9790 = vadd.f32 0.0, %v9789
      %9791 = vmatmul.bf16.gmra.mxu0 %v9477
      %v9792 = vpop.f32.mrf.mxu0
      %v9793 = vadd.f32 0.0, %v9792
      %v9794 = vpop.f32.mrf.mxu0
      %v9795 = vadd.f32 0.0, %v9794
      %9796 = vmatmul.bf16.gmra.mxu0 %v9480
      %v9797 = vpop.f32.mrf.mxu0
      %v9798 = vadd.f32 0.0, %v9797
      %v9799 = vpop.f32.mrf.mxu0
      %v9800 = vadd.f32 0.0, %v9799
      %9801 = vmatmul.bf16.gmra.mxu0 %v9483
      %v9802 = vpop.f32.mrf.mxu0
      %v9803 = vadd.f32 0.0, %v9802
      %v9804 = vpop.f32.mrf.mxu0
      %v9805 = vadd.f32 0.0, %v9804
      %9806 = vmatmul.bf16.gmra.mxu0 %v9486
      %v9807 = vpop.f32.mrf.mxu0
      %v9808 = vadd.f32 0.0, %v9807
      %v9809 = vpop.f32.mrf.mxu0
      %v9810 = vadd.f32 0.0, %v9809
      %9811 = vmatmul.bf16.gmra.mxu0 %v9489
      %v9812 = vpop.f32.mrf.mxu0
      %v9813 = vadd.f32 0.0, %v9812
      %v9814 = vpop.f32.mrf.mxu0
      %v9815 = vadd.f32 0.0, %v9814
      %9816 = vmatmul.bf16.gmra.mxu0 %v9492
      %v9817 = vpop.f32.mrf.mxu0
      %v9818 = vadd.f32 0.0, %v9817
      %v9819 = vpop.f32.mrf.mxu0
      %v9820 = vadd.f32 0.0, %v9819
      %9821 = vmatmul.bf16.gmra.mxu0 %v9495
      %v9822 = vpop.f32.mrf.mxu0
      %v9823 = vadd.f32 0.0, %v9822
      %v9824 = vpop.f32.mrf.mxu0
      %v9825 = vadd.f32 0.0, %v9824
      %9826 = vmatmul.bf16.gmra.mxu0 %v9498
      %v9827 = vpop.f32.mrf.mxu0
      %v9828 = vadd.f32 0.0, %v9827
      %v9829 = vpop.f32.mrf.mxu0
      %v9830 = vadd.f32 0.0, %v9829
      %9831 = vmatmul.bf16.gmra.mxu0 %v9501
      %v9832 = vpop.f32.mrf.mxu0
      %v9833 = vadd.f32 0.0, %v9832
      %v9834 = vpop.f32.mrf.mxu0
      %v9835 = vadd.f32 0.0, %v9834
      %9836 = vmatmul.bf16.gmra.mxu0 %v9504
      %v9837 = vpop.f32.mrf.mxu0
      %v9838 = vadd.f32 0.0, %v9837
      %v9839 = vpop.f32.mrf.mxu0
      %v9840 = vadd.f32 0.0, %v9839
      %9841 = vmatmul.bf16.gmra.mxu0 %v9507
      %v9842 = vpop.f32.mrf.mxu0
      %v9843 = vadd.f32 0.0, %v9842
      %v9844 = vpop.f32.mrf.mxu0
      %v9845 = vadd.f32 0.0, %v9844
      %9846 = vmatmul.bf16.gmra.mxu0 %v9510
      %v9847 = vpop.f32.mrf.mxu0
      %v9848 = vadd.f32 0.0, %v9847
      %v9849 = vpop.f32.mrf.mxu0
      %v9850 = vadd.f32 0.0, %v9849
      %9851 = vmatmul.bf16.gmra.mxu0 %v9513
      %v9852 = vpop.f32.mrf.mxu0
      %v9853 = vadd.f32 0.0, %v9852
      %v9854 = vpop.f32.mrf.mxu0
      %v9855 = vadd.f32 0.0, %v9854
      %9856 = vmatmul.bf16.gmra.mxu0 %v9516
      %v9857 = vpop.f32.mrf.mxu0
      %v9858 = vadd.f32 0.0, %v9857
      %v9859 = vpop.f32.mrf.mxu0
      %v9860 = vadd.f32 0.0, %v9859
      %9861 = vmatmul.bf16.gmra.mxu0 %v9519
      %v9862 = vpop.f32.mrf.mxu0
      %v9863 = vadd.f32 0.0, %v9862
      %v9864 = vpop.f32.mrf.mxu0
      %v9865 = vadd.f32 0.0, %v9864
      %9866 = vmatmul.bf16.gmra.mxu0 %v9522
      %v9867 = vpop.f32.mrf.mxu0
      %v9868 = vadd.f32 0.0, %v9867
      %v9869 = vpop.f32.mrf.mxu0
      %v9870 = vadd.f32 0.0, %v9869
      %9871 = vmatmul.bf16.gmra.mxu0 %v9525
      %v9872 = vpop.f32.mrf.mxu0
      %v9873 = vadd.f32 0.0, %v9872
      %v9874 = vpop.f32.mrf.mxu0
      %v9875 = vadd.f32 0.0, %v9874
      %9876 = vmatmul.bf16.gmra.mxu0 %v9528
      %v9877 = vpop.f32.mrf.mxu0
      %v9878 = vadd.f32 0.0, %v9877
      %v9879 = vpop.f32.mrf.mxu0
      %v9880 = vadd.f32 0.0, %v9879
      %9881 = vdwg.mxu0
      %v9882 = vadd.f32 %v9046, %v9543
      %v9883 = vadd.f32 %v9047, %v9545
      %v9884 = vadd.f32 %v9048, %v9548
      %v9885 = vadd.f32 %v9049, %v9550
      %v9886 = vadd.f32 %v9050, %v9553
      %v9887 = vadd.f32 %v9051, %v9555
      %v9888 = vadd.f32 %v9052, %v9558
      %v9889 = vadd.f32 %v9053, %v9560
      %v9890 = vadd.f32 %v9054, %v9563
      %v9891 = vadd.f32 %v9055, %v9565
      %v9892 = vadd.f32 %v9056, %v9568
      %v9893 = vadd.f32 %v9057, %v9570
      %v9894 = vadd.f32 %v9058, %v9573
      %v9895 = vadd.f32 %v9059, %v9575
      %v9896 = vadd.f32 %v9060, %v9578
      %v9897 = vadd.f32 %v9061, %v9580
      %v9898 = vadd.f32 %v9062, %v9583
      %v9899 = vadd.f32 %v9063, %v9585
      %v9900 = vadd.f32 %v9064, %v9588
      %v9901 = vadd.f32 %v9065, %v9590
      %v9902 = vadd.f32 %v9066, %v9593
      %v9903 = vadd.f32 %v9067, %v9595
      %v9904 = vadd.f32 %v9068, %v9598
      %v9905 = vadd.f32 %v9069, %v9600
      %v9906 = vadd.f32 %v9070, %v9603
      %v9907 = vadd.f32 %v9071, %v9605
      %v9908 = vadd.f32 %v9072, %v9608
      %v9909 = vadd.f32 %v9073, %v9610
      %v9910 = vadd.f32 %v9074, %v9613
      %v9911 = vadd.f32 %v9075, %v9615
      %v9912 = vadd.f32 %v9076, %v9618
      %v9913 = vadd.f32 %v9077, %v9620
      %v9914 = vadd.f32 %v9078, %v9623
      %v9915 = vadd.f32 %v9079, %v9625
      %v9916 = vadd.f32 %v9080, %v9628
      %v9917 = vadd.f32 %v9081, %v9630
      %v9918 = vadd.f32 %v9082, %v9633
      %v9919 = vadd.f32 %v9083, %v9635
      %v9920 = vadd.f32 %v9084, %v9638
      %v9921 = vadd.f32 %v9085, %v9640
      %v9922 = vadd.f32 %v9086, %v9643
      %v9923 = vadd.f32 %v9087, %v9645
      %v9924 = vadd.f32 %v9088, %v9648
      %v9925 = vadd.f32 %v9089, %v9650
      %v9926 = vadd.f32 %v9090, %v9653
      %v9927 = vadd.f32 %v9091, %v9655
      %v9928 = vadd.f32 %v9092, %v9658
      %v9929 = vadd.f32 %v9093, %v9660
      %v9930 = vadd.f32 %v9094, %v9663
      %v9931 = vadd.f32 %v9095, %v9665
      %v9932 = vadd.f32 %v9096, %v9668
      %v9933 = vadd.f32 %v9097, %v9670
      %v9934 = vadd.f32 %v9098, %v9673
      %v9935 = vadd.f32 %v9099, %v9675
      %v9936 = vadd.f32 %v9100, %v9678
      %v9937 = vadd.f32 %v9101, %v9680
      %v9938 = vadd.f32 %v9102, %v9683
      %v9939 = vadd.f32 %v9103, %v9685
      %v9940 = vadd.f32 %v9104, %v9688
      %v9941 = vadd.f32 %v9105, %v9690
      %v9942 = vadd.f32 %v9106, %v9693
      %v9943 = vadd.f32 %v9107, %v9695
      %v9944 = vadd.f32 %v9108, %v9698
      %v9945 = vadd.f32 %v9109, %v9700
      %v9946 = vadd.f32 %v9110, %v9703
      %v9947 = vadd.f32 %v9111, %v9705
      %v9948 = vadd.f32 %v9112, %v9708
      %v9949 = vadd.f32 %v9113, %v9710
      %v9950 = vadd.f32 %v9114, %v9713
      %v9951 = vadd.f32 %v9115, %v9715
      %v9952 = vadd.f32 %v9116, %v9718
      %v9953 = vadd.f32 %v9117, %v9720
      %v9954 = vadd.f32 %v9118, %v9723
      %v9955 = vadd.f32 %v9119, %v9725
      %v9956 = vadd.f32 %v9120, %v9728
      %v9957 = vadd.f32 %v9121, %v9730
      %v9958 = vadd.f32 %v9122, %v9733
      %v9959 = vadd.f32 %v9123, %v9735
      %v9960 = vadd.f32 %v9124, %v9738
      %v9961 = vadd.f32 %v9125, %v9740
      %v9962 = vadd.f32 %v9126, %v9743
      %v9963 = vadd.f32 %v9127, %v9745
      %v9964 = vadd.f32 %v9128, %v9748
      %v9965 = vadd.f32 %v9129, %v9750
      %v9966 = vadd.f32 %v9130, %v9753
      %v9967 = vadd.f32 %v9131, %v9755
      %v9968 = vadd.f32 %v9132, %v9758
      %v9969 = vadd.f32 %v9133, %v9760
      %v9970 = vadd.f32 %v9134, %v9763
      %v9971 = vadd.f32 %v9135, %v9765
      %v9972 = vadd.f32 %v9136, %v9768
      %v9973 = vadd.f32 %v9137, %v9770
      %v9974 = vadd.f32 %v9138, %v9773
      %v9975 = vadd.f32 %v9139, %v9775
      %v9976 = vadd.f32 %v9140, %v9778
      %v9977 = vadd.f32 %v9141, %v9780
      %v9978 = vadd.f32 %v9142, %v9783
      %v9979 = vadd.f32 %v9143, %v9785
      %v9980 = vadd.f32 %v9144, %v9788
      %v9981 = vadd.f32 %v9145, %v9790
      %v9982 = vadd.f32 %v9146, %v9793
      %v9983 = vadd.f32 %v9147, %v9795
      %v9984 = vadd.f32 %v9148, %v9798
      %v9985 = vadd.f32 %v9149, %v9800
      %v9986 = vadd.f32 %v9150, %v9803
      %v9987 = vadd.f32 %v9151, %v9805
      %v9988 = vadd.f32 %v9152, %v9808
      %v9989 = vadd.f32 %v9153, %v9810
      %v9990 = vadd.f32 %v9154, %v9813
      %v9991 = vadd.f32 %v9155, %v9815
      %v9992 = vadd.f32 %v9156, %v9818
      %v9993 = vadd.f32 %v9157, %v9820
      %v9994 = vadd.f32 %v9158, %v9823
      %v9995 = vadd.f32 %v9159, %v9825
      %v9996 = vadd.f32 %v9160, %v9828
      %v9997 = vadd.f32 %v9161, %v9830
      %v9998 = vadd.f32 %v9162, %v9833
      %v9999 = vadd.f32 %v9163, %v9835
      %v10000 = vadd.f32 %v9164, %v9838
      %v10001 = vadd.f32 %v9165, %v9840
      %v10002 = vadd.f32 %v9166, %v9843
      %v10003 = vadd.f32 %v9167, %v9845
      %v10004 = vadd.f32 %v9168, %v9848
      %v10005 = vadd.f32 %v9169, %v9850
      %v10006 = vadd.f32 %v9170, %v9853
      %v10007 = vadd.f32 %v9171, %v9855
      %v10008 = vadd.f32 %v9172, %v9858
      %v10009 = vadd.f32 %v9173, %v9860
      %v10010 = vadd.f32 %v9174, %v9863
      %v10011 = vadd.f32 %v9175, %v9865
      %v10012 = vadd.f32 %v9176, %v9868
      %v10013 = vadd.f32 %v9177, %v9870
      %v10014 = vadd.f32 %v9178, %v9873
      %v10015 = vadd.f32 %v9179, %v9875
      %v10016 = vadd.f32 %v9180, %v9878
      %v10017 = vadd.f32 %v9181, %v9880
      %v10018 = vld [vmem:[%s2] sm:$0x1]
      %v10020 = vperm.slane %v10018, 0
      %v10022 = vadd.f32 %v9882, %v10020
      %v10023 = vadd.f32 %v9883, %v10020
      %v10024 = vadd.f32 %v9884, %v10020
      %v10025 = vadd.f32 %v9885, %v10020
      %v10026 = vadd.f32 %v9886, %v10020
      %v10027 = vadd.f32 %v9887, %v10020
      %v10028 = vadd.f32 %v9888, %v10020
      %v10029 = vadd.f32 %v9889, %v10020
      %v10030 = vadd.f32 %v9890, %v10020
      %v10031 = vadd.f32 %v9891, %v10020
      %v10032 = vadd.f32 %v9892, %v10020
      %v10033 = vadd.f32 %v9893, %v10020
      %v10034 = vadd.f32 %v9894, %v10020
      %v10035 = vadd.f32 %v9895, %v10020
      %v10036 = vadd.f32 %v9896, %v10020
      %v10037 = vadd.f32 %v9897, %v10020
      %v10038 = vadd.f32 %v9898, %v10020
      %v10039 = vadd.f32 %v9899, %v10020
      %v10040 = vadd.f32 %v9900, %v10020
      %v10041 = vadd.f32 %v9901, %v10020
      %v10042 = vadd.f32 %v9902, %v10020
      %v10043 = vadd.f32 %v9903, %v10020
      %v10044 = vadd.f32 %v9904, %v10020
      %v10045 = vadd.f32 %v9905, %v10020
      %v10046 = vadd.f32 %v9906, %v10020
      %v10047 = vadd.f32 %v9907, %v10020
      %v10048 = vadd.f32 %v9908, %v10020
      %v10049 = vadd.f32 %v9909, %v10020
      %v10050 = vadd.f32 %v9910, %v10020
      %v10051 = vadd.f32 %v9911, %v10020
      %v10052 = vadd.f32 %v9912, %v10020
      %v10053 = vadd.f32 %v9913, %v10020
      %v10054 = vadd.f32 %v9914, %v10020
      %v10055 = vadd.f32 %v9915, %v10020
      %v10056 = vadd.f32 %v9916, %v10020
      %v10057 = vadd.f32 %v9917, %v10020
      %v10058 = vadd.f32 %v9918, %v10020
      %v10059 = vadd.f32 %v9919, %v10020
      %v10060 = vadd.f32 %v9920, %v10020
      %v10061 = vadd.f32 %v9921, %v10020
      %v10062 = vadd.f32 %v9922, %v10020
      %v10063 = vadd.f32 %v9923, %v10020
      %v10064 = vadd.f32 %v9924, %v10020
      %v10065 = vadd.f32 %v9925, %v10020
      %v10066 = vadd.f32 %v9926, %v10020
      %v10067 = vadd.f32 %v9927, %v10020
      %v10068 = vadd.f32 %v9928, %v10020
      %v10069 = vadd.f32 %v9929, %v10020
      %v10070 = vadd.f32 %v9930, %v10020
      %v10071 = vadd.f32 %v9931, %v10020
      %v10072 = vadd.f32 %v9932, %v10020
      %v10073 = vadd.f32 %v9933, %v10020
      %v10074 = vadd.f32 %v9934, %v10020
      %v10075 = vadd.f32 %v9935, %v10020
      %v10076 = vadd.f32 %v9936, %v10020
      %v10077 = vadd.f32 %v9937, %v10020
      %v10078 = vadd.f32 %v9938, %v10020
      %v10079 = vadd.f32 %v9939, %v10020
      %v10080 = vadd.f32 %v9940, %v10020
      %v10081 = vadd.f32 %v9941, %v10020
      %v10082 = vadd.f32 %v9942, %v10020
      %v10083 = vadd.f32 %v9943, %v10020
      %v10084 = vadd.f32 %v9944, %v10020
      %v10085 = vadd.f32 %v9945, %v10020
      %v10086 = vadd.f32 %v9946, %v10020
      %v10087 = vadd.f32 %v9947, %v10020
      %v10088 = vadd.f32 %v9948, %v10020
      %v10089 = vadd.f32 %v9949, %v10020
      %v10090 = vadd.f32 %v9950, %v10020
      %v10091 = vadd.f32 %v9951, %v10020
      %v10092 = vadd.f32 %v9952, %v10020
      %v10093 = vadd.f32 %v9953, %v10020
      %v10094 = vadd.f32 %v9954, %v10020
      %v10095 = vadd.f32 %v9955, %v10020
      %v10096 = vadd.f32 %v9956, %v10020
      %v10097 = vadd.f32 %v9957, %v10020
      %v10098 = vadd.f32 %v9958, %v10020
      %v10099 = vadd.f32 %v9959, %v10020
      %v10100 = vadd.f32 %v9960, %v10020
      %v10101 = vadd.f32 %v9961, %v10020
      %v10102 = vadd.f32 %v9962, %v10020
      %v10103 = vadd.f32 %v9963, %v10020
      %v10104 = vadd.f32 %v9964, %v10020
      %v10105 = vadd.f32 %v9965, %v10020
      %v10106 = vadd.f32 %v9966, %v10020
      %v10107 = vadd.f32 %v9967, %v10020
      %v10108 = vadd.f32 %v9968, %v10020
      %v10109 = vadd.f32 %v9969, %v10020
      %v10110 = vadd.f32 %v9970, %v10020
      %v10111 = vadd.f32 %v9971, %v10020
      %v10112 = vadd.f32 %v9972, %v10020
      %v10113 = vadd.f32 %v9973, %v10020
      %v10114 = vadd.f32 %v9974, %v10020
      %v10115 = vadd.f32 %v9975, %v10020
      %v10116 = vadd.f32 %v9976, %v10020
      %v10117 = vadd.f32 %v9977, %v10020
      %v10118 = vadd.f32 %v9978, %v10020
      %v10119 = vadd.f32 %v9979, %v10020
      %v10120 = vadd.f32 %v9980, %v10020
      %v10121 = vadd.f32 %v9981, %v10020
      %v10122 = vadd.f32 %v9982, %v10020
      %v10123 = vadd.f32 %v9983, %v10020
      %v10124 = vadd.f32 %v9984, %v10020
      %v10125 = vadd.f32 %v9985, %v10020
      %v10126 = vadd.f32 %v9986, %v10020
      %v10127 = vadd.f32 %v9987, %v10020
      %v10128 = vadd.f32 %v9988, %v10020
      %v10129 = vadd.f32 %v9989, %v10020
      %v10130 = vadd.f32 %v9990, %v10020
      %v10131 = vadd.f32 %v9991, %v10020
      %v10132 = vadd.f32 %v9992, %v10020
      %v10133 = vadd.f32 %v9993, %v10020
      %v10134 = vadd.f32 %v9994, %v10020
      %v10135 = vadd.f32 %v9995, %v10020
      %v10136 = vadd.f32 %v9996, %v10020
      %v10137 = vadd.f32 %v9997, %v10020
      %v10138 = vadd.f32 %v9998, %v10020
      %v10139 = vadd.f32 %v9999, %v10020
      %v10140 = vadd.f32 %v10000, %v10020
      %v10141 = vadd.f32 %v10001, %v10020
      %v10142 = vadd.f32 %v10002, %v10020
      %v10143 = vadd.f32 %v10003, %v10020
      %v10144 = vadd.f32 %v10004, %v10020
      %v10145 = vadd.f32 %v10005, %v10020
      %v10146 = vadd.f32 %v10006, %v10020
      %v10147 = vadd.f32 %v10007, %v10020
      %v10148 = vadd.f32 %v10008, %v10020
      %v10149 = vadd.f32 %v10009, %v10020
      %v10150 = vadd.f32 %v10010, %v10020
      %v10151 = vadd.f32 %v10011, %v10020
      %v10152 = vadd.f32 %v10012, %v10020
      %v10153 = vadd.f32 %v10013, %v10020
      %v10154 = vadd.f32 %v10014, %v10020
      %v10155 = vadd.f32 %v10015, %v10020
      %v10156 = vadd.f32 %v10016, %v10020
      %v10157 = vadd.f32 %v10017, %v10020
      %v10158 = vmax.f32 %v10022, 0.0
      %v10159 = vmax.f32 %v10023, 0.0
      %v10160 = vmax.f32 %v10024, 0.0
      %v10161 = vmax.f32 %v10025, 0.0
      %v10162 = vmax.f32 %v10026, 0.0
      %v10163 = vmax.f32 %v10027, 0.0
      %v10164 = vmax.f32 %v10028, 0.0
      %v10165 = vmax.f32 %v10029, 0.0
      %v10166 = vmax.f32 %v10030, 0.0
      %v10167 = vmax.f32 %v10031, 0.0
      %v10168 = vmax.f32 %v10032, 0.0
      %v10169 = vmax.f32 %v10033, 0.0
      %v10170 = vmax.f32 %v10034, 0.0
      %v10171 = vmax.f32 %v10035, 0.0
      %v10172 = vmax.f32 %v10036, 0.0
      %v10173 = vmax.f32 %v10037, 0.0
      %v10174 = vmax.f32 %v10038, 0.0
      %v10175 = vmax.f32 %v10039, 0.0
      %v10176 = vmax.f32 %v10040, 0.0
      %v10177 = vmax.f32 %v10041, 0.0
      %v10178 = vmax.f32 %v10042, 0.0
      %v10179 = vmax.f32 %v10043, 0.0
      %v10180 = vmax.f32 %v10044, 0.0
      %v10181 = vmax.f32 %v10045, 0.0
      %v10182 = vmax.f32 %v10046, 0.0
      %v10183 = vmax.f32 %v10047, 0.0
      %v10184 = vmax.f32 %v10048, 0.0
      %v10185 = vmax.f32 %v10049, 0.0
      %v10186 = vmax.f32 %v10050, 0.0
      %v10187 = vmax.f32 %v10051, 0.0
      %v10188 = vmax.f32 %v10052, 0.0
      %v10189 = vmax.f32 %v10053, 0.0
      %v10190 = vmax.f32 %v10054, 0.0
      %v10191 = vmax.f32 %v10055, 0.0
      %v10192 = vmax.f32 %v10056, 0.0
      %v10193 = vmax.f32 %v10057, 0.0
      %v10194 = vmax.f32 %v10058, 0.0
      %v10195 = vmax.f32 %v10059, 0.0
      %v10196 = vmax.f32 %v10060, 0.0
      %v10197 = vmax.f32 %v10061, 0.0
      %v10198 = vmax.f32 %v10062, 0.0
      %v10199 = vmax.f32 %v10063, 0.0
      %v10200 = vmax.f32 %v10064, 0.0
      %v10201 = vmax.f32 %v10065, 0.0
      %v10202 = vmax.f32 %v10066, 0.0
      %v10203 = vmax.f32 %v10067, 0.0
      %v10204 = vmax.f32 %v10068, 0.0
      %v10205 = vmax.f32 %v10069, 0.0
      %v10206 = vmax.f32 %v10070, 0.0
      %v10207 = vmax.f32 %v10071, 0.0
      %v10208 = vmax.f32 %v10072, 0.0
      %v10209 = vmax.f32 %v10073, 0.0
      %v10210 = vmax.f32 %v10074, 0.0
      %v10211 = vmax.f32 %v10075, 0.0
      %v10212 = vmax.f32 %v10076, 0.0
      %v10213 = vmax.f32 %v10077, 0.0
      %v10214 = vmax.f32 %v10078, 0.0
      %v10215 = vmax.f32 %v10079, 0.0
      %v10216 = vmax.f32 %v10080, 0.0
      %v10217 = vmax.f32 %v10081, 0.0
      %v10218 = vmax.f32 %v10082, 0.0
      %v10219 = vmax.f32 %v10083, 0.0
      %v10220 = vmax.f32 %v10084, 0.0
      %v10221 = vmax.f32 %v10085, 0.0
      %v10222 = vmax.f32 %v10086, 0.0
      %v10223 = vmax.f32 %v10087, 0.0
      %v10224 = vmax.f32 %v10088, 0.0
      %v10225 = vmax.f32 %v10089, 0.0
      %v10226 = vmax.f32 %v10090, 0.0
      %v10227 = vmax.f32 %v10091, 0.0
      %v10228 = vmax.f32 %v10092, 0.0
      %v10229 = vmax.f32 %v10093, 0.0
      %v10230 = vmax.f32 %v10094, 0.0
      %v10231 = vmax.f32 %v10095, 0.0
      %v10232 = vmax.f32 %v10096, 0.0
      %v10233 = vmax.f32 %v10097, 0.0
      %v10234 = vmax.f32 %v10098, 0.0
      %v10235 = vmax.f32 %v10099, 0.0
      %v10236 = vmax.f32 %v10100, 0.0
      %v10237 = vmax.f32 %v10101, 0.0
      %v10238 = vmax.f32 %v10102, 0.0
      %v10239 = vmax.f32 %v10103, 0.0
      %v10240 = vmax.f32 %v10104, 0.0
      %v10241 = vmax.f32 %v10105, 0.0
      %v10242 = vmax.f32 %v10106, 0.0
      %v10243 = vmax.f32 %v10107, 0.0
      %v10244 = vmax.f32 %v10108, 0.0
      %v10245 = vmax.f32 %v10109, 0.0
      %v10246 = vmax.f32 %v10110, 0.0
      %v10247 = vmax.f32 %v10111, 0.0
      %v10248 = vmax.f32 %v10112, 0.0
      %v10249 = vmax.f32 %v10113, 0.0
      %v10250 = vmax.f32 %v10114, 0.0
      %v10251 = vmax.f32 %v10115, 0.0
      %v10252 = vmax.f32 %v10116, 0.0
      %v10253 = vmax.f32 %v10117, 0.0
      %v10254 = vmax.f32 %v10118, 0.0
      %v10255 = vmax.f32 %v10119, 0.0
      %v10256 = vmax.f32 %v10120, 0.0
      %v10257 = vmax.f32 %v10121, 0.0
      %v10258 = vmax.f32 %v10122, 0.0
      %v10259 = vmax.f32 %v10123, 0.0
      %v10260 = vmax.f32 %v10124, 0.0
      %v10261 = vmax.f32 %v10125, 0.0
      %v10262 = vmax.f32 %v10126, 0.0
      %v10263 = vmax.f32 %v10127, 0.0
      %v10264 = vmax.f32 %v10128, 0.0
      %v10265 = vmax.f32 %v10129, 0.0
      %v10266 = vmax.f32 %v10130, 0.0
      %v10267 = vmax.f32 %v10131, 0.0
      %v10268 = vmax.f32 %v10132, 0.0
      %v10269 = vmax.f32 %v10133, 0.0
      %v10270 = vmax.f32 %v10134, 0.0
      %v10271 = vmax.f32 %v10135, 0.0
      %v10272 = vmax.f32 %v10136, 0.0
      %v10273 = vmax.f32 %v10137, 0.0
      %v10274 = vmax.f32 %v10138, 0.0
      %v10275 = vmax.f32 %v10139, 0.0
      %v10276 = vmax.f32 %v10140, 0.0
      %v10277 = vmax.f32 %v10141, 0.0
      %v10278 = vmax.f32 %v10142, 0.0
      %v10279 = vmax.f32 %v10143, 0.0
      %v10280 = vmax.f32 %v10144, 0.0
      %v10281 = vmax.f32 %v10145, 0.0
      %v10282 = vmax.f32 %v10146, 0.0
      %v10283 = vmax.f32 %v10147, 0.0
      %v10284 = vmax.f32 %v10148, 0.0
      %v10285 = vmax.f32 %v10149, 0.0
      %v10286 = vmax.f32 %v10150, 0.0
      %v10287 = vmax.f32 %v10151, 0.0
      %v10288 = vmax.f32 %v10152, 0.0
      %v10289 = vmax.f32 %v10153, 0.0
      %v10290 = vmax.f32 %v10154, 0.0
      %v10291 = vmax.f32 %v10155, 0.0
      %v10292 = vmax.f32 %v10156, 0.0
      %v10293 = vmax.f32 %v10157, 0.0
      %v10294 = vpack.c.bf16 %v10158, %v10158
      %v10295 = vpack.c.bf16 %v10159, %v10159
      %v10296 = vpack.c.bf16 %v10160, %v10160
      %v10297 = vpack.c.bf16 %v10161, %v10161
      %v10298 = vpack.c.bf16 %v10162, %v10162
      %v10299 = vpack.c.bf16 %v10163, %v10163
      %v10300 = vpack.c.bf16 %v10164, %v10164
      %v10301 = vpack.c.bf16 %v10165, %v10165
      %v10302 = vpack.c.bf16 %v10166, %v10166
      %v10303 = vpack.c.bf16 %v10167, %v10167
      %v10304 = vpack.c.bf16 %v10168, %v10168
      %v10305 = vpack.c.bf16 %v10169, %v10169
      %v10306 = vpack.c.bf16 %v10170, %v10170
      %v10307 = vpack.c.bf16 %v10171, %v10171
      %v10308 = vpack.c.bf16 %v10172, %v10172
      %v10309 = vpack.c.bf16 %v10173, %v10173
      %v10310 = vpack.c.bf16 %v10174, %v10174
      %v10311 = vpack.c.bf16 %v10175, %v10175
      %v10312 = vpack.c.bf16 %v10176, %v10176
      %v10313 = vpack.c.bf16 %v10177, %v10177
      %v10314 = vpack.c.bf16 %v10178, %v10178
      %v10315 = vpack.c.bf16 %v10179, %v10179
      %v10316 = vpack.c.bf16 %v10180, %v10180
      %v10317 = vpack.c.bf16 %v10181, %v10181
      %v10318 = vpack.c.bf16 %v10182, %v10182
      %v10319 = vpack.c.bf16 %v10183, %v10183
      %v10320 = vpack.c.bf16 %v10184, %v10184
      %v10321 = vpack.c.bf16 %v10185, %v10185
      %v10322 = vpack.c.bf16 %v10186, %v10186
      %v10323 = vpack.c.bf16 %v10187, %v10187
      %v10324 = vpack.c.bf16 %v10188, %v10188
      %v10325 = vpack.c.bf16 %v10189, %v10189
      %v10326 = vpack.c.bf16 %v10190, %v10190
      %v10327 = vpack.c.bf16 %v10191, %v10191
      %v10328 = vpack.c.bf16 %v10192, %v10192
      %v10329 = vpack.c.bf16 %v10193, %v10193
      %v10330 = vpack.c.bf16 %v10194, %v10194
      %v10331 = vpack.c.bf16 %v10195, %v10195
      %v10332 = vpack.c.bf16 %v10196, %v10196
      %v10333 = vpack.c.bf16 %v10197, %v10197
      %v10334 = vpack.c.bf16 %v10198, %v10198
      %v10335 = vpack.c.bf16 %v10199, %v10199
      %v10336 = vpack.c.bf16 %v10200, %v10200
      %v10337 = vpack.c.bf16 %v10201, %v10201
      %v10338 = vpack.c.bf16 %v10202, %v10202
      %v10339 = vpack.c.bf16 %v10203, %v10203
      %v10340 = vpack.c.bf16 %v10204, %v10204
      %v10341 = vpack.c.bf16 %v10205, %v10205
      %v10342 = vpack.c.bf16 %v10206, %v10206
      %v10343 = vpack.c.bf16 %v10207, %v10207
      %v10344 = vpack.c.bf16 %v10208, %v10208
      %v10345 = vpack.c.bf16 %v10209, %v10209
      %v10346 = vpack.c.bf16 %v10210, %v10210
      %v10347 = vpack.c.bf16 %v10211, %v10211
      %v10348 = vpack.c.bf16 %v10212, %v10212
      %v10349 = vpack.c.bf16 %v10213, %v10213
      %v10350 = vpack.c.bf16 %v10214, %v10214
      %v10351 = vpack.c.bf16 %v10215, %v10215
      %v10352 = vpack.c.bf16 %v10216, %v10216
      %v10353 = vpack.c.bf16 %v10217, %v10217
      %v10354 = vpack.c.bf16 %v10218, %v10218
      %v10355 = vpack.c.bf16 %v10219, %v10219
      %v10356 = vpack.c.bf16 %v10220, %v10220
      %v10357 = vpack.c.bf16 %v10221, %v10221
      %v10358 = vpack.c.bf16 %v10222, %v10222
      %v10359 = vpack.c.bf16 %v10223, %v10223
      %v10360 = vpack.c.bf16 %v10224, %v10224
      %v10361 = vpack.c.bf16 %v10225, %v10225
      %v10362 = vpack.c.bf16 %v10226, %v10226
      %v10363 = vpack.c.bf16 %v10227, %v10227
      %v10364 = vpack.c.bf16 %v10228, %v10228
      %v10365 = vpack.c.bf16 %v10229, %v10229
      %v10366 = vpack.c.bf16 %v10230, %v10230
      %v10367 = vpack.c.bf16 %v10231, %v10231
      %v10368 = vpack.c.bf16 %v10232, %v10232
      %v10369 = vpack.c.bf16 %v10233, %v10233
      %v10370 = vpack.c.bf16 %v10234, %v10234
      %v10371 = vpack.c.bf16 %v10235, %v10235
      %v10372 = vpack.c.bf16 %v10236, %v10236
      %v10373 = vpack.c.bf16 %v10237, %v10237
      %v10374 = vpack.c.bf16 %v10238, %v10238
      %v10375 = vpack.c.bf16 %v10239, %v10239
      %v10376 = vpack.c.bf16 %v10240, %v10240
      %v10377 = vpack.c.bf16 %v10241, %v10241
      %v10378 = vpack.c.bf16 %v10242, %v10242
      %v10379 = vpack.c.bf16 %v10243, %v10243
      %v10380 = vpack.c.bf16 %v10244, %v10244
      %v10381 = vpack.c.bf16 %v10245, %v10245
      %v10382 = vpack.c.bf16 %v10246, %v10246
      %v10383 = vpack.c.bf16 %v10247, %v10247
      %v10384 = vpack.c.bf16 %v10248, %v10248
      %v10385 = vpack.c.bf16 %v10249, %v10249
      %v10386 = vpack.c.bf16 %v10250, %v10250
      %v10387 = vpack.c.bf16 %v10251, %v10251
      %v10388 = vpack.c.bf16 %v10252, %v10252
      %v10389 = vpack.c.bf16 %v10253, %v10253
      %v10390 = vpack.c.bf16 %v10254, %v10254
      %v10391 = vpack.c.bf16 %v10255, %v10255
      %v10392 = vpack.c.bf16 %v10256, %v10256
      %v10393 = vpack.c.bf16 %v10257, %v10257
      %v10394 = vpack.c.bf16 %v10258, %v10258
      %v10395 = vpack.c.bf16 %v10259, %v10259
      %v10396 = vpack.c.bf16 %v10260, %v10260
      %v10397 = vpack.c.bf16 %v10261, %v10261
      %v10398 = vpack.c.bf16 %v10262, %v10262
      %v10399 = vpack.c.bf16 %v10263, %v10263
      %v10400 = vpack.c.bf16 %v10264, %v10264
      %v10401 = vpack.c.bf16 %v10265, %v10265
      %v10402 = vpack.c.bf16 %v10266, %v10266
      %v10403 = vpack.c.bf16 %v10267, %v10267
      %v10404 = vpack.c.bf16 %v10268, %v10268
      %v10405 = vpack.c.bf16 %v10269, %v10269
      %v10406 = vpack.c.bf16 %v10270, %v10270
      %v10407 = vpack.c.bf16 %v10271, %v10271
      %v10408 = vpack.c.bf16 %v10272, %v10272
      %v10409 = vpack.c.bf16 %v10273, %v10273
      %v10410 = vpack.c.bf16 %v10274, %v10274
      %v10411 = vpack.c.bf16 %v10275, %v10275
      %v10412 = vpack.c.bf16 %v10276, %v10276
      %v10413 = vpack.c.bf16 %v10277, %v10277
      %v10414 = vpack.c.bf16 %v10278, %v10278
      %v10415 = vpack.c.bf16 %v10279, %v10279
      %v10416 = vpack.c.bf16 %v10280, %v10280
      %v10417 = vpack.c.bf16 %v10281, %v10281
      %v10418 = vpack.c.bf16 %v10282, %v10282
      %v10419 = vpack.c.bf16 %v10283, %v10283
      %v10420 = vpack.c.bf16 %v10284, %v10284
      %v10421 = vpack.c.bf16 %v10285, %v10285
      %v10422 = vpack.c.bf16 %v10286, %v10286
      %v10423 = vpack.c.bf16 %v10287, %v10287
      %v10424 = vpack.c.bf16 %v10288, %v10288
      %v10425 = vpack.c.bf16 %v10289, %v10289
      %v10426 = vpack.c.bf16 %v10290, %v10290
      %v10427 = vpack.c.bf16 %v10291, %v10291
      %v10428 = vpack.c.bf16 %v10292, %v10292
      %v10429 = vpack.c.bf16 %v10293, %v10293
      %vm10430 = vcmask 27648
      %10431 = vst.msk [vmem:[%s170] sm:$0xf] %vm10430, %v10294
      %10432 = vst.msk [vmem:[%s170 + $0x4] sm:$0xf] %vm10430, %v10295
      %10433 = vst.msk [vmem:[%s170 + $0x8] sm:$0xf] %vm10430, %v10296
      %10434 = vst.msk [vmem:[%s170 + $0xc] sm:$0xf] %vm10430, %v10297
      %10435 = vst.msk [vmem:[%s170 + $0x10] sm:$0xf] %vm10430, %v10298
      %10436 = vst.msk [vmem:[%s170 + $0x14] sm:$0xf] %vm10430, %v10299
      %10437 = vst.msk [vmem:[%s170 + $0x18] sm:$0xf] %vm10430, %v10300
      %10438 = vst.msk [vmem:[%s170 + $0x1c] sm:$0xf] %vm10430, %v10301
      %10439 = vst.msk [vmem:[%s170 + $0x20] sm:$0xf] %vm10430, %v10302
      %10440 = vst.msk [vmem:[%s170 + $0x24] sm:$0xf] %vm10430, %v10303
      %10441 = vst.msk [vmem:[%s170 + $0x28] sm:$0xf] %vm10430, %v10304
      %10442 = vst.msk [vmem:[%s170 + $0x2c] sm:$0xf] %vm10430, %v10305
      %10443 = vst.msk [vmem:[%s170 + $0x30] sm:$0xf] %vm10430, %v10306
      %10444 = vst.msk [vmem:[%s170 + $0x34] sm:$0xf] %vm10430, %v10307
      %10445 = vst.msk [vmem:[%s170 + $0x38] sm:$0xf] %vm10430, %v10308
      %10446 = vst.msk [vmem:[%s170 + $0x3c] sm:$0xf] %vm10430, %v10309
      %10447 = vst.msk [vmem:[%s170 + $0x40] sm:$0xf] %vm10430, %v10310
      %10448 = vst.msk [vmem:[%s170 + $0x44] sm:$0xf] %vm10430, %v10311
      %10449 = vst.msk [vmem:[%s170 + $0x48] sm:$0xf] %vm10430, %v10312
      %10450 = vst.msk [vmem:[%s170 + $0x4c] sm:$0xf] %vm10430, %v10313
      %10451 = vst.msk [vmem:[%s170 + $0x50] sm:$0xf] %vm10430, %v10314
      %10452 = vst.msk [vmem:[%s170 + $0x54] sm:$0xf] %vm10430, %v10315
      %10453 = vst.msk [vmem:[%s170 + $0x58] sm:$0xf] %vm10430, %v10316
      %10454 = vst.msk [vmem:[%s170 + $0x5c] sm:$0xf] %vm10430, %v10317
      %10455 = vst.msk [vmem:[%s170 + $0x60] sm:$0xf] %vm10430, %v10318
      %10456 = vst.msk [vmem:[%s170 + $0x64] sm:$0xf] %vm10430, %v10319
      %10457 = vst.msk [vmem:[%s170 + $0x68] sm:$0xf] %vm10430, %v10320
      %10458 = vst.msk [vmem:[%s170 + $0x6c] sm:$0xf] %vm10430, %v10321
      %10459 = vst.msk [vmem:[%s170 + $0x70] sm:$0xf] %vm10430, %v10322
      %10460 = vst.msk [vmem:[%s170 + $0x74] sm:$0xf] %vm10430, %v10323
      %10461 = vst.msk [vmem:[%s170 + $0x78] sm:$0xf] %vm10430, %v10324
      %10462 = vst.msk [vmem:[%s170 + $0x7c] sm:$0xf] %vm10430, %v10325
      %10463 = vst.msk [vmem:[%s170 + $0x80] sm:$0xf] %vm10430, %v10326
      %10464 = vst.msk [vmem:[%s170 + $0x84] sm:$0xf] %vm10430, %v10327
      %10465 = vst.msk [vmem:[%s170 + $0x88] sm:$0xf] %vm10430, %v10328
      %10466 = vst.msk [vmem:[%s170 + $0x8c] sm:$0xf] %vm10430, %v10329
      %10467 = vst.msk [vmem:[%s170 + $0x90] sm:$0xf] %vm10430, %v10330
      %10468 = vst.msk [vmem:[%s170 + $0x94] sm:$0xf] %vm10430, %v10331
      %10469 = vst.msk [vmem:[%s170 + $0x98] sm:$0xf] %vm10430, %v10332
      %10470 = vst.msk [vmem:[%s170 + $0x9c] sm:$0xf] %vm10430, %v10333
      %10471 = vst.msk [vmem:[%s170 + $0xa0] sm:$0xf] %vm10430, %v10334
      %10472 = vst.msk [vmem:[%s170 + $0xa4] sm:$0xf] %vm10430, %v10335
      %10473 = vst.msk [vmem:[%s170 + $0xa8] sm:$0xf] %vm10430, %v10336
      %10474 = vst.msk [vmem:[%s170 + $0xac] sm:$0xf] %vm10430, %v10337
      %10475 = vst.msk [vmem:[%s170 + $0xb0] sm:$0xf] %vm10430, %v10338
      %10476 = vst.msk [vmem:[%s170 + $0xb4] sm:$0xf] %vm10430, %v10339
      %10477 = vst.msk [vmem:[%s170 + $0xb8] sm:$0xf] %vm10430, %v10340
      %10478 = vst.msk [vmem:[%s170 + $0xbc] sm:$0xf] %vm10430, %v10341
      %10479 = vst.msk [vmem:[%s170 + $0xc0] sm:$0xf] %vm10430, %v10342
      %10480 = vst.msk [vmem:[%s170 + $0xc4] sm:$0xf] %vm10430, %v10343
      %10481 = vst.msk [vmem:[%s170 + $0xc8] sm:$0xf] %vm10430, %v10344
      %10482 = vst.msk [vmem:[%s170 + $0xcc] sm:$0xf] %vm10430, %v10345
      %10483 = vst.msk [vmem:[%s170 + $0xd0] sm:$0xf] %vm10430, %v10346
      %10484 = vst.msk [vmem:[%s170 + $0xd4] sm:$0xf] %vm10430, %v10347
      %10485 = vst.msk [vmem:[%s170 + $0xd8] sm:$0xf] %vm10430, %v10348
      %10486 = vst.msk [vmem:[%s170 + $0xdc] sm:$0xf] %vm10430, %v10349
      %10487 = vst.msk [vmem:[%s170 + $0xe0] sm:$0xf] %vm10430, %v10350
      %10488 = vst.msk [vmem:[%s170 + $0xe4] sm:$0xf] %vm10430, %v10351
      %10489 = vst.msk [vmem:[%s170 + $0xe8] sm:$0xf] %vm10430, %v10352
      %10490 = vst.msk [vmem:[%s170 + $0xec] sm:$0xf] %vm10430, %v10353
      %10491 = vst.msk [vmem:[%s170 + $0xf0] sm:$0xf] %vm10430, %v10354
      %10492 = vst.msk [vmem:[%s170 + $0xf4] sm:$0xf] %vm10430, %v10355
      %10493 = vst.msk [vmem:[%s170 + $0xf8] sm:$0xf] %vm10430, %v10356
      %10494 = vst.msk [vmem:[%s170 + $0xfc] sm:$0xf] %vm10430, %v10357
      %10495 = vst.msk [vmem:[%s170 + $0x100] sm:$0xf] %vm10430, %v10358
      %10496 = vst.msk [vmem:[%s170 + $0x104] sm:$0xf] %vm10430, %v10359
      %10497 = vst.msk [vmem:[%s170 + $0x108] sm:$0xf] %vm10430, %v10360
      %10498 = vst.msk [vmem:[%s170 + $0x10c] sm:$0xf] %vm10430, %v10361
      %10499 = vst.msk [vmem:[%s170 + $0x110] sm:$0xf] %vm10430, %v10362
      %10500 = vst.msk [vmem:[%s170 + $0x114] sm:$0xf] %vm10430, %v10363
      %10501 = vst.msk [vmem:[%s170 + $0x118] sm:$0xf] %vm10430, %v10364
      %10502 = vst.msk [vmem:[%s170 + $0x11c] sm:$0xf] %vm10430, %v10365
      %10503 = vst.msk [vmem:[%s170 + $0x120] sm:$0xf] %vm10430, %v10366
      %10504 = vst.msk [vmem:[%s170 + $0x124] sm:$0xf] %vm10430, %v10367
      %10505 = vst.msk [vmem:[%s170 + $0x128] sm:$0xf] %vm10430, %v10368
      %10506 = vst.msk [vmem:[%s170 + $0x12c] sm:$0xf] %vm10430, %v10369
      %10507 = vst.msk [vmem:[%s170 + $0x130] sm:$0xf] %vm10430, %v10370
      %10508 = vst.msk [vmem:[%s170 + $0x134] sm:$0xf] %vm10430, %v10371
      %10509 = vst.msk [vmem:[%s170 + $0x138] sm:$0xf] %vm10430, %v10372
      %10510 = vst.msk [vmem:[%s170 + $0x13c] sm:$0xf] %vm10430, %v10373
      %10511 = vst.msk [vmem:[%s170 + $0x140] sm:$0xf] %vm10430, %v10374
      %10512 = vst.msk [vmem:[%s170 + $0x144] sm:$0xf] %vm10430, %v10375
      %10513 = vst.msk [vmem:[%s170 + $0x148] sm:$0xf] %vm10430, %v10376
      %10514 = vst.msk [vmem:[%s170 + $0x14c] sm:$0xf] %vm10430, %v10377
      %10515 = vst.msk [vmem:[%s170 + $0x150] sm:$0xf] %vm10430, %v10378
      %10516 = vst.msk [vmem:[%s170 + $0x154] sm:$0xf] %vm10430, %v10379
      %10517 = vst.msk [vmem:[%s170 + $0x158] sm:$0xf] %vm10430, %v10380
      %10518 = vst.msk [vmem:[%s170 + $0x15c] sm:$0xf] %vm10430, %v10381
      %10519 = vst.msk [vmem:[%s170 + $0x160] sm:$0xf] %vm10430, %v10382
      %10520 = vst.msk [vmem:[%s170 + $0x164] sm:$0xf] %vm10430, %v10383
      %10521 = vst.msk [vmem:[%s170 + $0x168] sm:$0xf] %vm10430, %v10384
      %10522 = vst.msk [vmem:[%s170 + $0x16c] sm:$0xf] %vm10430, %v10385
      %10523 = vst.msk [vmem:[%s170 + $0x170] sm:$0xf] %vm10430, %v10386
      %10524 = vst.msk [vmem:[%s170 + $0x174] sm:$0xf] %vm10430, %v10387
      %10525 = vst.msk [vmem:[%s170 + $0x178] sm:$0xf] %vm10430, %v10388
      %10526 = vst.msk [vmem:[%s170 + $0x17c] sm:$0xf] %vm10430, %v10389
      %10527 = vst.msk [vmem:[%s170 + $0x180] sm:$0xf] %vm10430, %v10390
      %10528 = vst.msk [vmem:[%s170 + $0x184] sm:$0xf] %vm10430, %v10391
      %10529 = vst.msk [vmem:[%s170 + $0x188] sm:$0xf] %vm10430, %v10392
      %10530 = vst.msk [vmem:[%s170 + $0x18c] sm:$0xf] %vm10430, %v10393
      %10531 = vst.msk [vmem:[%s170 + $0x190] sm:$0xf] %vm10430, %v10394
      %10532 = vst.msk [vmem:[%s170 + $0x194] sm:$0xf] %vm10430, %v10395
      %10533 = vst.msk [vmem:[%s170 + $0x198] sm:$0xf] %vm10430, %v10396
      %10534 = vst.msk [vmem:[%s170 + $0x19c] sm:$0xf] %vm10430, %v10397
      %10535 = vst.msk [vmem:[%s170 + $0x1a0] sm:$0xf] %vm10430, %v10398
      %10536 = vst.msk [vmem:[%s170 + $0x1a4] sm:$0xf] %vm10430, %v10399
      %10537 = vst.msk [vmem:[%s170 + $0x1a8] sm:$0xf] %vm10430, %v10400
      %10538 = vst.msk [vmem:[%s170 + $0x1ac] sm:$0xf] %vm10430, %v10401
      %10539 = vst.msk [vmem:[%s170 + $0x1b0] sm:$0xf] %vm10430, %v10402
      %10540 = vst.msk [vmem:[%s170 + $0x1b4] sm:$0xf] %vm10430, %v10403
      %10541 = vst.msk [vmem:[%s170 + $0x1b8] sm:$0xf] %vm10430, %v10404
      %10542 = vst.msk [vmem:[%s170 + $0x1bc] sm:$0xf] %vm10430, %v10405
      %10543 = vst.msk [vmem:[%s170 + $0x1c0] sm:$0xf] %vm10430, %v10406
      %10544 = vst.msk [vmem:[%s170 + $0x1c4] sm:$0xf] %vm10430, %v10407
      %10545 = vst.msk [vmem:[%s170 + $0x1c8] sm:$0xf] %vm10430, %v10408
      %10546 = vst.msk [vmem:[%s170 + $0x1cc] sm:$0xf] %vm10430, %v10409
      %10547 = vst.msk [vmem:[%s170 + $0x1d0] sm:$0xf] %vm10430, %v10410
      %10548 = vst.msk [vmem:[%s170 + $0x1d4] sm:$0xf] %vm10430, %v10411
      %10549 = vst.msk [vmem:[%s170 + $0x1d8] sm:$0xf] %vm10430, %v10412
      %10550 = vst.msk [vmem:[%s170 + $0x1dc] sm:$0xf] %vm10430, %v10413
      %10551 = vst.msk [vmem:[%s170 + $0x1e0] sm:$0xf] %vm10430, %v10414
      %10552 = vst.msk [vmem:[%s170 + $0x1e4] sm:$0xf] %vm10430, %v10415
      %10553 = vst.msk [vmem:[%s170 + $0x1e8] sm:$0xf] %vm10430, %v10416
      %10554 = vst.msk [vmem:[%s170 + $0x1ec] sm:$0xf] %vm10430, %v10417
      %10555 = vst.msk [vmem:[%s170 + $0x1f0] sm:$0xf] %vm10430, %v10418
      %10556 = vst.msk [vmem:[%s170 + $0x1f4] sm:$0xf] %vm10430, %v10419
      %10557 = vst.msk [vmem:[%s170 + $0x1f8] sm:$0xf] %vm10430, %v10420
      %10558 = vst.msk [vmem:[%s170 + $0x1fc] sm:$0xf] %vm10430, %v10421
      %10559 = vst.msk [vmem:[%s170 + $0x200] sm:$0xf] %vm10430, %v10422
      %10560 = vst.msk [vmem:[%s170 + $0x204] sm:$0xf] %vm10430, %v10423
      %10561 = vst.msk [vmem:[%s170 + $0x208] sm:$0xf] %vm10430, %v10424
      %10562 = vst.msk [vmem:[%s170 + $0x20c] sm:$0xf] %vm10430, %v10425
      %10563 = vst.msk [vmem:[%s170 + $0x210] sm:$0xf] %vm10430, %v10426
      %10564 = vst.msk [vmem:[%s170 + $0x214] sm:$0xf] %vm10430, %v10427
      %10565 = vst.msk [vmem:[%s170 + $0x218] sm:$0xf] %vm10430, %v10428
      %10566 = vst.msk [vmem:[%s170 + $0x21c] sm:$0xf] %vm10430, %v10429
      %p10567 = scmp.lt.s32.totalorder %s14, 1
      %s10568 = scalar_select %p10567, %s14, 1
      %s10569 = smul.addr %s10568, 136
      %s10570 = smul.addr %s10569, 4
      %s10571 = scalar_lea.vmem %s3, %s10570
      // Predicated region
      $region33: #{hw_scale_ratio_forward.2} parent=31 // pred_check
        %p10572 = pneg %p100
      $region34: #{hw_scale_ratio_forward.2} parent=31 // pred_check_branch
        %10574 = sbr.rel (%p10572) target = $region36
      $region35: #{hw_scale_ratio_forward.2} parent=31 // pred_region
        _
      $region36: #{hw_scale_ratio_forward.2} parent=31 // pred_fallthru
        _
    $region32: #{hw_scale_ratio_forward.2} parent=5 // pred_fallthru
      _
    %p10575 = scmp.le.s32.totalorder 2, %s9
    // Predicated region
    $region37: #{hw_scale_ratio_forward.2} parent=5 // pred_check
      %p10576 = pneg %p10575
    $region38: #{hw_scale_ratio_forward.2} parent=5 // pred_check_branch
      %10578 = sbr.rel (%p10576) target = $region40
    $region39: #{hw_scale_ratio_forward.2} parent=5 // pred_region
      %s10579 = ssub.s32 %s9, 2
      // Predicated region
      $region41: #{hw_scale_ratio_forward.2} parent=39 // pred_check
        %p10580 = pneg %p106
      $region42: #{hw_scale_ratio_forward.2} parent=39 // pred_check_branch
        %10582 = sbr.rel (%p10580) target = $region44
      $region43: #{hw_scale_ratio_forward.2} parent=39 // pred_region
        %p10583 = scmp.lt.s32.totalorder %s15, 1
        %s10584 = scalar_select %p10583, %s15, 1
        %s10585 = smul.addr %s10584, 136
        %s10586 = smul.addr %s10585, 4
        %s10587 = scalar_lea.vmem %s3, %s10586
      $region44: #{hw_scale_ratio_forward.2} parent=39 // pred_fallthru
        _
    $region40: #{hw_scale_ratio_forward.2} parent=5 // pred_fallthru
      _
  $region6: #{hw_scale_ratio_forward.2} parent=0 // loop_footer
    %s13 = sadd.s32 1, %s9
  $region7: #{hw_scale_ratio_forward.2} parent=0 // loop_footer_branch
    %8 = sbr.rel target = $region3
  $region8: #{hw_scale_ratio_forward.2} parent=0 // loop_exit
    _

</llo_original>
